<compile_context>
chip_gen: v6e
topology: v6e:2x2x1
jax: 0.10.0
libtpu: 0.0.40
codegen_flags: <defaults>
</compile_context>

<pallas_src>
import functools

import jax
import jax.numpy as jnp
from jax.experimental import pallas as pl
from jax.experimental.pallas import tpu as pltpu

LRELU_SLOPE = 0.1
MAX_TILE_T = 512      # output-time lanes per grid step (multiple of 128)
HALO_LANES = 128      # lane-aligned halo block borrowed from the next tile


# ----------------------------------------------------------------------------
# Pallas kernel: 1D convolution as a single im2col matmul per time tile.
#   x_ref  : (1, Cin, T_blk)            bf16   (time on lanes, pre-padded)
#   xh_ref : (1, Cin, 128)              bf16   (halo = start of next tile; tiled path only)
#   w_ref  : (Cout, K*Cin)              bf16   (pre-flattened weight)
#   b_ref  : (Cout, 1)                  f32
#   res_ref: (1, Cout, t_out)           bf16   (optional fused residual)
#   o_ref  : (1, Cout, t_out)
# ----------------------------------------------------------------------------
def _conv1d_kernel(*refs, K, dilation, t_out, in_lrelu, out_tanh,
                   has_halo, has_res):
    it = iter(refs)
    x_ref = next(it)
    xh_ref = next(it) if has_halo else None
    w_ref = next(it)
    b_ref = next(it)
    res_ref = next(it) if has_res else None
    o_ref = next(it)

    x = x_ref[0]                                        # (Cin, T_blk) bf16
    if has_halo:
        x = jnp.concatenate([x, xh_ref[0]], axis=-1)    # (Cin, T_blk + 128)

    xf = x.astype(jnp.float32)                          # element-wise math in f32
    if in_lrelu:
        xf = jnp.where(xf > 0, xf, LRELU_SLOPE * xf)
    xb = xf.astype(jnp.bfloat16)                        # MXU operands in bf16

    # im2col: stack K shifted views along the contraction (sublane) axis.
    cols = [xb[:, k * dilation:k * dilation + t_out] for k in range(K)]
    x_col = cols[0] if K == 1 else jnp.concatenate(cols, axis=0)   # (K*Cin, t_out)

    # single MXU contraction over K*Cin, f32 accumulation, lane-dense output.
    acc = jnp.dot(w_ref[...], x_col, preferred_element_type=jnp.float32)
    acc = acc + b_ref[...].astype(jnp.float32)          # (Cout, 1) broadcast
    if has_res:
        acc = acc + res_ref[0].astype(jnp.float32)      # fused residual add
    if out_tanh:
        acc = jnp.tanh(acc)
    o_ref[0] = acc.astype(o_ref.dtype)


def conv1d_pallas(x, w_flat, b, *, dilation=1, pad_l=0, pad_r=0,
                  in_lrelu=False, out_tanh=False, residual=None,
                  out_dtype=jnp.bfloat16):
    """x: [B, Cin, T] (unpadded, time on lanes), w_flat: [Cout, K*Cin] bf16,
    b: [Cout].  Returns [B, Cout, T + pad_l + pad_r - (K-1)*dilation]."""
    B, Cin, T = x.shape
    Cout, KC = w_flat.shape
    assert KC % Cin == 0
    K = KC // Cin
    halo = (K - 1) * dilation
    t_out = T + pad_l + pad_r - halo
    assert t_out >= 1

    tiled = t_out > MAX_TILE_T
    if tiled:
        assert halo <= HALO_LANES
        tile = MAX_TILE_T
        nt = -(-t_out // tile)
        t_in_pad = nt * tile + HALO_LANES     # covers every tile + its halo view
    else:
        tile = t_out
        nt = 1
        t_in_pad = T + pad_l + pad_r

    # One combined pad per conv ('same' padding + alignment padding).
    # TODO(synk): fold the 'same' padding into in-kernel masking to drop this
    #             extra HBM pass entirely.
    xp = jnp.pad(x.astype(jnp.bfloat16),
                 ((0, 0), (0, 0), (pad_l, t_in_pad - T - pad_l)))
    b2 = b.reshape(Cout, 1).astype(jnp.float32)

    kern = functools.partial(_conv1d_kernel, K=K, dilation=dilation,
                             t_out=tile, in_lrelu=in_lrelu, out_tanh=out_tanh,
                             has_halo=tiled, has_res=residual is not None)

    if tiled:
        grid = (B, nt)
        halo_blk = tile // HALO_LANES
        in_specs = [
            pl.BlockSpec((1, Cin, tile), lambda bi, ti: (bi, 0, ti)),
            pl.BlockSpec((1, Cin, HALO_LANES),
                         lambda bi, ti: (bi, 0, (ti + 1) * halo_blk)),
            pl.BlockSpec((Cout, KC), lambda bi, ti: (0, 0)),
            pl.BlockSpec((Cout, 1), lambda bi, ti: (0, 0)),
        ]
        args = [xp, xp, w_flat, b2]
        if residual is not None:
            in_specs.append(pl.BlockSpec((1, Cout, tile),
                                         lambda bi, ti: (bi, 0, ti)))
            args.append(residual.astype(jnp.bfloat16))
        out_spec = pl.BlockSpec((1, Cout, tile), lambda bi, ti: (bi, 0, ti))
        dims = ("parallel", "parallel")
    else:
        grid = (B,)
        in_specs = [
            pl.BlockSpec((1, Cin, t_in_pad), lambda bi: (bi, 0, 0)),
            pl.BlockSpec((Cout, KC), lambda bi: (0, 0)),
            pl.BlockSpec((Cout, 1), lambda bi: (0, 0)),
        ]
        args = [xp, w_flat, b2]
        if residual is not None:
            in_specs.append(pl.BlockSpec((1, Cout, t_out),
                                         lambda bi: (bi, 0, 0)))
            args.append(residual.astype(jnp.bfloat16))
        out_spec = pl.BlockSpec((1, Cout, t_out), lambda bi: (bi, 0, 0))
        dims = ("parallel",)

    # TODO(synk): consider pipeline_mode=pl.Buffered(3) on the input specs for
    #             the small early-stage tiles where DMA latency is exposed.
    return pl.pallas_call(
        kern,
        out_shape=jax.ShapeDtypeStruct((B, Cout, t_out), out_dtype),
        grid=grid,
        in_specs=in_specs,
        out_specs=out_spec,
        compiler_params=pltpu.CompilerParams(dimension_semantics=dims),
    )(*args)


# ----------------------------------------------------------------------------
# Transposed conv as a polyphase decomposition (no zero-insertion).
# ----------------------------------------------------------------------------
def conv_transpose1d_pallas(x, w, b, *, stride, pad, in_lrelu):
    """ConvTranspose1d(stride, K, padding=pad) via `stride` stride-1 sub-convs
    on the un-dilated input, then lane-interleave of the phase outputs.
    `w` is stored in zero-insertion-conv form [K, Cin, Cout]."""
    B, Cin, T = x.shape
    K, _, Cout = w.shape
    assert K - 2 * pad == stride          # => output length == T * stride
    pprime = K - 1 - pad
    phase_out = []
    for r in range(stride):
        k0 = (pprime - r) % stride
        taps = list(range(k0, K, stride))
        n_taps = len(taps)
        base = (r + k0 - pprime) // stride
        w_r = jnp.stack([w[k] for k in taps], axis=0)            # (n_taps,Cin,Cout)
        w_r_flat = w_r.reshape(n_taps * Cin, Cout).T.astype(jnp.bfloat16)
        off = max(0, base)
        p_l = max(0, -base)
        p_r = base + n_taps - 1
        assert p_r >= 0
        x_r = x if off == 0 else x[:, :, off:]
        # leaky-relu is fused into the sub-conv (applied to the real samples).
        phase_out.append(conv1d_pallas(x_r, w_r_flat, b, dilation=1,
                                       pad_l=p_l, pad_r=p_r,
                                       in_lrelu=in_lrelu))
    # interleave: y[..., q*stride + r] = phase_out[r][..., q]
    return jnp.stack(phase_out, axis=-1).reshape(B, Cout, T * stride)


# ----------------------------------------------------------------------------
# ResBlock (residual add fused into the second conv's epilogue)
# ----------------------------------------------------------------------------
def resblock(x, params, kernel_size, dilations):
    for d, (w1, b1, w2, b2) in zip(dilations, params):
        p1 = d * (kernel_size - 1) // 2
        xt = conv1d_pallas(x, w1, b1, dilation=d, pad_l=p1, pad_r=p1,
                           in_lrelu=True)
        p2 = (kernel_size - 1) // 2
        x = conv1d_pallas(xt, w2, b2, dilation=1, pad_l=p2, pad_r=p2,
                          in_lrelu=True, residual=x)
    return x


# ----------------------------------------------------------------------------
# HiFiGAN generator (synthetic small config, deterministic weights)
# ----------------------------------------------------------------------------
class HiFiGANPallas:
    def __init__(self, key, *, n_codebooks=2, vocab_size=16, emb_dim=32,
                 upsample_rates=(2, 2), upsample_kernel_sizes=(4, 4),
                 resblock_kernel_sizes=(3, 5),
                 resblock_dilations=((1, 3), (1, 3))):
        self.n_codebooks = n_codebooks
        self.upsample_rates = upsample_rates
        self.upsample_kernel_sizes = upsample_kernel_sizes
        self.resblock_kernel_sizes = resblock_kernel_sizes
        self.resblock_dilations = resblock_dilations

        def nxt():
            nonlocal key
            key, sub = jax.random.split(key)
            return sub

        def w_init(shape):
            return 0.05 * jax.random.normal(nxt(), shape, jnp.float32)

        def flat(w):                       # (K, Cin, Cout) -> (Cout, K*Cin) bf16
            K, Cin, Cout = w.shape
            return w.reshape(K * Cin, Cout).T.astype(jnp.bfloat16)

        # token embeddings (one table per codebook layer), summed over layers
        self.emb = [w_init((vocab_size, emb_dim)) for _ in range(n_codebooks)]

        # conv_pre: kernel 7, emb_dim -> emb_dim
        self.w_pre = flat(w_init((7, emb_dim, emb_dim)))
        self.b_pre = jnp.zeros((emb_dim,), jnp.float32)

        # upsample stages + MRF resblocks
        self.ups, self.res = [], []
        ch = emb_dim
        for i, (u, k) in enumerate(zip(upsample_rates, upsample_kernel_sizes)):
            cout = emb_dim // (2 ** (i + 1))
            self.ups.append((w_init((k, ch, cout)),            # conv-form weight
                             jnp.zeros((cout,), jnp.float32)))
            stage = []
            for kr, dils in zip(resblock_kernel_sizes, resblock_dilations):
                blocks = []
                for _d in dils:
                    blocks.append((flat(w_init((kr, cout, cout))),
                                   jnp.zeros((cout,), jnp.float32),
                                   flat(w_init((kr, cout, cout))),
                                   jnp.zeros((cout,), jnp.float32)))
                stage.append(blocks)
            self.res.append(stage)
            ch = cout

        # conv_post: kernel 7, ch -> 1
        self.w_post = flat(w_init((7, ch, 1)))
        self.b_post = jnp.zeros((1,), jnp.float32)

    def __call__(self, toks):
        """toks: [B, T, N] int tokens -> wav: [B, T * prod(upsample_rates)]"""
        # embedding sum over codebook layers (glue gather), then [B, C, T] bf16
        x = jnp.zeros(toks.shape[:2] + (self.emb[0].shape[1],), jnp.float32)
        for n in range(self.n_codebooks):
            x = x + jnp.take(self.emb[n], toks[:, :, n], axis=0)
        x = jnp.transpose(x, (0, 2, 1)).astype(jnp.bfloat16)

        # conv_pre
        x = conv1d_pallas(x, self.w_pre, self.b_pre, pad_l=3, pad_r=3)

        n_res = len(self.resblock_kernel_sizes)
        for i, (u, k) in enumerate(zip(self.upsample_rates,
                                       self.upsample_kernel_sizes)):
            w_up, b_up = self.ups[i]
            x = conv_transpose1d_pallas(x, w_up, b_up, stride=u,
                                        pad=(k - u) // 2, in_lrelu=True)
            xs = None
            for j in range(n_res):
                r = resblock(x, self.res[i][j],
                             self.resblock_kernel_sizes[j],
                             self.resblock_dilations[j])
                xs = r if xs is None else xs + r
            # TODO(synk): fuse the MRF sum / (1/n_res) scale into the last
            #             resblock conv's epilogue to drop these glue passes.
            x = (xs.astype(jnp.float32) / float(n_res)).astype(jnp.bfloat16)

        # conv_post + tanh, fused in the Pallas kernel; lane-dense (B, 1, T) out
        x = conv1d_pallas(x, self.w_post, self.b_post, pad_l=3, pad_r=3,
                          in_lrelu=True, out_tanh=True, out_dtype=jnp.float32)
        # model(toks)[0].squeeze(1) -> drop the single channel dim
        return x[:, 0, :]


if __name__ == "__main__":
    key = jax.random.PRNGKey(0)
    k_model, k_toks = jax.random.split(key)

    # --- model forward at small shapes (exercises the single-block path) ----
    B, T, N = 2, 8, 2
    toks = jax.random.randint(k_toks, (B, T, N), 0, 16, dtype=jnp.int32)

    model = HiFiGANPallas(k_model)
    wav = jax.jit(model.__call__)(toks)
    wav = jax.block_until_ready(wav)

    expected_T = T * 2 * 2  # product of upsample rates
    assert wav.shape == (B, expected_T), wav.shape
    assert bool(jnp.all(jnp.isfinite(wav)))

    # --- exercise the time-tiled (halo) path of the conv kernel -------------
    Cin, Cout, K, Tlong = 32, 16, 7, 1200      # 3 time tiles, last one partial
    kx, kw = jax.random.split(jax.random.PRNGKey(1))
    xt = (0.1 * jax.random.normal(kx, (1, Cin, Tlong), jnp.float32)
          ).astype(jnp.bfloat16)
    wt = 0.05 * jax.random.normal(kw, (K, Cin, Cout), jnp.float32)
    bt = jnp.zeros((Cout,), jnp.float32)
    w_flat = wt.reshape(K * Cin, Cout).T.astype(jnp.bfloat16)
    y = conv1d_pallas(xt, w_flat, bt, pad_l=3, pad_r=3, out_dtype=jnp.float32)
    y = jax.block_until_ready(y)
    xpad = jnp.pad(xt.astype(jnp.float32), ((0, 0), (0, 0), (3, 3)))
    ref = sum(jnp.einsum('io,bit->bot', wt[k], xpad[:, :, k:k + Tlong])
              for k in range(K))
    assert y.shape == (1, Cout, Tlong), y.shape
    err = float(jnp.max(jnp.abs(y - ref)))
    assert err < 5e-2, err

    print("KERNEL_OK")
</pallas_src>

<mosaic_0001>
module attributes {stable_mosaic.version = 11 : i64} {
  func.func @_conv1d_kernel(%arg0: i32, %arg1: memref<1x32x14xbf16, #tpu.memory_space<vmem>>, %arg2: memref<32x224xbf16, #tpu.memory_space<vmem>>, %arg3: memref<32x1xf32, #tpu.memory_space<vmem>>, %arg4: memref<1x32x8xbf16, #tpu.memory_space<vmem>>) attributes {dimension_semantics = [#tpu.dimension_semantics<parallel>], iteration_bounds = array<i64: 2>, scalar_prefetch = 0 : i64, scratch_operands = 0 : i64, tpu.core_type = #tpu.core_type<tc>, window_params = [{transform_indices = @transform_0, window_bounds = array<i64: 1, 32, 14>}, {pipeline_mode = #tpu.pipeline_mode<synchronous>, transform_indices = @transform_1, window_bounds = array<i64: 32, 224>}, {pipeline_mode = #tpu.pipeline_mode<synchronous>, transform_indices = @transform_2, window_bounds = array<i64: 32, 1>}, {transform_indices = @transform_3, window_bounds = array<i64: 1, 32, 8>}]} {
    %c0 = arith.constant 0 : index
    %c0_0 = arith.constant 0 : index
    %c0_1 = arith.constant 0 : index
    %0 = vector.load %arg1[%c0, %c0_0, %c0_1] : memref<1x32x14xbf16, #tpu.memory_space<vmem>>, vector<1x32x14xbf16>
    %1 = vector.shape_cast %0 : vector<1x32x14xbf16> to vector<32x14xbf16>
    %2 = arith.extf %1 : vector<32x14xbf16> to vector<32x14xf32>
    %3 = arith.truncf %2 : vector<32x14xf32> to vector<32x14xbf16>
    %4 = vector.extract_strided_slice %3 {offsets = [0, 0], sizes = [32, 8], strides = [1, 1]} : vector<32x14xbf16> to vector<32x8xbf16>
    %5 = vector.extract_strided_slice %3 {offsets = [0, 1], sizes = [32, 8], strides = [1, 1]} : vector<32x14xbf16> to vector<32x8xbf16>
    %6 = vector.extract_strided_slice %3 {offsets = [0, 2], sizes = [32, 8], strides = [1, 1]} : vector<32x14xbf16> to vector<32x8xbf16>
    %7 = vector.extract_strided_slice %3 {offsets = [0, 3], sizes = [32, 8], strides = [1, 1]} : vector<32x14xbf16> to vector<32x8xbf16>
    %8 = vector.extract_strided_slice %3 {offsets = [0, 4], sizes = [32, 8], strides = [1, 1]} : vector<32x14xbf16> to vector<32x8xbf16>
    %9 = vector.extract_strided_slice %3 {offsets = [0, 5], sizes = [32, 8], strides = [1, 1]} : vector<32x14xbf16> to vector<32x8xbf16>
    %10 = vector.extract_strided_slice %3 {offsets = [0, 6], sizes = [32, 8], strides = [1, 1]} : vector<32x14xbf16> to vector<32x8xbf16>
    %11 = tpu.concatenate %4, %5, %6, %7, %8, %9, %10 in 0 : vector<32x8xbf16>, vector<32x8xbf16>, vector<32x8xbf16>, vector<32x8xbf16>, vector<32x8xbf16>, vector<32x8xbf16>, vector<32x8xbf16> -> vector<224x8xbf16>
    %c0_2 = arith.constant 0 : index
    %c0_3 = arith.constant 0 : index
    %12 = vector.load %arg2[%c0_2, %c0_3] : memref<32x224xbf16, #tpu.memory_space<vmem>>, vector<32x224xbf16>
    %cst = arith.constant dense<0.000000e+00> : vector<32x8xf32>
    %13 = tpu.matmul %12, %11, %cst {dimension_numbers = #tpu.dot_dimension_numbers<[1], [0], [0], [1], [0, 0, 1, 1], [], []>} : vector<32x224xbf16>, vector<224x8xbf16>, vector<32x8xf32> -> vector<32x8xf32>
    %c0_4 = arith.constant 0 : index
    %c0_5 = arith.constant 0 : index
    %14 = vector.load %arg3[%c0_4, %c0_5] : memref<32x1xf32, #tpu.memory_space<vmem>>, vector<32x1xf32>
    %15 = vector.broadcast %14 : vector<32x1xf32> to vector<32x8xf32>
    %16 = arith.addf %13, %15 : vector<32x8xf32>
    %17 = arith.truncf %16 : vector<32x8xf32> to vector<32x8xbf16>
    %c0_6 = arith.constant 0 : index
    %c0_7 = arith.constant 0 : index
    %c0_8 = arith.constant 0 : index
    %18 = vector.load %arg4[%c0_6, %c0_7, %c0_8] : memref<1x32x8xbf16, #tpu.memory_space<vmem>>, vector<1x32x8xbf16>
    %19 = vector.shape_cast %18 : vector<1x32x8xbf16> to vector<32x8xbf16>
    %20 = vector.shape_cast %17 : vector<32x8xbf16> to vector<1x32x8xbf16>
    tpu.vector_store %arg4[%c0_6, %c0_7, %c0_8], %20 {strides = array<i32>} : memref<1x32x8xbf16, #tpu.memory_space<vmem>>, vector<1x32x8xbf16>,
    return
  }
  func.func @transform_0(%arg0: i32) -> (i32, i32, i32) {
    %c0_i32 = arith.constant 0 : i32
    %c0_i32_0 = arith.constant 0 : i32
    %c0_i32_1 = arith.constant 0 : i32
    return %arg0, %c0_i32, %c0_i32_0 : i32, i32, i32
  }
  func.func @transform_1(%arg0: i32) -> (i32, i32) {
    %c0_i32 = arith.constant 0 : i32
    %c0_i32_0 = arith.constant 0 : i32
    %c0_i32_1 = arith.constant 0 : i32
    return %c0_i32, %c0_i32_0 : i32, i32
  }
  func.func @transform_2(%arg0: i32) -> (i32, i32) {
    %c0_i32 = arith.constant 0 : i32
    %c0_i32_0 = arith.constant 0 : i32
    %c0_i32_1 = arith.constant 0 : i32
    return %c0_i32, %c0_i32_0 : i32, i32
  }
  func.func @transform_3(%arg0: i32) -> (i32, i32, i32) {
    %c0_i32 = arith.constant 0 : i32
    %c0_i32_0 = arith.constant 0 : i32
    %c0_i32_1 = arith.constant 0 : i32
    return %arg0, %c0_i32, %c0_i32_0 : i32, i32, i32
  }
}

module attributes {stable_mosaic.version = 11 : i64} {
  func.func @_conv1d_kernel(%arg0: i32, %arg1: memref<1x32x9xbf16, #tpu.memory_space<vmem>>, %arg2: memref<16x64xbf16, #tpu.memory_space<vmem>>, %arg3: memref<16x1xf32, #tpu.memory_space<vmem>>, %arg4: memref<1x16x8xbf16, #tpu.memory_space<vmem>>) attributes {dimension_semantics = [#tpu.dimension_semantics<parallel>], iteration_bounds = array<i64: 2>, scalar_prefetch = 0 : i64, scratch_operands = 0 : i64, tpu.core_type = #tpu.core_type<tc>, window_params = [{transform_indices = @transform_0, window_bounds = array<i64: 1, 32, 9>}, {pipeline_mode = #tpu.pipeline_mode<synchronous>, transform_indices = @transform_1, window_bounds = array<i64: 16, 64>}, {pipeline_mode = #tpu.pipeline_mode<synchronous>, transform_indices = @transform_2, window_bounds = array<i64: 16, 1>}, {transform_indices = @transform_3, window_bounds = array<i64: 1, 16, 8>}]} {
    %c0 = arith.constant 0 : index
    %c0_0 = arith.constant 0 : index
    %c0_1 = arith.constant 0 : index
    %0 = vector.load %arg1[%c0, %c0_0, %c0_1] : memref<1x32x9xbf16, #tpu.memory_space<vmem>>, vector<1x32x9xbf16>
    %1 = vector.shape_cast %0 : vector<1x32x9xbf16> to vector<32x9xbf16>
    %2 = arith.extf %1 : vector<32x9xbf16> to vector<32x9xf32>
    %cst = arith.constant 0.000000e+00 : f32
    %3 = vector.broadcast %cst : f32 to vector<32x9xf32>
    %4 = arith.cmpf ogt, %2, %3 : vector<32x9xf32>
    %cst_2 = arith.constant 1.000000e-01 : f32
    %5 = vector.broadcast %cst_2 : f32 to vector<32x9xf32>
    %6 = arith.mulf %5, %2 : vector<32x9xf32>
    %7 = arith.select %4, %2, %6 : vector<32x9xi1>, vector<32x9xf32>
    %8 = arith.truncf %7 : vector<32x9xf32> to vector<32x9xbf16>
    %9 = vector.extract_strided_slice %8 {offsets = [0, 0], sizes = [32, 8], strides = [1, 1]} : vector<32x9xbf16> to vector<32x8xbf16>
    %10 = vector.extract_strided_slice %8 {offsets = [0, 1], sizes = [32, 8], strides = [1, 1]} : vector<32x9xbf16> to vector<32x8xbf16>
    %11 = tpu.concatenate %9, %10 in 0 : vector<32x8xbf16>, vector<32x8xbf16> -> vector<64x8xbf16>
    %c0_3 = arith.constant 0 : index
    %c0_4 = arith.constant 0 : index
    %12 = vector.load %arg2[%c0_3, %c0_4] : memref<16x64xbf16, #tpu.memory_space<vmem>>, vector<16x64xbf16>
    %cst_5 = arith.constant dense<0.000000e+00> : vector<16x8xf32>
    %13 = tpu.matmul %12, %11, %cst_5 {dimension_numbers = #tpu.dot_dimension_numbers<[1], [0], [0], [1], [0, 0, 1, 1], [], []>} : vector<16x64xbf16>, vector<64x8xbf16>, vector<16x8xf32> -> vector<16x8xf32>
    %c0_6 = arith.constant 0 : index
    %c0_7 = arith.constant 0 : index
    %14 = vector.load %arg3[%c0_6, %c0_7] : memref<16x1xf32, #tpu.memory_space<vmem>>, vector<16x1xf32>
    %15 = vector.broadcast %14 : vector<16x1xf32> to vector<16x8xf32>
    %16 = arith.addf %13, %15 : vector<16x8xf32>
    %17 = arith.truncf %16 : vector<16x8xf32> to vector<16x8xbf16>
    %c0_8 = arith.constant 0 : index
    %c0_9 = arith.constant 0 : index
    %c0_10 = arith.constant 0 : index
    %18 = vector.load %arg4[%c0_8, %c0_9, %c0_10] : memref<1x16x8xbf16, #tpu.memory_space<vmem>>, vector<1x16x8xbf16>
    %19 = vector.shape_cast %18 : vector<1x16x8xbf16> to vector<16x8xbf16>
    %20 = vector.shape_cast %17 : vector<16x8xbf16> to vector<1x16x8xbf16>
    tpu.vector_store %arg4[%c0_8, %c0_9, %c0_10], %20 {strides = array<i32>} : memref<1x16x8xbf16, #tpu.memory_space<vmem>>, vector<1x16x8xbf16>,
    return
  }
  func.func @transform_0(%arg0: i32) -> (i32, i32, i32) {
    %c0_i32 = arith.constant 0 : i32
    %c0_i32_0 = arith.constant 0 : i32
    %c0_i32_1 = arith.constant 0 : i32
    return %arg0, %c0_i32, %c0_i32_0 : i32, i32, i32
  }
  func.func @transform_1(%arg0: i32) -> (i32, i32) {
    %c0_i32 = arith.constant 0 : i32
    %c0_i32_0 = arith.constant 0 : i32
    %c0_i32_1 = arith.constant 0 : i32
    return %c0_i32, %c0_i32_0 : i32, i32
  }
  func.func @transform_2(%arg0: i32) -> (i32, i32) {
    %c0_i32 = arith.constant 0 : i32
    %c0_i32_0 = arith.constant 0 : i32
    %c0_i32_1 = arith.constant 0 : i32
    return %c0_i32, %c0_i32_0 : i32, i32
  }
  func.func @transform_3(%arg0: i32) -> (i32, i32, i32) {
    %c0_i32 = arith.constant 0 : i32
    %c0_i32_0 = arith.constant 0 : i32
    %c0_i32_1 = arith.constant 0 : i32
    return %arg0, %c0_i32, %c0_i32_0 : i32, i32, i32
  }
}

module attributes {stable_mosaic.version = 11 : i64} {
  func.func @_conv1d_kernel(%arg0: i32, %arg1: memref<1x16x20xbf16, #tpu.memory_space<vmem>>, %arg2: memref<16x80xbf16, #tpu.memory_space<vmem>>, %arg3: memref<16x1xf32, #tpu.memory_space<vmem>>, %arg4: memref<1x16x16xbf16, #tpu.memory_space<vmem>>) attributes {dimension_semantics = [#tpu.dimension_semantics<parallel>], iteration_bounds = array<i64: 2>, scalar_prefetch = 0 : i64, scratch_operands = 0 : i64, tpu.core_type = #tpu.core_type<tc>, window_params = [{transform_indices = @transform_0, window_bounds = array<i64: 1, 16, 20>}, {pipeline_mode = #tpu.pipeline_mode<synchronous>, transform_indices = @transform_1, window_bounds = array<i64: 16, 80>}, {pipeline_mode = #tpu.pipeline_mode<synchronous>, transform_indices = @transform_2, window_bounds = array<i64: 16, 1>}, {transform_indices = @transform_3, window_bounds = array<i64: 1, 16, 16>}]} {
    %c0 = arith.constant 0 : index
    %c0_0 = arith.constant 0 : index
    %c0_1 = arith.constant 0 : index
    %0 = vector.load %arg1[%c0, %c0_0, %c0_1] : memref<1x16x20xbf16, #tpu.memory_space<vmem>>, vector<1x16x20xbf16>
    %1 = vector.shape_cast %0 : vector<1x16x20xbf16> to vector<16x20xbf16>
    %2 = arith.extf %1 : vector<16x20xbf16> to vector<16x20xf32>
    %cst = arith.constant 0.000000e+00 : f32
    %3 = vector.broadcast %cst : f32 to vector<16x20xf32>
    %4 = arith.cmpf ogt, %2, %3 : vector<16x20xf32>
    %cst_2 = arith.constant 1.000000e-01 : f32
    %5 = vector.broadcast %cst_2 : f32 to vector<16x20xf32>
    %6 = arith.mulf %5, %2 : vector<16x20xf32>
    %7 = arith.select %4, %2, %6 : vector<16x20xi1>, vector<16x20xf32>
    %8 = arith.truncf %7 : vector<16x20xf32> to vector<16x20xbf16>
    %9 = vector.extract_strided_slice %8 {offsets = [0, 0], sizes = [16, 16], strides = [1, 1]} : vector<16x20xbf16> to vector<16x16xbf16>
    %10 = vector.extract_strided_slice %8 {offsets = [0, 1], sizes = [16, 16], strides = [1, 1]} : vector<16x20xbf16> to vector<16x16xbf16>
    %11 = vector.extract_strided_slice %8 {offsets = [0, 2], sizes = [16, 16], strides = [1, 1]} : vector<16x20xbf16> to vector<16x16xbf16>
    %12 = vector.extract_strided_slice %8 {offsets = [0, 3], sizes = [16, 16], strides = [1, 1]} : vector<16x20xbf16> to vector<16x16xbf16>
    %13 = vector.extract_strided_slice %8 {offsets = [0, 4], sizes = [16, 16], strides = [1, 1]} : vector<16x20xbf16> to vector<16x16xbf16>
    %14 = tpu.concatenate %9, %10, %11, %12, %13 in 0 : vector<16x16xbf16>, vector<16x16xbf16>, vector<16x16xbf16>, vector<16x16xbf16>, vector<16x16xbf16> -> vector<80x16xbf16>
    %c0_3 = arith.constant 0 : index
    %c0_4 = arith.constant 0 : index
    %15 = vector.load %arg2[%c0_3, %c0_4] : memref<16x80xbf16, #tpu.memory_space<vmem>>, vector<16x80xbf16>
    %cst_5 = arith.constant dense<0.000000e+00> : vector<16x16xf32>
    %16 = tpu.matmul %15, %14, %cst_5 {dimension_numbers = #tpu.dot_dimension_numbers<[1], [0], [0], [1], [0, 0, 1, 1], [], []>} : vector<16x80xbf16>, vector<80x16xbf16>, vector<16x16xf32> -> vector<16x16xf32>
    %c0_6 = arith.constant 0 : index
    %c0_7 = arith.constant 0 : index
    %17 = vector.load %arg3[%c0_6, %c0_7] : memref<16x1xf32, #tpu.memory_space<vmem>>, vector<16x1xf32>
    %18 = vector.broadcast %17 : vector<16x1xf32> to vector<16x16xf32>
    %19 = arith.addf %16, %18 : vector<16x16xf32>
    %20 = arith.truncf %19 : vector<16x16xf32> to vector<16x16xbf16>
    %c0_8 = arith.constant 0 : index
    %c0_9 = arith.constant 0 : index
    %c0_10 = arith.constant 0 : index
    %21 = vector.load %arg4[%c0_8, %c0_9, %c0_10] : memref<1x16x16xbf16, #tpu.memory_space<vmem>>, vector<1x16x16xbf16>
    %22 = vector.shape_cast %21 : vector<1x16x16xbf16> to vector<16x16xbf16>
    %23 = vector.shape_cast %20 : vector<16x16xbf16> to vector<1x16x16xbf16>
    tpu.vector_store %arg4[%c0_8, %c0_9, %c0_10], %23 {strides = array<i32>} : memref<1x16x16xbf16, #tpu.memory_space<vmem>>, vector<1x16x16xbf16>,
    return
  }
  func.func @transform_0(%arg0: i32) -> (i32, i32, i32) {
    %c0_i32 = arith.constant 0 : i32
    %c0_i32_0 = arith.constant 0 : i32
    %c0_i32_1 = arith.constant 0 : i32
    return %arg0, %c0_i32, %c0_i32_0 : i32, i32, i32
  }
  func.func @transform_1(%arg0: i32) -> (i32, i32) {
    %c0_i32 = arith.constant 0 : i32
    %c0_i32_0 = arith.constant 0 : i32
    %c0_i32_1 = arith.constant 0 : i32
    return %c0_i32, %c0_i32_0 : i32, i32
  }
  func.func @transform_2(%arg0: i32) -> (i32, i32) {
    %c0_i32 = arith.constant 0 : i32
    %c0_i32_0 = arith.constant 0 : i32
    %c0_i32_1 = arith.constant 0 : i32
    return %c0_i32, %c0_i32_0 : i32, i32
  }
  func.func @transform_3(%arg0: i32) -> (i32, i32, i32) {
    %c0_i32 = arith.constant 0 : i32
    %c0_i32_0 = arith.constant 0 : i32
    %c0_i32_1 = arith.constant 0 : i32
    return %arg0, %c0_i32, %c0_i32_0 : i32, i32, i32
  }
}

module attributes {stable_mosaic.version = 11 : i64} {
  func.func @_conv1d_kernel(%arg0: i32, %arg1: memref<1x16x20xbf16, #tpu.memory_space<vmem>>, %arg2: memref<16x80xbf16, #tpu.memory_space<vmem>>, %arg3: memref<16x1xf32, #tpu.memory_space<vmem>>, %arg4: memref<1x16x16xbf16, #tpu.memory_space<vmem>>, %arg5: memref<1x16x16xbf16, #tpu.memory_space<vmem>>) attributes {dimension_semantics = [#tpu.dimension_semantics<parallel>], iteration_bounds = array<i64: 2>, scalar_prefetch = 0 : i64, scratch_operands = 0 : i64, tpu.core_type = #tpu.core_type<tc>, window_params = [{transform_indices = @transform_0, window_bounds = array<i64: 1, 16, 20>}, {pipeline_mode = #tpu.pipeline_mode<synchronous>, transform_indices = @transform_1, window_bounds = array<i64: 16, 80>}, {pipeline_mode = #tpu.pipeline_mode<synchronous>, transform_indices = @transform_2, window_bounds = array<i64: 16, 1>}, {transform_indices = @transform_3, window_bounds = array<i64: 1, 16, 16>}, {transform_indices = @transform_4, window_bounds = array<i64: 1, 16, 16>}]} {
    %c0 = arith.constant 0 : index
    %c0_0 = arith.constant 0 : index
    %c0_1 = arith.constant 0 : index
    %0 = vector.load %arg1[%c0, %c0_0, %c0_1] : memref<1x16x20xbf16, #tpu.memory_space<vmem>>, vector<1x16x20xbf16>
    %1 = vector.shape_cast %0 : vector<1x16x20xbf16> to vector<16x20xbf16>
    %2 = arith.extf %1 : vector<16x20xbf16> to vector<16x20xf32>
    %cst = arith.constant 0.000000e+00 : f32
    %3 = vector.broadcast %cst : f32 to vector<16x20xf32>
    %4 = arith.cmpf ogt, %2, %3 : vector<16x20xf32>
    %cst_2 = arith.constant 1.000000e-01 : f32
    %5 = vector.broadcast %cst_2 : f32 to vector<16x20xf32>
    %6 = arith.mulf %5, %2 : vector<16x20xf32>
    %7 = arith.select %4, %2, %6 : vector<16x20xi1>, vector<16x20xf32>
    %8 = arith.truncf %7 : vector<16x20xf32> to vector<16x20xbf16>
    %9 = vector.extract_strided_slice %8 {offsets = [0, 0], sizes = [16, 16], strides = [1, 1]} : vector<16x20xbf16> to vector<16x16xbf16>
    %10 = vector.extract_strided_slice %8 {offsets = [0, 1], sizes = [16, 16], strides = [1, 1]} : vector<16x20xbf16> to vector<16x16xbf16>
    %11 = vector.extract_strided_slice %8 {offsets = [0, 2], sizes = [16, 16], strides = [1, 1]} : vector<16x20xbf16> to vector<16x16xbf16>
    %12 = vector.extract_strided_slice %8 {offsets = [0, 3], sizes = [16, 16], strides = [1, 1]} : vector<16x20xbf16> to vector<16x16xbf16>
    %13 = vector.extract_strided_slice %8 {offsets = [0, 4], sizes = [16, 16], strides = [1, 1]} : vector<16x20xbf16> to vector<16x16xbf16>
    %14 = tpu.concatenate %9, %10, %11, %12, %13 in 0 : vector<16x16xbf16>, vector<16x16xbf16>, vector<16x16xbf16>, vector<16x16xbf16>, vector<16x16xbf16> -> vector<80x16xbf16>
    %c0_3 = arith.constant 0 : index
    %c0_4 = arith.constant 0 : index
    %15 = vector.load %arg2[%c0_3, %c0_4] : memref<16x80xbf16, #tpu.memory_space<vmem>>, vector<16x80xbf16>
    %cst_5 = arith.constant dense<0.000000e+00> : vector<16x16xf32>
    %16 = tpu.matmul %15, %14, %cst_5 {dimension_numbers = #tpu.dot_dimension_numbers<[1], [0], [0], [1], [0, 0, 1, 1], [], []>} : vector<16x80xbf16>, vector<80x16xbf16>, vector<16x16xf32> -> vector<16x16xf32>
    %c0_6 = arith.constant 0 : index
    %c0_7 = arith.constant 0 : index
    %17 = vector.load %arg3[%c0_6, %c0_7] : memref<16x1xf32, #tpu.memory_space<vmem>>, vector<16x1xf32>
    %18 = vector.broadcast %17 : vector<16x1xf32> to vector<16x16xf32>
    %19 = arith.addf %16, %18 : vector<16x16xf32>
    %c0_8 = arith.constant 0 : index
    %c0_9 = arith.constant 0 : index
    %c0_10 = arith.constant 0 : index
    %20 = vector.load %arg4[%c0_8, %c0_9, %c0_10] : memref<1x16x16xbf16, #tpu.memory_space<vmem>>, vector<1x16x16xbf16>
    %21 = vector.shape_cast %20 : vector<1x16x16xbf16> to vector<16x16xbf16>
    %22 = arith.extf %21 : vector<16x16xbf16> to vector<16x16xf32>
    %23 = arith.addf %19, %22 : vector<16x16xf32>
    %24 = arith.truncf %23 : vector<16x16xf32> to vector<16x16xbf16>
    %c0_11 = arith.constant 0 : index
    %c0_12 = arith.constant 0 : index
    %c0_13 = arith.constant 0 : index
    %25 = vector.load %arg5[%c0_11, %c0_12, %c0_13] : memref<1x16x16xbf16, #tpu.memory_space<vmem>>, vector<1x16x16xbf16>
    %26 = vector.shape_cast %25 : vector<1x16x16xbf16> to vector<16x16xbf16>
    %27 = vector.shape_cast %24 : vector<16x16xbf16> to vector<1x16x16xbf16>
    tpu.vector_store %arg5[%c0_11, %c0_12, %c0_13], %27 {strides = array<i32>} : memref<1x16x16xbf16, #tpu.memory_space<vmem>>, vector<1x16x16xbf16>,
    return
  }
  func.func @transform_0(%arg0: i32) -> (i32, i32, i32) {
    %c0_i32 = arith.constant 0 : i32
    %c0_i32_0 = arith.constant 0 : i32
    %c0_i32_1 = arith.constant 0 : i32
    return %arg0, %c0_i32, %c0_i32_0 : i32, i32, i32
  }
  func.func @transform_1(%arg0: i32) -> (i32, i32) {
    %c0_i32 = arith.constant 0 : i32
    %c0_i32_0 = arith.constant 0 : i32
    %c0_i32_1 = arith.constant 0 : i32
    return %c0_i32, %c0_i32_0 : i32, i32
  }
  func.func @transform_2(%arg0: i32) -> (i32, i32) {
    %c0_i32 = arith.constant 0 : i32
    %c0_i32_0 = arith.constant 0 : i32
    %c0_i32_1 = arith.constant 0 : i32
    return %c0_i32, %c0_i32_0 : i32, i32
  }
  func.func @transform_3(%arg0: i32) -> (i32, i32, i32) {
    %c0_i32 = arith.constant 0 : i32
    %c0_i32_0 = arith.constant 0 : i32
    %c0_i32_1 = arith.constant 0 : i32
    return %arg0, %c0_i32, %c0_i32_0 : i32, i32, i32
  }
  func.func @transform_4(%arg0: i32) -> (i32, i32, i32) {
    %c0_i32 = arith.constant 0 : i32
    %c0_i32_0 = arith.constant 0 : i32
    %c0_i32_1 = arith.constant 0 : i32
    return %arg0, %c0_i32, %c0_i32_0 : i32, i32, i32
  }
}

module attributes {stable_mosaic.version = 11 : i64} {
  func.func @_conv1d_kernel(%arg0: i32, %arg1: memref<1x16x28xbf16, #tpu.memory_space<vmem>>, %arg2: memref<16x80xbf16, #tpu.memory_space<vmem>>, %arg3: memref<16x1xf32, #tpu.memory_space<vmem>>, %arg4: memref<1x16x16xbf16, #tpu.memory_space<vmem>>) attributes {dimension_semantics = [#tpu.dimension_semantics<parallel>], iteration_bounds = array<i64: 2>, scalar_prefetch = 0 : i64, scratch_operands = 0 : i64, tpu.core_type = #tpu.core_type<tc>, window_params = [{transform_indices = @transform_0, window_bounds = array<i64: 1, 16, 28>}, {pipeline_mode = #tpu.pipeline_mode<synchronous>, transform_indices = @transform_1, window_bounds = array<i64: 16, 80>}, {pipeline_mode = #tpu.pipeline_mode<synchronous>, transform_indices = @transform_2, window_bounds = array<i64: 16, 1>}, {transform_indices = @transform_3, window_bounds = array<i64: 1, 16, 16>}]} {
    %c0 = arith.constant 0 : index
    %c0_0 = arith.constant 0 : index
    %c0_1 = arith.constant 0 : index
    %0 = vector.load %arg1[%c0, %c0_0, %c0_1] : memref<1x16x28xbf16, #tpu.memory_space<vmem>>, vector<1x16x28xbf16>
    %1 = vector.shape_cast %0 : vector<1x16x28xbf16> to vector<16x28xbf16>
    %2 = arith.extf %1 : vector<16x28xbf16> to vector<16x28xf32>
    %cst = arith.constant 0.000000e+00 : f32
    %3 = vector.broadcast %cst : f32 to vector<16x28xf32>
    %4 = arith.cmpf ogt, %2, %3 : vector<16x28xf32>
    %cst_2 = arith.constant 1.000000e-01 : f32
    %5 = vector.broadcast %cst_2 : f32 to vector<16x28xf32>
    %6 = arith.mulf %5, %2 : vector<16x28xf32>
    %7 = arith.select %4, %2, %6 : vector<16x28xi1>, vector<16x28xf32>
    %8 = arith.truncf %7 : vector<16x28xf32> to vector<16x28xbf16>
    %9 = vector.extract_strided_slice %8 {offsets = [0, 0], sizes = [16, 16], strides = [1, 1]} : vector<16x28xbf16> to vector<16x16xbf16>
    %10 = vector.extract_strided_slice %8 {offsets = [0, 3], sizes = [16, 16], strides = [1, 1]} : vector<16x28xbf16> to vector<16x16xbf16>
    %11 = vector.extract_strided_slice %8 {offsets = [0, 6], sizes = [16, 16], strides = [1, 1]} : vector<16x28xbf16> to vector<16x16xbf16>
    %12 = vector.extract_strided_slice %8 {offsets = [0, 9], sizes = [16, 16], strides = [1, 1]} : vector<16x28xbf16> to vector<16x16xbf16>
    %13 = vector.extract_strided_slice %8 {offsets = [0, 12], sizes = [16, 16], strides = [1, 1]} : vector<16x28xbf16> to vector<16x16xbf16>
    %14 = tpu.concatenate %9, %10, %11, %12, %13 in 0 : vector<16x16xbf16>, vector<16x16xbf16>, vector<16x16xbf16>, vector<16x16xbf16>, vector<16x16xbf16> -> vector<80x16xbf16>
    %c0_3 = arith.constant 0 : index
    %c0_4 = arith.constant 0 : index
    %15 = vector.load %arg2[%c0_3, %c0_4] : memref<16x80xbf16, #tpu.memory_space<vmem>>, vector<16x80xbf16>
    %cst_5 = arith.constant dense<0.000000e+00> : vector<16x16xf32>
    %16 = tpu.matmul %15, %14, %cst_5 {dimension_numbers = #tpu.dot_dimension_numbers<[1], [0], [0], [1], [0, 0, 1, 1], [], []>} : vector<16x80xbf16>, vector<80x16xbf16>, vector<16x16xf32> -> vector<16x16xf32>
    %c0_6 = arith.constant 0 : index
    %c0_7 = arith.constant 0 : index
    %17 = vector.load %arg3[%c0_6, %c0_7] : memref<16x1xf32, #tpu.memory_space<vmem>>, vector<16x1xf32>
    %18 = vector.broadcast %17 : vector<16x1xf32> to vector<16x16xf32>
    %19 = arith.addf %16, %18 : vector<16x16xf32>
    %20 = arith.truncf %19 : vector<16x16xf32> to vector<16x16xbf16>
    %c0_8 = arith.constant 0 : index
    %c0_9 = arith.constant 0 : index
    %c0_10 = arith.constant 0 : index
    %21 = vector.load %arg4[%c0_8, %c0_9, %c0_10] : memref<1x16x16xbf16, #tpu.memory_space<vmem>>, vector<1x16x16xbf16>
    %22 = vector.shape_cast %21 : vector<1x16x16xbf16> to vector<16x16xbf16>
    %23 = vector.shape_cast %20 : vector<16x16xbf16> to vector<1x16x16xbf16>
    tpu.vector_store %arg4[%c0_8, %c0_9, %c0_10], %23 {strides = array<i32>} : memref<1x16x16xbf16, #tpu.memory_space<vmem>>, vector<1x16x16xbf16>,
    return
  }
  func.func @transform_0(%arg0: i32) -> (i32, i32, i32) {
    %c0_i32 = arith.constant 0 : i32
    %c0_i32_0 = arith.constant 0 : i32
    %c0_i32_1 = arith.constant 0 : i32
    return %arg0, %c0_i32, %c0_i32_0 : i32, i32, i32
  }
  func.func @transform_1(%arg0: i32) -> (i32, i32) {
    %c0_i32 = arith.constant 0 : i32
    %c0_i32_0 = arith.constant 0 : i32
    %c0_i32_1 = arith.constant 0 : i32
    return %c0_i32, %c0_i32_0 : i32, i32
  }
  func.func @transform_2(%arg0: i32) -> (i32, i32) {
    %c0_i32 = arith.constant 0 : i32
    %c0_i32_0 = arith.constant 0 : i32
    %c0_i32_1 = arith.constant 0 : i32
    return %c0_i32, %c0_i32_0 : i32, i32
  }
  func.func @transform_3(%arg0: i32) -> (i32, i32, i32) {
    %c0_i32 = arith.constant 0 : i32
    %c0_i32_0 = arith.constant 0 : i32
    %c0_i32_1 = arith.constant 0 : i32
    return %arg0, %c0_i32, %c0_i32_0 : i32, i32, i32
  }
}

module attributes {stable_mosaic.version = 11 : i64} {
  func.func @_conv1d_kernel(%arg0: i32, %arg1: memref<1x16x18xbf16, #tpu.memory_space<vmem>>, %arg2: memref<16x48xbf16, #tpu.memory_space<vmem>>, %arg3: memref<16x1xf32, #tpu.memory_space<vmem>>, %arg4: memref<1x16x16xbf16, #tpu.memory_space<vmem>>) attributes {dimension_semantics = [#tpu.dimension_semantics<parallel>], iteration_bounds = array<i64: 2>, scalar_prefetch = 0 : i64, scratch_operands = 0 : i64, tpu.core_type = #tpu.core_type<tc>, window_params = [{transform_indices = @transform_0, window_bounds = array<i64: 1, 16, 18>}, {pipeline_mode = #tpu.pipeline_mode<synchronous>, transform_indices = @transform_1, window_bounds = array<i64: 16, 48>}, {pipeline_mode = #tpu.pipeline_mode<synchronous>, transform_indices = @transform_2, window_bounds = array<i64: 16, 1>}, {transform_indices = @transform_3, window_bounds = array<i64: 1, 16, 16>}]} {
    %c0 = arith.constant 0 : index
    %c0_0 = arith.constant 0 : index
    %c0_1 = arith.constant 0 : index
    %0 = vector.load %arg1[%c0, %c0_0, %c0_1] : memref<1x16x18xbf16, #tpu.memory_space<vmem>>, vector<1x16x18xbf16>
    %1 = vector.shape_cast %0 : vector<1x16x18xbf16> to vector<16x18xbf16>
    %2 = arith.extf %1 : vector<16x18xbf16> to vector<16x18xf32>
    %cst = arith.constant 0.000000e+00 : f32
    %3 = vector.broadcast %cst : f32 to vector<16x18xf32>
    %4 = arith.cmpf ogt, %2, %3 : vector<16x18xf32>
    %cst_2 = arith.constant 1.000000e-01 : f32
    %5 = vector.broadcast %cst_2 : f32 to vector<16x18xf32>
    %6 = arith.mulf %5, %2 : vector<16x18xf32>
    %7 = arith.select %4, %2, %6 : vector<16x18xi1>, vector<16x18xf32>
    %8 = arith.truncf %7 : vector<16x18xf32> to vector<16x18xbf16>
    %9 = vector.extract_strided_slice %8 {offsets = [0, 0], sizes = [16, 16], strides = [1, 1]} : vector<16x18xbf16> to vector<16x16xbf16>
    %10 = vector.extract_strided_slice %8 {offsets = [0, 1], sizes = [16, 16], strides = [1, 1]} : vector<16x18xbf16> to vector<16x16xbf16>
    %11 = vector.extract_strided_slice %8 {offsets = [0, 2], sizes = [16, 16], strides = [1, 1]} : vector<16x18xbf16> to vector<16x16xbf16>
    %12 = tpu.concatenate %9, %10, %11 in 0 : vector<16x16xbf16>, vector<16x16xbf16>, vector<16x16xbf16> -> vector<48x16xbf16>
    %c0_3 = arith.constant 0 : index
    %c0_4 = arith.constant 0 : index
    %13 = vector.load %arg2[%c0_3, %c0_4] : memref<16x48xbf16, #tpu.memory_space<vmem>>, vector<16x48xbf16>
    %cst_5 = arith.constant dense<0.000000e+00> : vector<16x16xf32>
    %14 = tpu.matmul %13, %12, %cst_5 {dimension_numbers = #tpu.dot_dimension_numbers<[1], [0], [0], [1], [0, 0, 1, 1], [], []>} : vector<16x48xbf16>, vector<48x16xbf16>, vector<16x16xf32> -> vector<16x16xf32>
    %c0_6 = arith.constant 0 : index
    %c0_7 = arith.constant 0 : index
    %15 = vector.load %arg3[%c0_6, %c0_7] : memref<16x1xf32, #tpu.memory_space<vmem>>, vector<16x1xf32>
    %16 = vector.broadcast %15 : vector<16x1xf32> to vector<16x16xf32>
    %17 = arith.addf %14, %16 : vector<16x16xf32>
    %18 = arith.truncf %17 : vector<16x16xf32> to vector<16x16xbf16>
    %c0_8 = arith.constant 0 : index
    %c0_9 = arith.constant 0 : index
    %c0_10 = arith.constant 0 : index
    %19 = vector.load %arg4[%c0_8, %c0_9, %c0_10] : memref<1x16x16xbf16, #tpu.memory_space<vmem>>, vector<1x16x16xbf16>
    %20 = vector.shape_cast %19 : vector<1x16x16xbf16> to vector<16x16xbf16>
    %21 = vector.shape_cast %18 : vector<16x16xbf16> to vector<1x16x16xbf16>
    tpu.vector_store %arg4[%c0_8, %c0_9, %c0_10], %21 {strides = array<i32>} : memref<1x16x16xbf16, #tpu.memory_space<vmem>>, vector<1x16x16xbf16>,
    return
  }
  func.func @transform_0(%arg0: i32) -> (i32, i32, i32) {
    %c0_i32 = arith.constant 0 : i32
    %c0_i32_0 = arith.constant 0 : i32
    %c0_i32_1 = arith.constant 0 : i32
    return %arg0, %c0_i32, %c0_i32_0 : i32, i32, i32
  }
  func.func @transform_1(%arg0: i32) -> (i32, i32) {
    %c0_i32 = arith.constant 0 : i32
    %c0_i32_0 = arith.constant 0 : i32
    %c0_i32_1 = arith.constant 0 : i32
    return %c0_i32, %c0_i32_0 : i32, i32
  }
  func.func @transform_2(%arg0: i32) -> (i32, i32) {
    %c0_i32 = arith.constant 0 : i32
    %c0_i32_0 = arith.constant 0 : i32
    %c0_i32_1 = arith.constant 0 : i32
    return %c0_i32, %c0_i32_0 : i32, i32
  }
  func.func @transform_3(%arg0: i32) -> (i32, i32, i32) {
    %c0_i32 = arith.constant 0 : i32
    %c0_i32_0 = arith.constant 0 : i32
    %c0_i32_1 = arith.constant 0 : i32
    return %arg0, %c0_i32, %c0_i32_0 : i32, i32, i32
  }
}

module attributes {stable_mosaic.version = 11 : i64} {
  func.func @_conv1d_kernel(%arg0: i32, %arg1: memref<1x16x22xbf16, #tpu.memory_space<vmem>>, %arg2: memref<16x48xbf16, #tpu.memory_space<vmem>>, %arg3: memref<16x1xf32, #tpu.memory_space<vmem>>, %arg4: memref<1x16x16xbf16, #tpu.memory_space<vmem>>) attributes {dimension_semantics = [#tpu.dimension_semantics<parallel>], iteration_bounds = array<i64: 2>, scalar_prefetch = 0 : i64, scratch_operands = 0 : i64, tpu.core_type = #tpu.core_type<tc>, window_params = [{transform_indices = @transform_0, window_bounds = array<i64: 1, 16, 22>}, {pipeline_mode = #tpu.pipeline_mode<synchronous>, transform_indices = @transform_1, window_bounds = array<i64: 16, 48>}, {pipeline_mode = #tpu.pipeline_mode<synchronous>, transform_indices = @transform_2, window_bounds = array<i64: 16, 1>}, {transform_indices = @transform_3, window_bounds = array<i64: 1, 16, 16>}]} {
    %c0 = arith.constant 0 : index
    %c0_0 = arith.constant 0 : index
    %c0_1 = arith.constant 0 : index
    %0 = vector.load %arg1[%c0, %c0_0, %c0_1] : memref<1x16x22xbf16, #tpu.memory_space<vmem>>, vector<1x16x22xbf16>
    %1 = vector.shape_cast %0 : vector<1x16x22xbf16> to vector<16x22xbf16>
    %2 = arith.extf %1 : vector<16x22xbf16> to vector<16x22xf32>
    %cst = arith.constant 0.000000e+00 : f32
    %3 = vector.broadcast %cst : f32 to vector<16x22xf32>
    %4 = arith.cmpf ogt, %2, %3 : vector<16x22xf32>
    %cst_2 = arith.constant 1.000000e-01 : f32
    %5 = vector.broadcast %cst_2 : f32 to vector<16x22xf32>
    %6 = arith.mulf %5, %2 : vector<16x22xf32>
    %7 = arith.select %4, %2, %6 : vector<16x22xi1>, vector<16x22xf32>
    %8 = arith.truncf %7 : vector<16x22xf32> to vector<16x22xbf16>
    %9 = vector.extract_strided_slice %8 {offsets = [0, 0], sizes = [16, 16], strides = [1, 1]} : vector<16x22xbf16> to vector<16x16xbf16>
    %10 = vector.extract_strided_slice %8 {offsets = [0, 3], sizes = [16, 16], strides = [1, 1]} : vector<16x22xbf16> to vector<16x16xbf16>
    %11 = vector.extract_strided_slice %8 {offsets = [0, 6], sizes = [16, 16], strides = [1, 1]} : vector<16x22xbf16> to vector<16x16xbf16>
    %12 = tpu.concatenate %9, %10, %11 in 0 : vector<16x16xbf16>, vector<16x16xbf16>, vector<16x16xbf16> -> vector<48x16xbf16>
    %c0_3 = arith.constant 0 : index
    %c0_4 = arith.constant 0 : index
    %13 = vector.load %arg2[%c0_3, %c0_4] : memref<16x48xbf16, #tpu.memory_space<vmem>>, vector<16x48xbf16>
    %cst_5 = arith.constant dense<0.000000e+00> : vector<16x16xf32>
    %14 = tpu.matmul %13, %12, %cst_5 {dimension_numbers = #tpu.dot_dimension_numbers<[1], [0], [0], [1], [0, 0, 1, 1], [], []>} : vector<16x48xbf16>, vector<48x16xbf16>, vector<16x16xf32> -> vector<16x16xf32>
    %c0_6 = arith.constant 0 : index
    %c0_7 = arith.constant 0 : index
    %15 = vector.load %arg3[%c0_6, %c0_7] : memref<16x1xf32, #tpu.memory_space<vmem>>, vector<16x1xf32>
    %16 = vector.broadcast %15 : vector<16x1xf32> to vector<16x16xf32>
    %17 = arith.addf %14, %16 : vector<16x16xf32>
    %18 = arith.truncf %17 : vector<16x16xf32> to vector<16x16xbf16>
    %c0_8 = arith.constant 0 : index
    %c0_9 = arith.constant 0 : index
    %c0_10 = arith.constant 0 : index
    %19 = vector.load %arg4[%c0_8, %c0_9, %c0_10] : memref<1x16x16xbf16, #tpu.memory_space<vmem>>, vector<1x16x16xbf16>
    %20 = vector.shape_cast %19 : vector<1x16x16xbf16> to vector<16x16xbf16>
    %21 = vector.shape_cast %18 : vector<16x16xbf16> to vector<1x16x16xbf16>
    tpu.vector_store %arg4[%c0_8, %c0_9, %c0_10], %21 {strides = array<i32>} : memref<1x16x16xbf16, #tpu.memory_space<vmem>>, vector<1x16x16xbf16>,
    return
  }
  func.func @transform_0(%arg0: i32) -> (i32, i32, i32) {
    %c0_i32 = arith.constant 0 : i32
    %c0_i32_0 = arith.constant 0 : i32
    %c0_i32_1 = arith.constant 0 : i32
    return %arg0, %c0_i32, %c0_i32_0 : i32, i32, i32
  }
  func.func @transform_1(%arg0: i32) -> (i32, i32) {
    %c0_i32 = arith.constant 0 : i32
    %c0_i32_0 = arith.constant 0 : i32
    %c0_i32_1 = arith.constant 0 : i32
    return %c0_i32, %c0_i32_0 : i32, i32
  }
  func.func @transform_2(%arg0: i32) -> (i32, i32) {
    %c0_i32 = arith.constant 0 : i32
    %c0_i32_0 = arith.constant 0 : i32
    %c0_i32_1 = arith.constant 0 : i32
    return %c0_i32, %c0_i32_0 : i32, i32
  }
  func.func @transform_3(%arg0: i32) -> (i32, i32, i32) {
    %c0_i32 = arith.constant 0 : i32
    %c0_i32_0 = arith.constant 0 : i32
    %c0_i32_1 = arith.constant 0 : i32
    return %arg0, %c0_i32, %c0_i32_0 : i32, i32, i32
  }
}

module attributes {stable_mosaic.version = 11 : i64} {
  func.func @_conv1d_kernel(%arg0: i32, %arg1: memref<1x16x18xbf16, #tpu.memory_space<vmem>>, %arg2: memref<16x48xbf16, #tpu.memory_space<vmem>>, %arg3: memref<16x1xf32, #tpu.memory_space<vmem>>, %arg4: memref<1x16x16xbf16, #tpu.memory_space<vmem>>, %arg5: memref<1x16x16xbf16, #tpu.memory_space<vmem>>) attributes {dimension_semantics = [#tpu.dimension_semantics<parallel>], iteration_bounds = array<i64: 2>, scalar_prefetch = 0 : i64, scratch_operands = 0 : i64, tpu.core_type = #tpu.core_type<tc>, window_params = [{transform_indices = @transform_0, window_bounds = array<i64: 1, 16, 18>}, {pipeline_mode = #tpu.pipeline_mode<synchronous>, transform_indices = @transform_1, window_bounds = array<i64: 16, 48>}, {pipeline_mode = #tpu.pipeline_mode<synchronous>, transform_indices = @transform_2, window_bounds = array<i64: 16, 1>}, {transform_indices = @transform_3, window_bounds = array<i64: 1, 16, 16>}, {transform_indices = @transform_4, window_bounds = array<i64: 1, 16, 16>}]} {
    %c0 = arith.constant 0 : index
    %c0_0 = arith.constant 0 : index
    %c0_1 = arith.constant 0 : index
    %0 = vector.load %arg1[%c0, %c0_0, %c0_1] : memref<1x16x18xbf16, #tpu.memory_space<vmem>>, vector<1x16x18xbf16>
    %1 = vector.shape_cast %0 : vector<1x16x18xbf16> to vector<16x18xbf16>
    %2 = arith.extf %1 : vector<16x18xbf16> to vector<16x18xf32>
    %cst = arith.constant 0.000000e+00 : f32
    %3 = vector.broadcast %cst : f32 to vector<16x18xf32>
    %4 = arith.cmpf ogt, %2, %3 : vector<16x18xf32>
    %cst_2 = arith.constant 1.000000e-01 : f32
    %5 = vector.broadcast %cst_2 : f32 to vector<16x18xf32>
    %6 = arith.mulf %5, %2 : vector<16x18xf32>
    %7 = arith.select %4, %2, %6 : vector<16x18xi1>, vector<16x18xf32>
    %8 = arith.truncf %7 : vector<16x18xf32> to vector<16x18xbf16>
    %9 = vector.extract_strided_slice %8 {offsets = [0, 0], sizes = [16, 16], strides = [1, 1]} : vector<16x18xbf16> to vector<16x16xbf16>
    %10 = vector.extract_strided_slice %8 {offsets = [0, 1], sizes = [16, 16], strides = [1, 1]} : vector<16x18xbf16> to vector<16x16xbf16>
    %11 = vector.extract_strided_slice %8 {offsets = [0, 2], sizes = [16, 16], strides = [1, 1]} : vector<16x18xbf16> to vector<16x16xbf16>
    %12 = tpu.concatenate %9, %10, %11 in 0 : vector<16x16xbf16>, vector<16x16xbf16>, vector<16x16xbf16> -> vector<48x16xbf16>
    %c0_3 = arith.constant 0 : index
    %c0_4 = arith.constant 0 : index
    %13 = vector.load %arg2[%c0_3, %c0_4] : memref<16x48xbf16, #tpu.memory_space<vmem>>, vector<16x48xbf16>
    %cst_5 = arith.constant dense<0.000000e+00> : vector<16x16xf32>
    %14 = tpu.matmul %13, %12, %cst_5 {dimension_numbers = #tpu.dot_dimension_numbers<[1], [0], [0], [1], [0, 0, 1, 1], [], []>} : vector<16x48xbf16>, vector<48x16xbf16>, vector<16x16xf32> -> vector<16x16xf32>
    %c0_6 = arith.constant 0 : index
    %c0_7 = arith.constant 0 : index
    %15 = vector.load %arg3[%c0_6, %c0_7] : memref<16x1xf32, #tpu.memory_space<vmem>>, vector<16x1xf32>
    %16 = vector.broadcast %15 : vector<16x1xf32> to vector<16x16xf32>
    %17 = arith.addf %14, %16 : vector<16x16xf32>
    %c0_8 = arith.constant 0 : index
    %c0_9 = arith.constant 0 : index
    %c0_10 = arith.constant 0 : index
    %18 = vector.load %arg4[%c0_8, %c0_9, %c0_10] : memref<1x16x16xbf16, #tpu.memory_space<vmem>>, vector<1x16x16xbf16>
    %19 = vector.shape_cast %18 : vector<1x16x16xbf16> to vector<16x16xbf16>
    %20 = arith.extf %19 : vector<16x16xbf16> to vector<16x16xf32>
    %21 = arith.addf %17, %20 : vector<16x16xf32>
    %22 = arith.truncf %21 : vector<16x16xf32> to vector<16x16xbf16>
    %c0_11 = arith.constant 0 : index
    %c0_12 = arith.constant 0 : index
    %c0_13 = arith.constant 0 : index
    %23 = vector.load %arg5[%c0_11, %c0_12, %c0_13] : memref<1x16x16xbf16, #tpu.memory_space<vmem>>, vector<1x16x16xbf16>
    %24 = vector.shape_cast %23 : vector<1x16x16xbf16> to vector<16x16xbf16>
    %25 = vector.shape_cast %22 : vector<16x16xbf16> to vector<1x16x16xbf16>
    tpu.vector_store %arg5[%c0_11, %c0_12, %c0_13], %25 {strides = array<i32>} : memref<1x16x16xbf16, #tpu.memory_space<vmem>>, vector<1x16x16xbf16>,
    return
  }
  func.func @transform_0(%arg0: i32) -> (i32, i32, i32) {
    %c0_i32 = arith.constant 0 : i32
    %c0_i32_0 = arith.constant 0 : i32
    %c0_i32_1 = arith.constant 0 : i32
    return %arg0, %c0_i32, %c0_i32_0 : i32, i32, i32
  }
  func.func @transform_1(%arg0: i32) -> (i32, i32) {
    %c0_i32 = arith.constant 0 : i32
    %c0_i32_0 = arith.constant 0 : i32
    %c0_i32_1 = arith.constant 0 : i32
    return %c0_i32, %c0_i32_0 : i32, i32
  }
  func.func @transform_2(%arg0: i32) -> (i32, i32) {
    %c0_i32 = arith.constant 0 : i32
    %c0_i32_0 = arith.constant 0 : i32
    %c0_i32_1 = arith.constant 0 : i32
    return %c0_i32, %c0_i32_0 : i32, i32
  }
  func.func @transform_3(%arg0: i32) -> (i32, i32, i32) {
    %c0_i32 = arith.constant 0 : i32
    %c0_i32_0 = arith.constant 0 : i32
    %c0_i32_1 = arith.constant 0 : i32
    return %arg0, %c0_i32, %c0_i32_0 : i32, i32, i32
  }
  func.func @transform_4(%arg0: i32) -> (i32, i32, i32) {
    %c0_i32 = arith.constant 0 : i32
    %c0_i32_0 = arith.constant 0 : i32
    %c0_i32_1 = arith.constant 0 : i32
    return %arg0, %c0_i32, %c0_i32_0 : i32, i32, i32
  }
}

module attributes {stable_mosaic.version = 11 : i64} {
  func.func @_conv1d_kernel(%arg0: i32, %arg1: memref<1x8x36xbf16, #tpu.memory_space<vmem>>, %arg2: memref<8x40xbf16, #tpu.memory_space<vmem>>, %arg3: memref<8x1xf32, #tpu.memory_space<vmem>>, %arg4: memref<1x8x32xbf16, #tpu.memory_space<vmem>>) attributes {dimension_semantics = [#tpu.dimension_semantics<parallel>], iteration_bounds = array<i64: 2>, scalar_prefetch = 0 : i64, scratch_operands = 0 : i64, tpu.core_type = #tpu.core_type<tc>, window_params = [{transform_indices = @transform_0, window_bounds = array<i64: 1, 8, 36>}, {pipeline_mode = #tpu.pipeline_mode<synchronous>, transform_indices = @transform_1, window_bounds = array<i64: 8, 40>}, {pipeline_mode = #tpu.pipeline_mode<synchronous>, transform_indices = @transform_2, window_bounds = array<i64: 8, 1>}, {transform_indices = @transform_3, window_bounds = array<i64: 1, 8, 32>}]} {
    %c0 = arith.constant 0 : index
    %c0_0 = arith.constant 0 : index
    %c0_1 = arith.constant 0 : index
    %0 = vector.load %arg1[%c0, %c0_0, %c0_1] : memref<1x8x36xbf16, #tpu.memory_space<vmem>>, vector<1x8x36xbf16>
    %1 = vector.shape_cast %0 : vector<1x8x36xbf16> to vector<8x36xbf16>
    %2 = arith.extf %1 : vector<8x36xbf16> to vector<8x36xf32>
    %cst = arith.constant 0.000000e+00 : f32
    %3 = vector.broadcast %cst : f32 to vector<8x36xf32>
    %4 = arith.cmpf ogt, %2, %3 : vector<8x36xf32>
    %cst_2 = arith.constant 1.000000e-01 : f32
    %5 = vector.broadcast %cst_2 : f32 to vector<8x36xf32>
    %6 = arith.mulf %5, %2 : vector<8x36xf32>
    %7 = arith.select %4, %2, %6 : vector<8x36xi1>, vector<8x36xf32>
    %8 = arith.truncf %7 : vector<8x36xf32> to vector<8x36xbf16>
    %9 = vector.extract_strided_slice %8 {offsets = [0, 0], sizes = [8, 32], strides = [1, 1]} : vector<8x36xbf16> to vector<8x32xbf16>
    %10 = vector.extract_strided_slice %8 {offsets = [0, 1], sizes = [8, 32], strides = [1, 1]} : vector<8x36xbf16> to vector<8x32xbf16>
    %11 = vector.extract_strided_slice %8 {offsets = [0, 2], sizes = [8, 32], strides = [1, 1]} : vector<8x36xbf16> to vector<8x32xbf16>
    %12 = vector.extract_strided_slice %8 {offsets = [0, 3], sizes = [8, 32], strides = [1, 1]} : vector<8x36xbf16> to vector<8x32xbf16>
    %13 = vector.extract_strided_slice %8 {offsets = [0, 4], sizes = [8, 32], strides = [1, 1]} : vector<8x36xbf16> to vector<8x32xbf16>
    %14 = tpu.concatenate %9, %10, %11, %12, %13 in 0 : vector<8x32xbf16>, vector<8x32xbf16>, vector<8x32xbf16>, vector<8x32xbf16>, vector<8x32xbf16> -> vector<40x32xbf16>
    %c0_3 = arith.constant 0 : index
    %c0_4 = arith.constant 0 : index
    %15 = vector.load %arg2[%c0_3, %c0_4] : memref<8x40xbf16, #tpu.memory_space<vmem>>, vector<8x40xbf16>
    %cst_5 = arith.constant dense<0.000000e+00> : vector<8x32xf32>
    %16 = tpu.matmul %15, %14, %cst_5 {dimension_numbers = #tpu.dot_dimension_numbers<[1], [0], [0], [1], [0, 0, 1, 1], [], []>} : vector<8x40xbf16>, vector<40x32xbf16>, vector<8x32xf32> -> vector<8x32xf32>
    %c0_6 = arith.constant 0 : index
    %c0_7 = arith.constant 0 : index
    %17 = vector.load %arg3[%c0_6, %c0_7] : memref<8x1xf32, #tpu.memory_space<vmem>>, vector<8x1xf32>
    %18 = vector.broadcast %17 : vector<8x1xf32> to vector<8x32xf32>
    %19 = arith.addf %16, %18 : vector<8x32xf32>
    %20 = arith.truncf %19 : vector<8x32xf32> to vector<8x32xbf16>
    %c0_8 = arith.constant 0 : index
    %c0_9 = arith.constant 0 : index
    %c0_10 = arith.constant 0 : index
    %21 = vector.load %arg4[%c0_8, %c0_9, %c0_10] : memref<1x8x32xbf16, #tpu.memory_space<vmem>>, vector<1x8x32xbf16>
    %22 = vector.shape_cast %21 : vector<1x8x32xbf16> to vector<8x32xbf16>
    %23 = vector.shape_cast %20 : vector<8x32xbf16> to vector<1x8x32xbf16>
    tpu.vector_store %arg4[%c0_8, %c0_9, %c0_10], %23 {strides = array<i32>} : memref<1x8x32xbf16, #tpu.memory_space<vmem>>, vector<1x8x32xbf16>,
    return
  }
  func.func @transform_0(%arg0: i32) -> (i32, i32, i32) {
    %c0_i32 = arith.constant 0 : i32
    %c0_i32_0 = arith.constant 0 : i32
    %c0_i32_1 = arith.constant 0 : i32
    return %arg0, %c0_i32, %c0_i32_0 : i32, i32, i32
  }
  func.func @transform_1(%arg0: i32) -> (i32, i32) {
    %c0_i32 = arith.constant 0 : i32
    %c0_i32_0 = arith.constant 0 : i32
    %c0_i32_1 = arith.constant 0 : i32
    return %c0_i32, %c0_i32_0 : i32, i32
  }
  func.func @transform_2(%arg0: i32) -> (i32, i32) {
    %c0_i32 = arith.constant 0 : i32
    %c0_i32_0 = arith.constant 0 : i32
    %c0_i32_1 = arith.constant 0 : i32
    return %c0_i32, %c0_i32_0 : i32, i32
  }
  func.func @transform_3(%arg0: i32) -> (i32, i32, i32) {
    %c0_i32 = arith.constant 0 : i32
    %c0_i32_0 = arith.constant 0 : i32
    %c0_i32_1 = arith.constant 0 : i32
    return %arg0, %c0_i32, %c0_i32_0 : i32, i32, i32
  }
}

module attributes {stable_mosaic.version = 11 : i64} {
  func.func @_conv1d_kernel(%arg0: i32, %arg1: memref<1x8x36xbf16, #tpu.memory_space<vmem>>, %arg2: memref<8x40xbf16, #tpu.memory_space<vmem>>, %arg3: memref<8x1xf32, #tpu.memory_space<vmem>>, %arg4: memref<1x8x32xbf16, #tpu.memory_space<vmem>>, %arg5: memref<1x8x32xbf16, #tpu.memory_space<vmem>>) attributes {dimension_semantics = [#tpu.dimension_semantics<parallel>], iteration_bounds = array<i64: 2>, scalar_prefetch = 0 : i64, scratch_operands = 0 : i64, tpu.core_type = #tpu.core_type<tc>, window_params = [{transform_indices = @transform_0, window_bounds = array<i64: 1, 8, 36>}, {pipeline_mode = #tpu.pipeline_mode<synchronous>, transform_indices = @transform_1, window_bounds = array<i64: 8, 40>}, {pipeline_mode = #tpu.pipeline_mode<synchronous>, transform_indices = @transform_2, window_bounds = array<i64: 8, 1>}, {transform_indices = @transform_3, window_bounds = array<i64: 1, 8, 32>}, {transform_indices = @transform_4, window_bounds = array<i64: 1, 8, 32>}]} {
    %c0 = arith.constant 0 : index
    %c0_0 = arith.constant 0 : index
    %c0_1 = arith.constant 0 : index
    %0 = vector.load %arg1[%c0, %c0_0, %c0_1] : memref<1x8x36xbf16, #tpu.memory_space<vmem>>, vector<1x8x36xbf16>
    %1 = vector.shape_cast %0 : vector<1x8x36xbf16> to vector<8x36xbf16>
    %2 = arith.extf %1 : vector<8x36xbf16> to vector<8x36xf32>
    %cst = arith.constant 0.000000e+00 : f32
    %3 = vector.broadcast %cst : f32 to vector<8x36xf32>
    %4 = arith.cmpf ogt, %2, %3 : vector<8x36xf32>
    %cst_2 = arith.constant 1.000000e-01 : f32
    %5 = vector.broadcast %cst_2 : f32 to vector<8x36xf32>
    %6 = arith.mulf %5, %2 : vector<8x36xf32>
    %7 = arith.select %4, %2, %6 : vector<8x36xi1>, vector<8x36xf32>
    %8 = arith.truncf %7 : vector<8x36xf32> to vector<8x36xbf16>
    %9 = vector.extract_strided_slice %8 {offsets = [0, 0], sizes = [8, 32], strides = [1, 1]} : vector<8x36xbf16> to vector<8x32xbf16>
    %10 = vector.extract_strided_slice %8 {offsets = [0, 1], sizes = [8, 32], strides = [1, 1]} : vector<8x36xbf16> to vector<8x32xbf16>
    %11 = vector.extract_strided_slice %8 {offsets = [0, 2], sizes = [8, 32], strides = [1, 1]} : vector<8x36xbf16> to vector<8x32xbf16>
    %12 = vector.extract_strided_slice %8 {offsets = [0, 3], sizes = [8, 32], strides = [1, 1]} : vector<8x36xbf16> to vector<8x32xbf16>
    %13 = vector.extract_strided_slice %8 {offsets = [0, 4], sizes = [8, 32], strides = [1, 1]} : vector<8x36xbf16> to vector<8x32xbf16>
    %14 = tpu.concatenate %9, %10, %11, %12, %13 in 0 : vector<8x32xbf16>, vector<8x32xbf16>, vector<8x32xbf16>, vector<8x32xbf16>, vector<8x32xbf16> -> vector<40x32xbf16>
    %c0_3 = arith.constant 0 : index
    %c0_4 = arith.constant 0 : index
    %15 = vector.load %arg2[%c0_3, %c0_4] : memref<8x40xbf16, #tpu.memory_space<vmem>>, vector<8x40xbf16>
    %cst_5 = arith.constant dense<0.000000e+00> : vector<8x32xf32>
    %16 = tpu.matmul %15, %14, %cst_5 {dimension_numbers = #tpu.dot_dimension_numbers<[1], [0], [0], [1], [0, 0, 1, 1], [], []>} : vector<8x40xbf16>, vector<40x32xbf16>, vector<8x32xf32> -> vector<8x32xf32>
    %c0_6 = arith.constant 0 : index
    %c0_7 = arith.constant 0 : index
    %17 = vector.load %arg3[%c0_6, %c0_7] : memref<8x1xf32, #tpu.memory_space<vmem>>, vector<8x1xf32>
    %18 = vector.broadcast %17 : vector<8x1xf32> to vector<8x32xf32>
    %19 = arith.addf %16, %18 : vector<8x32xf32>
    %c0_8 = arith.constant 0 : index
    %c0_9 = arith.constant 0 : index
    %c0_10 = arith.constant 0 : index
    %20 = vector.load %arg4[%c0_8, %c0_9, %c0_10] : memref<1x8x32xbf16, #tpu.memory_space<vmem>>, vector<1x8x32xbf16>
    %21 = vector.shape_cast %20 : vector<1x8x32xbf16> to vector<8x32xbf16>
    %22 = arith.extf %21 : vector<8x32xbf16> to vector<8x32xf32>
    %23 = arith.addf %19, %22 : vector<8x32xf32>
    %24 = arith.truncf %23 : vector<8x32xf32> to vector<8x32xbf16>
    %c0_11 = arith.constant 0 : index
    %c0_12 = arith.constant 0 : index
    %c0_13 = arith.constant 0 : index
    %25 = vector.load %arg5[%c0_11, %c0_12, %c0_13] : memref<1x8x32xbf16, #tpu.memory_space<vmem>>, vector<1x8x32xbf16>
    %26 = vector.shape_cast %25 : vector<1x8x32xbf16> to vector<8x32xbf16>
    %27 = vector.shape_cast %24 : vector<8x32xbf16> to vector<1x8x32xbf16>
    tpu.vector_store %arg5[%c0_11, %c0_12, %c0_13], %27 {strides = array<i32>} : memref<1x8x32xbf16, #tpu.memory_space<vmem>>, vector<1x8x32xbf16>,
    return
  }
  func.func @transform_0(%arg0: i32) -> (i32, i32, i32) {
    %c0_i32 = arith.constant 0 : i32
    %c0_i32_0 = arith.constant 0 : i32
    %c0_i32_1 = arith.constant 0 : i32
    return %arg0, %c0_i32, %c0_i32_0 : i32, i32, i32
  }
  func.func @transform_1(%arg0: i32) -> (i32, i32) {
    %c0_i32 = arith.constant 0 : i32
    %c0_i32_0 = arith.constant 0 : i32
    %c0_i32_1 = arith.constant 0 : i32
    return %c0_i32, %c0_i32_0 : i32, i32
  }
  func.func @transform_2(%arg0: i32) -> (i32, i32) {
    %c0_i32 = arith.constant 0 : i32
    %c0_i32_0 = arith.constant 0 : i32
    %c0_i32_1 = arith.constant 0 : i32
    return %c0_i32, %c0_i32_0 : i32, i32
  }
  func.func @transform_3(%arg0: i32) -> (i32, i32, i32) {
    %c0_i32 = arith.constant 0 : i32
    %c0_i32_0 = arith.constant 0 : i32
    %c0_i32_1 = arith.constant 0 : i32
    return %arg0, %c0_i32, %c0_i32_0 : i32, i32, i32
  }
  func.func @transform_4(%arg0: i32) -> (i32, i32, i32) {
    %c0_i32 = arith.constant 0 : i32
    %c0_i32_0 = arith.constant 0 : i32
    %c0_i32_1 = arith.constant 0 : i32
    return %arg0, %c0_i32, %c0_i32_0 : i32, i32, i32
  }
}

module attributes {stable_mosaic.version = 11 : i64} {
  func.func @_conv1d_kernel(%arg0: i32, %arg1: memref<1x16x17xbf16, #tpu.memory_space<vmem>>, %arg2: memref<8x32xbf16, #tpu.memory_space<vmem>>, %arg3: memref<8x1xf32, #tpu.memory_space<vmem>>, %arg4: memref<1x8x16xbf16, #tpu.memory_space<vmem>>) attributes {dimension_semantics = [#tpu.dimension_semantics<parallel>], iteration_bounds = array<i64: 2>, scalar_prefetch = 0 : i64, scratch_operands = 0 : i64, tpu.core_type = #tpu.core_type<tc>, window_params = [{transform_indices = @transform_0, window_bounds = array<i64: 1, 16, 17>}, {pipeline_mode = #tpu.pipeline_mode<synchronous>, transform_indices = @transform_1, window_bounds = array<i64: 8, 32>}, {pipeline_mode = #tpu.pipeline_mode<synchronous>, transform_indices = @transform_2, window_bounds = array<i64: 8, 1>}, {transform_indices = @transform_3, window_bounds = array<i64: 1, 8, 16>}]} {
    %c0 = arith.constant 0 : index
    %c0_0 = arith.constant 0 : index
    %c0_1 = arith.constant 0 : index
    %0 = vector.load %arg1[%c0, %c0_0, %c0_1] : memref<1x16x17xbf16, #tpu.memory_space<vmem>>, vector<1x16x17xbf16>
    %1 = vector.shape_cast %0 : vector<1x16x17xbf16> to vector<16x17xbf16>
    %2 = arith.extf %1 : vector<16x17xbf16> to vector<16x17xf32>
    %cst = arith.constant 0.000000e+00 : f32
    %3 = vector.broadcast %cst : f32 to vector<16x17xf32>
    %4 = arith.cmpf ogt, %2, %3 : vector<16x17xf32>
    %cst_2 = arith.constant 1.000000e-01 : f32
    %5 = vector.broadcast %cst_2 : f32 to vector<16x17xf32>
    %6 = arith.mulf %5, %2 : vector<16x17xf32>
    %7 = arith.select %4, %2, %6 : vector<16x17xi1>, vector<16x17xf32>
    %8 = arith.truncf %7 : vector<16x17xf32> to vector<16x17xbf16>
    %9 = vector.extract_strided_slice %8 {offsets = [0, 0], sizes = [16, 16], strides = [1, 1]} : vector<16x17xbf16> to vector<16x16xbf16>
    %10 = vector.extract_strided_slice %8 {offsets = [0, 1], sizes = [16, 16], strides = [1, 1]} : vector<16x17xbf16> to vector<16x16xbf16>
    %11 = tpu.concatenate %9, %10 in 0 : vector<16x16xbf16>, vector<16x16xbf16> -> vector<32x16xbf16>
    %c0_3 = arith.constant 0 : index
    %c0_4 = arith.constant 0 : index
    %12 = vector.load %arg2[%c0_3, %c0_4] : memref<8x32xbf16, #tpu.memory_space<vmem>>, vector<8x32xbf16>
    %cst_5 = arith.constant dense<0.000000e+00> : vector<8x16xf32>
    %13 = tpu.matmul %12, %11, %cst_5 {dimension_numbers = #tpu.dot_dimension_numbers<[1], [0], [0], [1], [0, 0, 1, 1], [], []>} : vector<8x32xbf16>, vector<32x16xbf16>, vector<8x16xf32> -> vector<8x16xf32>
    %c0_6 = arith.constant 0 : index
    %c0_7 = arith.constant 0 : index
    %14 = vector.load %arg3[%c0_6, %c0_7] : memref<8x1xf32, #tpu.memory_space<vmem>>, vector<8x1xf32>
    %15 = vector.broadcast %14 : vector<8x1xf32> to vector<8x16xf32>
    %16 = arith.addf %13, %15 : vector<8x16xf32>
    %17 = arith.truncf %16 : vector<8x16xf32> to vector<8x16xbf16>
    %c0_8 = arith.constant 0 : index
    %c0_9 = arith.constant 0 : index
    %c0_10 = arith.constant 0 : index
    %18 = vector.load %arg4[%c0_8, %c0_9, %c0_10] : memref<1x8x16xbf16, #tpu.memory_space<vmem>>, vector<1x8x16xbf16>
    %19 = vector.shape_cast %18 : vector<1x8x16xbf16> to vector<8x16xbf16>
    %20 = vector.shape_cast %17 : vector<8x16xbf16> to vector<1x8x16xbf16>
    tpu.vector_store %arg4[%c0_8, %c0_9, %c0_10], %20 {strides = array<i32>} : memref<1x8x16xbf16, #tpu.memory_space<vmem>>, vector<1x8x16xbf16>,
    return
  }
  func.func @transform_0(%arg0: i32) -> (i32, i32, i32) {
    %c0_i32 = arith.constant 0 : i32
    %c0_i32_0 = arith.constant 0 : i32
    %c0_i32_1 = arith.constant 0 : i32
    return %arg0, %c0_i32, %c0_i32_0 : i32, i32, i32
  }
  func.func @transform_1(%arg0: i32) -> (i32, i32) {
    %c0_i32 = arith.constant 0 : i32
    %c0_i32_0 = arith.constant 0 : i32
    %c0_i32_1 = arith.constant 0 : i32
    return %c0_i32, %c0_i32_0 : i32, i32
  }
  func.func @transform_2(%arg0: i32) -> (i32, i32) {
    %c0_i32 = arith.constant 0 : i32
    %c0_i32_0 = arith.constant 0 : i32
    %c0_i32_1 = arith.constant 0 : i32
    return %c0_i32, %c0_i32_0 : i32, i32
  }
  func.func @transform_3(%arg0: i32) -> (i32, i32, i32) {
    %c0_i32 = arith.constant 0 : i32
    %c0_i32_0 = arith.constant 0 : i32
    %c0_i32_1 = arith.constant 0 : i32
    return %arg0, %c0_i32, %c0_i32_0 : i32, i32, i32
  }
}

module attributes {stable_mosaic.version = 11 : i64} {
  func.func @_conv1d_kernel(%arg0: i32, %arg1: memref<1x8x44xbf16, #tpu.memory_space<vmem>>, %arg2: memref<8x40xbf16, #tpu.memory_space<vmem>>, %arg3: memref<8x1xf32, #tpu.memory_space<vmem>>, %arg4: memref<1x8x32xbf16, #tpu.memory_space<vmem>>) attributes {dimension_semantics = [#tpu.dimension_semantics<parallel>], iteration_bounds = array<i64: 2>, scalar_prefetch = 0 : i64, scratch_operands = 0 : i64, tpu.core_type = #tpu.core_type<tc>, window_params = [{transform_indices = @transform_0, window_bounds = array<i64: 1, 8, 44>}, {pipeline_mode = #tpu.pipeline_mode<synchronous>, transform_indices = @transform_1, window_bounds = array<i64: 8, 40>}, {pipeline_mode = #tpu.pipeline_mode<synchronous>, transform_indices = @transform_2, window_bounds = array<i64: 8, 1>}, {transform_indices = @transform_3, window_bounds = array<i64: 1, 8, 32>}]} {
    %c0 = arith.constant 0 : index
    %c0_0 = arith.constant 0 : index
    %c0_1 = arith.constant 0 : index
    %0 = vector.load %arg1[%c0, %c0_0, %c0_1] : memref<1x8x44xbf16, #tpu.memory_space<vmem>>, vector<1x8x44xbf16>
    %1 = vector.shape_cast %0 : vector<1x8x44xbf16> to vector<8x44xbf16>
    %2 = arith.extf %1 : vector<8x44xbf16> to vector<8x44xf32>
    %cst = arith.constant 0.000000e+00 : f32
    %3 = vector.broadcast %cst : f32 to vector<8x44xf32>
    %4 = arith.cmpf ogt, %2, %3 : vector<8x44xf32>
    %cst_2 = arith.constant 1.000000e-01 : f32
    %5 = vector.broadcast %cst_2 : f32 to vector<8x44xf32>
    %6 = arith.mulf %5, %2 : vector<8x44xf32>
    %7 = arith.select %4, %2, %6 : vector<8x44xi1>, vector<8x44xf32>
    %8 = arith.truncf %7 : vector<8x44xf32> to vector<8x44xbf16>
    %9 = vector.extract_strided_slice %8 {offsets = [0, 0], sizes = [8, 32], strides = [1, 1]} : vector<8x44xbf16> to vector<8x32xbf16>
    %10 = vector.extract_strided_slice %8 {offsets = [0, 3], sizes = [8, 32], strides = [1, 1]} : vector<8x44xbf16> to vector<8x32xbf16>
    %11 = vector.extract_strided_slice %8 {offsets = [0, 6], sizes = [8, 32], strides = [1, 1]} : vector<8x44xbf16> to vector<8x32xbf16>
    %12 = vector.extract_strided_slice %8 {offsets = [0, 9], sizes = [8, 32], strides = [1, 1]} : vector<8x44xbf16> to vector<8x32xbf16>
    %13 = vector.extract_strided_slice %8 {offsets = [0, 12], sizes = [8, 32], strides = [1, 1]} : vector<8x44xbf16> to vector<8x32xbf16>
    %14 = tpu.concatenate %9, %10, %11, %12, %13 in 0 : vector<8x32xbf16>, vector<8x32xbf16>, vector<8x32xbf16>, vector<8x32xbf16>, vector<8x32xbf16> -> vector<40x32xbf16>
    %c0_3 = arith.constant 0 : index
    %c0_4 = arith.constant 0 : index
    %15 = vector.load %arg2[%c0_3, %c0_4] : memref<8x40xbf16, #tpu.memory_space<vmem>>, vector<8x40xbf16>
    %cst_5 = arith.constant dense<0.000000e+00> : vector<8x32xf32>
    %16 = tpu.matmul %15, %14, %cst_5 {dimension_numbers = #tpu.dot_dimension_numbers<[1], [0], [0], [1], [0, 0, 1, 1], [], []>} : vector<8x40xbf16>, vector<40x32xbf16>, vector<8x32xf32> -> vector<8x32xf32>
    %c0_6 = arith.constant 0 : index
    %c0_7 = arith.constant 0 : index
    %17 = vector.load %arg3[%c0_6, %c0_7] : memref<8x1xf32, #tpu.memory_space<vmem>>, vector<8x1xf32>
    %18 = vector.broadcast %17 : vector<8x1xf32> to vector<8x32xf32>
    %19 = arith.addf %16, %18 : vector<8x32xf32>
    %20 = arith.truncf %19 : vector<8x32xf32> to vector<8x32xbf16>
    %c0_8 = arith.constant 0 : index
    %c0_9 = arith.constant 0 : index
    %c0_10 = arith.constant 0 : index
    %21 = vector.load %arg4[%c0_8, %c0_9, %c0_10] : memref<1x8x32xbf16, #tpu.memory_space<vmem>>, vector<1x8x32xbf16>
    %22 = vector.shape_cast %21 : vector<1x8x32xbf16> to vector<8x32xbf16>
    %23 = vector.shape_cast %20 : vector<8x32xbf16> to vector<1x8x32xbf16>
    tpu.vector_store %arg4[%c0_8, %c0_9, %c0_10], %23 {strides = array<i32>} : memref<1x8x32xbf16, #tpu.memory_space<vmem>>, vector<1x8x32xbf16>,
    return
  }
  func.func @transform_0(%arg0: i32) -> (i32, i32, i32) {
    %c0_i32 = arith.constant 0 : i32
    %c0_i32_0 = arith.constant 0 : i32
    %c0_i32_1 = arith.constant 0 : i32
    return %arg0, %c0_i32, %c0_i32_0 : i32, i32, i32
  }
  func.func @transform_1(%arg0: i32) -> (i32, i32) {
    %c0_i32 = arith.constant 0 : i32
    %c0_i32_0 = arith.constant 0 : i32
    %c0_i32_1 = arith.constant 0 : i32
    return %c0_i32, %c0_i32_0 : i32, i32
  }
  func.func @transform_2(%arg0: i32) -> (i32, i32) {
    %c0_i32 = arith.constant 0 : i32
    %c0_i32_0 = arith.constant 0 : i32
    %c0_i32_1 = arith.constant 0 : i32
    return %c0_i32, %c0_i32_0 : i32, i32
  }
  func.func @transform_3(%arg0: i32) -> (i32, i32, i32) {
    %c0_i32 = arith.constant 0 : i32
    %c0_i32_0 = arith.constant 0 : i32
    %c0_i32_1 = arith.constant 0 : i32
    return %arg0, %c0_i32, %c0_i32_0 : i32, i32, i32
  }
}

module attributes {stable_mosaic.version = 11 : i64} {
  func.func @_conv1d_kernel(%arg0: i32, %arg1: memref<1x8x34xbf16, #tpu.memory_space<vmem>>, %arg2: memref<8x24xbf16, #tpu.memory_space<vmem>>, %arg3: memref<8x1xf32, #tpu.memory_space<vmem>>, %arg4: memref<1x8x32xbf16, #tpu.memory_space<vmem>>, %arg5: memref<1x8x32xbf16, #tpu.memory_space<vmem>>) attributes {dimension_semantics = [#tpu.dimension_semantics<parallel>], iteration_bounds = array<i64: 2>, scalar_prefetch = 0 : i64, scratch_operands = 0 : i64, tpu.core_type = #tpu.core_type<tc>, window_params = [{transform_indices = @transform_0, window_bounds = array<i64: 1, 8, 34>}, {pipeline_mode = #tpu.pipeline_mode<synchronous>, transform_indices = @transform_1, window_bounds = array<i64: 8, 24>}, {pipeline_mode = #tpu.pipeline_mode<synchronous>, transform_indices = @transform_2, window_bounds = array<i64: 8, 1>}, {transform_indices = @transform_3, window_bounds = array<i64: 1, 8, 32>}, {transform_indices = @transform_4, window_bounds = array<i64: 1, 8, 32>}]} {
    %c0 = arith.constant 0 : index
    %c0_0 = arith.constant 0 : index
    %c0_1 = arith.constant 0 : index
    %0 = vector.load %arg1[%c0, %c0_0, %c0_1] : memref<1x8x34xbf16, #tpu.memory_space<vmem>>, vector<1x8x34xbf16>
    %1 = vector.shape_cast %0 : vector<1x8x34xbf16> to vector<8x34xbf16>
    %2 = arith.extf %1 : vector<8x34xbf16> to vector<8x34xf32>
    %cst = arith.constant 0.000000e+00 : f32
    %3 = vector.broadcast %cst : f32 to vector<8x34xf32>
    %4 = arith.cmpf ogt, %2, %3 : vector<8x34xf32>
    %cst_2 = arith.constant 1.000000e-01 : f32
    %5 = vector.broadcast %cst_2 : f32 to vector<8x34xf32>
    %6 = arith.mulf %5, %2 : vector<8x34xf32>
    %7 = arith.select %4, %2, %6 : vector<8x34xi1>, vector<8x34xf32>
    %8 = arith.truncf %7 : vector<8x34xf32> to vector<8x34xbf16>
    %9 = vector.extract_strided_slice %8 {offsets = [0, 0], sizes = [8, 32], strides = [1, 1]} : vector<8x34xbf16> to vector<8x32xbf16>
    %10 = vector.extract_strided_slice %8 {offsets = [0, 1], sizes = [8, 32], strides = [1, 1]} : vector<8x34xbf16> to vector<8x32xbf16>
    %11 = vector.extract_strided_slice %8 {offsets = [0, 2], sizes = [8, 32], strides = [1, 1]} : vector<8x34xbf16> to vector<8x32xbf16>
    %12 = tpu.concatenate %9, %10, %11 in 0 : vector<8x32xbf16>, vector<8x32xbf16>, vector<8x32xbf16> -> vector<24x32xbf16>
    %c0_3 = arith.constant 0 : index
    %c0_4 = arith.constant 0 : index
    %13 = vector.load %arg2[%c0_3, %c0_4] : memref<8x24xbf16, #tpu.memory_space<vmem>>, vector<8x24xbf16>
    %cst_5 = arith.constant dense<0.000000e+00> : vector<8x32xf32>
    %14 = tpu.matmul %13, %12, %cst_5 {dimension_numbers = #tpu.dot_dimension_numbers<[1], [0], [0], [1], [0, 0, 1, 1], [], []>} : vector<8x24xbf16>, vector<24x32xbf16>, vector<8x32xf32> -> vector<8x32xf32>
    %c0_6 = arith.constant 0 : index
    %c0_7 = arith.constant 0 : index
    %15 = vector.load %arg3[%c0_6, %c0_7] : memref<8x1xf32, #tpu.memory_space<vmem>>, vector<8x1xf32>
    %16 = vector.broadcast %15 : vector<8x1xf32> to vector<8x32xf32>
    %17 = arith.addf %14, %16 : vector<8x32xf32>
    %c0_8 = arith.constant 0 : index
    %c0_9 = arith.constant 0 : index
    %c0_10 = arith.constant 0 : index
    %18 = vector.load %arg4[%c0_8, %c0_9, %c0_10] : memref<1x8x32xbf16, #tpu.memory_space<vmem>>, vector<1x8x32xbf16>
    %19 = vector.shape_cast %18 : vector<1x8x32xbf16> to vector<8x32xbf16>
    %20 = arith.extf %19 : vector<8x32xbf16> to vector<8x32xf32>
    %21 = arith.addf %17, %20 : vector<8x32xf32>
    %22 = arith.truncf %21 : vector<8x32xf32> to vector<8x32xbf16>
    %c0_11 = arith.constant 0 : index
    %c0_12 = arith.constant 0 : index
    %c0_13 = arith.constant 0 : index
    %23 = vector.load %arg5[%c0_11, %c0_12, %c0_13] : memref<1x8x32xbf16, #tpu.memory_space<vmem>>, vector<1x8x32xbf16>
    %24 = vector.shape_cast %23 : vector<1x8x32xbf16> to vector<8x32xbf16>
    %25 = vector.shape_cast %22 : vector<8x32xbf16> to vector<1x8x32xbf16>
    tpu.vector_store %arg5[%c0_11, %c0_12, %c0_13], %25 {strides = array<i32>} : memref<1x8x32xbf16, #tpu.memory_space<vmem>>, vector<1x8x32xbf16>,
    return
  }
  func.func @transform_0(%arg0: i32) -> (i32, i32, i32) {
    %c0_i32 = arith.constant 0 : i32
    %c0_i32_0 = arith.constant 0 : i32
    %c0_i32_1 = arith.constant 0 : i32
    return %arg0, %c0_i32, %c0_i32_0 : i32, i32, i32
  }
  func.func @transform_1(%arg0: i32) -> (i32, i32) {
    %c0_i32 = arith.constant 0 : i32
    %c0_i32_0 = arith.constant 0 : i32
    %c0_i32_1 = arith.constant 0 : i32
    return %c0_i32, %c0_i32_0 : i32, i32
  }
  func.func @transform_2(%arg0: i32) -> (i32, i32) {
    %c0_i32 = arith.constant 0 : i32
    %c0_i32_0 = arith.constant 0 : i32
    %c0_i32_1 = arith.constant 0 : i32
    return %c0_i32, %c0_i32_0 : i32, i32
  }
  func.func @transform_3(%arg0: i32) -> (i32, i32, i32) {
    %c0_i32 = arith.constant 0 : i32
    %c0_i32_0 = arith.constant 0 : i32
    %c0_i32_1 = arith.constant 0 : i32
    return %arg0, %c0_i32, %c0_i32_0 : i32, i32, i32
  }
  func.func @transform_4(%arg0: i32) -> (i32, i32, i32) {
    %c0_i32 = arith.constant 0 : i32
    %c0_i32_0 = arith.constant 0 : i32
    %c0_i32_1 = arith.constant 0 : i32
    return %arg0, %c0_i32, %c0_i32_0 : i32, i32, i32
  }
}

module attributes {stable_mosaic.version = 11 : i64} {
  func.func @_conv1d_kernel(%arg0: i32, %arg1: memref<1x8x34xbf16, #tpu.memory_space<vmem>>, %arg2: memref<8x24xbf16, #tpu.memory_space<vmem>>, %arg3: memref<8x1xf32, #tpu.memory_space<vmem>>, %arg4: memref<1x8x32xbf16, #tpu.memory_space<vmem>>) attributes {dimension_semantics = [#tpu.dimension_semantics<parallel>], iteration_bounds = array<i64: 2>, scalar_prefetch = 0 : i64, scratch_operands = 0 : i64, tpu.core_type = #tpu.core_type<tc>, window_params = [{transform_indices = @transform_0, window_bounds = array<i64: 1, 8, 34>}, {pipeline_mode = #tpu.pipeline_mode<synchronous>, transform_indices = @transform_1, window_bounds = array<i64: 8, 24>}, {pipeline_mode = #tpu.pipeline_mode<synchronous>, transform_indices = @transform_2, window_bounds = array<i64: 8, 1>}, {transform_indices = @transform_3, window_bounds = array<i64: 1, 8, 32>}]} {
    %c0 = arith.constant 0 : index
    %c0_0 = arith.constant 0 : index
    %c0_1 = arith.constant 0 : index
    %0 = vector.load %arg1[%c0, %c0_0, %c0_1] : memref<1x8x34xbf16, #tpu.memory_space<vmem>>, vector<1x8x34xbf16>
    %1 = vector.shape_cast %0 : vector<1x8x34xbf16> to vector<8x34xbf16>
    %2 = arith.extf %1 : vector<8x34xbf16> to vector<8x34xf32>
    %cst = arith.constant 0.000000e+00 : f32
    %3 = vector.broadcast %cst : f32 to vector<8x34xf32>
    %4 = arith.cmpf ogt, %2, %3 : vector<8x34xf32>
    %cst_2 = arith.constant 1.000000e-01 : f32
    %5 = vector.broadcast %cst_2 : f32 to vector<8x34xf32>
    %6 = arith.mulf %5, %2 : vector<8x34xf32>
    %7 = arith.select %4, %2, %6 : vector<8x34xi1>, vector<8x34xf32>
    %8 = arith.truncf %7 : vector<8x34xf32> to vector<8x34xbf16>
    %9 = vector.extract_strided_slice %8 {offsets = [0, 0], sizes = [8, 32], strides = [1, 1]} : vector<8x34xbf16> to vector<8x32xbf16>
    %10 = vector.extract_strided_slice %8 {offsets = [0, 1], sizes = [8, 32], strides = [1, 1]} : vector<8x34xbf16> to vector<8x32xbf16>
    %11 = vector.extract_strided_slice %8 {offsets = [0, 2], sizes = [8, 32], strides = [1, 1]} : vector<8x34xbf16> to vector<8x32xbf16>
    %12 = tpu.concatenate %9, %10, %11 in 0 : vector<8x32xbf16>, vector<8x32xbf16>, vector<8x32xbf16> -> vector<24x32xbf16>
    %c0_3 = arith.constant 0 : index
    %c0_4 = arith.constant 0 : index
    %13 = vector.load %arg2[%c0_3, %c0_4] : memref<8x24xbf16, #tpu.memory_space<vmem>>, vector<8x24xbf16>
    %cst_5 = arith.constant dense<0.000000e+00> : vector<8x32xf32>
    %14 = tpu.matmul %13, %12, %cst_5 {dimension_numbers = #tpu.dot_dimension_numbers<[1], [0], [0], [1], [0, 0, 1, 1], [], []>} : vector<8x24xbf16>, vector<24x32xbf16>, vector<8x32xf32> -> vector<8x32xf32>
    %c0_6 = arith.constant 0 : index
    %c0_7 = arith.constant 0 : index
    %15 = vector.load %arg3[%c0_6, %c0_7] : memref<8x1xf32, #tpu.memory_space<vmem>>, vector<8x1xf32>
    %16 = vector.broadcast %15 : vector<8x1xf32> to vector<8x32xf32>
    %17 = arith.addf %14, %16 : vector<8x32xf32>
    %18 = arith.truncf %17 : vector<8x32xf32> to vector<8x32xbf16>
    %c0_8 = arith.constant 0 : index
    %c0_9 = arith.constant 0 : index
    %c0_10 = arith.constant 0 : index
    %19 = vector.load %arg4[%c0_8, %c0_9, %c0_10] : memref<1x8x32xbf16, #tpu.memory_space<vmem>>, vector<1x8x32xbf16>
    %20 = vector.shape_cast %19 : vector<1x8x32xbf16> to vector<8x32xbf16>
    %21 = vector.shape_cast %18 : vector<8x32xbf16> to vector<1x8x32xbf16>
    tpu.vector_store %arg4[%c0_8, %c0_9, %c0_10], %21 {strides = array<i32>} : memref<1x8x32xbf16, #tpu.memory_space<vmem>>, vector<1x8x32xbf16>,
    return
  }
  func.func @transform_0(%arg0: i32) -> (i32, i32, i32) {
    %c0_i32 = arith.constant 0 : i32
    %c0_i32_0 = arith.constant 0 : i32
    %c0_i32_1 = arith.constant 0 : i32
    return %arg0, %c0_i32, %c0_i32_0 : i32, i32, i32
  }
  func.func @transform_1(%arg0: i32) -> (i32, i32) {
    %c0_i32 = arith.constant 0 : i32
    %c0_i32_0 = arith.constant 0 : i32
    %c0_i32_1 = arith.constant 0 : i32
    return %c0_i32, %c0_i32_0 : i32, i32
  }
  func.func @transform_2(%arg0: i32) -> (i32, i32) {
    %c0_i32 = arith.constant 0 : i32
    %c0_i32_0 = arith.constant 0 : i32
    %c0_i32_1 = arith.constant 0 : i32
    return %c0_i32, %c0_i32_0 : i32, i32
  }
  func.func @transform_3(%arg0: i32) -> (i32, i32, i32) {
    %c0_i32 = arith.constant 0 : i32
    %c0_i32_0 = arith.constant 0 : i32
    %c0_i32_1 = arith.constant 0 : i32
    return %arg0, %c0_i32, %c0_i32_0 : i32, i32, i32
  }
}

module attributes {stable_mosaic.version = 11 : i64} {
  func.func @_conv1d_kernel(%arg0: i32, %arg1: memref<1x8x38xbf16, #tpu.memory_space<vmem>>, %arg2: memref<8x24xbf16, #tpu.memory_space<vmem>>, %arg3: memref<8x1xf32, #tpu.memory_space<vmem>>, %arg4: memref<1x8x32xbf16, #tpu.memory_space<vmem>>) attributes {dimension_semantics = [#tpu.dimension_semantics<parallel>], iteration_bounds = array<i64: 2>, scalar_prefetch = 0 : i64, scratch_operands = 0 : i64, tpu.core_type = #tpu.core_type<tc>, window_params = [{transform_indices = @transform_0, window_bounds = array<i64: 1, 8, 38>}, {pipeline_mode = #tpu.pipeline_mode<synchronous>, transform_indices = @transform_1, window_bounds = array<i64: 8, 24>}, {pipeline_mode = #tpu.pipeline_mode<synchronous>, transform_indices = @transform_2, window_bounds = array<i64: 8, 1>}, {transform_indices = @transform_3, window_bounds = array<i64: 1, 8, 32>}]} {
    %c0 = arith.constant 0 : index
    %c0_0 = arith.constant 0 : index
    %c0_1 = arith.constant 0 : index
    %0 = vector.load %arg1[%c0, %c0_0, %c0_1] : memref<1x8x38xbf16, #tpu.memory_space<vmem>>, vector<1x8x38xbf16>
    %1 = vector.shape_cast %0 : vector<1x8x38xbf16> to vector<8x38xbf16>
    %2 = arith.extf %1 : vector<8x38xbf16> to vector<8x38xf32>
    %cst = arith.constant 0.000000e+00 : f32
    %3 = vector.broadcast %cst : f32 to vector<8x38xf32>
    %4 = arith.cmpf ogt, %2, %3 : vector<8x38xf32>
    %cst_2 = arith.constant 1.000000e-01 : f32
    %5 = vector.broadcast %cst_2 : f32 to vector<8x38xf32>
    %6 = arith.mulf %5, %2 : vector<8x38xf32>
    %7 = arith.select %4, %2, %6 : vector<8x38xi1>, vector<8x38xf32>
    %8 = arith.truncf %7 : vector<8x38xf32> to vector<8x38xbf16>
    %9 = vector.extract_strided_slice %8 {offsets = [0, 0], sizes = [8, 32], strides = [1, 1]} : vector<8x38xbf16> to vector<8x32xbf16>
    %10 = vector.extract_strided_slice %8 {offsets = [0, 3], sizes = [8, 32], strides = [1, 1]} : vector<8x38xbf16> to vector<8x32xbf16>
    %11 = vector.extract_strided_slice %8 {offsets = [0, 6], sizes = [8, 32], strides = [1, 1]} : vector<8x38xbf16> to vector<8x32xbf16>
    %12 = tpu.concatenate %9, %10, %11 in 0 : vector<8x32xbf16>, vector<8x32xbf16>, vector<8x32xbf16> -> vector<24x32xbf16>
    %c0_3 = arith.constant 0 : index
    %c0_4 = arith.constant 0 : index
    %13 = vector.load %arg2[%c0_3, %c0_4] : memref<8x24xbf16, #tpu.memory_space<vmem>>, vector<8x24xbf16>
    %cst_5 = arith.constant dense<0.000000e+00> : vector<8x32xf32>
    %14 = tpu.matmul %13, %12, %cst_5 {dimension_numbers = #tpu.dot_dimension_numbers<[1], [0], [0], [1], [0, 0, 1, 1], [], []>} : vector<8x24xbf16>, vector<24x32xbf16>, vector<8x32xf32> -> vector<8x32xf32>
    %c0_6 = arith.constant 0 : index
    %c0_7 = arith.constant 0 : index
    %15 = vector.load %arg3[%c0_6, %c0_7] : memref<8x1xf32, #tpu.memory_space<vmem>>, vector<8x1xf32>
    %16 = vector.broadcast %15 : vector<8x1xf32> to vector<8x32xf32>
    %17 = arith.addf %14, %16 : vector<8x32xf32>
    %18 = arith.truncf %17 : vector<8x32xf32> to vector<8x32xbf16>
    %c0_8 = arith.constant 0 : index
    %c0_9 = arith.constant 0 : index
    %c0_10 = arith.constant 0 : index
    %19 = vector.load %arg4[%c0_8, %c0_9, %c0_10] : memref<1x8x32xbf16, #tpu.memory_space<vmem>>, vector<1x8x32xbf16>
    %20 = vector.shape_cast %19 : vector<1x8x32xbf16> to vector<8x32xbf16>
    %21 = vector.shape_cast %18 : vector<8x32xbf16> to vector<1x8x32xbf16>
    tpu.vector_store %arg4[%c0_8, %c0_9, %c0_10], %21 {strides = array<i32>} : memref<1x8x32xbf16, #tpu.memory_space<vmem>>, vector<1x8x32xbf16>,
    return
  }
  func.func @transform_0(%arg0: i32) -> (i32, i32, i32) {
    %c0_i32 = arith.constant 0 : i32
    %c0_i32_0 = arith.constant 0 : i32
    %c0_i32_1 = arith.constant 0 : i32
    return %arg0, %c0_i32, %c0_i32_0 : i32, i32, i32
  }
  func.func @transform_1(%arg0: i32) -> (i32, i32) {
    %c0_i32 = arith.constant 0 : i32
    %c0_i32_0 = arith.constant 0 : i32
    %c0_i32_1 = arith.constant 0 : i32
    return %c0_i32, %c0_i32_0 : i32, i32
  }
  func.func @transform_2(%arg0: i32) -> (i32, i32) {
    %c0_i32 = arith.constant 0 : i32
    %c0_i32_0 = arith.constant 0 : i32
    %c0_i32_1 = arith.constant 0 : i32
    return %c0_i32, %c0_i32_0 : i32, i32
  }
  func.func @transform_3(%arg0: i32) -> (i32, i32, i32) {
    %c0_i32 = arith.constant 0 : i32
    %c0_i32_0 = arith.constant 0 : i32
    %c0_i32_1 = arith.constant 0 : i32
    return %arg0, %c0_i32, %c0_i32_0 : i32, i32, i32
  }
}

module attributes {stable_mosaic.version = 11 : i64} {
  func.func @_conv1d_kernel(%arg0: i32, %arg1: memref<1x8x38xbf16, #tpu.memory_space<vmem>>, %arg2: memref<1x56xbf16, #tpu.memory_space<vmem>>, %arg3: memref<1x1xf32, #tpu.memory_space<vmem>>, %arg4: memref<1x1x32xf32, #tpu.memory_space<vmem>>) attributes {dimension_semantics = [#tpu.dimension_semantics<parallel>], iteration_bounds = array<i64: 2>, scalar_prefetch = 0 : i64, scratch_operands = 0 : i64, tpu.core_type = #tpu.core_type<tc>, window_params = [{transform_indices = @transform_0, window_bounds = array<i64: 1, 8, 38>}, {pipeline_mode = #tpu.pipeline_mode<synchronous>, transform_indices = @transform_1, window_bounds = array<i64: 1, 56>}, {pipeline_mode = #tpu.pipeline_mode<synchronous>, transform_indices = @transform_2, window_bounds = array<i64: 1, 1>}, {transform_indices = @transform_3, window_bounds = array<i64: 1, 1, 32>}]} {
    %c0 = arith.constant 0 : index
    %c0_0 = arith.constant 0 : index
    %c0_1 = arith.constant 0 : index
    %0 = vector.load %arg1[%c0, %c0_0, %c0_1] : memref<1x8x38xbf16, #tpu.memory_space<vmem>>, vector<1x8x38xbf16>
    %1 = vector.shape_cast %0 : vector<1x8x38xbf16> to vector<8x38xbf16>
    %2 = arith.extf %1 : vector<8x38xbf16> to vector<8x38xf32>
    %cst = arith.constant 0.000000e+00 : f32
    %3 = vector.broadcast %cst : f32 to vector<8x38xf32>
    %4 = arith.cmpf ogt, %2, %3 : vector<8x38xf32>
    %cst_2 = arith.constant 1.000000e-01 : f32
    %5 = vector.broadcast %cst_2 : f32 to vector<8x38xf32>
    %6 = arith.mulf %5, %2 : vector<8x38xf32>
    %7 = arith.select %4, %2, %6 : vector<8x38xi1>, vector<8x38xf32>
    %8 = arith.truncf %7 : vector<8x38xf32> to vector<8x38xbf16>
    %9 = vector.extract_strided_slice %8 {offsets = [0, 0], sizes = [8, 32], strides = [1, 1]} : vector<8x38xbf16> to vector<8x32xbf16>
    %10 = vector.extract_strided_slice %8 {offsets = [0, 1], sizes = [8, 32], strides = [1, 1]} : vector<8x38xbf16> to vector<8x32xbf16>
    %11 = vector.extract_strided_slice %8 {offsets = [0, 2], sizes = [8, 32], strides = [1, 1]} : vector<8x38xbf16> to vector<8x32xbf16>
    %12 = vector.extract_strided_slice %8 {offsets = [0, 3], sizes = [8, 32], strides = [1, 1]} : vector<8x38xbf16> to vector<8x32xbf16>
    %13 = vector.extract_strided_slice %8 {offsets = [0, 4], sizes = [8, 32], strides = [1, 1]} : vector<8x38xbf16> to vector<8x32xbf16>
    %14 = vector.extract_strided_slice %8 {offsets = [0, 5], sizes = [8, 32], strides = [1, 1]} : vector<8x38xbf16> to vector<8x32xbf16>
    %15 = vector.extract_strided_slice %8 {offsets = [0, 6], sizes = [8, 32], strides = [1, 1]} : vector<8x38xbf16> to vector<8x32xbf16>
    %16 = tpu.concatenate %9, %10, %11, %12, %13, %14, %15 in 0 : vector<8x32xbf16>, vector<8x32xbf16>, vector<8x32xbf16>, vector<8x32xbf16>, vector<8x32xbf16>, vector<8x32xbf16>, vector<8x32xbf16> -> vector<56x32xbf16>
    %c0_3 = arith.constant 0 : index
    %c0_4 = arith.constant 0 : index
    %17 = vector.load %arg2[%c0_3, %c0_4] : memref<1x56xbf16, #tpu.memory_space<vmem>>, vector<1x56xbf16>
    %cst_5 = arith.constant dense<0.000000e+00> : vector<1x32xf32>
    %18 = tpu.matmul %17, %16, %cst_5 {dimension_numbers = #tpu.dot_dimension_numbers<[1], [0], [0], [1], [0, 0, 1, 1], [], []>} : vector<1x56xbf16>, vector<56x32xbf16>, vector<1x32xf32> -> vector<1x32xf32>
    %c0_6 = arith.constant 0 : index
    %c0_7 = arith.constant 0 : index
    %19 = vector.load %arg3[%c0_6, %c0_7] : memref<1x1xf32, #tpu.memory_space<vmem>>, vector<1x1xf32>
    %20 = vector.broadcast %19 : vector<1x1xf32> to vector<1x32xf32>
    %21 = arith.addf %18, %20 : vector<1x32xf32>
    %22 = math.tanh %21 : vector<1x32xf32>
    %c0_8 = arith.constant 0 : index
    %c0_9 = arith.constant 0 : index
    %c0_10 = arith.constant 0 : index
    %23 = vector.load %arg4[%c0_8, %c0_9, %c0_10] : memref<1x1x32xf32, #tpu.memory_space<vmem>>, vector<1x1x32xf32>
    %24 = vector.shape_cast %23 : vector<1x1x32xf32> to vector<1x32xf32>
    %25 = vector.shape_cast %22 : vector<1x32xf32> to vector<1x1x32xf32>
    tpu.vector_store %arg4[%c0_8, %c0_9, %c0_10], %25 {strides = array<i32>} : memref<1x1x32xf32, #tpu.memory_space<vmem>>, vector<1x1x32xf32>,
    return
  }
  func.func @transform_0(%arg0: i32) -> (i32, i32, i32) {
    %c0_i32 = arith.constant 0 : i32
    %c0_i32_0 = arith.constant 0 : i32
    %c0_i32_1 = arith.constant 0 : i32
    return %arg0, %c0_i32, %c0_i32_0 : i32, i32, i32
  }
  func.func @transform_1(%arg0: i32) -> (i32, i32) {
    %c0_i32 = arith.constant 0 : i32
    %c0_i32_0 = arith.constant 0 : i32
    %c0_i32_1 = arith.constant 0 : i32
    return %c0_i32, %c0_i32_0 : i32, i32
  }
  func.func @transform_2(%arg0: i32) -> (i32, i32) {
    %c0_i32 = arith.constant 0 : i32
    %c0_i32_0 = arith.constant 0 : i32
    %c0_i32_1 = arith.constant 0 : i32
    return %c0_i32, %c0_i32_0 : i32, i32
  }
  func.func @transform_3(%arg0: i32) -> (i32, i32, i32) {
    %c0_i32 = arith.constant 0 : i32
    %c0_i32_0 = arith.constant 0 : i32
    %c0_i32_1 = arith.constant 0 : i32
    return %arg0, %c0_i32, %c0_i32_0 : i32, i32, i32
  }
}

</mosaic_0001>

<llo_original>
// kernel: a_call__.23
$region0: #{a_call__.23}
  #allocation0 [shape = 'u32[]', space=smem, size = 0x4, offset = 0x4, fixed_abs, tag = 'smem constant byte address 0x4 - core index']
  #allocation1 [shape = 'u32[144,128]{1,0:T(1,128)}', space=vmem, size = 0x12000, scoped, tag = 'internal scratch']
  %s0 = inlined_call_operand.vmem [shape: bf16[2,32,9], index: 0, kind: input, shape index: {}]
  %s1 = inlined_call_operand.vmem [shape: bf16[16,64], index: 1, kind: input, shape index: {}]
  %s2 = inlined_call_operand.vmem [shape: f32[16,1], index: 2, kind: input, shape index: {}]
  %s3 = inlined_call_operand.vmem [shape: bf16[2,16,8], index: 3, kind: output, shape index: {}]
  %s4 = sld [smem:[#allocation0]]
  $region45: #{a_call__.23} parent=0
    _
  %s6 = ssub.s32 1, %s4
  %s7 = scalar_select 0, %s6, %s4
  loop: start=0, step=1, limit=4
  $region2: #{a_call__.23} parent=0 // loop_pre_header
    _
  $region3: #{a_call__.23} parent=0 // loop_header
    %s9 = sphi 0, %s13
    %p10 = scmp.ge.s32.totalorder %s9, 4
    %s19 = sphi 0, %s21
    %s22 = sphi 0, %s19
    %s23 = sphi 0, %s22
    %s39 = sphi 0, %s23
    %s43 = sphi 0, %s43
    %s45 = sphi 0, %s43
    %s46 = sphi 0, %s45
    %s60 = sphi 0, %s46
    %s64 = sphi 0, %s64
    %s66 = sphi 0, %s64
    %s67 = sphi 0, %s66
    %s81 = sphi 0, %s67
    %s87 = sphi 0, %s89
    %s90 = sphi 0, %s87
    %s91 = sphi 0, %s90
    %s107 = sphi 0, %s91
  $region4: #{a_call__.23} parent=0 // loop_header_branch
    %12 = sbr.rel (%p10) target = $region8
  $region5: #{a_call__.23} parent=0 // loop_body
    %s14 = ssub.s32 %s9, 1
    %s15 = ssub.s32 %s9, 2
    %s16 = sadd.s32 %s9, 1
    %s17 = ssub.s32 %s9, %s16
    %p18 = scmp.eq.s32.totalorder %s17, 0
    %s20 = sadd.s32 %s19, 1
    %s21 = scalar_select %p18, %s19, %s20
    %p24 = pneg %p18
    %p25 = scmp.eq.s32.totalorder %s9, 1
    %p26 = por %p24, %p25
    %p27 = scmp.ne.s32.totalorder %s19, %s22
    %p28 = scmp.eq.s32.totalorder %s9, 0
    %p29 = por %p27, %p28
    %p30 = scmp.ne.s32.totalorder %s19, %s22
    %p31 = scmp.eq.s32.totalorder %s14, 1
    %p32 = por %p30, %p31
    %p33 = scmp.ne.s32.totalorder %s22, %s23
    %p34 = scmp.eq.s32.totalorder %s14, 0
    %p35 = por %p33, %p34
    %p36 = scmp.ne.s32.totalorder %s22, %s23
    %p37 = scmp.eq.s32.totalorder %s15, 1
    %p38 = por %p36, %p37
    %p40 = scmp.ne.s32.totalorder %s23, %s39
    %p41 = scmp.eq.s32.totalorder %s15, 0
    %p42 = por %p40, %p41
    %s44 = sadd.s32 %s43, 1
    %p47 = scmp.eq.s32.totalorder %s9, 1
    %p48 = scmp.ne.s32.totalorder %s43, %s45
    %p49 = scmp.eq.s32.totalorder %s9, 0
    %p50 = por %p48, %p49
    %p51 = scmp.ne.s32.totalorder %s43, %s45
    %p52 = scmp.eq.s32.totalorder %s14, 1
    %p53 = por %p51, %p52
    %p54 = scmp.ne.s32.totalorder %s45, %s46
    %p55 = scmp.eq.s32.totalorder %s14, 0
    %p56 = por %p54, %p55
    %p57 = scmp.ne.s32.totalorder %s45, %s46
    %p58 = scmp.eq.s32.totalorder %s15, 1
    %p59 = por %p57, %p58
    %p61 = scmp.ne.s32.totalorder %s46, %s60
    %p62 = scmp.eq.s32.totalorder %s15, 0
    %p63 = por %p61, %p62
    %s65 = sadd.s32 %s64, 1
    %p68 = scmp.eq.s32.totalorder %s9, 1
    %p69 = scmp.ne.s32.totalorder %s64, %s66
    %p70 = scmp.eq.s32.totalorder %s9, 0
    %p71 = por %p69, %p70
    %p72 = scmp.ne.s32.totalorder %s64, %s66
    %p73 = scmp.eq.s32.totalorder %s14, 1
    %p74 = por %p72, %p73
    %p75 = scmp.ne.s32.totalorder %s66, %s67
    %p76 = scmp.eq.s32.totalorder %s14, 0
    %p77 = por %p75, %p76
    %p78 = scmp.ne.s32.totalorder %s66, %s67
    %p79 = scmp.eq.s32.totalorder %s15, 1
    %p80 = por %p78, %p79
    %p82 = scmp.ne.s32.totalorder %s67, %s81
    %p83 = scmp.eq.s32.totalorder %s15, 0
    %p84 = por %p82, %p83
    %s85 = ssub.s32 %s9, %s16
    %p86 = scmp.eq.s32.totalorder %s85, 0
    %s88 = sadd.s32 %s87, 1
    %s89 = scalar_select %p86, %s87, %s88
    %p92 = pneg %p86
    %p93 = scmp.eq.s32.totalorder %s9, 1
    %p94 = por %p92, %p93
    %p95 = scmp.ne.s32.totalorder %s87, %s90
    %p96 = scmp.eq.s32.totalorder %s9, 0
    %p97 = por %p95, %p96
    %p98 = scmp.ne.s32.totalorder %s87, %s90
    %p99 = scmp.eq.s32.totalorder %s14, 1
    %p100 = por %p98, %p99
    %p101 = scmp.ne.s32.totalorder %s90, %s91
    %p102 = scmp.eq.s32.totalorder %s14, 0
    %p103 = por %p101, %p102
    %p104 = scmp.ne.s32.totalorder %s90, %s91
    %p105 = scmp.eq.s32.totalorder %s15, 1
    %p106 = por %p104, %p105
    %p108 = scmp.ne.s32.totalorder %s91, %s107
    %p109 = scmp.eq.s32.totalorder %s15, 0
    %p110 = por %p108, %p109
    %p111 = scmp.le.s32.totalorder 1, %s9
    %p112 = scmp.lt.s32.totalorder %s9, 3
    %p113 = pnand %p111, %p112
    %p114 = pneg %p113
    // Predicated region
    $region9: #{a_call__.23} parent=5 // pred_check
      _
    $region10: #{a_call__.23} parent=5 // pred_check_branch
      %116 = sbr.rel (%p113) target = $region12
    $region11: #{a_call__.23} parent=5 // pred_region
      %s117 = ssub.s32 %s9, 1
      // Predicated region
      $region13: #{a_call__.23} parent=11 // pred_check
        %p118 = pneg %p56
      $region14: #{a_call__.23} parent=11 // pred_check_branch
        %120 = sbr.rel (%p118) target = $region16
      $region15: #{a_call__.23} parent=11 // pred_region
        _
      $region16: #{a_call__.23} parent=11 // pred_fallthru
        _
      // Predicated region
      $region17: #{a_call__.23} parent=11 // pred_check
        %p121 = pneg %p77
      $region18: #{a_call__.23} parent=11 // pred_check_branch
        %123 = sbr.rel (%p121) target = $region20
      $region19: #{a_call__.23} parent=11 // pred_region
        _
      $region20: #{a_call__.23} parent=11 // pred_fallthru
        _
    $region12: #{a_call__.23} parent=5 // pred_fallthru
      _
    %p124 = scmp.lt.s32.totalorder %s9, 2
    // Predicated region
    $region21: #{a_call__.23} parent=5 // pred_check
      %p125 = pneg %p124
    $region22: #{a_call__.23} parent=5 // pred_check_branch
      %127 = sbr.rel (%p125) target = $region24
    $region23: #{a_call__.23} parent=5 // pred_region
      // Predicated region
      $region25: #{a_call__.23} parent=23 // pred_check
        %p128 = pneg %p29
      $region26: #{a_call__.23} parent=23 // pred_check_branch
        %130 = sbr.rel (%p128) target = $region28
      $region27: #{a_call__.23} parent=23 // pred_region
        %p131 = scmp.lt.s32.totalorder %s9, 1
        %s132 = scalar_select %p131, %s9, 1
        %s133 = smul.addr %s132, 4
        %s134 = smul.addr %s133, 4
        %s135 = scalar_lea.vmem %s0, %s134
      $region28: #{a_call__.23} parent=23 // pred_fallthru
        _
    $region24: #{a_call__.23} parent=5 // pred_fallthru
      _
    %p136 = scmp.le.s32.totalorder 1, %s9
    %p137 = scmp.lt.s32.totalorder %s9, 3
    %p138 = pnand %p136, %p137
    %p139 = pneg %p138
    // Predicated region
    $region29: #{a_call__.23} parent=5 // pred_check
      _
    $region30: #{a_call__.23} parent=5 // pred_check_branch
      %141 = sbr.rel (%p138) target = $region32
    $region31: #{a_call__.23} parent=5 // pred_region
      %s142 = ssub.s32 %s9, 1
      %p143 = scmp.lt.s32.totalorder %s14, 1
      %s144 = scalar_select %p143, %s14, 1
      %s145 = smul.addr %s144, 4
      %s146 = smul.addr %s145, 4
      %s147 = scalar_lea.vmem %s0, %s146
      %p148 = pneg %p35
      %p149 = pneg %p32
      %p150 = pneg %p56
      %p151 = pneg %p53
      %p152 = pneg %p77
      %p153 = pneg %p74
      %p154 = pneg %p103
      %p155 = pneg %p100
      %p156 = scmp.lt.s32.totalorder %s14, 1
      %s157 = scalar_select %p156, %s14, 1
      %s158 = smul.addr %s157, 2
      %s159 = smul.addr %s158, 4
      %s160 = scalar_lea.vmem %s3, %s159
      %p161 = scmp.lt.s32.totalorder %s14, 1
      %s162 = scalar_select %p161, %s14, 1
      %s163 = smul.addr %s162, 4
      %s164 = smul.addr %s163, 4
      %s165 = scalar_lea.vmem %s0, %s164
      %p166 = scmp.lt.s32.totalorder %s14, 1
      %s167 = scalar_select %p166, %s14, 1
      %s168 = smul.addr %s167, 2
      %s169 = smul.addr %s168, 4
      %s170 = scalar_lea.vmem %s3, %s169
      %v172 = vld [vmem:[%s165] sm:$0xf]
      %v173 = vld [vmem:[%s165 + $0x4] sm:$0xf]
      %v174 = vld [vmem:[%s165 + $0x8] sm:$0xf]
      %v175 = vld [vmem:[%s165 + $0xc] sm:$0xf]
      %v176 = vunpack.c.l.bf16 %v172
      %v177 = vunpack.c.l.bf16 %v173
      %v178 = vunpack.c.l.bf16 %v174
      %v179 = vunpack.c.l.bf16 %v175
      %vm180 = vcmp.gt.f32.partialorder %v176, 0.0
      %vm181 = vcmp.gt.f32.partialorder %v177, 0.0
      %vm182 = vcmp.gt.f32.partialorder %v178, 0.0
      %vm183 = vcmp.gt.f32.partialorder %v179, 0.0
      %v184 = vmul.f32 %v176, 0.1
      %v185 = vmul.f32 %v177, 0.1
      %v186 = vmul.f32 %v178, 0.1
      %v187 = vmul.f32 %v179, 0.1
      %v188 = vsel %vm180, %v176, %v184
      %v189 = vsel %vm181, %v177, %v185
      %v190 = vsel %vm182, %v178, %v186
      %v191 = vsel %vm183, %v179, %v187
      %v192 = vpack.c.bf16 %v189, %v188
      %v193 = vpack.c.bf16 %v191, %v190
      %196 = vrot.lane.b32.xlu0 %v192, 127
      %v197 = vpop.permute.xlu0 %196
      %198 = vrot.lane.b32.xlu0 %v193, 127
      %v199 = vpop.permute.xlu0 %198
      %v202 = vld [vmem:[%s1] sm:$0xf]
      %v203 = vld [vmem:[%s1 + $0x4] sm:$0xf]
      %v204 = vld [vmem:[%s2] sm:$0xff]
      %v205 = vld [vmem:[%s2 + $0x8] sm:$0xff]
      %207 = vset.pattern.permute.xlu0 0
      %208 = vperm.xlu0 %207, %v204
      %v209 = vpop.permute.xlu0 %208
      %212 = vset.pattern.permute.xlu0 0
      %213 = vperm.xlu0 %212, %v205
      %v214 = vpop.permute.xlu0 %213
      %v218 = vunpack.c.l.b16 %v202
      %v219 = vunpack.c.l.b16 %v203
      %v220 = vpack.c.b16 %v219, %v218
      %vm221 = vcmask 523264
      %v223 = vsel %vm221, %v220, 0
      %225 = vmatprep.subr.bf16.mxu0 0
      %226 = vmatpush1.bf16.msra.mxu0 0
      %227 = vmatprep.subr.bf16.mxu0 0
      %228 = vmatpush1.bf16.msra.mxu0 0
      %229 = vmatprep.subr.bf16.mxu0 0
      %230 = vmatpush1.bf16.msra.mxu0 0
      %231 = vmatprep.subr.bf16.mxu0 0
      %232 = vmatpush1.bf16.msra.mxu0 0
      %233 = vmatprep.subr.bf16.mxu0 0
      %234 = vmatpush1.bf16.msra.mxu0 %v199
      %235 = vmatprep.subr.bf16.mxu0 0
      %236 = vmatpush1.bf16.msra.mxu0 %v197
      %237 = vmatprep.subr.bf16.mxu0 0
      %238 = vmatpush1.bf16.msra.mxu0 %v193
      %239 = vmatprep.subr.bf16.mxu0 0
      %240 = vmatpush1.bf16.msra.mxu0 %v192
      %241 = vmatprep.subr.bf16.mxu0 0
      %242 = vmatpush2.bf16.msra.mxu0 0
      %243 = vmatprep.subr.bf16.mxu0 0
      %244 = vmatpush2.bf16.msra.mxu0 0
      %245 = vmatprep.subr.bf16.mxu0 0
      %246 = vmatpush2.bf16.msra.mxu0 0
      %247 = vmatprep.subr.bf16.mxu0 0
      %248 = vmatpush2.bf16.msra.mxu0 0
      %249 = vmatprep.subr.bf16.mxu0 0
      %250 = vmatpush2.bf16.msra.mxu0 0
      %251 = vmatprep.subr.bf16.mxu0 0
      %252 = vmatpush2.bf16.msra.mxu0 0
      %253 = vmatprep.subr.bf16.mxu0 0
      %254 = vmatpush2.bf16.msra.mxu0 0
      %255 = vmatprep.subr.bf16.mxu0 0
      %256 = vmatpush2.bf16.msra.mxu0 0
      %257 = vmatprep.mubr.bf16.mxu0 0
      %258 = vmatmul.mubr.bf16.gmra.mxu0 %v223
      %v259 = vpop.f32.mrf.mxu0
      %v260 = vadd.f32 %v209, %v259
      %v261 = vpop.f32.mrf.mxu0
      %v262 = vpop.f32.mrf.mxu0
      %v263 = vadd.f32 %v214, %v262
      %v264 = vpop.f32.mrf.mxu0
      %265 = vdwg.mxu0
      %v266 = vpack.c.bf16 %v263, %v260
      %v268 = vunpack.c.l.b16 %v266
      %v269 = vunpack.c.h.b16 %v266
      %v270 = vpack.c.b16 %v268, %v268
      %v271 = vpack.c.b16 %v269, %v269
      %vm274 = vcmask 60416
      %275 = vst.msk [vmem:[%s170] sm:$0xf] %vm274, %v270
      %276 = vst.msk [vmem:[%s170 + $0x4] sm:$0xf] %vm274, %v271
      %p277 = scmp.lt.s32.totalorder %s14, 1
      %s278 = scalar_select %p277, %s14, 1
      %s279 = smul.addr %s278, 2
      %s280 = smul.addr %s279, 4
      %s281 = scalar_lea.vmem %s3, %s280
      // Predicated region
      $region33: #{a_call__.23} parent=31 // pred_check
        %p282 = pneg %p100
      $region34: #{a_call__.23} parent=31 // pred_check_branch
        %284 = sbr.rel (%p282) target = $region36
      $region35: #{a_call__.23} parent=31 // pred_region
        _
      $region36: #{a_call__.23} parent=31 // pred_fallthru
        _
    $region32: #{a_call__.23} parent=5 // pred_fallthru
      _
    %p285 = scmp.le.s32.totalorder 2, %s9
    // Predicated region
    $region37: #{a_call__.23} parent=5 // pred_check
      %p286 = pneg %p285
    $region38: #{a_call__.23} parent=5 // pred_check_branch
      %288 = sbr.rel (%p286) target = $region40
    $region39: #{a_call__.23} parent=5 // pred_region
      %s289 = ssub.s32 %s9, 2
      // Predicated region
      $region41: #{a_call__.23} parent=39 // pred_check
        %p290 = pneg %p106
      $region42: #{a_call__.23} parent=39 // pred_check_branch
        %292 = sbr.rel (%p290) target = $region44
      $region43: #{a_call__.23} parent=39 // pred_region
        %p293 = scmp.lt.s32.totalorder %s15, 1
        %s294 = scalar_select %p293, %s15, 1
        %s295 = smul.addr %s294, 2
        %s296 = smul.addr %s295, 4
        %s297 = scalar_lea.vmem %s3, %s296
      $region44: #{a_call__.23} parent=39 // pred_fallthru
        _
    $region40: #{a_call__.23} parent=5 // pred_fallthru
      _
  $region6: #{a_call__.23} parent=0 // loop_footer
    %s13 = sadd.s32 1, %s9
  $region7: #{a_call__.23} parent=0 // loop_footer_branch
    %8 = sbr.rel target = $region3
  $region8: #{a_call__.23} parent=0 // loop_exit
    _

// kernel: a_call__.29
$region0: #{a_call__.29}
  #allocation0 [shape = 'u32[]', space=smem, size = 0x4, offset = 0x4, fixed_abs, tag = 'smem constant byte address 0x4 - core index']
  #allocation1 [shape = 'u32[144,128]{1,0:T(1,128)}', space=vmem, size = 0x12000, scoped, tag = 'internal scratch']
  %s0 = inlined_call_operand.vmem [shape: bf16[2,16,20], index: 0, kind: input, shape index: {}]
  %s1 = inlined_call_operand.vmem [shape: bf16[16,80], index: 1, kind: input, shape index: {}]
  %s2 = inlined_call_operand.vmem [shape: f32[16,1], index: 2, kind: input, shape index: {}]
  %s3 = inlined_call_operand.vmem [shape: bf16[2,16,16], index: 3, kind: output, shape index: {}]
  %s4 = sld [smem:[#allocation0]]
  $region45: #{a_call__.29} parent=0
    _
  %s6 = ssub.s32 1, %s4
  %s7 = scalar_select 0, %s6, %s4
  loop: start=0, step=1, limit=4
  $region2: #{a_call__.29} parent=0 // loop_pre_header
    _
  $region3: #{a_call__.29} parent=0 // loop_header
    %s9 = sphi 0, %s13
    %p10 = scmp.ge.s32.totalorder %s9, 4
    %s19 = sphi 0, %s21
    %s22 = sphi 0, %s19
    %s23 = sphi 0, %s22
    %s39 = sphi 0, %s23
    %s43 = sphi 0, %s43
    %s45 = sphi 0, %s43
    %s46 = sphi 0, %s45
    %s60 = sphi 0, %s46
    %s64 = sphi 0, %s64
    %s66 = sphi 0, %s64
    %s67 = sphi 0, %s66
    %s81 = sphi 0, %s67
    %s87 = sphi 0, %s89
    %s90 = sphi 0, %s87
    %s91 = sphi 0, %s90
    %s107 = sphi 0, %s91
  $region4: #{a_call__.29} parent=0 // loop_header_branch
    %12 = sbr.rel (%p10) target = $region8
  $region5: #{a_call__.29} parent=0 // loop_body
    %s14 = ssub.s32 %s9, 1
    %s15 = ssub.s32 %s9, 2
    %s16 = sadd.s32 %s9, 1
    %s17 = ssub.s32 %s9, %s16
    %p18 = scmp.eq.s32.totalorder %s17, 0
    %s20 = sadd.s32 %s19, 1
    %s21 = scalar_select %p18, %s19, %s20
    %p24 = pneg %p18
    %p25 = scmp.eq.s32.totalorder %s9, 1
    %p26 = por %p24, %p25
    %p27 = scmp.ne.s32.totalorder %s19, %s22
    %p28 = scmp.eq.s32.totalorder %s9, 0
    %p29 = por %p27, %p28
    %p30 = scmp.ne.s32.totalorder %s19, %s22
    %p31 = scmp.eq.s32.totalorder %s14, 1
    %p32 = por %p30, %p31
    %p33 = scmp.ne.s32.totalorder %s22, %s23
    %p34 = scmp.eq.s32.totalorder %s14, 0
    %p35 = por %p33, %p34
    %p36 = scmp.ne.s32.totalorder %s22, %s23
    %p37 = scmp.eq.s32.totalorder %s15, 1
    %p38 = por %p36, %p37
    %p40 = scmp.ne.s32.totalorder %s23, %s39
    %p41 = scmp.eq.s32.totalorder %s15, 0
    %p42 = por %p40, %p41
    %s44 = sadd.s32 %s43, 1
    %p47 = scmp.eq.s32.totalorder %s9, 1
    %p48 = scmp.ne.s32.totalorder %s43, %s45
    %p49 = scmp.eq.s32.totalorder %s9, 0
    %p50 = por %p48, %p49
    %p51 = scmp.ne.s32.totalorder %s43, %s45
    %p52 = scmp.eq.s32.totalorder %s14, 1
    %p53 = por %p51, %p52
    %p54 = scmp.ne.s32.totalorder %s45, %s46
    %p55 = scmp.eq.s32.totalorder %s14, 0
    %p56 = por %p54, %p55
    %p57 = scmp.ne.s32.totalorder %s45, %s46
    %p58 = scmp.eq.s32.totalorder %s15, 1
    %p59 = por %p57, %p58
    %p61 = scmp.ne.s32.totalorder %s46, %s60
    %p62 = scmp.eq.s32.totalorder %s15, 0
    %p63 = por %p61, %p62
    %s65 = sadd.s32 %s64, 1
    %p68 = scmp.eq.s32.totalorder %s9, 1
    %p69 = scmp.ne.s32.totalorder %s64, %s66
    %p70 = scmp.eq.s32.totalorder %s9, 0
    %p71 = por %p69, %p70
    %p72 = scmp.ne.s32.totalorder %s64, %s66
    %p73 = scmp.eq.s32.totalorder %s14, 1
    %p74 = por %p72, %p73
    %p75 = scmp.ne.s32.totalorder %s66, %s67
    %p76 = scmp.eq.s32.totalorder %s14, 0
    %p77 = por %p75, %p76
    %p78 = scmp.ne.s32.totalorder %s66, %s67
    %p79 = scmp.eq.s32.totalorder %s15, 1
    %p80 = por %p78, %p79
    %p82 = scmp.ne.s32.totalorder %s67, %s81
    %p83 = scmp.eq.s32.totalorder %s15, 0
    %p84 = por %p82, %p83
    %s85 = ssub.s32 %s9, %s16
    %p86 = scmp.eq.s32.totalorder %s85, 0
    %s88 = sadd.s32 %s87, 1
    %s89 = scalar_select %p86, %s87, %s88
    %p92 = pneg %p86
    %p93 = scmp.eq.s32.totalorder %s9, 1
    %p94 = por %p92, %p93
    %p95 = scmp.ne.s32.totalorder %s87, %s90
    %p96 = scmp.eq.s32.totalorder %s9, 0
    %p97 = por %p95, %p96
    %p98 = scmp.ne.s32.totalorder %s87, %s90
    %p99 = scmp.eq.s32.totalorder %s14, 1
    %p100 = por %p98, %p99
    %p101 = scmp.ne.s32.totalorder %s90, %s91
    %p102 = scmp.eq.s32.totalorder %s14, 0
    %p103 = por %p101, %p102
    %p104 = scmp.ne.s32.totalorder %s90, %s91
    %p105 = scmp.eq.s32.totalorder %s15, 1
    %p106 = por %p104, %p105
    %p108 = scmp.ne.s32.totalorder %s91, %s107
    %p109 = scmp.eq.s32.totalorder %s15, 0
    %p110 = por %p108, %p109
    %p111 = scmp.le.s32.totalorder 1, %s9
    %p112 = scmp.lt.s32.totalorder %s9, 3
    %p113 = pnand %p111, %p112
    %p114 = pneg %p113
    // Predicated region
    $region9: #{a_call__.29} parent=5 // pred_check
      _
    $region10: #{a_call__.29} parent=5 // pred_check_branch
      %116 = sbr.rel (%p113) target = $region12
    $region11: #{a_call__.29} parent=5 // pred_region
      %s117 = ssub.s32 %s9, 1
      // Predicated region
      $region13: #{a_call__.29} parent=11 // pred_check
        %p118 = pneg %p56
      $region14: #{a_call__.29} parent=11 // pred_check_branch
        %120 = sbr.rel (%p118) target = $region16
      $region15: #{a_call__.29} parent=11 // pred_region
        _
      $region16: #{a_call__.29} parent=11 // pred_fallthru
        _
      // Predicated region
      $region17: #{a_call__.29} parent=11 // pred_check
        %p121 = pneg %p77
      $region18: #{a_call__.29} parent=11 // pred_check_branch
        %123 = sbr.rel (%p121) target = $region20
      $region19: #{a_call__.29} parent=11 // pred_region
        _
      $region20: #{a_call__.29} parent=11 // pred_fallthru
        _
    $region12: #{a_call__.29} parent=5 // pred_fallthru
      _
    %p124 = scmp.lt.s32.totalorder %s9, 2
    // Predicated region
    $region21: #{a_call__.29} parent=5 // pred_check
      %p125 = pneg %p124
    $region22: #{a_call__.29} parent=5 // pred_check_branch
      %127 = sbr.rel (%p125) target = $region24
    $region23: #{a_call__.29} parent=5 // pred_region
      // Predicated region
      $region25: #{a_call__.29} parent=23 // pred_check
        %p128 = pneg %p29
      $region26: #{a_call__.29} parent=23 // pred_check_branch
        %130 = sbr.rel (%p128) target = $region28
      $region27: #{a_call__.29} parent=23 // pred_region
        %p131 = scmp.lt.s32.totalorder %s9, 1
        %s132 = scalar_select %p131, %s9, 1
        %s133 = smul.addr %s132, 2
        %s134 = smul.addr %s133, 4
        %s135 = scalar_lea.vmem %s0, %s134
      $region28: #{a_call__.29} parent=23 // pred_fallthru
        _
    $region24: #{a_call__.29} parent=5 // pred_fallthru
      _
    %p136 = scmp.le.s32.totalorder 1, %s9
    %p137 = scmp.lt.s32.totalorder %s9, 3
    %p138 = pnand %p136, %p137
    %p139 = pneg %p138
    // Predicated region
    $region29: #{a_call__.29} parent=5 // pred_check
      _
    $region30: #{a_call__.29} parent=5 // pred_check_branch
      %141 = sbr.rel (%p138) target = $region32
    $region31: #{a_call__.29} parent=5 // pred_region
      %s142 = ssub.s32 %s9, 1
      %p143 = scmp.lt.s32.totalorder %s14, 1
      %s144 = scalar_select %p143, %s14, 1
      %s145 = smul.addr %s144, 2
      %s146 = smul.addr %s145, 4
      %s147 = scalar_lea.vmem %s0, %s146
      %p148 = pneg %p35
      %p149 = pneg %p32
      %p150 = pneg %p56
      %p151 = pneg %p53
      %p152 = pneg %p77
      %p153 = pneg %p74
      %p154 = pneg %p103
      %p155 = pneg %p100
      %p156 = scmp.lt.s32.totalorder %s14, 1
      %s157 = scalar_select %p156, %s14, 1
      %s158 = smul.addr %s157, 2
      %s159 = smul.addr %s158, 4
      %s160 = scalar_lea.vmem %s3, %s159
      %p161 = scmp.lt.s32.totalorder %s14, 1
      %s162 = scalar_select %p161, %s14, 1
      %s163 = smul.addr %s162, 2
      %s164 = smul.addr %s163, 4
      %s165 = scalar_lea.vmem %s0, %s164
      %p166 = scmp.lt.s32.totalorder %s14, 1
      %s167 = scalar_select %p166, %s14, 1
      %s168 = smul.addr %s167, 2
      %s169 = smul.addr %s168, 4
      %s170 = scalar_lea.vmem %s3, %s169
      %v172 = vld [vmem:[%s165] sm:$0xf]
      %v173 = vld [vmem:[%s165 + $0x4] sm:$0xf]
      %v174 = vunpack.c.l.bf16 %v172
      %v175 = vunpack.c.l.bf16 %v173
      %vm176 = vcmp.gt.f32.partialorder %v174, 0.0
      %vm177 = vcmp.gt.f32.partialorder %v175, 0.0
      %v178 = vmul.f32 %v174, 0.1
      %v179 = vmul.f32 %v175, 0.1
      %v180 = vsel %vm176, %v174, %v178
      %v181 = vsel %vm177, %v175, %v179
      %v182 = vpack.c.bf16 %v181, %v180
      %184 = vrot.lane.b32.xlu0 %v182, 127
      %v185 = vpop.permute.xlu0 %184
      %187 = vrot.lane.b32.xlu0 %v182, 126
      %v188 = vpop.permute.xlu0 %187
      %190 = vrot.lane.b32.xlu0 %v182, 125
      %v191 = vpop.permute.xlu0 %190
      %193 = vrot.lane.b32.xlu0 %v182, 124
      %v194 = vpop.permute.xlu0 %193
      %v196 = vld [vmem:[%s1] sm:$0xf]
      %v197 = vld [vmem:[%s1 + $0x4] sm:$0xf]
      %v198 = vld [vmem:[%s2] sm:$0xff]
      %v199 = vld [vmem:[%s2 + $0x8] sm:$0xff]
      %201 = vset.pattern.permute.xlu0 0
      %202 = vperm.xlu0 %201, %v198
      %v203 = vpop.permute.xlu0 %202
      %206 = vset.pattern.permute.xlu0 0
      %207 = vperm.xlu0 %206, %v199
      %v208 = vpop.permute.xlu0 %207
      %v212 = vunpack.c.l.b16 %v196
      %v213 = vunpack.c.l.b16 %v197
      %v214 = vpack.c.b16 %v213, %v212
      %vm215 = vcmask 654336
      %v217 = vsel %vm215, %v214, 0
      %219 = vmatprep.subr.bf16.mxu0 0
      %220 = vmatpush1.bf16.msra.mxu0 0
      %221 = vmatprep.subr.bf16.mxu0 0
      %222 = vmatpush1.bf16.msra.mxu0 0
      %223 = vmatprep.subr.bf16.mxu0 0
      %224 = vmatpush1.bf16.msra.mxu0 0
      %225 = vmatprep.subr.bf16.mxu0 0
      %226 = vmatpush1.bf16.msra.mxu0 %v194
      %227 = vmatprep.subr.bf16.mxu0 0
      %228 = vmatpush1.bf16.msra.mxu0 %v191
      %229 = vmatprep.subr.bf16.mxu0 0
      %230 = vmatpush1.bf16.msra.mxu0 %v188
      %231 = vmatprep.subr.bf16.mxu0 0
      %232 = vmatpush1.bf16.msra.mxu0 %v185
      %233 = vmatprep.subr.bf16.mxu0 0
      %234 = vmatpush1.bf16.msra.mxu0 %v182
      %235 = vmatprep.subr.bf16.mxu0 0
      %236 = vmatpush2.bf16.msra.mxu0 0
      %237 = vmatprep.subr.bf16.mxu0 0
      %238 = vmatpush2.bf16.msra.mxu0 0
      %239 = vmatprep.subr.bf16.mxu0 0
      %240 = vmatpush2.bf16.msra.mxu0 0
      %241 = vmatprep.subr.bf16.mxu0 0
      %242 = vmatpush2.bf16.msra.mxu0 0
      %243 = vmatprep.subr.bf16.mxu0 0
      %244 = vmatpush2.bf16.msra.mxu0 0
      %245 = vmatprep.subr.bf16.mxu0 0
      %246 = vmatpush2.bf16.msra.mxu0 0
      %247 = vmatprep.subr.bf16.mxu0 0
      %248 = vmatpush2.bf16.msra.mxu0 0
      %249 = vmatprep.subr.bf16.mxu0 0
      %250 = vmatpush2.bf16.msra.mxu0 0
      %251 = vmatprep.mubr.bf16.mxu0 0
      %252 = vmatmul.mubr.bf16.gmra.mxu0 %v217
      %v253 = vpop.f32.mrf.mxu0
      %v254 = vadd.f32 %v203, %v253
      %v255 = vpop.f32.mrf.mxu0
      %v256 = vpop.f32.mrf.mxu0
      %v257 = vadd.f32 %v208, %v256
      %v258 = vpop.f32.mrf.mxu0
      %259 = vdwg.mxu0
      %v260 = vpack.c.bf16 %v257, %v254
      %v262 = vunpack.c.l.b16 %v260
      %v263 = vunpack.c.h.b16 %v260
      %v264 = vpack.c.b16 %v262, %v262
      %v265 = vpack.c.b16 %v263, %v263
      %vm268 = vcmask 125952
      %269 = vst.msk [vmem:[%s170] sm:$0xf] %vm268, %v264
      %270 = vst.msk [vmem:[%s170 + $0x4] sm:$0xf] %vm268, %v265
      %p271 = scmp.lt.s32.totalorder %s14, 1
      %s272 = scalar_select %p271, %s14, 1
      %s273 = smul.addr %s272, 2
      %s274 = smul.addr %s273, 4
      %s275 = scalar_lea.vmem %s3, %s274
      // Predicated region
      $region33: #{a_call__.29} parent=31 // pred_check
        %p276 = pneg %p100
      $region34: #{a_call__.29} parent=31 // pred_check_branch
        %278 = sbr.rel (%p276) target = $region36
      $region35: #{a_call__.29} parent=31 // pred_region
        _
      $region36: #{a_call__.29} parent=31 // pred_fallthru
        _
    $region32: #{a_call__.29} parent=5 // pred_fallthru
      _
    %p279 = scmp.le.s32.totalorder 2, %s9
    // Predicated region
    $region37: #{a_call__.29} parent=5 // pred_check
      %p280 = pneg %p279
    $region38: #{a_call__.29} parent=5 // pred_check_branch
      %282 = sbr.rel (%p280) target = $region40
    $region39: #{a_call__.29} parent=5 // pred_region
      %s283 = ssub.s32 %s9, 2
      // Predicated region
      $region41: #{a_call__.29} parent=39 // pred_check
        %p284 = pneg %p106
      $region42: #{a_call__.29} parent=39 // pred_check_branch
        %286 = sbr.rel (%p284) target = $region44
      $region43: #{a_call__.29} parent=39 // pred_region
        %p287 = scmp.lt.s32.totalorder %s15, 1
        %s288 = scalar_select %p287, %s15, 1
        %s289 = smul.addr %s288, 2
        %s290 = smul.addr %s289, 4
        %s291 = scalar_lea.vmem %s3, %s290
      $region44: #{a_call__.29} parent=39 // pred_fallthru
        _
    $region40: #{a_call__.29} parent=5 // pred_fallthru
      _
  $region6: #{a_call__.29} parent=0 // loop_footer
    %s13 = sadd.s32 1, %s9
  $region7: #{a_call__.29} parent=0 // loop_footer_branch
    %8 = sbr.rel target = $region3
  $region8: #{a_call__.29} parent=0 // loop_exit
    _

// kernel: a_call__.30
$region0: #{a_call__.30}
  #allocation0 [shape = 'u32[]', space=smem, size = 0x4, offset = 0x4, fixed_abs, tag = 'smem constant byte address 0x4 - core index']
  #allocation1 [shape = 'u32[144,128]{1,0:T(1,128)}', space=vmem, size = 0x12000, scoped, tag = 'internal scratch']
  %s0 = inlined_call_operand.vmem [shape: bf16[2,16,20], index: 0, kind: input, shape index: {}]
  %s1 = inlined_call_operand.vmem [shape: bf16[16,80], index: 1, kind: input, shape index: {}]
  %s2 = inlined_call_operand.vmem [shape: f32[16,1], index: 2, kind: input, shape index: {}]
  %s3 = inlined_call_operand.vmem [shape: bf16[2,16,16], index: 3, kind: input, shape index: {}]
  %s4 = inlined_call_operand.vmem [shape: bf16[2,16,16], index: 4, kind: output, shape index: {}]
  %s5 = sld [smem:[#allocation0]]
  $region49: #{a_call__.30} parent=0
    _
  %s7 = ssub.s32 1, %s5
  %s8 = scalar_select 0, %s7, %s5
  loop: start=0, step=1, limit=4
  $region2: #{a_call__.30} parent=0 // loop_pre_header
    _
  $region3: #{a_call__.30} parent=0 // loop_header
    %s10 = sphi 0, %s14
    %p11 = scmp.ge.s32.totalorder %s10, 4
    %s20 = sphi 0, %s22
    %s23 = sphi 0, %s20
    %s24 = sphi 0, %s23
    %s40 = sphi 0, %s24
    %s44 = sphi 0, %s44
    %s46 = sphi 0, %s44
    %s47 = sphi 0, %s46
    %s61 = sphi 0, %s47
    %s65 = sphi 0, %s65
    %s67 = sphi 0, %s65
    %s68 = sphi 0, %s67
    %s82 = sphi 0, %s68
    %s88 = sphi 0, %s90
    %s91 = sphi 0, %s88
    %s92 = sphi 0, %s91
    %s108 = sphi 0, %s92
    %s114 = sphi 0, %s116
    %s117 = sphi 0, %s114
    %s118 = sphi 0, %s117
    %s134 = sphi 0, %s118
  $region4: #{a_call__.30} parent=0 // loop_header_branch
    %13 = sbr.rel (%p11) target = $region8
  $region5: #{a_call__.30} parent=0 // loop_body
    %s15 = ssub.s32 %s10, 1
    %s16 = ssub.s32 %s10, 2
    %s17 = sadd.s32 %s10, 1
    %s18 = ssub.s32 %s10, %s17
    %p19 = scmp.eq.s32.totalorder %s18, 0
    %s21 = sadd.s32 %s20, 1
    %s22 = scalar_select %p19, %s20, %s21
    %p25 = pneg %p19
    %p26 = scmp.eq.s32.totalorder %s10, 1
    %p27 = por %p25, %p26
    %p28 = scmp.ne.s32.totalorder %s20, %s23
    %p29 = scmp.eq.s32.totalorder %s10, 0
    %p30 = por %p28, %p29
    %p31 = scmp.ne.s32.totalorder %s20, %s23
    %p32 = scmp.eq.s32.totalorder %s15, 1
    %p33 = por %p31, %p32
    %p34 = scmp.ne.s32.totalorder %s23, %s24
    %p35 = scmp.eq.s32.totalorder %s15, 0
    %p36 = por %p34, %p35
    %p37 = scmp.ne.s32.totalorder %s23, %s24
    %p38 = scmp.eq.s32.totalorder %s16, 1
    %p39 = por %p37, %p38
    %p41 = scmp.ne.s32.totalorder %s24, %s40
    %p42 = scmp.eq.s32.totalorder %s16, 0
    %p43 = por %p41, %p42
    %s45 = sadd.s32 %s44, 1
    %p48 = scmp.eq.s32.totalorder %s10, 1
    %p49 = scmp.ne.s32.totalorder %s44, %s46
    %p50 = scmp.eq.s32.totalorder %s10, 0
    %p51 = por %p49, %p50
    %p52 = scmp.ne.s32.totalorder %s44, %s46
    %p53 = scmp.eq.s32.totalorder %s15, 1
    %p54 = por %p52, %p53
    %p55 = scmp.ne.s32.totalorder %s46, %s47
    %p56 = scmp.eq.s32.totalorder %s15, 0
    %p57 = por %p55, %p56
    %p58 = scmp.ne.s32.totalorder %s46, %s47
    %p59 = scmp.eq.s32.totalorder %s16, 1
    %p60 = por %p58, %p59
    %p62 = scmp.ne.s32.totalorder %s47, %s61
    %p63 = scmp.eq.s32.totalorder %s16, 0
    %p64 = por %p62, %p63
    %s66 = sadd.s32 %s65, 1
    %p69 = scmp.eq.s32.totalorder %s10, 1
    %p70 = scmp.ne.s32.totalorder %s65, %s67
    %p71 = scmp.eq.s32.totalorder %s10, 0
    %p72 = por %p70, %p71
    %p73 = scmp.ne.s32.totalorder %s65, %s67
    %p74 = scmp.eq.s32.totalorder %s15, 1
    %p75 = por %p73, %p74
    %p76 = scmp.ne.s32.totalorder %s67, %s68
    %p77 = scmp.eq.s32.totalorder %s15, 0
    %p78 = por %p76, %p77
    %p79 = scmp.ne.s32.totalorder %s67, %s68
    %p80 = scmp.eq.s32.totalorder %s16, 1
    %p81 = por %p79, %p80
    %p83 = scmp.ne.s32.totalorder %s68, %s82
    %p84 = scmp.eq.s32.totalorder %s16, 0
    %p85 = por %p83, %p84
    %s86 = ssub.s32 %s10, %s17
    %p87 = scmp.eq.s32.totalorder %s86, 0
    %s89 = sadd.s32 %s88, 1
    %s90 = scalar_select %p87, %s88, %s89
    %p93 = pneg %p87
    %p94 = scmp.eq.s32.totalorder %s10, 1
    %p95 = por %p93, %p94
    %p96 = scmp.ne.s32.totalorder %s88, %s91
    %p97 = scmp.eq.s32.totalorder %s10, 0
    %p98 = por %p96, %p97
    %p99 = scmp.ne.s32.totalorder %s88, %s91
    %p100 = scmp.eq.s32.totalorder %s15, 1
    %p101 = por %p99, %p100
    %p102 = scmp.ne.s32.totalorder %s91, %s92
    %p103 = scmp.eq.s32.totalorder %s15, 0
    %p104 = por %p102, %p103
    %p105 = scmp.ne.s32.totalorder %s91, %s92
    %p106 = scmp.eq.s32.totalorder %s16, 1
    %p107 = por %p105, %p106
    %p109 = scmp.ne.s32.totalorder %s92, %s108
    %p110 = scmp.eq.s32.totalorder %s16, 0
    %p111 = por %p109, %p110
    %s112 = ssub.s32 %s10, %s17
    %p113 = scmp.eq.s32.totalorder %s112, 0
    %s115 = sadd.s32 %s114, 1
    %s116 = scalar_select %p113, %s114, %s115
    %p119 = pneg %p113
    %p120 = scmp.eq.s32.totalorder %s10, 1
    %p121 = por %p119, %p120
    %p122 = scmp.ne.s32.totalorder %s114, %s117
    %p123 = scmp.eq.s32.totalorder %s10, 0
    %p124 = por %p122, %p123
    %p125 = scmp.ne.s32.totalorder %s114, %s117
    %p126 = scmp.eq.s32.totalorder %s15, 1
    %p127 = por %p125, %p126
    %p128 = scmp.ne.s32.totalorder %s117, %s118
    %p129 = scmp.eq.s32.totalorder %s15, 0
    %p130 = por %p128, %p129
    %p131 = scmp.ne.s32.totalorder %s117, %s118
    %p132 = scmp.eq.s32.totalorder %s16, 1
    %p133 = por %p131, %p132
    %p135 = scmp.ne.s32.totalorder %s118, %s134
    %p136 = scmp.eq.s32.totalorder %s16, 0
    %p137 = por %p135, %p136
    %p138 = scmp.le.s32.totalorder 1, %s10
    %p139 = scmp.lt.s32.totalorder %s10, 3
    %p140 = pnand %p138, %p139
    %p141 = pneg %p140
    // Predicated region
    $region9: #{a_call__.30} parent=5 // pred_check
      _
    $region10: #{a_call__.30} parent=5 // pred_check_branch
      %143 = sbr.rel (%p140) target = $region12
    $region11: #{a_call__.30} parent=5 // pred_region
      %s144 = ssub.s32 %s10, 1
      // Predicated region
      $region13: #{a_call__.30} parent=11 // pred_check
        %p145 = pneg %p57
      $region14: #{a_call__.30} parent=11 // pred_check_branch
        %147 = sbr.rel (%p145) target = $region16
      $region15: #{a_call__.30} parent=11 // pred_region
        _
      $region16: #{a_call__.30} parent=11 // pred_fallthru
        _
      // Predicated region
      $region17: #{a_call__.30} parent=11 // pred_check
        %p148 = pneg %p78
      $region18: #{a_call__.30} parent=11 // pred_check_branch
        %150 = sbr.rel (%p148) target = $region20
      $region19: #{a_call__.30} parent=11 // pred_region
        _
      $region20: #{a_call__.30} parent=11 // pred_fallthru
        _
    $region12: #{a_call__.30} parent=5 // pred_fallthru
      _
    %p151 = scmp.lt.s32.totalorder %s10, 2
    // Predicated region
    $region21: #{a_call__.30} parent=5 // pred_check
      %p152 = pneg %p151
    $region22: #{a_call__.30} parent=5 // pred_check_branch
      %154 = sbr.rel (%p152) target = $region24
    $region23: #{a_call__.30} parent=5 // pred_region
      // Predicated region
      $region25: #{a_call__.30} parent=23 // pred_check
        %p155 = pneg %p30
      $region26: #{a_call__.30} parent=23 // pred_check_branch
        %157 = sbr.rel (%p155) target = $region28
      $region27: #{a_call__.30} parent=23 // pred_region
        %p158 = scmp.lt.s32.totalorder %s10, 1
        %s159 = scalar_select %p158, %s10, 1
        %s160 = smul.addr %s159, 2
        %s161 = smul.addr %s160, 4
        %s162 = scalar_lea.vmem %s0, %s161
      $region28: #{a_call__.30} parent=23 // pred_fallthru
        _
      // Predicated region
      $region29: #{a_call__.30} parent=23 // pred_check
        %p163 = pneg %p98
      $region30: #{a_call__.30} parent=23 // pred_check_branch
        %165 = sbr.rel (%p163) target = $region32
      $region31: #{a_call__.30} parent=23 // pred_region
        %p166 = scmp.lt.s32.totalorder %s10, 1
        %s167 = scalar_select %p166, %s10, 1
        %s168 = smul.addr %s167, 2
        %s169 = smul.addr %s168, 4
        %s170 = scalar_lea.vmem %s3, %s169
      $region32: #{a_call__.30} parent=23 // pred_fallthru
        _
    $region24: #{a_call__.30} parent=5 // pred_fallthru
      _
    %p171 = scmp.le.s32.totalorder 1, %s10
    %p172 = scmp.lt.s32.totalorder %s10, 3
    %p173 = pnand %p171, %p172
    %p174 = pneg %p173
    // Predicated region
    $region33: #{a_call__.30} parent=5 // pred_check
      _
    $region34: #{a_call__.30} parent=5 // pred_check_branch
      %176 = sbr.rel (%p173) target = $region36
    $region35: #{a_call__.30} parent=5 // pred_region
      %s177 = ssub.s32 %s10, 1
      %p178 = scmp.lt.s32.totalorder %s15, 1
      %s179 = scalar_select %p178, %s15, 1
      %s180 = smul.addr %s179, 2
      %s181 = smul.addr %s180, 4
      %s182 = scalar_lea.vmem %s0, %s181
      %p183 = pneg %p36
      %p184 = pneg %p33
      %p185 = pneg %p57
      %p186 = pneg %p54
      %p187 = pneg %p78
      %p188 = pneg %p75
      %p189 = scmp.lt.s32.totalorder %s15, 1
      %s190 = scalar_select %p189, %s15, 1
      %s191 = smul.addr %s190, 2
      %s192 = smul.addr %s191, 4
      %s193 = scalar_lea.vmem %s3, %s192
      %p194 = pneg %p104
      %p195 = pneg %p101
      %p196 = pneg %p130
      %p197 = pneg %p127
      %p198 = scmp.lt.s32.totalorder %s15, 1
      %s199 = scalar_select %p198, %s15, 1
      %s200 = smul.addr %s199, 2
      %s201 = smul.addr %s200, 4
      %s202 = scalar_lea.vmem %s4, %s201
      %p203 = scmp.lt.s32.totalorder %s15, 1
      %s204 = scalar_select %p203, %s15, 1
      %s205 = smul.addr %s204, 2
      %s206 = smul.addr %s205, 4
      %s207 = scalar_lea.vmem %s0, %s206
      %p208 = scmp.lt.s32.totalorder %s15, 1
      %s209 = scalar_select %p208, %s15, 1
      %s210 = smul.addr %s209, 2
      %s211 = smul.addr %s210, 4
      %s212 = scalar_lea.vmem %s3, %s211
      %p213 = scmp.lt.s32.totalorder %s15, 1
      %s214 = scalar_select %p213, %s15, 1
      %s215 = smul.addr %s214, 2
      %s216 = smul.addr %s215, 4
      %s217 = scalar_lea.vmem %s4, %s216
      %v219 = vld [vmem:[%s207] sm:$0xf]
      %v220 = vld [vmem:[%s207 + $0x4] sm:$0xf]
      %v221 = vunpack.c.l.bf16 %v219
      %v222 = vunpack.c.l.bf16 %v220
      %vm223 = vcmp.gt.f32.partialorder %v221, 0.0
      %vm224 = vcmp.gt.f32.partialorder %v222, 0.0
      %v225 = vmul.f32 %v221, 0.1
      %v226 = vmul.f32 %v222, 0.1
      %v227 = vsel %vm223, %v221, %v225
      %v228 = vsel %vm224, %v222, %v226
      %v229 = vpack.c.bf16 %v228, %v227
      %231 = vrot.lane.b32.xlu0 %v229, 127
      %v232 = vpop.permute.xlu0 %231
      %234 = vrot.lane.b32.xlu0 %v229, 126
      %v235 = vpop.permute.xlu0 %234
      %237 = vrot.lane.b32.xlu0 %v229, 125
      %v238 = vpop.permute.xlu0 %237
      %240 = vrot.lane.b32.xlu0 %v229, 124
      %v241 = vpop.permute.xlu0 %240
      %v243 = vld [vmem:[%s1] sm:$0xf]
      %v244 = vld [vmem:[%s1 + $0x4] sm:$0xf]
      %v245 = vld [vmem:[%s2] sm:$0xff]
      %v246 = vld [vmem:[%s2 + $0x8] sm:$0xff]
      %248 = vset.pattern.permute.xlu0 0
      %249 = vperm.xlu0 %248, %v245
      %v250 = vpop.permute.xlu0 %249
      %253 = vset.pattern.permute.xlu0 0
      %254 = vperm.xlu0 %253, %v246
      %v255 = vpop.permute.xlu0 %254
      %v259 = vunpack.c.l.b16 %v243
      %v260 = vunpack.c.l.b16 %v244
      %v261 = vpack.c.b16 %v260, %v259
      %vm262 = vcmask 654336
      %v264 = vsel %vm262, %v261, 0
      %266 = vmatprep.subr.bf16.mxu0 0
      %267 = vmatpush1.bf16.msra.mxu0 0
      %268 = vmatprep.subr.bf16.mxu0 0
      %269 = vmatpush1.bf16.msra.mxu0 0
      %270 = vmatprep.subr.bf16.mxu0 0
      %271 = vmatpush1.bf16.msra.mxu0 0
      %272 = vmatprep.subr.bf16.mxu0 0
      %273 = vmatpush1.bf16.msra.mxu0 %v241
      %274 = vmatprep.subr.bf16.mxu0 0
      %275 = vmatpush1.bf16.msra.mxu0 %v238
      %276 = vmatprep.subr.bf16.mxu0 0
      %277 = vmatpush1.bf16.msra.mxu0 %v235
      %278 = vmatprep.subr.bf16.mxu0 0
      %279 = vmatpush1.bf16.msra.mxu0 %v232
      %280 = vmatprep.subr.bf16.mxu0 0
      %281 = vmatpush1.bf16.msra.mxu0 %v229
      %282 = vmatprep.subr.bf16.mxu0 0
      %283 = vmatpush2.bf16.msra.mxu0 0
      %284 = vmatprep.subr.bf16.mxu0 0
      %285 = vmatpush2.bf16.msra.mxu0 0
      %286 = vmatprep.subr.bf16.mxu0 0
      %287 = vmatpush2.bf16.msra.mxu0 0
      %288 = vmatprep.subr.bf16.mxu0 0
      %289 = vmatpush2.bf16.msra.mxu0 0
      %290 = vmatprep.subr.bf16.mxu0 0
      %291 = vmatpush2.bf16.msra.mxu0 0
      %292 = vmatprep.subr.bf16.mxu0 0
      %293 = vmatpush2.bf16.msra.mxu0 0
      %294 = vmatprep.subr.bf16.mxu0 0
      %295 = vmatpush2.bf16.msra.mxu0 0
      %296 = vmatprep.subr.bf16.mxu0 0
      %297 = vmatpush2.bf16.msra.mxu0 0
      %298 = vmatprep.mubr.bf16.mxu0 0
      %299 = vmatmul.mubr.bf16.gmra.mxu0 %v264
      %v300 = vpop.f32.mrf.mxu0
      %v301 = vadd.f32 %v250, %v300
      %v302 = vpop.f32.mrf.mxu0
      %v303 = vpop.f32.mrf.mxu0
      %v304 = vadd.f32 %v255, %v303
      %v305 = vpop.f32.mrf.mxu0
      %306 = vdwg.mxu0
      %v307 = vld [vmem:[%s212] sm:$0xf]
      %v308 = vld [vmem:[%s212 + $0x4] sm:$0xf]
      %v309 = vunpack.c.l.bf16 %v307
      %v310 = vunpack.c.l.bf16 %v308
      %v311 = vadd.f32 %v301, %v309
      %v312 = vadd.f32 %v304, %v310
      %v313 = vpack.c.bf16 %v312, %v311
      %v315 = vunpack.c.l.b16 %v313
      %v316 = vunpack.c.h.b16 %v313
      %v317 = vpack.c.b16 %v315, %v315
      %v318 = vpack.c.b16 %v316, %v316
      %vm321 = vcmask 125952
      %322 = vst.msk [vmem:[%s217] sm:$0xf] %vm321, %v317
      %323 = vst.msk [vmem:[%s217 + $0x4] sm:$0xf] %vm321, %v318
      %p324 = scmp.lt.s32.totalorder %s15, 1
      %s325 = scalar_select %p324, %s15, 1
      %s326 = smul.addr %s325, 2
      %s327 = smul.addr %s326, 4
      %s328 = scalar_lea.vmem %s4, %s327
      // Predicated region
      $region37: #{a_call__.30} parent=35 // pred_check
        %p329 = pneg %p127
      $region38: #{a_call__.30} parent=35 // pred_check_branch
        %331 = sbr.rel (%p329) target = $region40
      $region39: #{a_call__.30} parent=35 // pred_region
        _
      $region40: #{a_call__.30} parent=35 // pred_fallthru
        _
    $region36: #{a_call__.30} parent=5 // pred_fallthru
      _
    %p332 = scmp.le.s32.totalorder 2, %s10
    // Predicated region
    $region41: #{a_call__.30} parent=5 // pred_check
      %p333 = pneg %p332
    $region42: #{a_call__.30} parent=5 // pred_check_branch
      %335 = sbr.rel (%p333) target = $region44
    $region43: #{a_call__.30} parent=5 // pred_region
      %s336 = ssub.s32 %s10, 2
      // Predicated region
      $region45: #{a_call__.30} parent=43 // pred_check
        %p337 = pneg %p133
      $region46: #{a_call__.30} parent=43 // pred_check_branch
        %339 = sbr.rel (%p337) target = $region48
      $region47: #{a_call__.30} parent=43 // pred_region
        %p340 = scmp.lt.s32.totalorder %s16, 1
        %s341 = scalar_select %p340, %s16, 1
        %s342 = smul.addr %s341, 2
        %s343 = smul.addr %s342, 4
        %s344 = scalar_lea.vmem %s4, %s343
      $region48: #{a_call__.30} parent=43 // pred_fallthru
        _
    $region44: #{a_call__.30} parent=5 // pred_fallthru
      _
  $region6: #{a_call__.30} parent=0 // loop_footer
    %s14 = sadd.s32 1, %s10
  $region7: #{a_call__.30} parent=0 // loop_footer_branch
    %9 = sbr.rel target = $region3
  $region8: #{a_call__.30} parent=0 // loop_exit
    _

// kernel: a_call__.22
$region0: #{a_call__.22}
  #allocation0 [shape = 'u32[]', space=smem, size = 0x4, offset = 0x4, fixed_abs, tag = 'smem constant byte address 0x4 - core index']
  #allocation1 [shape = 'u32[144,128]{1,0:T(1,128)}', space=vmem, size = 0x12000, scoped, tag = 'internal scratch']
  %s0 = inlined_call_operand.vmem [shape: bf16[2,32,14], index: 0, kind: input, shape index: {}]
  %s1 = inlined_call_operand.vmem [shape: bf16[32,224], index: 1, kind: input, shape index: {}]
  %s2 = inlined_call_operand.vmem [shape: f32[32,1], index: 2, kind: input, shape index: {}]
  %s3 = inlined_call_operand.vmem [shape: bf16[2,32,8], index: 3, kind: output, shape index: {}]
  %s4 = sld [smem:[#allocation0]]
  $region45: #{a_call__.22} parent=0
    _
  %s6 = ssub.s32 1, %s4
  %s7 = scalar_select 0, %s6, %s4
  loop: start=0, step=1, limit=4
  $region2: #{a_call__.22} parent=0 // loop_pre_header
    _
  $region3: #{a_call__.22} parent=0 // loop_header
    %s9 = sphi 0, %s13
    %p10 = scmp.ge.s32.totalorder %s9, 4
    %s19 = sphi 0, %s21
    %s22 = sphi 0, %s19
    %s23 = sphi 0, %s22
    %s39 = sphi 0, %s23
    %s43 = sphi 0, %s43
    %s45 = sphi 0, %s43
    %s46 = sphi 0, %s45
    %s60 = sphi 0, %s46
    %s64 = sphi 0, %s64
    %s66 = sphi 0, %s64
    %s67 = sphi 0, %s66
    %s81 = sphi 0, %s67
    %s87 = sphi 0, %s89
    %s90 = sphi 0, %s87
    %s91 = sphi 0, %s90
    %s107 = sphi 0, %s91
  $region4: #{a_call__.22} parent=0 // loop_header_branch
    %12 = sbr.rel (%p10) target = $region8
  $region5: #{a_call__.22} parent=0 // loop_body
    %s14 = ssub.s32 %s9, 1
    %s15 = ssub.s32 %s9, 2
    %s16 = sadd.s32 %s9, 1
    %s17 = ssub.s32 %s9, %s16
    %p18 = scmp.eq.s32.totalorder %s17, 0
    %s20 = sadd.s32 %s19, 1
    %s21 = scalar_select %p18, %s19, %s20
    %p24 = pneg %p18
    %p25 = scmp.eq.s32.totalorder %s9, 1
    %p26 = por %p24, %p25
    %p27 = scmp.ne.s32.totalorder %s19, %s22
    %p28 = scmp.eq.s32.totalorder %s9, 0
    %p29 = por %p27, %p28
    %p30 = scmp.ne.s32.totalorder %s19, %s22
    %p31 = scmp.eq.s32.totalorder %s14, 1
    %p32 = por %p30, %p31
    %p33 = scmp.ne.s32.totalorder %s22, %s23
    %p34 = scmp.eq.s32.totalorder %s14, 0
    %p35 = por %p33, %p34
    %p36 = scmp.ne.s32.totalorder %s22, %s23
    %p37 = scmp.eq.s32.totalorder %s15, 1
    %p38 = por %p36, %p37
    %p40 = scmp.ne.s32.totalorder %s23, %s39
    %p41 = scmp.eq.s32.totalorder %s15, 0
    %p42 = por %p40, %p41
    %s44 = sadd.s32 %s43, 1
    %p47 = scmp.eq.s32.totalorder %s9, 1
    %p48 = scmp.ne.s32.totalorder %s43, %s45
    %p49 = scmp.eq.s32.totalorder %s9, 0
    %p50 = por %p48, %p49
    %p51 = scmp.ne.s32.totalorder %s43, %s45
    %p52 = scmp.eq.s32.totalorder %s14, 1
    %p53 = por %p51, %p52
    %p54 = scmp.ne.s32.totalorder %s45, %s46
    %p55 = scmp.eq.s32.totalorder %s14, 0
    %p56 = por %p54, %p55
    %p57 = scmp.ne.s32.totalorder %s45, %s46
    %p58 = scmp.eq.s32.totalorder %s15, 1
    %p59 = por %p57, %p58
    %p61 = scmp.ne.s32.totalorder %s46, %s60
    %p62 = scmp.eq.s32.totalorder %s15, 0
    %p63 = por %p61, %p62
    %s65 = sadd.s32 %s64, 1
    %p68 = scmp.eq.s32.totalorder %s9, 1
    %p69 = scmp.ne.s32.totalorder %s64, %s66
    %p70 = scmp.eq.s32.totalorder %s9, 0
    %p71 = por %p69, %p70
    %p72 = scmp.ne.s32.totalorder %s64, %s66
    %p73 = scmp.eq.s32.totalorder %s14, 1
    %p74 = por %p72, %p73
    %p75 = scmp.ne.s32.totalorder %s66, %s67
    %p76 = scmp.eq.s32.totalorder %s14, 0
    %p77 = por %p75, %p76
    %p78 = scmp.ne.s32.totalorder %s66, %s67
    %p79 = scmp.eq.s32.totalorder %s15, 1
    %p80 = por %p78, %p79
    %p82 = scmp.ne.s32.totalorder %s67, %s81
    %p83 = scmp.eq.s32.totalorder %s15, 0
    %p84 = por %p82, %p83
    %s85 = ssub.s32 %s9, %s16
    %p86 = scmp.eq.s32.totalorder %s85, 0
    %s88 = sadd.s32 %s87, 1
    %s89 = scalar_select %p86, %s87, %s88
    %p92 = pneg %p86
    %p93 = scmp.eq.s32.totalorder %s9, 1
    %p94 = por %p92, %p93
    %p95 = scmp.ne.s32.totalorder %s87, %s90
    %p96 = scmp.eq.s32.totalorder %s9, 0
    %p97 = por %p95, %p96
    %p98 = scmp.ne.s32.totalorder %s87, %s90
    %p99 = scmp.eq.s32.totalorder %s14, 1
    %p100 = por %p98, %p99
    %p101 = scmp.ne.s32.totalorder %s90, %s91
    %p102 = scmp.eq.s32.totalorder %s14, 0
    %p103 = por %p101, %p102
    %p104 = scmp.ne.s32.totalorder %s90, %s91
    %p105 = scmp.eq.s32.totalorder %s15, 1
    %p106 = por %p104, %p105
    %p108 = scmp.ne.s32.totalorder %s91, %s107
    %p109 = scmp.eq.s32.totalorder %s15, 0
    %p110 = por %p108, %p109
    %p111 = scmp.le.s32.totalorder 1, %s9
    %p112 = scmp.lt.s32.totalorder %s9, 3
    %p113 = pnand %p111, %p112
    %p114 = pneg %p113
    // Predicated region
    $region9: #{a_call__.22} parent=5 // pred_check
      _
    $region10: #{a_call__.22} parent=5 // pred_check_branch
      %116 = sbr.rel (%p113) target = $region12
    $region11: #{a_call__.22} parent=5 // pred_region
      %s117 = ssub.s32 %s9, 1
      // Predicated region
      $region13: #{a_call__.22} parent=11 // pred_check
        %p118 = pneg %p56
      $region14: #{a_call__.22} parent=11 // pred_check_branch
        %120 = sbr.rel (%p118) target = $region16
      $region15: #{a_call__.22} parent=11 // pred_region
        _
      $region16: #{a_call__.22} parent=11 // pred_fallthru
        _
      // Predicated region
      $region17: #{a_call__.22} parent=11 // pred_check
        %p121 = pneg %p77
      $region18: #{a_call__.22} parent=11 // pred_check_branch
        %123 = sbr.rel (%p121) target = $region20
      $region19: #{a_call__.22} parent=11 // pred_region
        _
      $region20: #{a_call__.22} parent=11 // pred_fallthru
        _
    $region12: #{a_call__.22} parent=5 // pred_fallthru
      _
    %p124 = scmp.lt.s32.totalorder %s9, 2
    // Predicated region
    $region21: #{a_call__.22} parent=5 // pred_check
      %p125 = pneg %p124
    $region22: #{a_call__.22} parent=5 // pred_check_branch
      %127 = sbr.rel (%p125) target = $region24
    $region23: #{a_call__.22} parent=5 // pred_region
      // Predicated region
      $region25: #{a_call__.22} parent=23 // pred_check
        %p128 = pneg %p29
      $region26: #{a_call__.22} parent=23 // pred_check_branch
        %130 = sbr.rel (%p128) target = $region28
      $region27: #{a_call__.22} parent=23 // pred_region
        %p131 = scmp.lt.s32.totalorder %s9, 1
        %s132 = scalar_select %p131, %s9, 1
        %s133 = smul.addr %s132, 4
        %s134 = smul.addr %s133, 4
        %s135 = scalar_lea.vmem %s0, %s134
      $region28: #{a_call__.22} parent=23 // pred_fallthru
        _
    $region24: #{a_call__.22} parent=5 // pred_fallthru
      _
    %p136 = scmp.le.s32.totalorder 1, %s9
    %p137 = scmp.lt.s32.totalorder %s9, 3
    %p138 = pnand %p136, %p137
    %p139 = pneg %p138
    // Predicated region
    $region29: #{a_call__.22} parent=5 // pred_check
      _
    $region30: #{a_call__.22} parent=5 // pred_check_branch
      %141 = sbr.rel (%p138) target = $region32
    $region31: #{a_call__.22} parent=5 // pred_region
      %s142 = ssub.s32 %s9, 1
      %p143 = scmp.lt.s32.totalorder %s14, 1
      %s144 = scalar_select %p143, %s14, 1
      %s145 = smul.addr %s144, 4
      %s146 = smul.addr %s145, 4
      %s147 = scalar_lea.vmem %s0, %s146
      %p148 = pneg %p35
      %p149 = pneg %p32
      %p150 = pneg %p56
      %p151 = pneg %p53
      %p152 = pneg %p77
      %p153 = pneg %p74
      %p154 = pneg %p103
      %p155 = pneg %p100
      %p156 = scmp.lt.s32.totalorder %s14, 1
      %s157 = scalar_select %p156, %s14, 1
      %s158 = smul.addr %s157, 4
      %s159 = smul.addr %s158, 4
      %s160 = scalar_lea.vmem %s3, %s159
      %p161 = scmp.lt.s32.totalorder %s14, 1
      %s162 = scalar_select %p161, %s14, 1
      %s163 = smul.addr %s162, 4
      %s164 = smul.addr %s163, 4
      %s165 = scalar_lea.vmem %s0, %s164
      %p166 = scmp.lt.s32.totalorder %s14, 1
      %s167 = scalar_select %p166, %s14, 1
      %s168 = smul.addr %s167, 4
      %s169 = smul.addr %s168, 4
      %s170 = scalar_lea.vmem %s3, %s169
      %v172 = vld [vmem:[%s165] sm:$0xf]
      %v173 = vld [vmem:[%s165 + $0x4] sm:$0xf]
      %v174 = vld [vmem:[%s165 + $0x8] sm:$0xf]
      %v175 = vld [vmem:[%s165 + $0xc] sm:$0xf]
      %v180 = vunpack.c.l.b16 %v172
      %v181 = vunpack.c.l.b16 %v173
      %v182 = vunpack.c.l.b16 %v174
      %v183 = vunpack.c.l.b16 %v175
      %v184 = vpack.c.b16 %v181, %v180
      %v185 = vpack.c.b16 %v183, %v182
      %188 = vrot.lane.b32.xlu0 %v184, 127
      %v189 = vpop.permute.xlu0 %188
      %190 = vrot.lane.b32.xlu0 %v185, 127
      %v191 = vpop.permute.xlu0 %190
      %194 = vrot.lane.b32.xlu0 %v184, 126
      %v195 = vpop.permute.xlu0 %194
      %196 = vrot.lane.b32.xlu0 %v185, 126
      %v197 = vpop.permute.xlu0 %196
      %200 = vrot.lane.b32.xlu0 %v184, 125
      %v201 = vpop.permute.xlu0 %200
      %202 = vrot.lane.b32.xlu0 %v185, 125
      %v203 = vpop.permute.xlu0 %202
      %206 = vrot.lane.b32.xlu0 %v184, 124
      %v207 = vpop.permute.xlu0 %206
      %208 = vrot.lane.b32.xlu0 %v185, 124
      %v209 = vpop.permute.xlu0 %208
      %212 = vrot.lane.b32.xlu0 %v184, 123
      %v213 = vpop.permute.xlu0 %212
      %214 = vrot.lane.b32.xlu0 %v185, 123
      %v215 = vpop.permute.xlu0 %214
      %218 = vrot.lane.b32.xlu0 %v184, 122
      %v219 = vpop.permute.xlu0 %218
      %220 = vrot.lane.b32.xlu0 %v185, 122
      %v221 = vpop.permute.xlu0 %220
      %v224 = vld [vmem:[%s1] sm:$0xff]
      %v225 = vld [vmem:[%s1 + $0x8] sm:$0xff]
      %v226 = vld [vmem:[%s1 + $0x10] sm:$0xff]
      %v227 = vld [vmem:[%s1 + $0x18] sm:$0xff]
      %v228 = vld [vmem:[%s2] sm:$0xff]
      %v229 = vld [vmem:[%s2 + $0x8] sm:$0xff]
      %v230 = vld [vmem:[%s2 + $0x10] sm:$0xff]
      %v231 = vld [vmem:[%s2 + $0x18] sm:$0xff]
      %233 = vset.pattern.permute.xlu0 0
      %234 = vperm.xlu0 %233, %v228
      %v235 = vpop.permute.xlu0 %234
      %238 = vset.pattern.permute.xlu0 0
      %239 = vperm.xlu0 %238, %v229
      %v240 = vpop.permute.xlu0 %239
      %243 = vset.pattern.permute.xlu0 0
      %244 = vperm.xlu0 %243, %v230
      %v245 = vpop.permute.xlu0 %244
      %248 = vset.pattern.permute.xlu0 0
      %249 = vperm.xlu0 %248, %v231
      %v250 = vpop.permute.xlu0 %249
      %v256 = vunpack.c.l.b16 %v224
      %v257 = vunpack.c.h.b16 %v224
      %v258 = vunpack.c.l.b16 %v225
      %v259 = vunpack.c.h.b16 %v225
      %v260 = vunpack.c.l.b16 %v226
      %v261 = vunpack.c.h.b16 %v226
      %v262 = vunpack.c.l.b16 %v227
      %v263 = vunpack.c.h.b16 %v227
      %v264 = vpack.c.b16 %v258, %v256
      %v265 = vpack.c.b16 %v259, %v257
      %v266 = vpack.c.b16 %v262, %v260
      %v267 = vpack.c.b16 %v263, %v261
      %vm270 = vcmask 785408
      %v272 = vsel %vm270, %v265, 0
      %v275 = vsel %vm270, %v267, 0
      %277 = vmatprep.subr.bf16.mxu0 0
      %278 = vmatpush1.bf16.msra.mxu0 %v203
      %279 = vmatprep.subr.bf16.mxu0 0
      %280 = vmatpush1.bf16.msra.mxu0 %v201
      %281 = vmatprep.subr.bf16.mxu0 0
      %282 = vmatpush1.bf16.msra.mxu0 %v197
      %283 = vmatprep.subr.bf16.mxu0 0
      %284 = vmatpush1.bf16.msra.mxu0 %v195
      %285 = vmatprep.subr.bf16.mxu0 0
      %286 = vmatpush1.bf16.msra.mxu0 %v191
      %287 = vmatprep.subr.bf16.mxu0 0
      %288 = vmatpush1.bf16.msra.mxu0 %v189
      %289 = vmatprep.subr.bf16.mxu0 0
      %290 = vmatpush1.bf16.msra.mxu0 %v185
      %291 = vmatprep.subr.bf16.mxu0 0
      %292 = vmatpush1.bf16.msra.mxu0 %v184
      %293 = vmatprep.subr.bf16.mxu0 0
      %294 = vmatpush2.bf16.msra.mxu0 0
      %295 = vmatprep.subr.bf16.mxu0 0
      %296 = vmatpush2.bf16.msra.mxu0 0
      %297 = vmatprep.subr.bf16.mxu0 0
      %298 = vmatpush2.bf16.msra.mxu0 %v221
      %299 = vmatprep.subr.bf16.mxu0 0
      %300 = vmatpush2.bf16.msra.mxu0 %v219
      %301 = vmatprep.subr.bf16.mxu0 0
      %302 = vmatpush2.bf16.msra.mxu0 %v215
      %303 = vmatprep.subr.bf16.mxu0 0
      %304 = vmatpush2.bf16.msra.mxu0 %v213
      %305 = vmatprep.subr.bf16.mxu0 0
      %306 = vmatpush2.bf16.msra.mxu0 %v209
      %307 = vmatprep.subr.bf16.mxu0 0
      %308 = vmatpush2.bf16.msra.mxu0 %v207
      %309 = vmatprep.mubr.bf16.mxu0 %v272
      %310 = vmatmul.mubr.bf16.gmra.mxu0 %v264
      %v311 = vpop.f32.mrf.mxu0
      %v312 = vadd.f32 %v235, %v311
      %v313 = vpop.f32.mrf.mxu0
      %v314 = vpop.f32.mrf.mxu0
      %v315 = vadd.f32 %v240, %v314
      %v316 = vpop.f32.mrf.mxu0
      %317 = vmatprep.mubr.bf16.mxu0 %v275
      %318 = vmatmul.mubr.bf16.gmra.mxu0 %v266
      %v319 = vpop.f32.mrf.mxu0
      %v320 = vadd.f32 %v245, %v319
      %v321 = vpop.f32.mrf.mxu0
      %v322 = vpop.f32.mrf.mxu0
      %v323 = vadd.f32 %v250, %v322
      %v324 = vpop.f32.mrf.mxu0
      %325 = vdwg.mxu0
      %v326 = vpack.c.bf16 %v315, %v312
      %v327 = vpack.c.bf16 %v323, %v320
      %v330 = vunpack.c.l.b16 %v326
      %v331 = vunpack.c.h.b16 %v326
      %v332 = vunpack.c.l.b16 %v327
      %v333 = vunpack.c.h.b16 %v327
      %v334 = vpack.c.b16 %v330, %v330
      %v335 = vpack.c.b16 %v331, %v331
      %v336 = vpack.c.b16 %v332, %v332
      %v337 = vpack.c.b16 %v333, %v333
      %vm342 = vcmask 60416
      %343 = vst.msk [vmem:[%s170] sm:$0xf] %vm342, %v334
      %344 = vst.msk [vmem:[%s170 + $0x4] sm:$0xf] %vm342, %v335
      %345 = vst.msk [vmem:[%s170 + $0x8] sm:$0xf] %vm342, %v336
      %346 = vst.msk [vmem:[%s170 + $0xc] sm:$0xf] %vm342, %v337
      %p347 = scmp.lt.s32.totalorder %s14, 1
      %s348 = scalar_select %p347, %s14, 1
      %s349 = smul.addr %s348, 4
      %s350 = smul.addr %s349, 4
      %s351 = scalar_lea.vmem %s3, %s350
      // Predicated region
      $region33: #{a_call__.22} parent=31 // pred_check
        %p352 = pneg %p100
      $region34: #{a_call__.22} parent=31 // pred_check_branch
        %354 = sbr.rel (%p352) target = $region36
      $region35: #{a_call__.22} parent=31 // pred_region
        _
      $region36: #{a_call__.22} parent=31 // pred_fallthru
        _
    $region32: #{a_call__.22} parent=5 // pred_fallthru
      _
    %p355 = scmp.le.s32.totalorder 2, %s9
    // Predicated region
    $region37: #{a_call__.22} parent=5 // pred_check
      %p356 = pneg %p355
    $region38: #{a_call__.22} parent=5 // pred_check_branch
      %358 = sbr.rel (%p356) target = $region40
    $region39: #{a_call__.22} parent=5 // pred_region
      %s359 = ssub.s32 %s9, 2
      // Predicated region
      $region41: #{a_call__.22} parent=39 // pred_check
        %p360 = pneg %p106
      $region42: #{a_call__.22} parent=39 // pred_check_branch
        %362 = sbr.rel (%p360) target = $region44
      $region43: #{a_call__.22} parent=39 // pred_region
        %p363 = scmp.lt.s32.totalorder %s15, 1
        %s364 = scalar_select %p363, %s15, 1
        %s365 = smul.addr %s364, 4
        %s366 = smul.addr %s365, 4
        %s367 = scalar_lea.vmem %s3, %s366
      $region44: #{a_call__.22} parent=39 // pred_fallthru
        _
    $region40: #{a_call__.22} parent=5 // pred_fallthru
      _
  $region6: #{a_call__.22} parent=0 // loop_footer
    %s13 = sadd.s32 1, %s9
  $region7: #{a_call__.22} parent=0 // loop_footer_branch
    %8 = sbr.rel target = $region3
  $region8: #{a_call__.22} parent=0 // loop_exit
    _

// kernel: a_call__.31
$region0: #{a_call__.31}
  #allocation0 [shape = 'u32[]', space=smem, size = 0x4, offset = 0x4, fixed_abs, tag = 'smem constant byte address 0x4 - core index']
  #allocation1 [shape = 'u32[144,128]{1,0:T(1,128)}', space=vmem, size = 0x12000, scoped, tag = 'internal scratch']
  %s0 = inlined_call_operand.vmem [shape: bf16[2,16,28], index: 0, kind: input, shape index: {}]
  %s1 = inlined_call_operand.vmem [shape: bf16[16,80], index: 1, kind: input, shape index: {}]
  %s2 = inlined_call_operand.vmem [shape: f32[16,1], index: 2, kind: input, shape index: {}]
  %s3 = inlined_call_operand.vmem [shape: bf16[2,16,16], index: 3, kind: output, shape index: {}]
  %s4 = sld [smem:[#allocation0]]
  $region45: #{a_call__.31} parent=0
    _
  %s6 = ssub.s32 1, %s4
  %s7 = scalar_select 0, %s6, %s4
  loop: start=0, step=1, limit=4
  $region2: #{a_call__.31} parent=0 // loop_pre_header
    _
  $region3: #{a_call__.31} parent=0 // loop_header
    %s9 = sphi 0, %s13
    %p10 = scmp.ge.s32.totalorder %s9, 4
    %s19 = sphi 0, %s21
    %s22 = sphi 0, %s19
    %s23 = sphi 0, %s22
    %s39 = sphi 0, %s23
    %s43 = sphi 0, %s43
    %s45 = sphi 0, %s43
    %s46 = sphi 0, %s45
    %s60 = sphi 0, %s46
    %s64 = sphi 0, %s64
    %s66 = sphi 0, %s64
    %s67 = sphi 0, %s66
    %s81 = sphi 0, %s67
    %s87 = sphi 0, %s89
    %s90 = sphi 0, %s87
    %s91 = sphi 0, %s90
    %s107 = sphi 0, %s91
  $region4: #{a_call__.31} parent=0 // loop_header_branch
    %12 = sbr.rel (%p10) target = $region8
  $region5: #{a_call__.31} parent=0 // loop_body
    %s14 = ssub.s32 %s9, 1
    %s15 = ssub.s32 %s9, 2
    %s16 = sadd.s32 %s9, 1
    %s17 = ssub.s32 %s9, %s16
    %p18 = scmp.eq.s32.totalorder %s17, 0
    %s20 = sadd.s32 %s19, 1
    %s21 = scalar_select %p18, %s19, %s20
    %p24 = pneg %p18
    %p25 = scmp.eq.s32.totalorder %s9, 1
    %p26 = por %p24, %p25
    %p27 = scmp.ne.s32.totalorder %s19, %s22
    %p28 = scmp.eq.s32.totalorder %s9, 0
    %p29 = por %p27, %p28
    %p30 = scmp.ne.s32.totalorder %s19, %s22
    %p31 = scmp.eq.s32.totalorder %s14, 1
    %p32 = por %p30, %p31
    %p33 = scmp.ne.s32.totalorder %s22, %s23
    %p34 = scmp.eq.s32.totalorder %s14, 0
    %p35 = por %p33, %p34
    %p36 = scmp.ne.s32.totalorder %s22, %s23
    %p37 = scmp.eq.s32.totalorder %s15, 1
    %p38 = por %p36, %p37
    %p40 = scmp.ne.s32.totalorder %s23, %s39
    %p41 = scmp.eq.s32.totalorder %s15, 0
    %p42 = por %p40, %p41
    %s44 = sadd.s32 %s43, 1
    %p47 = scmp.eq.s32.totalorder %s9, 1
    %p48 = scmp.ne.s32.totalorder %s43, %s45
    %p49 = scmp.eq.s32.totalorder %s9, 0
    %p50 = por %p48, %p49
    %p51 = scmp.ne.s32.totalorder %s43, %s45
    %p52 = scmp.eq.s32.totalorder %s14, 1
    %p53 = por %p51, %p52
    %p54 = scmp.ne.s32.totalorder %s45, %s46
    %p55 = scmp.eq.s32.totalorder %s14, 0
    %p56 = por %p54, %p55
    %p57 = scmp.ne.s32.totalorder %s45, %s46
    %p58 = scmp.eq.s32.totalorder %s15, 1
    %p59 = por %p57, %p58
    %p61 = scmp.ne.s32.totalorder %s46, %s60
    %p62 = scmp.eq.s32.totalorder %s15, 0
    %p63 = por %p61, %p62
    %s65 = sadd.s32 %s64, 1
    %p68 = scmp.eq.s32.totalorder %s9, 1
    %p69 = scmp.ne.s32.totalorder %s64, %s66
    %p70 = scmp.eq.s32.totalorder %s9, 0
    %p71 = por %p69, %p70
    %p72 = scmp.ne.s32.totalorder %s64, %s66
    %p73 = scmp.eq.s32.totalorder %s14, 1
    %p74 = por %p72, %p73
    %p75 = scmp.ne.s32.totalorder %s66, %s67
    %p76 = scmp.eq.s32.totalorder %s14, 0
    %p77 = por %p75, %p76
    %p78 = scmp.ne.s32.totalorder %s66, %s67
    %p79 = scmp.eq.s32.totalorder %s15, 1
    %p80 = por %p78, %p79
    %p82 = scmp.ne.s32.totalorder %s67, %s81
    %p83 = scmp.eq.s32.totalorder %s15, 0
    %p84 = por %p82, %p83
    %s85 = ssub.s32 %s9, %s16
    %p86 = scmp.eq.s32.totalorder %s85, 0
    %s88 = sadd.s32 %s87, 1
    %s89 = scalar_select %p86, %s87, %s88
    %p92 = pneg %p86
    %p93 = scmp.eq.s32.totalorder %s9, 1
    %p94 = por %p92, %p93
    %p95 = scmp.ne.s32.totalorder %s87, %s90
    %p96 = scmp.eq.s32.totalorder %s9, 0
    %p97 = por %p95, %p96
    %p98 = scmp.ne.s32.totalorder %s87, %s90
    %p99 = scmp.eq.s32.totalorder %s14, 1
    %p100 = por %p98, %p99
    %p101 = scmp.ne.s32.totalorder %s90, %s91
    %p102 = scmp.eq.s32.totalorder %s14, 0
    %p103 = por %p101, %p102
    %p104 = scmp.ne.s32.totalorder %s90, %s91
    %p105 = scmp.eq.s32.totalorder %s15, 1
    %p106 = por %p104, %p105
    %p108 = scmp.ne.s32.totalorder %s91, %s107
    %p109 = scmp.eq.s32.totalorder %s15, 0
    %p110 = por %p108, %p109
    %p111 = scmp.le.s32.totalorder 1, %s9
    %p112 = scmp.lt.s32.totalorder %s9, 3
    %p113 = pnand %p111, %p112
    %p114 = pneg %p113
    // Predicated region
    $region9: #{a_call__.31} parent=5 // pred_check
      _
    $region10: #{a_call__.31} parent=5 // pred_check_branch
      %116 = sbr.rel (%p113) target = $region12
    $region11: #{a_call__.31} parent=5 // pred_region
      %s117 = ssub.s32 %s9, 1
      // Predicated region
      $region13: #{a_call__.31} parent=11 // pred_check
        %p118 = pneg %p56
      $region14: #{a_call__.31} parent=11 // pred_check_branch
        %120 = sbr.rel (%p118) target = $region16
      $region15: #{a_call__.31} parent=11 // pred_region
        _
      $region16: #{a_call__.31} parent=11 // pred_fallthru
        _
      // Predicated region
      $region17: #{a_call__.31} parent=11 // pred_check
        %p121 = pneg %p77
      $region18: #{a_call__.31} parent=11 // pred_check_branch
        %123 = sbr.rel (%p121) target = $region20
      $region19: #{a_call__.31} parent=11 // pred_region
        _
      $region20: #{a_call__.31} parent=11 // pred_fallthru
        _
    $region12: #{a_call__.31} parent=5 // pred_fallthru
      _
    %p124 = scmp.lt.s32.totalorder %s9, 2
    // Predicated region
    $region21: #{a_call__.31} parent=5 // pred_check
      %p125 = pneg %p124
    $region22: #{a_call__.31} parent=5 // pred_check_branch
      %127 = sbr.rel (%p125) target = $region24
    $region23: #{a_call__.31} parent=5 // pred_region
      // Predicated region
      $region25: #{a_call__.31} parent=23 // pred_check
        %p128 = pneg %p29
      $region26: #{a_call__.31} parent=23 // pred_check_branch
        %130 = sbr.rel (%p128) target = $region28
      $region27: #{a_call__.31} parent=23 // pred_region
        %p131 = scmp.lt.s32.totalorder %s9, 1
        %s132 = scalar_select %p131, %s9, 1
        %s133 = smul.addr %s132, 2
        %s134 = smul.addr %s133, 4
        %s135 = scalar_lea.vmem %s0, %s134
      $region28: #{a_call__.31} parent=23 // pred_fallthru
        _
    $region24: #{a_call__.31} parent=5 // pred_fallthru
      _
    %p136 = scmp.le.s32.totalorder 1, %s9
    %p137 = scmp.lt.s32.totalorder %s9, 3
    %p138 = pnand %p136, %p137
    %p139 = pneg %p138
    // Predicated region
    $region29: #{a_call__.31} parent=5 // pred_check
      _
    $region30: #{a_call__.31} parent=5 // pred_check_branch
      %141 = sbr.rel (%p138) target = $region32
    $region31: #{a_call__.31} parent=5 // pred_region
      %s142 = ssub.s32 %s9, 1
      %p143 = scmp.lt.s32.totalorder %s14, 1
      %s144 = scalar_select %p143, %s14, 1
      %s145 = smul.addr %s144, 2
      %s146 = smul.addr %s145, 4
      %s147 = scalar_lea.vmem %s0, %s146
      %p148 = pneg %p35
      %p149 = pneg %p32
      %p150 = pneg %p56
      %p151 = pneg %p53
      %p152 = pneg %p77
      %p153 = pneg %p74
      %p154 = pneg %p103
      %p155 = pneg %p100
      %p156 = scmp.lt.s32.totalorder %s14, 1
      %s157 = scalar_select %p156, %s14, 1
      %s158 = smul.addr %s157, 2
      %s159 = smul.addr %s158, 4
      %s160 = scalar_lea.vmem %s3, %s159
      %p161 = scmp.lt.s32.totalorder %s14, 1
      %s162 = scalar_select %p161, %s14, 1
      %s163 = smul.addr %s162, 2
      %s164 = smul.addr %s163, 4
      %s165 = scalar_lea.vmem %s0, %s164
      %p166 = scmp.lt.s32.totalorder %s14, 1
      %s167 = scalar_select %p166, %s14, 1
      %s168 = smul.addr %s167, 2
      %s169 = smul.addr %s168, 4
      %s170 = scalar_lea.vmem %s3, %s169
      %v172 = vld [vmem:[%s165] sm:$0xf]
      %v173 = vld [vmem:[%s165 + $0x4] sm:$0xf]
      %v174 = vunpack.c.l.bf16 %v172
      %v175 = vunpack.c.l.bf16 %v173
      %vm176 = vcmp.gt.f32.partialorder %v174, 0.0
      %vm177 = vcmp.gt.f32.partialorder %v175, 0.0
      %v178 = vmul.f32 %v174, 0.1
      %v179 = vmul.f32 %v175, 0.1
      %v180 = vsel %vm176, %v174, %v178
      %v181 = vsel %vm177, %v175, %v179
      %v182 = vpack.c.bf16 %v181, %v180
      %184 = vrot.lane.b32.xlu0 %v182, 125
      %v185 = vpop.permute.xlu0 %184
      %187 = vrot.lane.b32.xlu0 %v182, 122
      %v188 = vpop.permute.xlu0 %187
      %190 = vrot.lane.b32.xlu0 %v182, 119
      %v191 = vpop.permute.xlu0 %190
      %193 = vrot.lane.b32.xlu0 %v182, 116
      %v194 = vpop.permute.xlu0 %193
      %v196 = vld [vmem:[%s1] sm:$0xf]
      %v197 = vld [vmem:[%s1 + $0x4] sm:$0xf]
      %v198 = vld [vmem:[%s2] sm:$0xff]
      %v199 = vld [vmem:[%s2 + $0x8] sm:$0xff]
      %201 = vset.pattern.permute.xlu0 0
      %202 = vperm.xlu0 %201, %v198
      %v203 = vpop.permute.xlu0 %202
      %206 = vset.pattern.permute.xlu0 0
      %207 = vperm.xlu0 %206, %v199
      %v208 = vpop.permute.xlu0 %207
      %v212 = vunpack.c.l.b16 %v196
      %v213 = vunpack.c.l.b16 %v197
      %v214 = vpack.c.b16 %v213, %v212
      %vm215 = vcmask 654336
      %v217 = vsel %vm215, %v214, 0
      %219 = vmatprep.subr.bf16.mxu0 0
      %220 = vmatpush1.bf16.msra.mxu0 0
      %221 = vmatprep.subr.bf16.mxu0 0
      %222 = vmatpush1.bf16.msra.mxu0 0
      %223 = vmatprep.subr.bf16.mxu0 0
      %224 = vmatpush1.bf16.msra.mxu0 0
      %225 = vmatprep.subr.bf16.mxu0 0
      %226 = vmatpush1.bf16.msra.mxu0 %v194
      %227 = vmatprep.subr.bf16.mxu0 0
      %228 = vmatpush1.bf16.msra.mxu0 %v191
      %229 = vmatprep.subr.bf16.mxu0 0
      %230 = vmatpush1.bf16.msra.mxu0 %v188
      %231 = vmatprep.subr.bf16.mxu0 0
      %232 = vmatpush1.bf16.msra.mxu0 %v185
      %233 = vmatprep.subr.bf16.mxu0 0
      %234 = vmatpush1.bf16.msra.mxu0 %v182
      %235 = vmatprep.subr.bf16.mxu0 0
      %236 = vmatpush2.bf16.msra.mxu0 0
      %237 = vmatprep.subr.bf16.mxu0 0
      %238 = vmatpush2.bf16.msra.mxu0 0
      %239 = vmatprep.subr.bf16.mxu0 0
      %240 = vmatpush2.bf16.msra.mxu0 0
      %241 = vmatprep.subr.bf16.mxu0 0
      %242 = vmatpush2.bf16.msra.mxu0 0
      %243 = vmatprep.subr.bf16.mxu0 0
      %244 = vmatpush2.bf16.msra.mxu0 0
      %245 = vmatprep.subr.bf16.mxu0 0
      %246 = vmatpush2.bf16.msra.mxu0 0
      %247 = vmatprep.subr.bf16.mxu0 0
      %248 = vmatpush2.bf16.msra.mxu0 0
      %249 = vmatprep.subr.bf16.mxu0 0
      %250 = vmatpush2.bf16.msra.mxu0 0
      %251 = vmatprep.mubr.bf16.mxu0 0
      %252 = vmatmul.mubr.bf16.gmra.mxu0 %v217
      %v253 = vpop.f32.mrf.mxu0
      %v254 = vadd.f32 %v203, %v253
      %v255 = vpop.f32.mrf.mxu0
      %v256 = vpop.f32.mrf.mxu0
      %v257 = vadd.f32 %v208, %v256
      %v258 = vpop.f32.mrf.mxu0
      %259 = vdwg.mxu0
      %v260 = vpack.c.bf16 %v257, %v254
      %v262 = vunpack.c.l.b16 %v260
      %v263 = vunpack.c.h.b16 %v260
      %v264 = vpack.c.b16 %v262, %v262
      %v265 = vpack.c.b16 %v263, %v263
      %vm268 = vcmask 125952
      %269 = vst.msk [vmem:[%s170] sm:$0xf] %vm268, %v264
      %270 = vst.msk [vmem:[%s170 + $0x4] sm:$0xf] %vm268, %v265
      %p271 = scmp.lt.s32.totalorder %s14, 1
      %s272 = scalar_select %p271, %s14, 1
      %s273 = smul.addr %s272, 2
      %s274 = smul.addr %s273, 4
      %s275 = scalar_lea.vmem %s3, %s274
      // Predicated region
      $region33: #{a_call__.31} parent=31 // pred_check
        %p276 = pneg %p100
      $region34: #{a_call__.31} parent=31 // pred_check_branch
        %278 = sbr.rel (%p276) target = $region36
      $region35: #{a_call__.31} parent=31 // pred_region
        _
      $region36: #{a_call__.31} parent=31 // pred_fallthru
        _
    $region32: #{a_call__.31} parent=5 // pred_fallthru
      _
    %p279 = scmp.le.s32.totalorder 2, %s9
    // Predicated region
    $region37: #{a_call__.31} parent=5 // pred_check
      %p280 = pneg %p279
    $region38: #{a_call__.31} parent=5 // pred_check_branch
      %282 = sbr.rel (%p280) target = $region40
    $region39: #{a_call__.31} parent=5 // pred_region
      %s283 = ssub.s32 %s9, 2
      // Predicated region
      $region41: #{a_call__.31} parent=39 // pred_check
        %p284 = pneg %p106
      $region42: #{a_call__.31} parent=39 // pred_check_branch
        %286 = sbr.rel (%p284) target = $region44
      $region43: #{a_call__.31} parent=39 // pred_region
        %p287 = scmp.lt.s32.totalorder %s15, 1
        %s288 = scalar_select %p287, %s15, 1
        %s289 = smul.addr %s288, 2
        %s290 = smul.addr %s289, 4
        %s291 = scalar_lea.vmem %s3, %s290
      $region44: #{a_call__.31} parent=39 // pred_fallthru
        _
    $region40: #{a_call__.31} parent=5 // pred_fallthru
      _
  $region6: #{a_call__.31} parent=0 // loop_footer
    %s13 = sadd.s32 1, %s9
  $region7: #{a_call__.31} parent=0 // loop_footer_branch
    %8 = sbr.rel target = $region3
  $region8: #{a_call__.31} parent=0 // loop_exit
    _

// kernel: a_call__.27
$region0: #{a_call__.27}
  #allocation0 [shape = 'u32[]', space=smem, size = 0x4, offset = 0x4, fixed_abs, tag = 'smem constant byte address 0x4 - core index']
  #allocation1 [shape = 'u32[144,128]{1,0:T(1,128)}', space=vmem, size = 0x12000, scoped, tag = 'internal scratch']
  %s0 = inlined_call_operand.vmem [shape: bf16[2,16,22], index: 0, kind: input, shape index: {}]
  %s1 = inlined_call_operand.vmem [shape: bf16[16,48], index: 1, kind: input, shape index: {}]
  %s2 = inlined_call_operand.vmem [shape: f32[16,1], index: 2, kind: input, shape index: {}]
  %s3 = inlined_call_operand.vmem [shape: bf16[2,16,16], index: 3, kind: output, shape index: {}]
  %s4 = sld [smem:[#allocation0]]
  $region45: #{a_call__.27} parent=0
    _
  %s6 = ssub.s32 1, %s4
  %s7 = scalar_select 0, %s6, %s4
  loop: start=0, step=1, limit=4
  $region2: #{a_call__.27} parent=0 // loop_pre_header
    _
  $region3: #{a_call__.27} parent=0 // loop_header
    %s9 = sphi 0, %s13
    %p10 = scmp.ge.s32.totalorder %s9, 4
    %s19 = sphi 0, %s21
    %s22 = sphi 0, %s19
    %s23 = sphi 0, %s22
    %s39 = sphi 0, %s23
    %s43 = sphi 0, %s43
    %s45 = sphi 0, %s43
    %s46 = sphi 0, %s45
    %s60 = sphi 0, %s46
    %s64 = sphi 0, %s64
    %s66 = sphi 0, %s64
    %s67 = sphi 0, %s66
    %s81 = sphi 0, %s67
    %s87 = sphi 0, %s89
    %s90 = sphi 0, %s87
    %s91 = sphi 0, %s90
    %s107 = sphi 0, %s91
  $region4: #{a_call__.27} parent=0 // loop_header_branch
    %12 = sbr.rel (%p10) target = $region8
  $region5: #{a_call__.27} parent=0 // loop_body
    %s14 = ssub.s32 %s9, 1
    %s15 = ssub.s32 %s9, 2
    %s16 = sadd.s32 %s9, 1
    %s17 = ssub.s32 %s9, %s16
    %p18 = scmp.eq.s32.totalorder %s17, 0
    %s20 = sadd.s32 %s19, 1
    %s21 = scalar_select %p18, %s19, %s20
    %p24 = pneg %p18
    %p25 = scmp.eq.s32.totalorder %s9, 1
    %p26 = por %p24, %p25
    %p27 = scmp.ne.s32.totalorder %s19, %s22
    %p28 = scmp.eq.s32.totalorder %s9, 0
    %p29 = por %p27, %p28
    %p30 = scmp.ne.s32.totalorder %s19, %s22
    %p31 = scmp.eq.s32.totalorder %s14, 1
    %p32 = por %p30, %p31
    %p33 = scmp.ne.s32.totalorder %s22, %s23
    %p34 = scmp.eq.s32.totalorder %s14, 0
    %p35 = por %p33, %p34
    %p36 = scmp.ne.s32.totalorder %s22, %s23
    %p37 = scmp.eq.s32.totalorder %s15, 1
    %p38 = por %p36, %p37
    %p40 = scmp.ne.s32.totalorder %s23, %s39
    %p41 = scmp.eq.s32.totalorder %s15, 0
    %p42 = por %p40, %p41
    %s44 = sadd.s32 %s43, 1
    %p47 = scmp.eq.s32.totalorder %s9, 1
    %p48 = scmp.ne.s32.totalorder %s43, %s45
    %p49 = scmp.eq.s32.totalorder %s9, 0
    %p50 = por %p48, %p49
    %p51 = scmp.ne.s32.totalorder %s43, %s45
    %p52 = scmp.eq.s32.totalorder %s14, 1
    %p53 = por %p51, %p52
    %p54 = scmp.ne.s32.totalorder %s45, %s46
    %p55 = scmp.eq.s32.totalorder %s14, 0
    %p56 = por %p54, %p55
    %p57 = scmp.ne.s32.totalorder %s45, %s46
    %p58 = scmp.eq.s32.totalorder %s15, 1
    %p59 = por %p57, %p58
    %p61 = scmp.ne.s32.totalorder %s46, %s60
    %p62 = scmp.eq.s32.totalorder %s15, 0
    %p63 = por %p61, %p62
    %s65 = sadd.s32 %s64, 1
    %p68 = scmp.eq.s32.totalorder %s9, 1
    %p69 = scmp.ne.s32.totalorder %s64, %s66
    %p70 = scmp.eq.s32.totalorder %s9, 0
    %p71 = por %p69, %p70
    %p72 = scmp.ne.s32.totalorder %s64, %s66
    %p73 = scmp.eq.s32.totalorder %s14, 1
    %p74 = por %p72, %p73
    %p75 = scmp.ne.s32.totalorder %s66, %s67
    %p76 = scmp.eq.s32.totalorder %s14, 0
    %p77 = por %p75, %p76
    %p78 = scmp.ne.s32.totalorder %s66, %s67
    %p79 = scmp.eq.s32.totalorder %s15, 1
    %p80 = por %p78, %p79
    %p82 = scmp.ne.s32.totalorder %s67, %s81
    %p83 = scmp.eq.s32.totalorder %s15, 0
    %p84 = por %p82, %p83
    %s85 = ssub.s32 %s9, %s16
    %p86 = scmp.eq.s32.totalorder %s85, 0
    %s88 = sadd.s32 %s87, 1
    %s89 = scalar_select %p86, %s87, %s88
    %p92 = pneg %p86
    %p93 = scmp.eq.s32.totalorder %s9, 1
    %p94 = por %p92, %p93
    %p95 = scmp.ne.s32.totalorder %s87, %s90
    %p96 = scmp.eq.s32.totalorder %s9, 0
    %p97 = por %p95, %p96
    %p98 = scmp.ne.s32.totalorder %s87, %s90
    %p99 = scmp.eq.s32.totalorder %s14, 1
    %p100 = por %p98, %p99
    %p101 = scmp.ne.s32.totalorder %s90, %s91
    %p102 = scmp.eq.s32.totalorder %s14, 0
    %p103 = por %p101, %p102
    %p104 = scmp.ne.s32.totalorder %s90, %s91
    %p105 = scmp.eq.s32.totalorder %s15, 1
    %p106 = por %p104, %p105
    %p108 = scmp.ne.s32.totalorder %s91, %s107
    %p109 = scmp.eq.s32.totalorder %s15, 0
    %p110 = por %p108, %p109
    %p111 = scmp.le.s32.totalorder 1, %s9
    %p112 = scmp.lt.s32.totalorder %s9, 3
    %p113 = pnand %p111, %p112
    %p114 = pneg %p113
    // Predicated region
    $region9: #{a_call__.27} parent=5 // pred_check
      _
    $region10: #{a_call__.27} parent=5 // pred_check_branch
      %116 = sbr.rel (%p113) target = $region12
    $region11: #{a_call__.27} parent=5 // pred_region
      %s117 = ssub.s32 %s9, 1
      // Predicated region
      $region13: #{a_call__.27} parent=11 // pred_check
        %p118 = pneg %p56
      $region14: #{a_call__.27} parent=11 // pred_check_branch
        %120 = sbr.rel (%p118) target = $region16
      $region15: #{a_call__.27} parent=11 // pred_region
        _
      $region16: #{a_call__.27} parent=11 // pred_fallthru
        _
      // Predicated region
      $region17: #{a_call__.27} parent=11 // pred_check
        %p121 = pneg %p77
      $region18: #{a_call__.27} parent=11 // pred_check_branch
        %123 = sbr.rel (%p121) target = $region20
      $region19: #{a_call__.27} parent=11 // pred_region
        _
      $region20: #{a_call__.27} parent=11 // pred_fallthru
        _
    $region12: #{a_call__.27} parent=5 // pred_fallthru
      _
    %p124 = scmp.lt.s32.totalorder %s9, 2
    // Predicated region
    $region21: #{a_call__.27} parent=5 // pred_check
      %p125 = pneg %p124
    $region22: #{a_call__.27} parent=5 // pred_check_branch
      %127 = sbr.rel (%p125) target = $region24
    $region23: #{a_call__.27} parent=5 // pred_region
      // Predicated region
      $region25: #{a_call__.27} parent=23 // pred_check
        %p128 = pneg %p29
      $region26: #{a_call__.27} parent=23 // pred_check_branch
        %130 = sbr.rel (%p128) target = $region28
      $region27: #{a_call__.27} parent=23 // pred_region
        %p131 = scmp.lt.s32.totalorder %s9, 1
        %s132 = scalar_select %p131, %s9, 1
        %s133 = smul.addr %s132, 2
        %s134 = smul.addr %s133, 4
        %s135 = scalar_lea.vmem %s0, %s134
      $region28: #{a_call__.27} parent=23 // pred_fallthru
        _
    $region24: #{a_call__.27} parent=5 // pred_fallthru
      _
    %p136 = scmp.le.s32.totalorder 1, %s9
    %p137 = scmp.lt.s32.totalorder %s9, 3
    %p138 = pnand %p136, %p137
    %p139 = pneg %p138
    // Predicated region
    $region29: #{a_call__.27} parent=5 // pred_check
      _
    $region30: #{a_call__.27} parent=5 // pred_check_branch
      %141 = sbr.rel (%p138) target = $region32
    $region31: #{a_call__.27} parent=5 // pred_region
      %s142 = ssub.s32 %s9, 1
      %p143 = scmp.lt.s32.totalorder %s14, 1
      %s144 = scalar_select %p143, %s14, 1
      %s145 = smul.addr %s144, 2
      %s146 = smul.addr %s145, 4
      %s147 = scalar_lea.vmem %s0, %s146
      %p148 = pneg %p35
      %p149 = pneg %p32
      %p150 = pneg %p56
      %p151 = pneg %p53
      %p152 = pneg %p77
      %p153 = pneg %p74
      %p154 = pneg %p103
      %p155 = pneg %p100
      %p156 = scmp.lt.s32.totalorder %s14, 1
      %s157 = scalar_select %p156, %s14, 1
      %s158 = smul.addr %s157, 2
      %s159 = smul.addr %s158, 4
      %s160 = scalar_lea.vmem %s3, %s159
      %p161 = scmp.lt.s32.totalorder %s14, 1
      %s162 = scalar_select %p161, %s14, 1
      %s163 = smul.addr %s162, 2
      %s164 = smul.addr %s163, 4
      %s165 = scalar_lea.vmem %s0, %s164
      %p166 = scmp.lt.s32.totalorder %s14, 1
      %s167 = scalar_select %p166, %s14, 1
      %s168 = smul.addr %s167, 2
      %s169 = smul.addr %s168, 4
      %s170 = scalar_lea.vmem %s3, %s169
      %v172 = vld [vmem:[%s165] sm:$0xf]
      %v173 = vld [vmem:[%s165 + $0x4] sm:$0xf]
      %v174 = vunpack.c.l.bf16 %v172
      %v175 = vunpack.c.l.bf16 %v173
      %vm176 = vcmp.gt.f32.partialorder %v174, 0.0
      %vm177 = vcmp.gt.f32.partialorder %v175, 0.0
      %v178 = vmul.f32 %v174, 0.1
      %v179 = vmul.f32 %v175, 0.1
      %v180 = vsel %vm176, %v174, %v178
      %v181 = vsel %vm177, %v175, %v179
      %v182 = vpack.c.bf16 %v181, %v180
      %184 = vrot.lane.b32.xlu0 %v182, 125
      %v185 = vpop.permute.xlu0 %184
      %187 = vrot.lane.b32.xlu0 %v182, 122
      %v188 = vpop.permute.xlu0 %187
      %v190 = vld [vmem:[%s1] sm:$0xf]
      %v191 = vld [vmem:[%s1 + $0x4] sm:$0xf]
      %v192 = vld [vmem:[%s2] sm:$0xff]
      %v193 = vld [vmem:[%s2 + $0x8] sm:$0xff]
      %195 = vset.pattern.permute.xlu0 0
      %196 = vperm.xlu0 %195, %v192
      %v197 = vpop.permute.xlu0 %196
      %200 = vset.pattern.permute.xlu0 0
      %201 = vperm.xlu0 %200, %v193
      %v202 = vpop.permute.xlu0 %201
      %v206 = vunpack.c.l.b16 %v190
      %v207 = vunpack.c.l.b16 %v191
      %v208 = vpack.c.b16 %v207, %v206
      %vm209 = vcmask 392192
      %v211 = vsel %vm209, %v208, 0
      %213 = vmatprep.subr.bf16.mxu0 0
      %214 = vmatpush1.bf16.msra.mxu0 0
      %215 = vmatprep.subr.bf16.mxu0 0
      %216 = vmatpush1.bf16.msra.mxu0 0
      %217 = vmatprep.subr.bf16.mxu0 0
      %218 = vmatpush1.bf16.msra.mxu0 0
      %219 = vmatprep.subr.bf16.mxu0 0
      %220 = vmatpush1.bf16.msra.mxu0 0
      %221 = vmatprep.subr.bf16.mxu0 0
      %222 = vmatpush1.bf16.msra.mxu0 0
      %223 = vmatprep.subr.bf16.mxu0 0
      %224 = vmatpush1.bf16.msra.mxu0 %v188
      %225 = vmatprep.subr.bf16.mxu0 0
      %226 = vmatpush1.bf16.msra.mxu0 %v185
      %227 = vmatprep.subr.bf16.mxu0 0
      %228 = vmatpush1.bf16.msra.mxu0 %v182
      %229 = vmatprep.subr.bf16.mxu0 0
      %230 = vmatpush2.bf16.msra.mxu0 0
      %231 = vmatprep.subr.bf16.mxu0 0
      %232 = vmatpush2.bf16.msra.mxu0 0
      %233 = vmatprep.subr.bf16.mxu0 0
      %234 = vmatpush2.bf16.msra.mxu0 0
      %235 = vmatprep.subr.bf16.mxu0 0
      %236 = vmatpush2.bf16.msra.mxu0 0
      %237 = vmatprep.subr.bf16.mxu0 0
      %238 = vmatpush2.bf16.msra.mxu0 0
      %239 = vmatprep.subr.bf16.mxu0 0
      %240 = vmatpush2.bf16.msra.mxu0 0
      %241 = vmatprep.subr.bf16.mxu0 0
      %242 = vmatpush2.bf16.msra.mxu0 0
      %243 = vmatprep.subr.bf16.mxu0 0
      %244 = vmatpush2.bf16.msra.mxu0 0
      %245 = vmatprep.mubr.bf16.mxu0 0
      %246 = vmatmul.mubr.bf16.gmra.mxu0 %v211
      %v247 = vpop.f32.mrf.mxu0
      %v248 = vadd.f32 %v197, %v247
      %v249 = vpop.f32.mrf.mxu0
      %v250 = vpop.f32.mrf.mxu0
      %v251 = vadd.f32 %v202, %v250
      %v252 = vpop.f32.mrf.mxu0
      %253 = vdwg.mxu0
      %v254 = vpack.c.bf16 %v251, %v248
      %v256 = vunpack.c.l.b16 %v254
      %v257 = vunpack.c.h.b16 %v254
      %v258 = vpack.c.b16 %v256, %v256
      %v259 = vpack.c.b16 %v257, %v257
      %vm262 = vcmask 125952
      %263 = vst.msk [vmem:[%s170] sm:$0xf] %vm262, %v258
      %264 = vst.msk [vmem:[%s170 + $0x4] sm:$0xf] %vm262, %v259
      %p265 = scmp.lt.s32.totalorder %s14, 1
      %s266 = scalar_select %p265, %s14, 1
      %s267 = smul.addr %s266, 2
      %s268 = smul.addr %s267, 4
      %s269 = scalar_lea.vmem %s3, %s268
      // Predicated region
      $region33: #{a_call__.27} parent=31 // pred_check
        %p270 = pneg %p100
      $region34: #{a_call__.27} parent=31 // pred_check_branch
        %272 = sbr.rel (%p270) target = $region36
      $region35: #{a_call__.27} parent=31 // pred_region
        _
      $region36: #{a_call__.27} parent=31 // pred_fallthru
        _
    $region32: #{a_call__.27} parent=5 // pred_fallthru
      _
    %p273 = scmp.le.s32.totalorder 2, %s9
    // Predicated region
    $region37: #{a_call__.27} parent=5 // pred_check
      %p274 = pneg %p273
    $region38: #{a_call__.27} parent=5 // pred_check_branch
      %276 = sbr.rel (%p274) target = $region40
    $region39: #{a_call__.27} parent=5 // pred_region
      %s277 = ssub.s32 %s9, 2
      // Predicated region
      $region41: #{a_call__.27} parent=39 // pred_check
        %p278 = pneg %p106
      $region42: #{a_call__.27} parent=39 // pred_check_branch
        %280 = sbr.rel (%p278) target = $region44
      $region43: #{a_call__.27} parent=39 // pred_region
        %p281 = scmp.lt.s32.totalorder %s15, 1
        %s282 = scalar_select %p281, %s15, 1
        %s283 = smul.addr %s282, 2
        %s284 = smul.addr %s283, 4
        %s285 = scalar_lea.vmem %s3, %s284
      $region44: #{a_call__.27} parent=39 // pred_fallthru
        _
    $region40: #{a_call__.27} parent=5 // pred_fallthru
      _
  $region6: #{a_call__.27} parent=0 // loop_footer
    %s13 = sadd.s32 1, %s9
  $region7: #{a_call__.27} parent=0 // loop_footer_branch
    %8 = sbr.rel target = $region3
  $region8: #{a_call__.27} parent=0 // loop_exit
    _

// kernel: a_call__.25
$region0: #{a_call__.25}
  #allocation0 [shape = 'u32[]', space=smem, size = 0x4, offset = 0x4, fixed_abs, tag = 'smem constant byte address 0x4 - core index']
  #allocation1 [shape = 'u32[144,128]{1,0:T(1,128)}', space=vmem, size = 0x12000, scoped, tag = 'internal scratch']
  %s0 = inlined_call_operand.vmem [shape: bf16[2,16,18], index: 0, kind: input, shape index: {}]
  %s1 = inlined_call_operand.vmem [shape: bf16[16,48], index: 1, kind: input, shape index: {}]
  %s2 = inlined_call_operand.vmem [shape: f32[16,1], index: 2, kind: input, shape index: {}]
  %s3 = inlined_call_operand.vmem [shape: bf16[2,16,16], index: 3, kind: output, shape index: {}]
  %s4 = sld [smem:[#allocation0]]
  $region45: #{a_call__.25} parent=0
    _
  %s6 = ssub.s32 1, %s4
  %s7 = scalar_select 0, %s6, %s4
  loop: start=0, step=1, limit=4
  $region2: #{a_call__.25} parent=0 // loop_pre_header
    _
  $region3: #{a_call__.25} parent=0 // loop_header
    %s9 = sphi 0, %s13
    %p10 = scmp.ge.s32.totalorder %s9, 4
    %s19 = sphi 0, %s21
    %s22 = sphi 0, %s19
    %s23 = sphi 0, %s22
    %s39 = sphi 0, %s23
    %s43 = sphi 0, %s43
    %s45 = sphi 0, %s43
    %s46 = sphi 0, %s45
    %s60 = sphi 0, %s46
    %s64 = sphi 0, %s64
    %s66 = sphi 0, %s64
    %s67 = sphi 0, %s66
    %s81 = sphi 0, %s67
    %s87 = sphi 0, %s89
    %s90 = sphi 0, %s87
    %s91 = sphi 0, %s90
    %s107 = sphi 0, %s91
  $region4: #{a_call__.25} parent=0 // loop_header_branch
    %12 = sbr.rel (%p10) target = $region8
  $region5: #{a_call__.25} parent=0 // loop_body
    %s14 = ssub.s32 %s9, 1
    %s15 = ssub.s32 %s9, 2
    %s16 = sadd.s32 %s9, 1
    %s17 = ssub.s32 %s9, %s16
    %p18 = scmp.eq.s32.totalorder %s17, 0
    %s20 = sadd.s32 %s19, 1
    %s21 = scalar_select %p18, %s19, %s20
    %p24 = pneg %p18
    %p25 = scmp.eq.s32.totalorder %s9, 1
    %p26 = por %p24, %p25
    %p27 = scmp.ne.s32.totalorder %s19, %s22
    %p28 = scmp.eq.s32.totalorder %s9, 0
    %p29 = por %p27, %p28
    %p30 = scmp.ne.s32.totalorder %s19, %s22
    %p31 = scmp.eq.s32.totalorder %s14, 1
    %p32 = por %p30, %p31
    %p33 = scmp.ne.s32.totalorder %s22, %s23
    %p34 = scmp.eq.s32.totalorder %s14, 0
    %p35 = por %p33, %p34
    %p36 = scmp.ne.s32.totalorder %s22, %s23
    %p37 = scmp.eq.s32.totalorder %s15, 1
    %p38 = por %p36, %p37
    %p40 = scmp.ne.s32.totalorder %s23, %s39
    %p41 = scmp.eq.s32.totalorder %s15, 0
    %p42 = por %p40, %p41
    %s44 = sadd.s32 %s43, 1
    %p47 = scmp.eq.s32.totalorder %s9, 1
    %p48 = scmp.ne.s32.totalorder %s43, %s45
    %p49 = scmp.eq.s32.totalorder %s9, 0
    %p50 = por %p48, %p49
    %p51 = scmp.ne.s32.totalorder %s43, %s45
    %p52 = scmp.eq.s32.totalorder %s14, 1
    %p53 = por %p51, %p52
    %p54 = scmp.ne.s32.totalorder %s45, %s46
    %p55 = scmp.eq.s32.totalorder %s14, 0
    %p56 = por %p54, %p55
    %p57 = scmp.ne.s32.totalorder %s45, %s46
    %p58 = scmp.eq.s32.totalorder %s15, 1
    %p59 = por %p57, %p58
    %p61 = scmp.ne.s32.totalorder %s46, %s60
    %p62 = scmp.eq.s32.totalorder %s15, 0
    %p63 = por %p61, %p62
    %s65 = sadd.s32 %s64, 1
    %p68 = scmp.eq.s32.totalorder %s9, 1
    %p69 = scmp.ne.s32.totalorder %s64, %s66
    %p70 = scmp.eq.s32.totalorder %s9, 0
    %p71 = por %p69, %p70
    %p72 = scmp.ne.s32.totalorder %s64, %s66
    %p73 = scmp.eq.s32.totalorder %s14, 1
    %p74 = por %p72, %p73
    %p75 = scmp.ne.s32.totalorder %s66, %s67
    %p76 = scmp.eq.s32.totalorder %s14, 0
    %p77 = por %p75, %p76
    %p78 = scmp.ne.s32.totalorder %s66, %s67
    %p79 = scmp.eq.s32.totalorder %s15, 1
    %p80 = por %p78, %p79
    %p82 = scmp.ne.s32.totalorder %s67, %s81
    %p83 = scmp.eq.s32.totalorder %s15, 0
    %p84 = por %p82, %p83
    %s85 = ssub.s32 %s9, %s16
    %p86 = scmp.eq.s32.totalorder %s85, 0
    %s88 = sadd.s32 %s87, 1
    %s89 = scalar_select %p86, %s87, %s88
    %p92 = pneg %p86
    %p93 = scmp.eq.s32.totalorder %s9, 1
    %p94 = por %p92, %p93
    %p95 = scmp.ne.s32.totalorder %s87, %s90
    %p96 = scmp.eq.s32.totalorder %s9, 0
    %p97 = por %p95, %p96
    %p98 = scmp.ne.s32.totalorder %s87, %s90
    %p99 = scmp.eq.s32.totalorder %s14, 1
    %p100 = por %p98, %p99
    %p101 = scmp.ne.s32.totalorder %s90, %s91
    %p102 = scmp.eq.s32.totalorder %s14, 0
    %p103 = por %p101, %p102
    %p104 = scmp.ne.s32.totalorder %s90, %s91
    %p105 = scmp.eq.s32.totalorder %s15, 1
    %p106 = por %p104, %p105
    %p108 = scmp.ne.s32.totalorder %s91, %s107
    %p109 = scmp.eq.s32.totalorder %s15, 0
    %p110 = por %p108, %p109
    %p111 = scmp.le.s32.totalorder 1, %s9
    %p112 = scmp.lt.s32.totalorder %s9, 3
    %p113 = pnand %p111, %p112
    %p114 = pneg %p113
    // Predicated region
    $region9: #{a_call__.25} parent=5 // pred_check
      _
    $region10: #{a_call__.25} parent=5 // pred_check_branch
      %116 = sbr.rel (%p113) target = $region12
    $region11: #{a_call__.25} parent=5 // pred_region
      %s117 = ssub.s32 %s9, 1
      // Predicated region
      $region13: #{a_call__.25} parent=11 // pred_check
        %p118 = pneg %p56
      $region14: #{a_call__.25} parent=11 // pred_check_branch
        %120 = sbr.rel (%p118) target = $region16
      $region15: #{a_call__.25} parent=11 // pred_region
        _
      $region16: #{a_call__.25} parent=11 // pred_fallthru
        _
      // Predicated region
      $region17: #{a_call__.25} parent=11 // pred_check
        %p121 = pneg %p77
      $region18: #{a_call__.25} parent=11 // pred_check_branch
        %123 = sbr.rel (%p121) target = $region20
      $region19: #{a_call__.25} parent=11 // pred_region
        _
      $region20: #{a_call__.25} parent=11 // pred_fallthru
        _
    $region12: #{a_call__.25} parent=5 // pred_fallthru
      _
    %p124 = scmp.lt.s32.totalorder %s9, 2
    // Predicated region
    $region21: #{a_call__.25} parent=5 // pred_check
      %p125 = pneg %p124
    $region22: #{a_call__.25} parent=5 // pred_check_branch
      %127 = sbr.rel (%p125) target = $region24
    $region23: #{a_call__.25} parent=5 // pred_region
      // Predicated region
      $region25: #{a_call__.25} parent=23 // pred_check
        %p128 = pneg %p29
      $region26: #{a_call__.25} parent=23 // pred_check_branch
        %130 = sbr.rel (%p128) target = $region28
      $region27: #{a_call__.25} parent=23 // pred_region
        %p131 = scmp.lt.s32.totalorder %s9, 1
        %s132 = scalar_select %p131, %s9, 1
        %s133 = smul.addr %s132, 2
        %s134 = smul.addr %s133, 4
        %s135 = scalar_lea.vmem %s0, %s134
      $region28: #{a_call__.25} parent=23 // pred_fallthru
        _
    $region24: #{a_call__.25} parent=5 // pred_fallthru
      _
    %p136 = scmp.le.s32.totalorder 1, %s9
    %p137 = scmp.lt.s32.totalorder %s9, 3
    %p138 = pnand %p136, %p137
    %p139 = pneg %p138
    // Predicated region
    $region29: #{a_call__.25} parent=5 // pred_check
      _
    $region30: #{a_call__.25} parent=5 // pred_check_branch
      %141 = sbr.rel (%p138) target = $region32
    $region31: #{a_call__.25} parent=5 // pred_region
      %s142 = ssub.s32 %s9, 1
      %p143 = scmp.lt.s32.totalorder %s14, 1
      %s144 = scalar_select %p143, %s14, 1
      %s145 = smul.addr %s144, 2
      %s146 = smul.addr %s145, 4
      %s147 = scalar_lea.vmem %s0, %s146
      %p148 = pneg %p35
      %p149 = pneg %p32
      %p150 = pneg %p56
      %p151 = pneg %p53
      %p152 = pneg %p77
      %p153 = pneg %p74
      %p154 = pneg %p103
      %p155 = pneg %p100
      %p156 = scmp.lt.s32.totalorder %s14, 1
      %s157 = scalar_select %p156, %s14, 1
      %s158 = smul.addr %s157, 2
      %s159 = smul.addr %s158, 4
      %s160 = scalar_lea.vmem %s3, %s159
      %p161 = scmp.lt.s32.totalorder %s14, 1
      %s162 = scalar_select %p161, %s14, 1
      %s163 = smul.addr %s162, 2
      %s164 = smul.addr %s163, 4
      %s165 = scalar_lea.vmem %s0, %s164
      %p166 = scmp.lt.s32.totalorder %s14, 1
      %s167 = scalar_select %p166, %s14, 1
      %s168 = smul.addr %s167, 2
      %s169 = smul.addr %s168, 4
      %s170 = scalar_lea.vmem %s3, %s169
      %v172 = vld [vmem:[%s165] sm:$0xf]
      %v173 = vld [vmem:[%s165 + $0x4] sm:$0xf]
      %v174 = vunpack.c.l.bf16 %v172
      %v175 = vunpack.c.l.bf16 %v173
      %vm176 = vcmp.gt.f32.partialorder %v174, 0.0
      %vm177 = vcmp.gt.f32.partialorder %v175, 0.0
      %v178 = vmul.f32 %v174, 0.1
      %v179 = vmul.f32 %v175, 0.1
      %v180 = vsel %vm176, %v174, %v178
      %v181 = vsel %vm177, %v175, %v179
      %v182 = vpack.c.bf16 %v181, %v180
      %184 = vrot.lane.b32.xlu0 %v182, 127
      %v185 = vpop.permute.xlu0 %184
      %187 = vrot.lane.b32.xlu0 %v182, 126
      %v188 = vpop.permute.xlu0 %187
      %v190 = vld [vmem:[%s1] sm:$0xf]
      %v191 = vld [vmem:[%s1 + $0x4] sm:$0xf]
      %v192 = vld [vmem:[%s2] sm:$0xff]
      %v193 = vld [vmem:[%s2 + $0x8] sm:$0xff]
      %195 = vset.pattern.permute.xlu0 0
      %196 = vperm.xlu0 %195, %v192
      %v197 = vpop.permute.xlu0 %196
      %200 = vset.pattern.permute.xlu0 0
      %201 = vperm.xlu0 %200, %v193
      %v202 = vpop.permute.xlu0 %201
      %v206 = vunpack.c.l.b16 %v190
      %v207 = vunpack.c.l.b16 %v191
      %v208 = vpack.c.b16 %v207, %v206
      %vm209 = vcmask 392192
      %v211 = vsel %vm209, %v208, 0
      %213 = vmatprep.subr.bf16.mxu0 0
      %214 = vmatpush1.bf16.msra.mxu0 0
      %215 = vmatprep.subr.bf16.mxu0 0
      %216 = vmatpush1.bf16.msra.mxu0 0
      %217 = vmatprep.subr.bf16.mxu0 0
      %218 = vmatpush1.bf16.msra.mxu0 0
      %219 = vmatprep.subr.bf16.mxu0 0
      %220 = vmatpush1.bf16.msra.mxu0 0
      %221 = vmatprep.subr.bf16.mxu0 0
      %222 = vmatpush1.bf16.msra.mxu0 0
      %223 = vmatprep.subr.bf16.mxu0 0
      %224 = vmatpush1.bf16.msra.mxu0 %v188
      %225 = vmatprep.subr.bf16.mxu0 0
      %226 = vmatpush1.bf16.msra.mxu0 %v185
      %227 = vmatprep.subr.bf16.mxu0 0
      %228 = vmatpush1.bf16.msra.mxu0 %v182
      %229 = vmatprep.subr.bf16.mxu0 0
      %230 = vmatpush2.bf16.msra.mxu0 0
      %231 = vmatprep.subr.bf16.mxu0 0
      %232 = vmatpush2.bf16.msra.mxu0 0
      %233 = vmatprep.subr.bf16.mxu0 0
      %234 = vmatpush2.bf16.msra.mxu0 0
      %235 = vmatprep.subr.bf16.mxu0 0
      %236 = vmatpush2.bf16.msra.mxu0 0
      %237 = vmatprep.subr.bf16.mxu0 0
      %238 = vmatpush2.bf16.msra.mxu0 0
      %239 = vmatprep.subr.bf16.mxu0 0
      %240 = vmatpush2.bf16.msra.mxu0 0
      %241 = vmatprep.subr.bf16.mxu0 0
      %242 = vmatpush2.bf16.msra.mxu0 0
      %243 = vmatprep.subr.bf16.mxu0 0
      %244 = vmatpush2.bf16.msra.mxu0 0
      %245 = vmatprep.mubr.bf16.mxu0 0
      %246 = vmatmul.mubr.bf16.gmra.mxu0 %v211
      %v247 = vpop.f32.mrf.mxu0
      %v248 = vadd.f32 %v197, %v247
      %v249 = vpop.f32.mrf.mxu0
      %v250 = vpop.f32.mrf.mxu0
      %v251 = vadd.f32 %v202, %v250
      %v252 = vpop.f32.mrf.mxu0
      %253 = vdwg.mxu0
      %v254 = vpack.c.bf16 %v251, %v248
      %v256 = vunpack.c.l.b16 %v254
      %v257 = vunpack.c.h.b16 %v254
      %v258 = vpack.c.b16 %v256, %v256
      %v259 = vpack.c.b16 %v257, %v257
      %vm262 = vcmask 125952
      %263 = vst.msk [vmem:[%s170] sm:$0xf] %vm262, %v258
      %264 = vst.msk [vmem:[%s170 + $0x4] sm:$0xf] %vm262, %v259
      %p265 = scmp.lt.s32.totalorder %s14, 1
      %s266 = scalar_select %p265, %s14, 1
      %s267 = smul.addr %s266, 2
      %s268 = smul.addr %s267, 4
      %s269 = scalar_lea.vmem %s3, %s268
      // Predicated region
      $region33: #{a_call__.25} parent=31 // pred_check
        %p270 = pneg %p100
      $region34: #{a_call__.25} parent=31 // pred_check_branch
        %272 = sbr.rel (%p270) target = $region36
      $region35: #{a_call__.25} parent=31 // pred_region
        _
      $region36: #{a_call__.25} parent=31 // pred_fallthru
        _
    $region32: #{a_call__.25} parent=5 // pred_fallthru
      _
    %p273 = scmp.le.s32.totalorder 2, %s9
    // Predicated region
    $region37: #{a_call__.25} parent=5 // pred_check
      %p274 = pneg %p273
    $region38: #{a_call__.25} parent=5 // pred_check_branch
      %276 = sbr.rel (%p274) target = $region40
    $region39: #{a_call__.25} parent=5 // pred_region
      %s277 = ssub.s32 %s9, 2
      // Predicated region
      $region41: #{a_call__.25} parent=39 // pred_check
        %p278 = pneg %p106
      $region42: #{a_call__.25} parent=39 // pred_check_branch
        %280 = sbr.rel (%p278) target = $region44
      $region43: #{a_call__.25} parent=39 // pred_region
        %p281 = scmp.lt.s32.totalorder %s15, 1
        %s282 = scalar_select %p281, %s15, 1
        %s283 = smul.addr %s282, 2
        %s284 = smul.addr %s283, 4
        %s285 = scalar_lea.vmem %s3, %s284
      $region44: #{a_call__.25} parent=39 // pred_fallthru
        _
    $region40: #{a_call__.25} parent=5 // pred_fallthru
      _
  $region6: #{a_call__.25} parent=0 // loop_footer
    %s13 = sadd.s32 1, %s9
  $region7: #{a_call__.25} parent=0 // loop_footer_branch
    %8 = sbr.rel target = $region3
  $region8: #{a_call__.25} parent=0 // loop_exit
    _

// kernel: a_call__.26
$region0: #{a_call__.26}
  #allocation0 [shape = 'u32[]', space=smem, size = 0x4, offset = 0x4, fixed_abs, tag = 'smem constant byte address 0x4 - core index']
  #allocation1 [shape = 'u32[144,128]{1,0:T(1,128)}', space=vmem, size = 0x12000, scoped, tag = 'internal scratch']
  %s0 = inlined_call_operand.vmem [shape: bf16[2,16,18], index: 0, kind: input, shape index: {}]
  %s1 = inlined_call_operand.vmem [shape: bf16[16,48], index: 1, kind: input, shape index: {}]
  %s2 = inlined_call_operand.vmem [shape: f32[16,1], index: 2, kind: input, shape index: {}]
  %s3 = inlined_call_operand.vmem [shape: bf16[2,16,16], index: 3, kind: input, shape index: {}]
  %s4 = inlined_call_operand.vmem [shape: bf16[2,16,16], index: 4, kind: output, shape index: {}]
  %s5 = sld [smem:[#allocation0]]
  $region49: #{a_call__.26} parent=0
    _
  %s7 = ssub.s32 1, %s5
  %s8 = scalar_select 0, %s7, %s5
  loop: start=0, step=1, limit=4
  $region2: #{a_call__.26} parent=0 // loop_pre_header
    _
  $region3: #{a_call__.26} parent=0 // loop_header
    %s10 = sphi 0, %s14
    %p11 = scmp.ge.s32.totalorder %s10, 4
    %s20 = sphi 0, %s22
    %s23 = sphi 0, %s20
    %s24 = sphi 0, %s23
    %s40 = sphi 0, %s24
    %s44 = sphi 0, %s44
    %s46 = sphi 0, %s44
    %s47 = sphi 0, %s46
    %s61 = sphi 0, %s47
    %s65 = sphi 0, %s65
    %s67 = sphi 0, %s65
    %s68 = sphi 0, %s67
    %s82 = sphi 0, %s68
    %s88 = sphi 0, %s90
    %s91 = sphi 0, %s88
    %s92 = sphi 0, %s91
    %s108 = sphi 0, %s92
    %s114 = sphi 0, %s116
    %s117 = sphi 0, %s114
    %s118 = sphi 0, %s117
    %s134 = sphi 0, %s118
  $region4: #{a_call__.26} parent=0 // loop_header_branch
    %13 = sbr.rel (%p11) target = $region8
  $region5: #{a_call__.26} parent=0 // loop_body
    %s15 = ssub.s32 %s10, 1
    %s16 = ssub.s32 %s10, 2
    %s17 = sadd.s32 %s10, 1
    %s18 = ssub.s32 %s10, %s17
    %p19 = scmp.eq.s32.totalorder %s18, 0
    %s21 = sadd.s32 %s20, 1
    %s22 = scalar_select %p19, %s20, %s21
    %p25 = pneg %p19
    %p26 = scmp.eq.s32.totalorder %s10, 1
    %p27 = por %p25, %p26
    %p28 = scmp.ne.s32.totalorder %s20, %s23
    %p29 = scmp.eq.s32.totalorder %s10, 0
    %p30 = por %p28, %p29
    %p31 = scmp.ne.s32.totalorder %s20, %s23
    %p32 = scmp.eq.s32.totalorder %s15, 1
    %p33 = por %p31, %p32
    %p34 = scmp.ne.s32.totalorder %s23, %s24
    %p35 = scmp.eq.s32.totalorder %s15, 0
    %p36 = por %p34, %p35
    %p37 = scmp.ne.s32.totalorder %s23, %s24
    %p38 = scmp.eq.s32.totalorder %s16, 1
    %p39 = por %p37, %p38
    %p41 = scmp.ne.s32.totalorder %s24, %s40
    %p42 = scmp.eq.s32.totalorder %s16, 0
    %p43 = por %p41, %p42
    %s45 = sadd.s32 %s44, 1
    %p48 = scmp.eq.s32.totalorder %s10, 1
    %p49 = scmp.ne.s32.totalorder %s44, %s46
    %p50 = scmp.eq.s32.totalorder %s10, 0
    %p51 = por %p49, %p50
    %p52 = scmp.ne.s32.totalorder %s44, %s46
    %p53 = scmp.eq.s32.totalorder %s15, 1
    %p54 = por %p52, %p53
    %p55 = scmp.ne.s32.totalorder %s46, %s47
    %p56 = scmp.eq.s32.totalorder %s15, 0
    %p57 = por %p55, %p56
    %p58 = scmp.ne.s32.totalorder %s46, %s47
    %p59 = scmp.eq.s32.totalorder %s16, 1
    %p60 = por %p58, %p59
    %p62 = scmp.ne.s32.totalorder %s47, %s61
    %p63 = scmp.eq.s32.totalorder %s16, 0
    %p64 = por %p62, %p63
    %s66 = sadd.s32 %s65, 1
    %p69 = scmp.eq.s32.totalorder %s10, 1
    %p70 = scmp.ne.s32.totalorder %s65, %s67
    %p71 = scmp.eq.s32.totalorder %s10, 0
    %p72 = por %p70, %p71
    %p73 = scmp.ne.s32.totalorder %s65, %s67
    %p74 = scmp.eq.s32.totalorder %s15, 1
    %p75 = por %p73, %p74
    %p76 = scmp.ne.s32.totalorder %s67, %s68
    %p77 = scmp.eq.s32.totalorder %s15, 0
    %p78 = por %p76, %p77
    %p79 = scmp.ne.s32.totalorder %s67, %s68
    %p80 = scmp.eq.s32.totalorder %s16, 1
    %p81 = por %p79, %p80
    %p83 = scmp.ne.s32.totalorder %s68, %s82
    %p84 = scmp.eq.s32.totalorder %s16, 0
    %p85 = por %p83, %p84
    %s86 = ssub.s32 %s10, %s17
    %p87 = scmp.eq.s32.totalorder %s86, 0
    %s89 = sadd.s32 %s88, 1
    %s90 = scalar_select %p87, %s88, %s89
    %p93 = pneg %p87
    %p94 = scmp.eq.s32.totalorder %s10, 1
    %p95 = por %p93, %p94
    %p96 = scmp.ne.s32.totalorder %s88, %s91
    %p97 = scmp.eq.s32.totalorder %s10, 0
    %p98 = por %p96, %p97
    %p99 = scmp.ne.s32.totalorder %s88, %s91
    %p100 = scmp.eq.s32.totalorder %s15, 1
    %p101 = por %p99, %p100
    %p102 = scmp.ne.s32.totalorder %s91, %s92
    %p103 = scmp.eq.s32.totalorder %s15, 0
    %p104 = por %p102, %p103
    %p105 = scmp.ne.s32.totalorder %s91, %s92
    %p106 = scmp.eq.s32.totalorder %s16, 1
    %p107 = por %p105, %p106
    %p109 = scmp.ne.s32.totalorder %s92, %s108
    %p110 = scmp.eq.s32.totalorder %s16, 0
    %p111 = por %p109, %p110
    %s112 = ssub.s32 %s10, %s17
    %p113 = scmp.eq.s32.totalorder %s112, 0
    %s115 = sadd.s32 %s114, 1
    %s116 = scalar_select %p113, %s114, %s115
    %p119 = pneg %p113
    %p120 = scmp.eq.s32.totalorder %s10, 1
    %p121 = por %p119, %p120
    %p122 = scmp.ne.s32.totalorder %s114, %s117
    %p123 = scmp.eq.s32.totalorder %s10, 0
    %p124 = por %p122, %p123
    %p125 = scmp.ne.s32.totalorder %s114, %s117
    %p126 = scmp.eq.s32.totalorder %s15, 1
    %p127 = por %p125, %p126
    %p128 = scmp.ne.s32.totalorder %s117, %s118
    %p129 = scmp.eq.s32.totalorder %s15, 0
    %p130 = por %p128, %p129
    %p131 = scmp.ne.s32.totalorder %s117, %s118
    %p132 = scmp.eq.s32.totalorder %s16, 1
    %p133 = por %p131, %p132
    %p135 = scmp.ne.s32.totalorder %s118, %s134
    %p136 = scmp.eq.s32.totalorder %s16, 0
    %p137 = por %p135, %p136
    %p138 = scmp.le.s32.totalorder 1, %s10
    %p139 = scmp.lt.s32.totalorder %s10, 3
    %p140 = pnand %p138, %p139
    %p141 = pneg %p140
    // Predicated region
    $region9: #{a_call__.26} parent=5 // pred_check
      _
    $region10: #{a_call__.26} parent=5 // pred_check_branch
      %143 = sbr.rel (%p140) target = $region12
    $region11: #{a_call__.26} parent=5 // pred_region
      %s144 = ssub.s32 %s10, 1
      // Predicated region
      $region13: #{a_call__.26} parent=11 // pred_check
        %p145 = pneg %p57
      $region14: #{a_call__.26} parent=11 // pred_check_branch
        %147 = sbr.rel (%p145) target = $region16
      $region15: #{a_call__.26} parent=11 // pred_region
        _
      $region16: #{a_call__.26} parent=11 // pred_fallthru
        _
      // Predicated region
      $region17: #{a_call__.26} parent=11 // pred_check
        %p148 = pneg %p78
      $region18: #{a_call__.26} parent=11 // pred_check_branch
        %150 = sbr.rel (%p148) target = $region20
      $region19: #{a_call__.26} parent=11 // pred_region
        _
      $region20: #{a_call__.26} parent=11 // pred_fallthru
        _
    $region12: #{a_call__.26} parent=5 // pred_fallthru
      _
    %p151 = scmp.lt.s32.totalorder %s10, 2
    // Predicated region
    $region21: #{a_call__.26} parent=5 // pred_check
      %p152 = pneg %p151
    $region22: #{a_call__.26} parent=5 // pred_check_branch
      %154 = sbr.rel (%p152) target = $region24
    $region23: #{a_call__.26} parent=5 // pred_region
      // Predicated region
      $region25: #{a_call__.26} parent=23 // pred_check
        %p155 = pneg %p30
      $region26: #{a_call__.26} parent=23 // pred_check_branch
        %157 = sbr.rel (%p155) target = $region28
      $region27: #{a_call__.26} parent=23 // pred_region
        %p158 = scmp.lt.s32.totalorder %s10, 1
        %s159 = scalar_select %p158, %s10, 1
        %s160 = smul.addr %s159, 2
        %s161 = smul.addr %s160, 4
        %s162 = scalar_lea.vmem %s0, %s161
      $region28: #{a_call__.26} parent=23 // pred_fallthru
        _
      // Predicated region
      $region29: #{a_call__.26} parent=23 // pred_check
        %p163 = pneg %p98
      $region30: #{a_call__.26} parent=23 // pred_check_branch
        %165 = sbr.rel (%p163) target = $region32
      $region31: #{a_call__.26} parent=23 // pred_region
        %p166 = scmp.lt.s32.totalorder %s10, 1
        %s167 = scalar_select %p166, %s10, 1
        %s168 = smul.addr %s167, 2
        %s169 = smul.addr %s168, 4
        %s170 = scalar_lea.vmem %s3, %s169
      $region32: #{a_call__.26} parent=23 // pred_fallthru
        _
    $region24: #{a_call__.26} parent=5 // pred_fallthru
      _
    %p171 = scmp.le.s32.totalorder 1, %s10
    %p172 = scmp.lt.s32.totalorder %s10, 3
    %p173 = pnand %p171, %p172
    %p174 = pneg %p173
    // Predicated region
    $region33: #{a_call__.26} parent=5 // pred_check
      _
    $region34: #{a_call__.26} parent=5 // pred_check_branch
      %176 = sbr.rel (%p173) target = $region36
    $region35: #{a_call__.26} parent=5 // pred_region
      %s177 = ssub.s32 %s10, 1
      %p178 = scmp.lt.s32.totalorder %s15, 1
      %s179 = scalar_select %p178, %s15, 1
      %s180 = smul.addr %s179, 2
      %s181 = smul.addr %s180, 4
      %s182 = scalar_lea.vmem %s0, %s181
      %p183 = pneg %p36
      %p184 = pneg %p33
      %p185 = pneg %p57
      %p186 = pneg %p54
      %p187 = pneg %p78
      %p188 = pneg %p75
      %p189 = scmp.lt.s32.totalorder %s15, 1
      %s190 = scalar_select %p189, %s15, 1
      %s191 = smul.addr %s190, 2
      %s192 = smul.addr %s191, 4
      %s193 = scalar_lea.vmem %s3, %s192
      %p194 = pneg %p104
      %p195 = pneg %p101
      %p196 = pneg %p130
      %p197 = pneg %p127
      %p198 = scmp.lt.s32.totalorder %s15, 1
      %s199 = scalar_select %p198, %s15, 1
      %s200 = smul.addr %s199, 2
      %s201 = smul.addr %s200, 4
      %s202 = scalar_lea.vmem %s4, %s201
      %p203 = scmp.lt.s32.totalorder %s15, 1
      %s204 = scalar_select %p203, %s15, 1
      %s205 = smul.addr %s204, 2
      %s206 = smul.addr %s205, 4
      %s207 = scalar_lea.vmem %s0, %s206
      %p208 = scmp.lt.s32.totalorder %s15, 1
      %s209 = scalar_select %p208, %s15, 1
      %s210 = smul.addr %s209, 2
      %s211 = smul.addr %s210, 4
      %s212 = scalar_lea.vmem %s3, %s211
      %p213 = scmp.lt.s32.totalorder %s15, 1
      %s214 = scalar_select %p213, %s15, 1
      %s215 = smul.addr %s214, 2
      %s216 = smul.addr %s215, 4
      %s217 = scalar_lea.vmem %s4, %s216
      %v219 = vld [vmem:[%s207] sm:$0xf]
      %v220 = vld [vmem:[%s207 + $0x4] sm:$0xf]
      %v221 = vunpack.c.l.bf16 %v219
      %v222 = vunpack.c.l.bf16 %v220
      %vm223 = vcmp.gt.f32.partialorder %v221, 0.0
      %vm224 = vcmp.gt.f32.partialorder %v222, 0.0
      %v225 = vmul.f32 %v221, 0.1
      %v226 = vmul.f32 %v222, 0.1
      %v227 = vsel %vm223, %v221, %v225
      %v228 = vsel %vm224, %v222, %v226
      %v229 = vpack.c.bf16 %v228, %v227
      %231 = vrot.lane.b32.xlu0 %v229, 127
      %v232 = vpop.permute.xlu0 %231
      %234 = vrot.lane.b32.xlu0 %v229, 126
      %v235 = vpop.permute.xlu0 %234
      %v237 = vld [vmem:[%s1] sm:$0xf]
      %v238 = vld [vmem:[%s1 + $0x4] sm:$0xf]
      %v239 = vld [vmem:[%s2] sm:$0xff]
      %v240 = vld [vmem:[%s2 + $0x8] sm:$0xff]
      %242 = vset.pattern.permute.xlu0 0
      %243 = vperm.xlu0 %242, %v239
      %v244 = vpop.permute.xlu0 %243
      %247 = vset.pattern.permute.xlu0 0
      %248 = vperm.xlu0 %247, %v240
      %v249 = vpop.permute.xlu0 %248
      %v253 = vunpack.c.l.b16 %v237
      %v254 = vunpack.c.l.b16 %v238
      %v255 = vpack.c.b16 %v254, %v253
      %vm256 = vcmask 392192
      %v258 = vsel %vm256, %v255, 0
      %260 = vmatprep.subr.bf16.mxu0 0
      %261 = vmatpush1.bf16.msra.mxu0 0
      %262 = vmatprep.subr.bf16.mxu0 0
      %263 = vmatpush1.bf16.msra.mxu0 0
      %264 = vmatprep.subr.bf16.mxu0 0
      %265 = vmatpush1.bf16.msra.mxu0 0
      %266 = vmatprep.subr.bf16.mxu0 0
      %267 = vmatpush1.bf16.msra.mxu0 0
      %268 = vmatprep.subr.bf16.mxu0 0
      %269 = vmatpush1.bf16.msra.mxu0 0
      %270 = vmatprep.subr.bf16.mxu0 0
      %271 = vmatpush1.bf16.msra.mxu0 %v235
      %272 = vmatprep.subr.bf16.mxu0 0
      %273 = vmatpush1.bf16.msra.mxu0 %v232
      %274 = vmatprep.subr.bf16.mxu0 0
      %275 = vmatpush1.bf16.msra.mxu0 %v229
      %276 = vmatprep.subr.bf16.mxu0 0
      %277 = vmatpush2.bf16.msra.mxu0 0
      %278 = vmatprep.subr.bf16.mxu0 0
      %279 = vmatpush2.bf16.msra.mxu0 0
      %280 = vmatprep.subr.bf16.mxu0 0
      %281 = vmatpush2.bf16.msra.mxu0 0
      %282 = vmatprep.subr.bf16.mxu0 0
      %283 = vmatpush2.bf16.msra.mxu0 0
      %284 = vmatprep.subr.bf16.mxu0 0
      %285 = vmatpush2.bf16.msra.mxu0 0
      %286 = vmatprep.subr.bf16.mxu0 0
      %287 = vmatpush2.bf16.msra.mxu0 0
      %288 = vmatprep.subr.bf16.mxu0 0
      %289 = vmatpush2.bf16.msra.mxu0 0
      %290 = vmatprep.subr.bf16.mxu0 0
      %291 = vmatpush2.bf16.msra.mxu0 0
      %292 = vmatprep.mubr.bf16.mxu0 0
      %293 = vmatmul.mubr.bf16.gmra.mxu0 %v258
      %v294 = vpop.f32.mrf.mxu0
      %v295 = vadd.f32 %v244, %v294
      %v296 = vpop.f32.mrf.mxu0
      %v297 = vpop.f32.mrf.mxu0
      %v298 = vadd.f32 %v249, %v297
      %v299 = vpop.f32.mrf.mxu0
      %300 = vdwg.mxu0
      %v301 = vld [vmem:[%s212] sm:$0xf]
      %v302 = vld [vmem:[%s212 + $0x4] sm:$0xf]
      %v303 = vunpack.c.l.bf16 %v301
      %v304 = vunpack.c.l.bf16 %v302
      %v305 = vadd.f32 %v295, %v303
      %v306 = vadd.f32 %v298, %v304
      %v307 = vpack.c.bf16 %v306, %v305
      %v309 = vunpack.c.l.b16 %v307
      %v310 = vunpack.c.h.b16 %v307
      %v311 = vpack.c.b16 %v309, %v309
      %v312 = vpack.c.b16 %v310, %v310
      %vm315 = vcmask 125952
      %316 = vst.msk [vmem:[%s217] sm:$0xf] %vm315, %v311
      %317 = vst.msk [vmem:[%s217 + $0x4] sm:$0xf] %vm315, %v312
      %p318 = scmp.lt.s32.totalorder %s15, 1
      %s319 = scalar_select %p318, %s15, 1
      %s320 = smul.addr %s319, 2
      %s321 = smul.addr %s320, 4
      %s322 = scalar_lea.vmem %s4, %s321
      // Predicated region
      $region37: #{a_call__.26} parent=35 // pred_check
        %p323 = pneg %p127
      $region38: #{a_call__.26} parent=35 // pred_check_branch
        %325 = sbr.rel (%p323) target = $region40
      $region39: #{a_call__.26} parent=35 // pred_region
        _
      $region40: #{a_call__.26} parent=35 // pred_fallthru
        _
    $region36: #{a_call__.26} parent=5 // pred_fallthru
      _
    %p326 = scmp.le.s32.totalorder 2, %s10
    // Predicated region
    $region41: #{a_call__.26} parent=5 // pred_check
      %p327 = pneg %p326
    $region42: #{a_call__.26} parent=5 // pred_check_branch
      %329 = sbr.rel (%p327) target = $region44
    $region43: #{a_call__.26} parent=5 // pred_region
      %s330 = ssub.s32 %s10, 2
      // Predicated region
      $region45: #{a_call__.26} parent=43 // pred_check
        %p331 = pneg %p133
      $region46: #{a_call__.26} parent=43 // pred_check_branch
        %333 = sbr.rel (%p331) target = $region48
      $region47: #{a_call__.26} parent=43 // pred_region
        %p334 = scmp.lt.s32.totalorder %s16, 1
        %s335 = scalar_select %p334, %s16, 1
        %s336 = smul.addr %s335, 2
        %s337 = smul.addr %s336, 4
        %s338 = scalar_lea.vmem %s4, %s337
      $region48: #{a_call__.26} parent=43 // pred_fallthru
        _
    $region44: #{a_call__.26} parent=5 // pred_fallthru
      _
  $region6: #{a_call__.26} parent=0 // loop_footer
    %s14 = sadd.s32 1, %s10
  $region7: #{a_call__.26} parent=0 // loop_footer_branch
    %9 = sbr.rel target = $region3
  $region8: #{a_call__.26} parent=0 // loop_exit
    _

// kernel: a_call__.39
$region0: #{a_call__.39}
  #allocation0 [shape = 'u32[]', space=smem, size = 0x4, offset = 0x4, fixed_abs, tag = 'smem constant byte address 0x4 - core index']
  #allocation1 [shape = 'u32[144,128]{1,0:T(1,128)}', space=vmem, size = 0x12000, scoped, tag = 'internal scratch']
  %s0 = inlined_call_operand.vmem [shape: bf16[2,8,36], index: 0, kind: input, shape index: {}]
  %s1 = inlined_call_operand.vmem [shape: bf16[8,40], index: 1, kind: input, shape index: {}]
  %s2 = inlined_call_operand.vmem [shape: f32[8,1], index: 2, kind: input, shape index: {}]
  %s3 = inlined_call_operand.vmem [shape: bf16[2,8,32], index: 3, kind: output, shape index: {}]
  %s4 = sld [smem:[#allocation0]]
  $region45: #{a_call__.39} parent=0
    _
  %s6 = ssub.s32 1, %s4
  %s7 = scalar_select 0, %s6, %s4
  loop: start=0, step=1, limit=4
  $region2: #{a_call__.39} parent=0 // loop_pre_header
    _
  $region3: #{a_call__.39} parent=0 // loop_header
    %s9 = sphi 0, %s13
    %p10 = scmp.ge.s32.totalorder %s9, 4
    %s19 = sphi 0, %s21
    %s22 = sphi 0, %s19
    %s23 = sphi 0, %s22
    %s39 = sphi 0, %s23
    %s43 = sphi 0, %s43
    %s45 = sphi 0, %s43
    %s46 = sphi 0, %s45
    %s60 = sphi 0, %s46
    %s64 = sphi 0, %s64
    %s66 = sphi 0, %s64
    %s67 = sphi 0, %s66
    %s81 = sphi 0, %s67
    %s87 = sphi 0, %s89
    %s90 = sphi 0, %s87
    %s91 = sphi 0, %s90
    %s107 = sphi 0, %s91
  $region4: #{a_call__.39} parent=0 // loop_header_branch
    %12 = sbr.rel (%p10) target = $region8
  $region5: #{a_call__.39} parent=0 // loop_body
    %s14 = ssub.s32 %s9, 1
    %s15 = ssub.s32 %s9, 2
    %s16 = sadd.s32 %s9, 1
    %s17 = ssub.s32 %s9, %s16
    %p18 = scmp.eq.s32.totalorder %s17, 0
    %s20 = sadd.s32 %s19, 1
    %s21 = scalar_select %p18, %s19, %s20
    %p24 = pneg %p18
    %p25 = scmp.eq.s32.totalorder %s9, 1
    %p26 = por %p24, %p25
    %p27 = scmp.ne.s32.totalorder %s19, %s22
    %p28 = scmp.eq.s32.totalorder %s9, 0
    %p29 = por %p27, %p28
    %p30 = scmp.ne.s32.totalorder %s19, %s22
    %p31 = scmp.eq.s32.totalorder %s14, 1
    %p32 = por %p30, %p31
    %p33 = scmp.ne.s32.totalorder %s22, %s23
    %p34 = scmp.eq.s32.totalorder %s14, 0
    %p35 = por %p33, %p34
    %p36 = scmp.ne.s32.totalorder %s22, %s23
    %p37 = scmp.eq.s32.totalorder %s15, 1
    %p38 = por %p36, %p37
    %p40 = scmp.ne.s32.totalorder %s23, %s39
    %p41 = scmp.eq.s32.totalorder %s15, 0
    %p42 = por %p40, %p41
    %s44 = sadd.s32 %s43, 1
    %p47 = scmp.eq.s32.totalorder %s9, 1
    %p48 = scmp.ne.s32.totalorder %s43, %s45
    %p49 = scmp.eq.s32.totalorder %s9, 0
    %p50 = por %p48, %p49
    %p51 = scmp.ne.s32.totalorder %s43, %s45
    %p52 = scmp.eq.s32.totalorder %s14, 1
    %p53 = por %p51, %p52
    %p54 = scmp.ne.s32.totalorder %s45, %s46
    %p55 = scmp.eq.s32.totalorder %s14, 0
    %p56 = por %p54, %p55
    %p57 = scmp.ne.s32.totalorder %s45, %s46
    %p58 = scmp.eq.s32.totalorder %s15, 1
    %p59 = por %p57, %p58
    %p61 = scmp.ne.s32.totalorder %s46, %s60
    %p62 = scmp.eq.s32.totalorder %s15, 0
    %p63 = por %p61, %p62
    %s65 = sadd.s32 %s64, 1
    %p68 = scmp.eq.s32.totalorder %s9, 1
    %p69 = scmp.ne.s32.totalorder %s64, %s66
    %p70 = scmp.eq.s32.totalorder %s9, 0
    %p71 = por %p69, %p70
    %p72 = scmp.ne.s32.totalorder %s64, %s66
    %p73 = scmp.eq.s32.totalorder %s14, 1
    %p74 = por %p72, %p73
    %p75 = scmp.ne.s32.totalorder %s66, %s67
    %p76 = scmp.eq.s32.totalorder %s14, 0
    %p77 = por %p75, %p76
    %p78 = scmp.ne.s32.totalorder %s66, %s67
    %p79 = scmp.eq.s32.totalorder %s15, 1
    %p80 = por %p78, %p79
    %p82 = scmp.ne.s32.totalorder %s67, %s81
    %p83 = scmp.eq.s32.totalorder %s15, 0
    %p84 = por %p82, %p83
    %s85 = ssub.s32 %s9, %s16
    %p86 = scmp.eq.s32.totalorder %s85, 0
    %s88 = sadd.s32 %s87, 1
    %s89 = scalar_select %p86, %s87, %s88
    %p92 = pneg %p86
    %p93 = scmp.eq.s32.totalorder %s9, 1
    %p94 = por %p92, %p93
    %p95 = scmp.ne.s32.totalorder %s87, %s90
    %p96 = scmp.eq.s32.totalorder %s9, 0
    %p97 = por %p95, %p96
    %p98 = scmp.ne.s32.totalorder %s87, %s90
    %p99 = scmp.eq.s32.totalorder %s14, 1
    %p100 = por %p98, %p99
    %p101 = scmp.ne.s32.totalorder %s90, %s91
    %p102 = scmp.eq.s32.totalorder %s14, 0
    %p103 = por %p101, %p102
    %p104 = scmp.ne.s32.totalorder %s90, %s91
    %p105 = scmp.eq.s32.totalorder %s15, 1
    %p106 = por %p104, %p105
    %p108 = scmp.ne.s32.totalorder %s91, %s107
    %p109 = scmp.eq.s32.totalorder %s15, 0
    %p110 = por %p108, %p109
    %p111 = scmp.le.s32.totalorder 1, %s9
    %p112 = scmp.lt.s32.totalorder %s9, 3
    %p113 = pnand %p111, %p112
    %p114 = pneg %p113
    // Predicated region
    $region9: #{a_call__.39} parent=5 // pred_check
      _
    $region10: #{a_call__.39} parent=5 // pred_check_branch
      %116 = sbr.rel (%p113) target = $region12
    $region11: #{a_call__.39} parent=5 // pred_region
      %s117 = ssub.s32 %s9, 1
      // Predicated region
      $region13: #{a_call__.39} parent=11 // pred_check
        %p118 = pneg %p56
      $region14: #{a_call__.39} parent=11 // pred_check_branch
        %120 = sbr.rel (%p118) target = $region16
      $region15: #{a_call__.39} parent=11 // pred_region
        _
      $region16: #{a_call__.39} parent=11 // pred_fallthru
        _
      // Predicated region
      $region17: #{a_call__.39} parent=11 // pred_check
        %p121 = pneg %p77
      $region18: #{a_call__.39} parent=11 // pred_check_branch
        %123 = sbr.rel (%p121) target = $region20
      $region19: #{a_call__.39} parent=11 // pred_region
        _
      $region20: #{a_call__.39} parent=11 // pred_fallthru
        _
    $region12: #{a_call__.39} parent=5 // pred_fallthru
      _
    %p124 = scmp.lt.s32.totalorder %s9, 2
    // Predicated region
    $region21: #{a_call__.39} parent=5 // pred_check
      %p125 = pneg %p124
    $region22: #{a_call__.39} parent=5 // pred_check_branch
      %127 = sbr.rel (%p125) target = $region24
    $region23: #{a_call__.39} parent=5 // pred_region
      // Predicated region
      $region25: #{a_call__.39} parent=23 // pred_check
        %p128 = pneg %p29
      $region26: #{a_call__.39} parent=23 // pred_check_branch
        %130 = sbr.rel (%p128) target = $region28
      $region27: #{a_call__.39} parent=23 // pred_region
        %p131 = scmp.lt.s32.totalorder %s9, 1
        %s132 = scalar_select %p131, %s9, 1
        %s133 = smul.addr %s132, 4
        %s134 = scalar_lea.vmem %s0, %s133
      $region28: #{a_call__.39} parent=23 // pred_fallthru
        _
    $region24: #{a_call__.39} parent=5 // pred_fallthru
      _
    %p135 = scmp.le.s32.totalorder 1, %s9
    %p136 = scmp.lt.s32.totalorder %s9, 3
    %p137 = pnand %p135, %p136
    %p138 = pneg %p137
    // Predicated region
    $region29: #{a_call__.39} parent=5 // pred_check
      _
    $region30: #{a_call__.39} parent=5 // pred_check_branch
      %140 = sbr.rel (%p137) target = $region32
    $region31: #{a_call__.39} parent=5 // pred_region
      %s141 = ssub.s32 %s9, 1
      %p142 = scmp.lt.s32.totalorder %s14, 1
      %s143 = scalar_select %p142, %s14, 1
      %s144 = smul.addr %s143, 4
      %s145 = scalar_lea.vmem %s0, %s144
      %p146 = pneg %p35
      %p147 = pneg %p32
      %p148 = pneg %p56
      %p149 = pneg %p53
      %p150 = pneg %p77
      %p151 = pneg %p74
      %p152 = pneg %p103
      %p153 = pneg %p100
      %p154 = scmp.lt.s32.totalorder %s14, 1
      %s155 = scalar_select %p154, %s14, 1
      %s156 = smul.addr %s155, 4
      %s157 = scalar_lea.vmem %s3, %s156
      %p158 = scmp.lt.s32.totalorder %s14, 1
      %s159 = scalar_select %p158, %s14, 1
      %s160 = smul.addr %s159, 4
      %s161 = scalar_lea.vmem %s0, %s160
      %p162 = scmp.lt.s32.totalorder %s14, 1
      %s163 = scalar_select %p162, %s14, 1
      %s164 = smul.addr %s163, 4
      %s165 = scalar_lea.vmem %s3, %s164
      %v167 = vld [vmem:[%s161] sm:$0xf]
      %v168 = vunpack.c.l.bf16 %v167
      %vm169 = vcmp.gt.f32.partialorder %v168, 0.0
      %v170 = vmul.f32 %v168, 0.1
      %v171 = vsel %vm169, %v168, %v170
      %v172 = vpack.c.bf16 %v171, %v171
      %v174 = vrot.slane %v172, 4
      %175 = vrot.lane.b32.xlu0 %v174, 127
      %v176 = vpop.permute.xlu0 %175
      %177 = vrot.lane.b32.xlu0 %v172, 126
      %v178 = vpop.permute.xlu0 %177
      %179 = vrot.lane.b32.xlu0 %v174, 125
      %v180 = vpop.permute.xlu0 %179
      %181 = vrot.lane.b32.xlu0 %v172, 124
      %v182 = vpop.permute.xlu0 %181
      %vm183 = vcmask 1043456
      %v186 = vsel %vm183, %v172, %v176
      %v190 = vsel %vm183, %v178, %v180
      %v192 = vld [vmem:[%s1] sm:$0xf]
      %v193 = vld [vmem:[%s2] sm:$0xff]
      %195 = vset.pattern.permute.xlu0 0
      %196 = vperm.xlu0 %195, %v193
      %v197 = vpop.permute.xlu0 %196
      %vm199 = vcmask 326656
      %v201 = vsel %vm199, %v192, 0
      %v204 = vsel %vm183, %v182, 0
      %206 = vmatprep.subr.bf16.mxu0 0
      %207 = vmatpush1.bf16.msra.mxu0 0
      %208 = vmatprep.subr.bf16.mxu0 0
      %209 = vmatpush1.bf16.msra.mxu0 0
      %210 = vmatprep.subr.bf16.mxu0 0
      %211 = vmatpush1.bf16.msra.mxu0 0
      %212 = vmatprep.subr.bf16.mxu0 0
      %213 = vmatpush1.bf16.msra.mxu0 0
      %214 = vmatprep.subr.bf16.mxu0 0
      %215 = vmatpush1.bf16.msra.mxu0 0
      %216 = vmatprep.subr.bf16.mxu0 0
      %217 = vmatpush1.bf16.msra.mxu0 %v204
      %218 = vmatprep.subr.bf16.mxu0 0
      %219 = vmatpush1.bf16.msra.mxu0 %v190
      %220 = vmatprep.subr.bf16.mxu0 0
      %221 = vmatpush1.bf16.msra.mxu0 %v186
      %222 = vmatprep.subr.bf16.mxu0 0
      %223 = vmatpush2.bf16.msra.mxu0 0
      %224 = vmatprep.subr.bf16.mxu0 0
      %225 = vmatpush2.bf16.msra.mxu0 0
      %226 = vmatprep.subr.bf16.mxu0 0
      %227 = vmatpush2.bf16.msra.mxu0 0
      %228 = vmatprep.subr.bf16.mxu0 0
      %229 = vmatpush2.bf16.msra.mxu0 0
      %230 = vmatprep.subr.bf16.mxu0 0
      %231 = vmatpush2.bf16.msra.mxu0 0
      %232 = vmatprep.subr.bf16.mxu0 0
      %233 = vmatpush2.bf16.msra.mxu0 0
      %234 = vmatprep.subr.bf16.mxu0 0
      %235 = vmatpush2.bf16.msra.mxu0 0
      %236 = vmatprep.subr.bf16.mxu0 0
      %237 = vmatpush2.bf16.msra.mxu0 0
      %238 = vmatprep.mubr.bf16.mxu0 0
      %239 = vmatmul.mubr.bf16.gmra.mxu0 %v201
      %v240 = vpop.f32.mrf.mxu0
      %v241 = vadd.f32 %v197, %v240
      %v242 = vpop.f32.mrf.mxu0
      %v243 = vpop.f32.mrf.mxu0
      %v244 = vpop.f32.mrf.mxu0
      %245 = vdwg.mxu0
      %v246 = vpack.c.bf16 %v241, %v241
      %vm247 = vcmask 257024
      %248 = vst.msk [vmem:[%s165] sm:$0xf] %vm247, %v246
      %p249 = scmp.lt.s32.totalorder %s14, 1
      %s250 = scalar_select %p249, %s14, 1
      %s251 = smul.addr %s250, 4
      %s252 = scalar_lea.vmem %s3, %s251
      // Predicated region
      $region33: #{a_call__.39} parent=31 // pred_check
        %p253 = pneg %p100
      $region34: #{a_call__.39} parent=31 // pred_check_branch
        %255 = sbr.rel (%p253) target = $region36
      $region35: #{a_call__.39} parent=31 // pred_region
        _
      $region36: #{a_call__.39} parent=31 // pred_fallthru
        _
    $region32: #{a_call__.39} parent=5 // pred_fallthru
      _
    %p256 = scmp.le.s32.totalorder 2, %s9
    // Predicated region
    $region37: #{a_call__.39} parent=5 // pred_check
      %p257 = pneg %p256
    $region38: #{a_call__.39} parent=5 // pred_check_branch
      %259 = sbr.rel (%p257) target = $region40
    $region39: #{a_call__.39} parent=5 // pred_region
      %s260 = ssub.s32 %s9, 2
      // Predicated region
      $region41: #{a_call__.39} parent=39 // pred_check
        %p261 = pneg %p106
      $region42: #{a_call__.39} parent=39 // pred_check_branch
        %263 = sbr.rel (%p261) target = $region44
      $region43: #{a_call__.39} parent=39 // pred_region
        %p264 = scmp.lt.s32.totalorder %s15, 1
        %s265 = scalar_select %p264, %s15, 1
        %s266 = smul.addr %s265, 4
        %s267 = scalar_lea.vmem %s3, %s266
      $region44: #{a_call__.39} parent=39 // pred_fallthru
        _
    $region40: #{a_call__.39} parent=5 // pred_fallthru
      _
  $region6: #{a_call__.39} parent=0 // loop_footer
    %s13 = sadd.s32 1, %s9
  $region7: #{a_call__.39} parent=0 // loop_footer_branch
    %8 = sbr.rel target = $region3
  $region8: #{a_call__.39} parent=0 // loop_exit
    _

// kernel: a_call__.40
$region0: #{a_call__.40}
  #allocation0 [shape = 'u32[]', space=smem, size = 0x4, offset = 0x4, fixed_abs, tag = 'smem constant byte address 0x4 - core index']
  #allocation1 [shape = 'u32[144,128]{1,0:T(1,128)}', space=vmem, size = 0x12000, scoped, tag = 'internal scratch']
  %s0 = inlined_call_operand.vmem [shape: bf16[2,8,36], index: 0, kind: input, shape index: {}]
  %s1 = inlined_call_operand.vmem [shape: bf16[8,40], index: 1, kind: input, shape index: {}]
  %s2 = inlined_call_operand.vmem [shape: f32[8,1], index: 2, kind: input, shape index: {}]
  %s3 = inlined_call_operand.vmem [shape: bf16[2,8,32], index: 3, kind: input, shape index: {}]
  %s4 = inlined_call_operand.vmem [shape: bf16[2,8,32], index: 4, kind: output, shape index: {}]
  %s5 = sld [smem:[#allocation0]]
  $region49: #{a_call__.40} parent=0
    _
  %s7 = ssub.s32 1, %s5
  %s8 = scalar_select 0, %s7, %s5
  loop: start=0, step=1, limit=4
  $region2: #{a_call__.40} parent=0 // loop_pre_header
    _
  $region3: #{a_call__.40} parent=0 // loop_header
    %s10 = sphi 0, %s14
    %p11 = scmp.ge.s32.totalorder %s10, 4
    %s20 = sphi 0, %s22
    %s23 = sphi 0, %s20
    %s24 = sphi 0, %s23
    %s40 = sphi 0, %s24
    %s44 = sphi 0, %s44
    %s46 = sphi 0, %s44
    %s47 = sphi 0, %s46
    %s61 = sphi 0, %s47
    %s65 = sphi 0, %s65
    %s67 = sphi 0, %s65
    %s68 = sphi 0, %s67
    %s82 = sphi 0, %s68
    %s88 = sphi 0, %s90
    %s91 = sphi 0, %s88
    %s92 = sphi 0, %s91
    %s108 = sphi 0, %s92
    %s114 = sphi 0, %s116
    %s117 = sphi 0, %s114
    %s118 = sphi 0, %s117
    %s134 = sphi 0, %s118
  $region4: #{a_call__.40} parent=0 // loop_header_branch
    %13 = sbr.rel (%p11) target = $region8
  $region5: #{a_call__.40} parent=0 // loop_body
    %s15 = ssub.s32 %s10, 1
    %s16 = ssub.s32 %s10, 2
    %s17 = sadd.s32 %s10, 1
    %s18 = ssub.s32 %s10, %s17
    %p19 = scmp.eq.s32.totalorder %s18, 0
    %s21 = sadd.s32 %s20, 1
    %s22 = scalar_select %p19, %s20, %s21
    %p25 = pneg %p19
    %p26 = scmp.eq.s32.totalorder %s10, 1
    %p27 = por %p25, %p26
    %p28 = scmp.ne.s32.totalorder %s20, %s23
    %p29 = scmp.eq.s32.totalorder %s10, 0
    %p30 = por %p28, %p29
    %p31 = scmp.ne.s32.totalorder %s20, %s23
    %p32 = scmp.eq.s32.totalorder %s15, 1
    %p33 = por %p31, %p32
    %p34 = scmp.ne.s32.totalorder %s23, %s24
    %p35 = scmp.eq.s32.totalorder %s15, 0
    %p36 = por %p34, %p35
    %p37 = scmp.ne.s32.totalorder %s23, %s24
    %p38 = scmp.eq.s32.totalorder %s16, 1
    %p39 = por %p37, %p38
    %p41 = scmp.ne.s32.totalorder %s24, %s40
    %p42 = scmp.eq.s32.totalorder %s16, 0
    %p43 = por %p41, %p42
    %s45 = sadd.s32 %s44, 1
    %p48 = scmp.eq.s32.totalorder %s10, 1
    %p49 = scmp.ne.s32.totalorder %s44, %s46
    %p50 = scmp.eq.s32.totalorder %s10, 0
    %p51 = por %p49, %p50
    %p52 = scmp.ne.s32.totalorder %s44, %s46
    %p53 = scmp.eq.s32.totalorder %s15, 1
    %p54 = por %p52, %p53
    %p55 = scmp.ne.s32.totalorder %s46, %s47
    %p56 = scmp.eq.s32.totalorder %s15, 0
    %p57 = por %p55, %p56
    %p58 = scmp.ne.s32.totalorder %s46, %s47
    %p59 = scmp.eq.s32.totalorder %s16, 1
    %p60 = por %p58, %p59
    %p62 = scmp.ne.s32.totalorder %s47, %s61
    %p63 = scmp.eq.s32.totalorder %s16, 0
    %p64 = por %p62, %p63
    %s66 = sadd.s32 %s65, 1
    %p69 = scmp.eq.s32.totalorder %s10, 1
    %p70 = scmp.ne.s32.totalorder %s65, %s67
    %p71 = scmp.eq.s32.totalorder %s10, 0
    %p72 = por %p70, %p71
    %p73 = scmp.ne.s32.totalorder %s65, %s67
    %p74 = scmp.eq.s32.totalorder %s15, 1
    %p75 = por %p73, %p74
    %p76 = scmp.ne.s32.totalorder %s67, %s68
    %p77 = scmp.eq.s32.totalorder %s15, 0
    %p78 = por %p76, %p77
    %p79 = scmp.ne.s32.totalorder %s67, %s68
    %p80 = scmp.eq.s32.totalorder %s16, 1
    %p81 = por %p79, %p80
    %p83 = scmp.ne.s32.totalorder %s68, %s82
    %p84 = scmp.eq.s32.totalorder %s16, 0
    %p85 = por %p83, %p84
    %s86 = ssub.s32 %s10, %s17
    %p87 = scmp.eq.s32.totalorder %s86, 0
    %s89 = sadd.s32 %s88, 1
    %s90 = scalar_select %p87, %s88, %s89
    %p93 = pneg %p87
    %p94 = scmp.eq.s32.totalorder %s10, 1
    %p95 = por %p93, %p94
    %p96 = scmp.ne.s32.totalorder %s88, %s91
    %p97 = scmp.eq.s32.totalorder %s10, 0
    %p98 = por %p96, %p97
    %p99 = scmp.ne.s32.totalorder %s88, %s91
    %p100 = scmp.eq.s32.totalorder %s15, 1
    %p101 = por %p99, %p100
    %p102 = scmp.ne.s32.totalorder %s91, %s92
    %p103 = scmp.eq.s32.totalorder %s15, 0
    %p104 = por %p102, %p103
    %p105 = scmp.ne.s32.totalorder %s91, %s92
    %p106 = scmp.eq.s32.totalorder %s16, 1
    %p107 = por %p105, %p106
    %p109 = scmp.ne.s32.totalorder %s92, %s108
    %p110 = scmp.eq.s32.totalorder %s16, 0
    %p111 = por %p109, %p110
    %s112 = ssub.s32 %s10, %s17
    %p113 = scmp.eq.s32.totalorder %s112, 0
    %s115 = sadd.s32 %s114, 1
    %s116 = scalar_select %p113, %s114, %s115
    %p119 = pneg %p113
    %p120 = scmp.eq.s32.totalorder %s10, 1
    %p121 = por %p119, %p120
    %p122 = scmp.ne.s32.totalorder %s114, %s117
    %p123 = scmp.eq.s32.totalorder %s10, 0
    %p124 = por %p122, %p123
    %p125 = scmp.ne.s32.totalorder %s114, %s117
    %p126 = scmp.eq.s32.totalorder %s15, 1
    %p127 = por %p125, %p126
    %p128 = scmp.ne.s32.totalorder %s117, %s118
    %p129 = scmp.eq.s32.totalorder %s15, 0
    %p130 = por %p128, %p129
    %p131 = scmp.ne.s32.totalorder %s117, %s118
    %p132 = scmp.eq.s32.totalorder %s16, 1
    %p133 = por %p131, %p132
    %p135 = scmp.ne.s32.totalorder %s118, %s134
    %p136 = scmp.eq.s32.totalorder %s16, 0
    %p137 = por %p135, %p136
    %p138 = scmp.le.s32.totalorder 1, %s10
    %p139 = scmp.lt.s32.totalorder %s10, 3
    %p140 = pnand %p138, %p139
    %p141 = pneg %p140
    // Predicated region
    $region9: #{a_call__.40} parent=5 // pred_check
      _
    $region10: #{a_call__.40} parent=5 // pred_check_branch
      %143 = sbr.rel (%p140) target = $region12
    $region11: #{a_call__.40} parent=5 // pred_region
      %s144 = ssub.s32 %s10, 1
      // Predicated region
      $region13: #{a_call__.40} parent=11 // pred_check
        %p145 = pneg %p57
      $region14: #{a_call__.40} parent=11 // pred_check_branch
        %147 = sbr.rel (%p145) target = $region16
      $region15: #{a_call__.40} parent=11 // pred_region
        _
      $region16: #{a_call__.40} parent=11 // pred_fallthru
        _
      // Predicated region
      $region17: #{a_call__.40} parent=11 // pred_check
        %p148 = pneg %p78
      $region18: #{a_call__.40} parent=11 // pred_check_branch
        %150 = sbr.rel (%p148) target = $region20
      $region19: #{a_call__.40} parent=11 // pred_region
        _
      $region20: #{a_call__.40} parent=11 // pred_fallthru
        _
    $region12: #{a_call__.40} parent=5 // pred_fallthru
      _
    %p151 = scmp.lt.s32.totalorder %s10, 2
    // Predicated region
    $region21: #{a_call__.40} parent=5 // pred_check
      %p152 = pneg %p151
    $region22: #{a_call__.40} parent=5 // pred_check_branch
      %154 = sbr.rel (%p152) target = $region24
    $region23: #{a_call__.40} parent=5 // pred_region
      // Predicated region
      $region25: #{a_call__.40} parent=23 // pred_check
        %p155 = pneg %p30
      $region26: #{a_call__.40} parent=23 // pred_check_branch
        %157 = sbr.rel (%p155) target = $region28
      $region27: #{a_call__.40} parent=23 // pred_region
        %p158 = scmp.lt.s32.totalorder %s10, 1
        %s159 = scalar_select %p158, %s10, 1
        %s160 = smul.addr %s159, 4
        %s161 = scalar_lea.vmem %s0, %s160
      $region28: #{a_call__.40} parent=23 // pred_fallthru
        _
      // Predicated region
      $region29: #{a_call__.40} parent=23 // pred_check
        %p162 = pneg %p98
      $region30: #{a_call__.40} parent=23 // pred_check_branch
        %164 = sbr.rel (%p162) target = $region32
      $region31: #{a_call__.40} parent=23 // pred_region
        %p165 = scmp.lt.s32.totalorder %s10, 1
        %s166 = scalar_select %p165, %s10, 1
        %s167 = smul.addr %s166, 4
        %s168 = scalar_lea.vmem %s3, %s167
      $region32: #{a_call__.40} parent=23 // pred_fallthru
        _
    $region24: #{a_call__.40} parent=5 // pred_fallthru
      _
    %p169 = scmp.le.s32.totalorder 1, %s10
    %p170 = scmp.lt.s32.totalorder %s10, 3
    %p171 = pnand %p169, %p170
    %p172 = pneg %p171
    // Predicated region
    $region33: #{a_call__.40} parent=5 // pred_check
      _
    $region34: #{a_call__.40} parent=5 // pred_check_branch
      %174 = sbr.rel (%p171) target = $region36
    $region35: #{a_call__.40} parent=5 // pred_region
      %s175 = ssub.s32 %s10, 1
      %p176 = scmp.lt.s32.totalorder %s15, 1
      %s177 = scalar_select %p176, %s15, 1
      %s178 = smul.addr %s177, 4
      %s179 = scalar_lea.vmem %s0, %s178
      %p180 = pneg %p36
      %p181 = pneg %p33
      %p182 = pneg %p57
      %p183 = pneg %p54
      %p184 = pneg %p78
      %p185 = pneg %p75
      %p186 = scmp.lt.s32.totalorder %s15, 1
      %s187 = scalar_select %p186, %s15, 1
      %s188 = smul.addr %s187, 4
      %s189 = scalar_lea.vmem %s3, %s188
      %p190 = pneg %p104
      %p191 = pneg %p101
      %p192 = pneg %p130
      %p193 = pneg %p127
      %p194 = scmp.lt.s32.totalorder %s15, 1
      %s195 = scalar_select %p194, %s15, 1
      %s196 = smul.addr %s195, 4
      %s197 = scalar_lea.vmem %s4, %s196
      %p198 = scmp.lt.s32.totalorder %s15, 1
      %s199 = scalar_select %p198, %s15, 1
      %s200 = smul.addr %s199, 4
      %s201 = scalar_lea.vmem %s0, %s200
      %p202 = scmp.lt.s32.totalorder %s15, 1
      %s203 = scalar_select %p202, %s15, 1
      %s204 = smul.addr %s203, 4
      %s205 = scalar_lea.vmem %s3, %s204
      %p206 = scmp.lt.s32.totalorder %s15, 1
      %s207 = scalar_select %p206, %s15, 1
      %s208 = smul.addr %s207, 4
      %s209 = scalar_lea.vmem %s4, %s208
      %v211 = vld [vmem:[%s201] sm:$0xf]
      %v212 = vunpack.c.l.bf16 %v211
      %vm213 = vcmp.gt.f32.partialorder %v212, 0.0
      %v214 = vmul.f32 %v212, 0.1
      %v215 = vsel %vm213, %v212, %v214
      %v216 = vpack.c.bf16 %v215, %v215
      %v218 = vrot.slane %v216, 4
      %219 = vrot.lane.b32.xlu0 %v218, 127
      %v220 = vpop.permute.xlu0 %219
      %221 = vrot.lane.b32.xlu0 %v216, 126
      %v222 = vpop.permute.xlu0 %221
      %223 = vrot.lane.b32.xlu0 %v218, 125
      %v224 = vpop.permute.xlu0 %223
      %225 = vrot.lane.b32.xlu0 %v216, 124
      %v226 = vpop.permute.xlu0 %225
      %vm227 = vcmask 1043456
      %v230 = vsel %vm227, %v216, %v220
      %v234 = vsel %vm227, %v222, %v224
      %v236 = vld [vmem:[%s1] sm:$0xf]
      %v237 = vld [vmem:[%s2] sm:$0xff]
      %239 = vset.pattern.permute.xlu0 0
      %240 = vperm.xlu0 %239, %v237
      %v241 = vpop.permute.xlu0 %240
      %vm243 = vcmask 326656
      %v245 = vsel %vm243, %v236, 0
      %v248 = vsel %vm227, %v226, 0
      %250 = vmatprep.subr.bf16.mxu0 0
      %251 = vmatpush1.bf16.msra.mxu0 0
      %252 = vmatprep.subr.bf16.mxu0 0
      %253 = vmatpush1.bf16.msra.mxu0 0
      %254 = vmatprep.subr.bf16.mxu0 0
      %255 = vmatpush1.bf16.msra.mxu0 0
      %256 = vmatprep.subr.bf16.mxu0 0
      %257 = vmatpush1.bf16.msra.mxu0 0
      %258 = vmatprep.subr.bf16.mxu0 0
      %259 = vmatpush1.bf16.msra.mxu0 0
      %260 = vmatprep.subr.bf16.mxu0 0
      %261 = vmatpush1.bf16.msra.mxu0 %v248
      %262 = vmatprep.subr.bf16.mxu0 0
      %263 = vmatpush1.bf16.msra.mxu0 %v234
      %264 = vmatprep.subr.bf16.mxu0 0
      %265 = vmatpush1.bf16.msra.mxu0 %v230
      %266 = vmatprep.subr.bf16.mxu0 0
      %267 = vmatpush2.bf16.msra.mxu0 0
      %268 = vmatprep.subr.bf16.mxu0 0
      %269 = vmatpush2.bf16.msra.mxu0 0
      %270 = vmatprep.subr.bf16.mxu0 0
      %271 = vmatpush2.bf16.msra.mxu0 0
      %272 = vmatprep.subr.bf16.mxu0 0
      %273 = vmatpush2.bf16.msra.mxu0 0
      %274 = vmatprep.subr.bf16.mxu0 0
      %275 = vmatpush2.bf16.msra.mxu0 0
      %276 = vmatprep.subr.bf16.mxu0 0
      %277 = vmatpush2.bf16.msra.mxu0 0
      %278 = vmatprep.subr.bf16.mxu0 0
      %279 = vmatpush2.bf16.msra.mxu0 0
      %280 = vmatprep.subr.bf16.mxu0 0
      %281 = vmatpush2.bf16.msra.mxu0 0
      %282 = vmatprep.mubr.bf16.mxu0 0
      %283 = vmatmul.mubr.bf16.gmra.mxu0 %v245
      %v284 = vpop.f32.mrf.mxu0
      %v285 = vadd.f32 %v241, %v284
      %v286 = vpop.f32.mrf.mxu0
      %v287 = vpop.f32.mrf.mxu0
      %v288 = vpop.f32.mrf.mxu0
      %289 = vdwg.mxu0
      %v290 = vld [vmem:[%s205] sm:$0xf]
      %v291 = vunpack.c.l.bf16 %v290
      %v292 = vadd.f32 %v285, %v291
      %v293 = vpack.c.bf16 %v292, %v292
      %vm294 = vcmask 257024
      %295 = vst.msk [vmem:[%s209] sm:$0xf] %vm294, %v293
      %p296 = scmp.lt.s32.totalorder %s15, 1
      %s297 = scalar_select %p296, %s15, 1
      %s298 = smul.addr %s297, 4
      %s299 = scalar_lea.vmem %s4, %s298
      // Predicated region
      $region37: #{a_call__.40} parent=35 // pred_check
        %p300 = pneg %p127
      $region38: #{a_call__.40} parent=35 // pred_check_branch
        %302 = sbr.rel (%p300) target = $region40
      $region39: #{a_call__.40} parent=35 // pred_region
        _
      $region40: #{a_call__.40} parent=35 // pred_fallthru
        _
    $region36: #{a_call__.40} parent=5 // pred_fallthru
      _
    %p303 = scmp.le.s32.totalorder 2, %s10
    // Predicated region
    $region41: #{a_call__.40} parent=5 // pred_check
      %p304 = pneg %p303
    $region42: #{a_call__.40} parent=5 // pred_check_branch
      %306 = sbr.rel (%p304) target = $region44
    $region43: #{a_call__.40} parent=5 // pred_region
      %s307 = ssub.s32 %s10, 2
      // Predicated region
      $region45: #{a_call__.40} parent=43 // pred_check
        %p308 = pneg %p133
      $region46: #{a_call__.40} parent=43 // pred_check_branch
        %310 = sbr.rel (%p308) target = $region48
      $region47: #{a_call__.40} parent=43 // pred_region
        %p311 = scmp.lt.s32.totalorder %s16, 1
        %s312 = scalar_select %p311, %s16, 1
        %s313 = smul.addr %s312, 4
        %s314 = scalar_lea.vmem %s4, %s313
      $region48: #{a_call__.40} parent=43 // pred_fallthru
        _
    $region44: #{a_call__.40} parent=5 // pred_fallthru
      _
  $region6: #{a_call__.40} parent=0 // loop_footer
    %s14 = sadd.s32 1, %s10
  $region7: #{a_call__.40} parent=0 // loop_footer_branch
    %9 = sbr.rel target = $region3
  $region8: #{a_call__.40} parent=0 // loop_exit
    _

// kernel: a_call__.33
$region0: #{a_call__.33}
  #allocation0 [shape = 'u32[]', space=smem, size = 0x4, offset = 0x4, fixed_abs, tag = 'smem constant byte address 0x4 - core index']
  #allocation1 [shape = 'u32[144,128]{1,0:T(1,128)}', space=vmem, size = 0x12000, scoped, tag = 'internal scratch']
  %s0 = inlined_call_operand.vmem [shape: bf16[2,16,17], index: 0, kind: input, shape index: {}]
  %s1 = inlined_call_operand.vmem [shape: bf16[8,32], index: 1, kind: input, shape index: {}]
  %s2 = inlined_call_operand.vmem [shape: f32[8,1], index: 2, kind: input, shape index: {}]
  %s3 = inlined_call_operand.vmem [shape: bf16[2,8,16], index: 3, kind: output, shape index: {}]
  %s4 = sld [smem:[#allocation0]]
  $region45: #{a_call__.33} parent=0
    _
  %s6 = ssub.s32 1, %s4
  %s7 = scalar_select 0, %s6, %s4
  loop: start=0, step=1, limit=4
  $region2: #{a_call__.33} parent=0 // loop_pre_header
    _
  $region3: #{a_call__.33} parent=0 // loop_header
    %s9 = sphi 0, %s13
    %p10 = scmp.ge.s32.totalorder %s9, 4
    %s19 = sphi 0, %s21
    %s22 = sphi 0, %s19
    %s23 = sphi 0, %s22
    %s39 = sphi 0, %s23
    %s43 = sphi 0, %s43
    %s45 = sphi 0, %s43
    %s46 = sphi 0, %s45
    %s60 = sphi 0, %s46
    %s64 = sphi 0, %s64
    %s66 = sphi 0, %s64
    %s67 = sphi 0, %s66
    %s81 = sphi 0, %s67
    %s87 = sphi 0, %s89
    %s90 = sphi 0, %s87
    %s91 = sphi 0, %s90
    %s107 = sphi 0, %s91
  $region4: #{a_call__.33} parent=0 // loop_header_branch
    %12 = sbr.rel (%p10) target = $region8
  $region5: #{a_call__.33} parent=0 // loop_body
    %s14 = ssub.s32 %s9, 1
    %s15 = ssub.s32 %s9, 2
    %s16 = sadd.s32 %s9, 1
    %s17 = ssub.s32 %s9, %s16
    %p18 = scmp.eq.s32.totalorder %s17, 0
    %s20 = sadd.s32 %s19, 1
    %s21 = scalar_select %p18, %s19, %s20
    %p24 = pneg %p18
    %p25 = scmp.eq.s32.totalorder %s9, 1
    %p26 = por %p24, %p25
    %p27 = scmp.ne.s32.totalorder %s19, %s22
    %p28 = scmp.eq.s32.totalorder %s9, 0
    %p29 = por %p27, %p28
    %p30 = scmp.ne.s32.totalorder %s19, %s22
    %p31 = scmp.eq.s32.totalorder %s14, 1
    %p32 = por %p30, %p31
    %p33 = scmp.ne.s32.totalorder %s22, %s23
    %p34 = scmp.eq.s32.totalorder %s14, 0
    %p35 = por %p33, %p34
    %p36 = scmp.ne.s32.totalorder %s22, %s23
    %p37 = scmp.eq.s32.totalorder %s15, 1
    %p38 = por %p36, %p37
    %p40 = scmp.ne.s32.totalorder %s23, %s39
    %p41 = scmp.eq.s32.totalorder %s15, 0
    %p42 = por %p40, %p41
    %s44 = sadd.s32 %s43, 1
    %p47 = scmp.eq.s32.totalorder %s9, 1
    %p48 = scmp.ne.s32.totalorder %s43, %s45
    %p49 = scmp.eq.s32.totalorder %s9, 0
    %p50 = por %p48, %p49
    %p51 = scmp.ne.s32.totalorder %s43, %s45
    %p52 = scmp.eq.s32.totalorder %s14, 1
    %p53 = por %p51, %p52
    %p54 = scmp.ne.s32.totalorder %s45, %s46
    %p55 = scmp.eq.s32.totalorder %s14, 0
    %p56 = por %p54, %p55
    %p57 = scmp.ne.s32.totalorder %s45, %s46
    %p58 = scmp.eq.s32.totalorder %s15, 1
    %p59 = por %p57, %p58
    %p61 = scmp.ne.s32.totalorder %s46, %s60
    %p62 = scmp.eq.s32.totalorder %s15, 0
    %p63 = por %p61, %p62
    %s65 = sadd.s32 %s64, 1
    %p68 = scmp.eq.s32.totalorder %s9, 1
    %p69 = scmp.ne.s32.totalorder %s64, %s66
    %p70 = scmp.eq.s32.totalorder %s9, 0
    %p71 = por %p69, %p70
    %p72 = scmp.ne.s32.totalorder %s64, %s66
    %p73 = scmp.eq.s32.totalorder %s14, 1
    %p74 = por %p72, %p73
    %p75 = scmp.ne.s32.totalorder %s66, %s67
    %p76 = scmp.eq.s32.totalorder %s14, 0
    %p77 = por %p75, %p76
    %p78 = scmp.ne.s32.totalorder %s66, %s67
    %p79 = scmp.eq.s32.totalorder %s15, 1
    %p80 = por %p78, %p79
    %p82 = scmp.ne.s32.totalorder %s67, %s81
    %p83 = scmp.eq.s32.totalorder %s15, 0
    %p84 = por %p82, %p83
    %s85 = ssub.s32 %s9, %s16
    %p86 = scmp.eq.s32.totalorder %s85, 0
    %s88 = sadd.s32 %s87, 1
    %s89 = scalar_select %p86, %s87, %s88
    %p92 = pneg %p86
    %p93 = scmp.eq.s32.totalorder %s9, 1
    %p94 = por %p92, %p93
    %p95 = scmp.ne.s32.totalorder %s87, %s90
    %p96 = scmp.eq.s32.totalorder %s9, 0
    %p97 = por %p95, %p96
    %p98 = scmp.ne.s32.totalorder %s87, %s90
    %p99 = scmp.eq.s32.totalorder %s14, 1
    %p100 = por %p98, %p99
    %p101 = scmp.ne.s32.totalorder %s90, %s91
    %p102 = scmp.eq.s32.totalorder %s14, 0
    %p103 = por %p101, %p102
    %p104 = scmp.ne.s32.totalorder %s90, %s91
    %p105 = scmp.eq.s32.totalorder %s15, 1
    %p106 = por %p104, %p105
    %p108 = scmp.ne.s32.totalorder %s91, %s107
    %p109 = scmp.eq.s32.totalorder %s15, 0
    %p110 = por %p108, %p109
    %p111 = scmp.le.s32.totalorder 1, %s9
    %p112 = scmp.lt.s32.totalorder %s9, 3
    %p113 = pnand %p111, %p112
    %p114 = pneg %p113
    // Predicated region
    $region9: #{a_call__.33} parent=5 // pred_check
      _
    $region10: #{a_call__.33} parent=5 // pred_check_branch
      %116 = sbr.rel (%p113) target = $region12
    $region11: #{a_call__.33} parent=5 // pred_region
      %s117 = ssub.s32 %s9, 1
      // Predicated region
      $region13: #{a_call__.33} parent=11 // pred_check
        %p118 = pneg %p56
      $region14: #{a_call__.33} parent=11 // pred_check_branch
        %120 = sbr.rel (%p118) target = $region16
      $region15: #{a_call__.33} parent=11 // pred_region
        _
      $region16: #{a_call__.33} parent=11 // pred_fallthru
        _
      // Predicated region
      $region17: #{a_call__.33} parent=11 // pred_check
        %p121 = pneg %p77
      $region18: #{a_call__.33} parent=11 // pred_check_branch
        %123 = sbr.rel (%p121) target = $region20
      $region19: #{a_call__.33} parent=11 // pred_region
        _
      $region20: #{a_call__.33} parent=11 // pred_fallthru
        _
    $region12: #{a_call__.33} parent=5 // pred_fallthru
      _
    %p124 = scmp.lt.s32.totalorder %s9, 2
    // Predicated region
    $region21: #{a_call__.33} parent=5 // pred_check
      %p125 = pneg %p124
    $region22: #{a_call__.33} parent=5 // pred_check_branch
      %127 = sbr.rel (%p125) target = $region24
    $region23: #{a_call__.33} parent=5 // pred_region
      // Predicated region
      $region25: #{a_call__.33} parent=23 // pred_check
        %p128 = pneg %p29
      $region26: #{a_call__.33} parent=23 // pred_check_branch
        %130 = sbr.rel (%p128) target = $region28
      $region27: #{a_call__.33} parent=23 // pred_region
        %p131 = scmp.lt.s32.totalorder %s9, 1
        %s132 = scalar_select %p131, %s9, 1
        %s133 = smul.addr %s132, 2
        %s134 = smul.addr %s133, 4
        %s135 = scalar_lea.vmem %s0, %s134
      $region28: #{a_call__.33} parent=23 // pred_fallthru
        _
    $region24: #{a_call__.33} parent=5 // pred_fallthru
      _
    %p136 = scmp.le.s32.totalorder 1, %s9
    %p137 = scmp.lt.s32.totalorder %s9, 3
    %p138 = pnand %p136, %p137
    %p139 = pneg %p138
    // Predicated region
    $region29: #{a_call__.33} parent=5 // pred_check
      _
    $region30: #{a_call__.33} parent=5 // pred_check_branch
      %141 = sbr.rel (%p138) target = $region32
    $region31: #{a_call__.33} parent=5 // pred_region
      %s142 = ssub.s32 %s9, 1
      %p143 = scmp.lt.s32.totalorder %s14, 1
      %s144 = scalar_select %p143, %s14, 1
      %s145 = smul.addr %s144, 2
      %s146 = smul.addr %s145, 4
      %s147 = scalar_lea.vmem %s0, %s146
      %p148 = pneg %p35
      %p149 = pneg %p32
      %p150 = pneg %p56
      %p151 = pneg %p53
      %p152 = pneg %p77
      %p153 = pneg %p74
      %p154 = pneg %p103
      %p155 = pneg %p100
      %p156 = scmp.lt.s32.totalorder %s14, 1
      %s157 = scalar_select %p156, %s14, 1
      %s158 = smul.addr %s157, 4
      %s159 = scalar_lea.vmem %s3, %s158
      %p160 = scmp.lt.s32.totalorder %s14, 1
      %s161 = scalar_select %p160, %s14, 1
      %s162 = smul.addr %s161, 2
      %s163 = smul.addr %s162, 4
      %s164 = scalar_lea.vmem %s0, %s163
      %p165 = scmp.lt.s32.totalorder %s14, 1
      %s166 = scalar_select %p165, %s14, 1
      %s167 = smul.addr %s166, 4
      %s168 = scalar_lea.vmem %s3, %s167
      %v170 = vld [vmem:[%s164] sm:$0xf]
      %v171 = vld [vmem:[%s164 + $0x4] sm:$0xf]
      %v172 = vunpack.c.l.bf16 %v170
      %v173 = vunpack.c.l.bf16 %v171
      %vm174 = vcmp.gt.f32.partialorder %v172, 0.0
      %vm175 = vcmp.gt.f32.partialorder %v173, 0.0
      %v176 = vmul.f32 %v172, 0.1
      %v177 = vmul.f32 %v173, 0.1
      %v178 = vsel %vm174, %v172, %v176
      %v179 = vsel %vm175, %v173, %v177
      %v180 = vpack.c.bf16 %v179, %v178
      %182 = vrot.lane.b32.xlu0 %v180, 127
      %v183 = vpop.permute.xlu0 %182
      %v185 = vld [vmem:[%s1] sm:$0xf]
      %v186 = vld [vmem:[%s2] sm:$0xff]
      %188 = vset.pattern.permute.xlu0 0
      %189 = vperm.xlu0 %188, %v186
      %v190 = vpop.permute.xlu0 %189
      %vm192 = vcmask 261120
      %v194 = vsel %vm192, %v185, 0
      %196 = vmatprep.subr.bf16.mxu0 0
      %197 = vmatpush1.bf16.msra.mxu0 0
      %198 = vmatprep.subr.bf16.mxu0 0
      %199 = vmatpush1.bf16.msra.mxu0 0
      %200 = vmatprep.subr.bf16.mxu0 0
      %201 = vmatpush1.bf16.msra.mxu0 0
      %202 = vmatprep.subr.bf16.mxu0 0
      %203 = vmatpush1.bf16.msra.mxu0 0
      %204 = vmatprep.subr.bf16.mxu0 0
      %205 = vmatpush1.bf16.msra.mxu0 0
      %206 = vmatprep.subr.bf16.mxu0 0
      %207 = vmatpush1.bf16.msra.mxu0 0
      %208 = vmatprep.subr.bf16.mxu0 0
      %209 = vmatpush1.bf16.msra.mxu0 %v183
      %210 = vmatprep.subr.bf16.mxu0 0
      %211 = vmatpush1.bf16.msra.mxu0 %v180
      %212 = vmatprep.subr.bf16.mxu0 0
      %213 = vmatpush2.bf16.msra.mxu0 0
      %214 = vmatprep.subr.bf16.mxu0 0
      %215 = vmatpush2.bf16.msra.mxu0 0
      %216 = vmatprep.subr.bf16.mxu0 0
      %217 = vmatpush2.bf16.msra.mxu0 0
      %218 = vmatprep.subr.bf16.mxu0 0
      %219 = vmatpush2.bf16.msra.mxu0 0
      %220 = vmatprep.subr.bf16.mxu0 0
      %221 = vmatpush2.bf16.msra.mxu0 0
      %222 = vmatprep.subr.bf16.mxu0 0
      %223 = vmatpush2.bf16.msra.mxu0 0
      %224 = vmatprep.subr.bf16.mxu0 0
      %225 = vmatpush2.bf16.msra.mxu0 0
      %226 = vmatprep.subr.bf16.mxu0 0
      %227 = vmatpush2.bf16.msra.mxu0 0
      %228 = vmatprep.mubr.bf16.mxu0 0
      %229 = vmatmul.mubr.bf16.gmra.mxu0 %v194
      %v230 = vpop.f32.mrf.mxu0
      %v231 = vadd.f32 %v190, %v230
      %v232 = vpop.f32.mrf.mxu0
      %v233 = vpop.f32.mrf.mxu0
      %v234 = vpop.f32.mrf.mxu0
      %235 = vdwg.mxu0
      %v236 = vpack.c.bf16 %v231, %v231
      %vm237 = vcmask 125952
      %238 = vst.msk [vmem:[%s168] sm:$0xf] %vm237, %v236
      %p239 = scmp.lt.s32.totalorder %s14, 1
      %s240 = scalar_select %p239, %s14, 1
      %s241 = smul.addr %s240, 4
      %s242 = scalar_lea.vmem %s3, %s241
      // Predicated region
      $region33: #{a_call__.33} parent=31 // pred_check
        %p243 = pneg %p100
      $region34: #{a_call__.33} parent=31 // pred_check_branch
        %245 = sbr.rel (%p243) target = $region36
      $region35: #{a_call__.33} parent=31 // pred_region
        _
      $region36: #{a_call__.33} parent=31 // pred_fallthru
        _
    $region32: #{a_call__.33} parent=5 // pred_fallthru
      _
    %p246 = scmp.le.s32.totalorder 2, %s9
    // Predicated region
    $region37: #{a_call__.33} parent=5 // pred_check
      %p247 = pneg %p246
    $region38: #{a_call__.33} parent=5 // pred_check_branch
      %249 = sbr.rel (%p247) target = $region40
    $region39: #{a_call__.33} parent=5 // pred_region
      %s250 = ssub.s32 %s9, 2
      // Predicated region
      $region41: #{a_call__.33} parent=39 // pred_check
        %p251 = pneg %p106
      $region42: #{a_call__.33} parent=39 // pred_check_branch
        %253 = sbr.rel (%p251) target = $region44
      $region43: #{a_call__.33} parent=39 // pred_region
        %p254 = scmp.lt.s32.totalorder %s15, 1
        %s255 = scalar_select %p254, %s15, 1
        %s256 = smul.addr %s255, 4
        %s257 = scalar_lea.vmem %s3, %s256
      $region44: #{a_call__.33} parent=39 // pred_fallthru
        _
    $region40: #{a_call__.33} parent=5 // pred_fallthru
      _
  $region6: #{a_call__.33} parent=0 // loop_footer
    %s13 = sadd.s32 1, %s9
  $region7: #{a_call__.33} parent=0 // loop_footer_branch
    %8 = sbr.rel target = $region3
  $region8: #{a_call__.33} parent=0 // loop_exit
    _

// kernel: a_call__.41
$region0: #{a_call__.41}
  #allocation0 [shape = 'u32[]', space=smem, size = 0x4, offset = 0x4, fixed_abs, tag = 'smem constant byte address 0x4 - core index']
  #allocation1 [shape = 'u32[144,128]{1,0:T(1,128)}', space=vmem, size = 0x12000, scoped, tag = 'internal scratch']
  %s0 = inlined_call_operand.vmem [shape: bf16[2,8,44], index: 0, kind: input, shape index: {}]
  %s1 = inlined_call_operand.vmem [shape: bf16[8,40], index: 1, kind: input, shape index: {}]
  %s2 = inlined_call_operand.vmem [shape: f32[8,1], index: 2, kind: input, shape index: {}]
  %s3 = inlined_call_operand.vmem [shape: bf16[2,8,32], index: 3, kind: output, shape index: {}]
  %s4 = sld [smem:[#allocation0]]
  $region45: #{a_call__.41} parent=0
    _
  %s6 = ssub.s32 1, %s4
  %s7 = scalar_select 0, %s6, %s4
  loop: start=0, step=1, limit=4
  $region2: #{a_call__.41} parent=0 // loop_pre_header
    _
  $region3: #{a_call__.41} parent=0 // loop_header
    %s9 = sphi 0, %s13
    %p10 = scmp.ge.s32.totalorder %s9, 4
    %s19 = sphi 0, %s21
    %s22 = sphi 0, %s19
    %s23 = sphi 0, %s22
    %s39 = sphi 0, %s23
    %s43 = sphi 0, %s43
    %s45 = sphi 0, %s43
    %s46 = sphi 0, %s45
    %s60 = sphi 0, %s46
    %s64 = sphi 0, %s64
    %s66 = sphi 0, %s64
    %s67 = sphi 0, %s66
    %s81 = sphi 0, %s67
    %s87 = sphi 0, %s89
    %s90 = sphi 0, %s87
    %s91 = sphi 0, %s90
    %s107 = sphi 0, %s91
  $region4: #{a_call__.41} parent=0 // loop_header_branch
    %12 = sbr.rel (%p10) target = $region8
  $region5: #{a_call__.41} parent=0 // loop_body
    %s14 = ssub.s32 %s9, 1
    %s15 = ssub.s32 %s9, 2
    %s16 = sadd.s32 %s9, 1
    %s17 = ssub.s32 %s9, %s16
    %p18 = scmp.eq.s32.totalorder %s17, 0
    %s20 = sadd.s32 %s19, 1
    %s21 = scalar_select %p18, %s19, %s20
    %p24 = pneg %p18
    %p25 = scmp.eq.s32.totalorder %s9, 1
    %p26 = por %p24, %p25
    %p27 = scmp.ne.s32.totalorder %s19, %s22
    %p28 = scmp.eq.s32.totalorder %s9, 0
    %p29 = por %p27, %p28
    %p30 = scmp.ne.s32.totalorder %s19, %s22
    %p31 = scmp.eq.s32.totalorder %s14, 1
    %p32 = por %p30, %p31
    %p33 = scmp.ne.s32.totalorder %s22, %s23
    %p34 = scmp.eq.s32.totalorder %s14, 0
    %p35 = por %p33, %p34
    %p36 = scmp.ne.s32.totalorder %s22, %s23
    %p37 = scmp.eq.s32.totalorder %s15, 1
    %p38 = por %p36, %p37
    %p40 = scmp.ne.s32.totalorder %s23, %s39
    %p41 = scmp.eq.s32.totalorder %s15, 0
    %p42 = por %p40, %p41
    %s44 = sadd.s32 %s43, 1
    %p47 = scmp.eq.s32.totalorder %s9, 1
    %p48 = scmp.ne.s32.totalorder %s43, %s45
    %p49 = scmp.eq.s32.totalorder %s9, 0
    %p50 = por %p48, %p49
    %p51 = scmp.ne.s32.totalorder %s43, %s45
    %p52 = scmp.eq.s32.totalorder %s14, 1
    %p53 = por %p51, %p52
    %p54 = scmp.ne.s32.totalorder %s45, %s46
    %p55 = scmp.eq.s32.totalorder %s14, 0
    %p56 = por %p54, %p55
    %p57 = scmp.ne.s32.totalorder %s45, %s46
    %p58 = scmp.eq.s32.totalorder %s15, 1
    %p59 = por %p57, %p58
    %p61 = scmp.ne.s32.totalorder %s46, %s60
    %p62 = scmp.eq.s32.totalorder %s15, 0
    %p63 = por %p61, %p62
    %s65 = sadd.s32 %s64, 1
    %p68 = scmp.eq.s32.totalorder %s9, 1
    %p69 = scmp.ne.s32.totalorder %s64, %s66
    %p70 = scmp.eq.s32.totalorder %s9, 0
    %p71 = por %p69, %p70
    %p72 = scmp.ne.s32.totalorder %s64, %s66
    %p73 = scmp.eq.s32.totalorder %s14, 1
    %p74 = por %p72, %p73
    %p75 = scmp.ne.s32.totalorder %s66, %s67
    %p76 = scmp.eq.s32.totalorder %s14, 0
    %p77 = por %p75, %p76
    %p78 = scmp.ne.s32.totalorder %s66, %s67
    %p79 = scmp.eq.s32.totalorder %s15, 1
    %p80 = por %p78, %p79
    %p82 = scmp.ne.s32.totalorder %s67, %s81
    %p83 = scmp.eq.s32.totalorder %s15, 0
    %p84 = por %p82, %p83
    %s85 = ssub.s32 %s9, %s16
    %p86 = scmp.eq.s32.totalorder %s85, 0
    %s88 = sadd.s32 %s87, 1
    %s89 = scalar_select %p86, %s87, %s88
    %p92 = pneg %p86
    %p93 = scmp.eq.s32.totalorder %s9, 1
    %p94 = por %p92, %p93
    %p95 = scmp.ne.s32.totalorder %s87, %s90
    %p96 = scmp.eq.s32.totalorder %s9, 0
    %p97 = por %p95, %p96
    %p98 = scmp.ne.s32.totalorder %s87, %s90
    %p99 = scmp.eq.s32.totalorder %s14, 1
    %p100 = por %p98, %p99
    %p101 = scmp.ne.s32.totalorder %s90, %s91
    %p102 = scmp.eq.s32.totalorder %s14, 0
    %p103 = por %p101, %p102
    %p104 = scmp.ne.s32.totalorder %s90, %s91
    %p105 = scmp.eq.s32.totalorder %s15, 1
    %p106 = por %p104, %p105
    %p108 = scmp.ne.s32.totalorder %s91, %s107
    %p109 = scmp.eq.s32.totalorder %s15, 0
    %p110 = por %p108, %p109
    %p111 = scmp.le.s32.totalorder 1, %s9
    %p112 = scmp.lt.s32.totalorder %s9, 3
    %p113 = pnand %p111, %p112
    %p114 = pneg %p113
    // Predicated region
    $region9: #{a_call__.41} parent=5 // pred_check
      _
    $region10: #{a_call__.41} parent=5 // pred_check_branch
      %116 = sbr.rel (%p113) target = $region12
    $region11: #{a_call__.41} parent=5 // pred_region
      %s117 = ssub.s32 %s9, 1
      // Predicated region
      $region13: #{a_call__.41} parent=11 // pred_check
        %p118 = pneg %p56
      $region14: #{a_call__.41} parent=11 // pred_check_branch
        %120 = sbr.rel (%p118) target = $region16
      $region15: #{a_call__.41} parent=11 // pred_region
        _
      $region16: #{a_call__.41} parent=11 // pred_fallthru
        _
      // Predicated region
      $region17: #{a_call__.41} parent=11 // pred_check
        %p121 = pneg %p77
      $region18: #{a_call__.41} parent=11 // pred_check_branch
        %123 = sbr.rel (%p121) target = $region20
      $region19: #{a_call__.41} parent=11 // pred_region
        _
      $region20: #{a_call__.41} parent=11 // pred_fallthru
        _
    $region12: #{a_call__.41} parent=5 // pred_fallthru
      _
    %p124 = scmp.lt.s32.totalorder %s9, 2
    // Predicated region
    $region21: #{a_call__.41} parent=5 // pred_check
      %p125 = pneg %p124
    $region22: #{a_call__.41} parent=5 // pred_check_branch
      %127 = sbr.rel (%p125) target = $region24
    $region23: #{a_call__.41} parent=5 // pred_region
      // Predicated region
      $region25: #{a_call__.41} parent=23 // pred_check
        %p128 = pneg %p29
      $region26: #{a_call__.41} parent=23 // pred_check_branch
        %130 = sbr.rel (%p128) target = $region28
      $region27: #{a_call__.41} parent=23 // pred_region
        %p131 = scmp.lt.s32.totalorder %s9, 1
        %s132 = scalar_select %p131, %s9, 1
        %s133 = smul.addr %s132, 4
        %s134 = scalar_lea.vmem %s0, %s133
      $region28: #{a_call__.41} parent=23 // pred_fallthru
        _
    $region24: #{a_call__.41} parent=5 // pred_fallthru
      _
    %p135 = scmp.le.s32.totalorder 1, %s9
    %p136 = scmp.lt.s32.totalorder %s9, 3
    %p137 = pnand %p135, %p136
    %p138 = pneg %p137
    // Predicated region
    $region29: #{a_call__.41} parent=5 // pred_check
      _
    $region30: #{a_call__.41} parent=5 // pred_check_branch
      %140 = sbr.rel (%p137) target = $region32
    $region31: #{a_call__.41} parent=5 // pred_region
      %s141 = ssub.s32 %s9, 1
      %p142 = scmp.lt.s32.totalorder %s14, 1
      %s143 = scalar_select %p142, %s14, 1
      %s144 = smul.addr %s143, 4
      %s145 = scalar_lea.vmem %s0, %s144
      %p146 = pneg %p35
      %p147 = pneg %p32
      %p148 = pneg %p56
      %p149 = pneg %p53
      %p150 = pneg %p77
      %p151 = pneg %p74
      %p152 = pneg %p103
      %p153 = pneg %p100
      %p154 = scmp.lt.s32.totalorder %s14, 1
      %s155 = scalar_select %p154, %s14, 1
      %s156 = smul.addr %s155, 4
      %s157 = scalar_lea.vmem %s3, %s156
      %p158 = scmp.lt.s32.totalorder %s14, 1
      %s159 = scalar_select %p158, %s14, 1
      %s160 = smul.addr %s159, 4
      %s161 = scalar_lea.vmem %s0, %s160
      %p162 = scmp.lt.s32.totalorder %s14, 1
      %s163 = scalar_select %p162, %s14, 1
      %s164 = smul.addr %s163, 4
      %s165 = scalar_lea.vmem %s3, %s164
      %v167 = vld [vmem:[%s161] sm:$0xf]
      %v168 = vunpack.c.l.bf16 %v167
      %vm169 = vcmp.gt.f32.partialorder %v168, 0.0
      %v170 = vmul.f32 %v168, 0.1
      %v171 = vsel %vm169, %v168, %v170
      %v172 = vpack.c.bf16 %v171, %v171
      %v174 = vrot.slane %v172, 4
      %175 = vrot.lane.b32.xlu0 %v174, 125
      %v176 = vpop.permute.xlu0 %175
      %177 = vrot.lane.b32.xlu0 %v172, 122
      %v178 = vpop.permute.xlu0 %177
      %179 = vrot.lane.b32.xlu0 %v174, 119
      %v180 = vpop.permute.xlu0 %179
      %181 = vrot.lane.b32.xlu0 %v172, 116
      %v182 = vpop.permute.xlu0 %181
      %vm183 = vcmask 1043456
      %v186 = vsel %vm183, %v172, %v176
      %v190 = vsel %vm183, %v178, %v180
      %v192 = vld [vmem:[%s1] sm:$0xf]
      %v193 = vld [vmem:[%s2] sm:$0xff]
      %195 = vset.pattern.permute.xlu0 0
      %196 = vperm.xlu0 %195, %v193
      %v197 = vpop.permute.xlu0 %196
      %vm199 = vcmask 326656
      %v201 = vsel %vm199, %v192, 0
      %v204 = vsel %vm183, %v182, 0
      %206 = vmatprep.subr.bf16.mxu0 0
      %207 = vmatpush1.bf16.msra.mxu0 0
      %208 = vmatprep.subr.bf16.mxu0 0
      %209 = vmatpush1.bf16.msra.mxu0 0
      %210 = vmatprep.subr.bf16.mxu0 0
      %211 = vmatpush1.bf16.msra.mxu0 0
      %212 = vmatprep.subr.bf16.mxu0 0
      %213 = vmatpush1.bf16.msra.mxu0 0
      %214 = vmatprep.subr.bf16.mxu0 0
      %215 = vmatpush1.bf16.msra.mxu0 0
      %216 = vmatprep.subr.bf16.mxu0 0
      %217 = vmatpush1.bf16.msra.mxu0 %v204
      %218 = vmatprep.subr.bf16.mxu0 0
      %219 = vmatpush1.bf16.msra.mxu0 %v190
      %220 = vmatprep.subr.bf16.mxu0 0
      %221 = vmatpush1.bf16.msra.mxu0 %v186
      %222 = vmatprep.subr.bf16.mxu0 0
      %223 = vmatpush2.bf16.msra.mxu0 0
      %224 = vmatprep.subr.bf16.mxu0 0
      %225 = vmatpush2.bf16.msra.mxu0 0
      %226 = vmatprep.subr.bf16.mxu0 0
      %227 = vmatpush2.bf16.msra.mxu0 0
      %228 = vmatprep.subr.bf16.mxu0 0
      %229 = vmatpush2.bf16.msra.mxu0 0
      %230 = vmatprep.subr.bf16.mxu0 0
      %231 = vmatpush2.bf16.msra.mxu0 0
      %232 = vmatprep.subr.bf16.mxu0 0
      %233 = vmatpush2.bf16.msra.mxu0 0
      %234 = vmatprep.subr.bf16.mxu0 0
      %235 = vmatpush2.bf16.msra.mxu0 0
      %236 = vmatprep.subr.bf16.mxu0 0
      %237 = vmatpush2.bf16.msra.mxu0 0
      %238 = vmatprep.mubr.bf16.mxu0 0
      %239 = vmatmul.mubr.bf16.gmra.mxu0 %v201
      %v240 = vpop.f32.mrf.mxu0
      %v241 = vadd.f32 %v197, %v240
      %v242 = vpop.f32.mrf.mxu0
      %v243 = vpop.f32.mrf.mxu0
      %v244 = vpop.f32.mrf.mxu0
      %245 = vdwg.mxu0
      %v246 = vpack.c.bf16 %v241, %v241
      %vm247 = vcmask 257024
      %248 = vst.msk [vmem:[%s165] sm:$0xf] %vm247, %v246
      %p249 = scmp.lt.s32.totalorder %s14, 1
      %s250 = scalar_select %p249, %s14, 1
      %s251 = smul.addr %s250, 4
      %s252 = scalar_lea.vmem %s3, %s251
      // Predicated region
      $region33: #{a_call__.41} parent=31 // pred_check
        %p253 = pneg %p100
      $region34: #{a_call__.41} parent=31 // pred_check_branch
        %255 = sbr.rel (%p253) target = $region36
      $region35: #{a_call__.41} parent=31 // pred_region
        _
      $region36: #{a_call__.41} parent=31 // pred_fallthru
        _
    $region32: #{a_call__.41} parent=5 // pred_fallthru
      _
    %p256 = scmp.le.s32.totalorder 2, %s9
    // Predicated region
    $region37: #{a_call__.41} parent=5 // pred_check
      %p257 = pneg %p256
    $region38: #{a_call__.41} parent=5 // pred_check_branch
      %259 = sbr.rel (%p257) target = $region40
    $region39: #{a_call__.41} parent=5 // pred_region
      %s260 = ssub.s32 %s9, 2
      // Predicated region
      $region41: #{a_call__.41} parent=39 // pred_check
        %p261 = pneg %p106
      $region42: #{a_call__.41} parent=39 // pred_check_branch
        %263 = sbr.rel (%p261) target = $region44
      $region43: #{a_call__.41} parent=39 // pred_region
        %p264 = scmp.lt.s32.totalorder %s15, 1
        %s265 = scalar_select %p264, %s15, 1
        %s266 = smul.addr %s265, 4
        %s267 = scalar_lea.vmem %s3, %s266
      $region44: #{a_call__.41} parent=39 // pred_fallthru
        _
    $region40: #{a_call__.41} parent=5 // pred_fallthru
      _
  $region6: #{a_call__.41} parent=0 // loop_footer
    %s13 = sadd.s32 1, %s9
  $region7: #{a_call__.41} parent=0 // loop_footer_branch
    %8 = sbr.rel target = $region3
  $region8: #{a_call__.41} parent=0 // loop_exit
    _

// kernel: a_call__.35
$region0: #{a_call__.35}
  #allocation0 [shape = 'u32[]', space=smem, size = 0x4, offset = 0x4, fixed_abs, tag = 'smem constant byte address 0x4 - core index']
  #allocation1 [shape = 'u32[144,128]{1,0:T(1,128)}', space=vmem, size = 0x12000, scoped, tag = 'internal scratch']
  %s0 = inlined_call_operand.vmem [shape: bf16[2,8,34], index: 0, kind: input, shape index: {}]
  %s1 = inlined_call_operand.vmem [shape: bf16[8,24], index: 1, kind: input, shape index: {}]
  %s2 = inlined_call_operand.vmem [shape: f32[8,1], index: 2, kind: input, shape index: {}]
  %s3 = inlined_call_operand.vmem [shape: bf16[2,8,32], index: 3, kind: output, shape index: {}]
  %s4 = sld [smem:[#allocation0]]
  $region45: #{a_call__.35} parent=0
    _
  %s6 = ssub.s32 1, %s4
  %s7 = scalar_select 0, %s6, %s4
  loop: start=0, step=1, limit=4
  $region2: #{a_call__.35} parent=0 // loop_pre_header
    _
  $region3: #{a_call__.35} parent=0 // loop_header
    %s9 = sphi 0, %s13
    %p10 = scmp.ge.s32.totalorder %s9, 4
    %s19 = sphi 0, %s21
    %s22 = sphi 0, %s19
    %s23 = sphi 0, %s22
    %s39 = sphi 0, %s23
    %s43 = sphi 0, %s43
    %s45 = sphi 0, %s43
    %s46 = sphi 0, %s45
    %s60 = sphi 0, %s46
    %s64 = sphi 0, %s64
    %s66 = sphi 0, %s64
    %s67 = sphi 0, %s66
    %s81 = sphi 0, %s67
    %s87 = sphi 0, %s89
    %s90 = sphi 0, %s87
    %s91 = sphi 0, %s90
    %s107 = sphi 0, %s91
  $region4: #{a_call__.35} parent=0 // loop_header_branch
    %12 = sbr.rel (%p10) target = $region8
  $region5: #{a_call__.35} parent=0 // loop_body
    %s14 = ssub.s32 %s9, 1
    %s15 = ssub.s32 %s9, 2
    %s16 = sadd.s32 %s9, 1
    %s17 = ssub.s32 %s9, %s16
    %p18 = scmp.eq.s32.totalorder %s17, 0
    %s20 = sadd.s32 %s19, 1
    %s21 = scalar_select %p18, %s19, %s20
    %p24 = pneg %p18
    %p25 = scmp.eq.s32.totalorder %s9, 1
    %p26 = por %p24, %p25
    %p27 = scmp.ne.s32.totalorder %s19, %s22
    %p28 = scmp.eq.s32.totalorder %s9, 0
    %p29 = por %p27, %p28
    %p30 = scmp.ne.s32.totalorder %s19, %s22
    %p31 = scmp.eq.s32.totalorder %s14, 1
    %p32 = por %p30, %p31
    %p33 = scmp.ne.s32.totalorder %s22, %s23
    %p34 = scmp.eq.s32.totalorder %s14, 0
    %p35 = por %p33, %p34
    %p36 = scmp.ne.s32.totalorder %s22, %s23
    %p37 = scmp.eq.s32.totalorder %s15, 1
    %p38 = por %p36, %p37
    %p40 = scmp.ne.s32.totalorder %s23, %s39
    %p41 = scmp.eq.s32.totalorder %s15, 0
    %p42 = por %p40, %p41
    %s44 = sadd.s32 %s43, 1
    %p47 = scmp.eq.s32.totalorder %s9, 1
    %p48 = scmp.ne.s32.totalorder %s43, %s45
    %p49 = scmp.eq.s32.totalorder %s9, 0
    %p50 = por %p48, %p49
    %p51 = scmp.ne.s32.totalorder %s43, %s45
    %p52 = scmp.eq.s32.totalorder %s14, 1
    %p53 = por %p51, %p52
    %p54 = scmp.ne.s32.totalorder %s45, %s46
    %p55 = scmp.eq.s32.totalorder %s14, 0
    %p56 = por %p54, %p55
    %p57 = scmp.ne.s32.totalorder %s45, %s46
    %p58 = scmp.eq.s32.totalorder %s15, 1
    %p59 = por %p57, %p58
    %p61 = scmp.ne.s32.totalorder %s46, %s60
    %p62 = scmp.eq.s32.totalorder %s15, 0
    %p63 = por %p61, %p62
    %s65 = sadd.s32 %s64, 1
    %p68 = scmp.eq.s32.totalorder %s9, 1
    %p69 = scmp.ne.s32.totalorder %s64, %s66
    %p70 = scmp.eq.s32.totalorder %s9, 0
    %p71 = por %p69, %p70
    %p72 = scmp.ne.s32.totalorder %s64, %s66
    %p73 = scmp.eq.s32.totalorder %s14, 1
    %p74 = por %p72, %p73
    %p75 = scmp.ne.s32.totalorder %s66, %s67
    %p76 = scmp.eq.s32.totalorder %s14, 0
    %p77 = por %p75, %p76
    %p78 = scmp.ne.s32.totalorder %s66, %s67
    %p79 = scmp.eq.s32.totalorder %s15, 1
    %p80 = por %p78, %p79
    %p82 = scmp.ne.s32.totalorder %s67, %s81
    %p83 = scmp.eq.s32.totalorder %s15, 0
    %p84 = por %p82, %p83
    %s85 = ssub.s32 %s9, %s16
    %p86 = scmp.eq.s32.totalorder %s85, 0
    %s88 = sadd.s32 %s87, 1
    %s89 = scalar_select %p86, %s87, %s88
    %p92 = pneg %p86
    %p93 = scmp.eq.s32.totalorder %s9, 1
    %p94 = por %p92, %p93
    %p95 = scmp.ne.s32.totalorder %s87, %s90
    %p96 = scmp.eq.s32.totalorder %s9, 0
    %p97 = por %p95, %p96
    %p98 = scmp.ne.s32.totalorder %s87, %s90
    %p99 = scmp.eq.s32.totalorder %s14, 1
    %p100 = por %p98, %p99
    %p101 = scmp.ne.s32.totalorder %s90, %s91
    %p102 = scmp.eq.s32.totalorder %s14, 0
    %p103 = por %p101, %p102
    %p104 = scmp.ne.s32.totalorder %s90, %s91
    %p105 = scmp.eq.s32.totalorder %s15, 1
    %p106 = por %p104, %p105
    %p108 = scmp.ne.s32.totalorder %s91, %s107
    %p109 = scmp.eq.s32.totalorder %s15, 0
    %p110 = por %p108, %p109
    %p111 = scmp.le.s32.totalorder 1, %s9
    %p112 = scmp.lt.s32.totalorder %s9, 3
    %p113 = pnand %p111, %p112
    %p114 = pneg %p113
    // Predicated region
    $region9: #{a_call__.35} parent=5 // pred_check
      _
    $region10: #{a_call__.35} parent=5 // pred_check_branch
      %116 = sbr.rel (%p113) target = $region12
    $region11: #{a_call__.35} parent=5 // pred_region
      %s117 = ssub.s32 %s9, 1
      // Predicated region
      $region13: #{a_call__.35} parent=11 // pred_check
        %p118 = pneg %p56
      $region14: #{a_call__.35} parent=11 // pred_check_branch
        %120 = sbr.rel (%p118) target = $region16
      $region15: #{a_call__.35} parent=11 // pred_region
        _
      $region16: #{a_call__.35} parent=11 // pred_fallthru
        _
      // Predicated region
      $region17: #{a_call__.35} parent=11 // pred_check
        %p121 = pneg %p77
      $region18: #{a_call__.35} parent=11 // pred_check_branch
        %123 = sbr.rel (%p121) target = $region20
      $region19: #{a_call__.35} parent=11 // pred_region
        _
      $region20: #{a_call__.35} parent=11 // pred_fallthru
        _
    $region12: #{a_call__.35} parent=5 // pred_fallthru
      _
    %p124 = scmp.lt.s32.totalorder %s9, 2
    // Predicated region
    $region21: #{a_call__.35} parent=5 // pred_check
      %p125 = pneg %p124
    $region22: #{a_call__.35} parent=5 // pred_check_branch
      %127 = sbr.rel (%p125) target = $region24
    $region23: #{a_call__.35} parent=5 // pred_region
      // Predicated region
      $region25: #{a_call__.35} parent=23 // pred_check
        %p128 = pneg %p29
      $region26: #{a_call__.35} parent=23 // pred_check_branch
        %130 = sbr.rel (%p128) target = $region28
      $region27: #{a_call__.35} parent=23 // pred_region
        %p131 = scmp.lt.s32.totalorder %s9, 1
        %s132 = scalar_select %p131, %s9, 1
        %s133 = smul.addr %s132, 4
        %s134 = scalar_lea.vmem %s0, %s133
      $region28: #{a_call__.35} parent=23 // pred_fallthru
        _
    $region24: #{a_call__.35} parent=5 // pred_fallthru
      _
    %p135 = scmp.le.s32.totalorder 1, %s9
    %p136 = scmp.lt.s32.totalorder %s9, 3
    %p137 = pnand %p135, %p136
    %p138 = pneg %p137
    // Predicated region
    $region29: #{a_call__.35} parent=5 // pred_check
      _
    $region30: #{a_call__.35} parent=5 // pred_check_branch
      %140 = sbr.rel (%p137) target = $region32
    $region31: #{a_call__.35} parent=5 // pred_region
      %s141 = ssub.s32 %s9, 1
      %p142 = scmp.lt.s32.totalorder %s14, 1
      %s143 = scalar_select %p142, %s14, 1
      %s144 = smul.addr %s143, 4
      %s145 = scalar_lea.vmem %s0, %s144
      %p146 = pneg %p35
      %p147 = pneg %p32
      %p148 = pneg %p56
      %p149 = pneg %p53
      %p150 = pneg %p77
      %p151 = pneg %p74
      %p152 = pneg %p103
      %p153 = pneg %p100
      %p154 = scmp.lt.s32.totalorder %s14, 1
      %s155 = scalar_select %p154, %s14, 1
      %s156 = smul.addr %s155, 4
      %s157 = scalar_lea.vmem %s3, %s156
      %p158 = scmp.lt.s32.totalorder %s14, 1
      %s159 = scalar_select %p158, %s14, 1
      %s160 = smul.addr %s159, 4
      %s161 = scalar_lea.vmem %s0, %s160
      %p162 = scmp.lt.s32.totalorder %s14, 1
      %s163 = scalar_select %p162, %s14, 1
      %s164 = smul.addr %s163, 4
      %s165 = scalar_lea.vmem %s3, %s164
      %v167 = vld [vmem:[%s161] sm:$0xf]
      %v168 = vunpack.c.l.bf16 %v167
      %vm169 = vcmp.gt.f32.partialorder %v168, 0.0
      %v170 = vmul.f32 %v168, 0.1
      %v171 = vsel %vm169, %v168, %v170
      %v172 = vpack.c.bf16 %v171, %v171
      %v174 = vrot.slane %v172, 4
      %175 = vrot.lane.b32.xlu0 %v174, 127
      %v176 = vpop.permute.xlu0 %175
      %177 = vrot.lane.b32.xlu0 %v172, 126
      %v178 = vpop.permute.xlu0 %177
      %vm179 = vcmask 1043456
      %v182 = vsel %vm179, %v172, %v176
      %v184 = vld [vmem:[%s1] sm:$0xf]
      %v185 = vld [vmem:[%s2] sm:$0xff]
      %187 = vset.pattern.permute.xlu0 0
      %188 = vperm.xlu0 %187, %v185
      %v189 = vpop.permute.xlu0 %188
      %vm191 = vcmask 195584
      %v193 = vsel %vm191, %v184, 0
      %v196 = vsel %vm179, %v178, 0
      %198 = vmatprep.subr.bf16.mxu0 0
      %199 = vmatpush1.bf16.msra.mxu0 0
      %200 = vmatprep.subr.bf16.mxu0 0
      %201 = vmatpush1.bf16.msra.mxu0 0
      %202 = vmatprep.subr.bf16.mxu0 0
      %203 = vmatpush1.bf16.msra.mxu0 0
      %204 = vmatprep.subr.bf16.mxu0 0
      %205 = vmatpush1.bf16.msra.mxu0 0
      %206 = vmatprep.subr.bf16.mxu0 0
      %207 = vmatpush1.bf16.msra.mxu0 0
      %208 = vmatprep.subr.bf16.mxu0 0
      %209 = vmatpush1.bf16.msra.mxu0 0
      %210 = vmatprep.subr.bf16.mxu0 0
      %211 = vmatpush1.bf16.msra.mxu0 %v196
      %212 = vmatprep.subr.bf16.mxu0 0
      %213 = vmatpush1.bf16.msra.mxu0 %v182
      %214 = vmatprep.subr.bf16.mxu0 0
      %215 = vmatpush2.bf16.msra.mxu0 0
      %216 = vmatprep.subr.bf16.mxu0 0
      %217 = vmatpush2.bf16.msra.mxu0 0
      %218 = vmatprep.subr.bf16.mxu0 0
      %219 = vmatpush2.bf16.msra.mxu0 0
      %220 = vmatprep.subr.bf16.mxu0 0
      %221 = vmatpush2.bf16.msra.mxu0 0
      %222 = vmatprep.subr.bf16.mxu0 0
      %223 = vmatpush2.bf16.msra.mxu0 0
      %224 = vmatprep.subr.bf16.mxu0 0
      %225 = vmatpush2.bf16.msra.mxu0 0
      %226 = vmatprep.subr.bf16.mxu0 0
      %227 = vmatpush2.bf16.msra.mxu0 0
      %228 = vmatprep.subr.bf16.mxu0 0
      %229 = vmatpush2.bf16.msra.mxu0 0
      %230 = vmatprep.mubr.bf16.mxu0 0
      %231 = vmatmul.mubr.bf16.gmra.mxu0 %v193
      %v232 = vpop.f32.mrf.mxu0
      %v233 = vadd.f32 %v189, %v232
      %v234 = vpop.f32.mrf.mxu0
      %v235 = vpop.f32.mrf.mxu0
      %v236 = vpop.f32.mrf.mxu0
      %237 = vdwg.mxu0
      %v238 = vpack.c.bf16 %v233, %v233
      %vm239 = vcmask 257024
      %240 = vst.msk [vmem:[%s165] sm:$0xf] %vm239, %v238
      %p241 = scmp.lt.s32.totalorder %s14, 1
      %s242 = scalar_select %p241, %s14, 1
      %s243 = smul.addr %s242, 4
      %s244 = scalar_lea.vmem %s3, %s243
      // Predicated region
      $region33: #{a_call__.35} parent=31 // pred_check
        %p245 = pneg %p100
      $region34: #{a_call__.35} parent=31 // pred_check_branch
        %247 = sbr.rel (%p245) target = $region36
      $region35: #{a_call__.35} parent=31 // pred_region
        _
      $region36: #{a_call__.35} parent=31 // pred_fallthru
        _
    $region32: #{a_call__.35} parent=5 // pred_fallthru
      _
    %p248 = scmp.le.s32.totalorder 2, %s9
    // Predicated region
    $region37: #{a_call__.35} parent=5 // pred_check
      %p249 = pneg %p248
    $region38: #{a_call__.35} parent=5 // pred_check_branch
      %251 = sbr.rel (%p249) target = $region40
    $region39: #{a_call__.35} parent=5 // pred_region
      %s252 = ssub.s32 %s9, 2
      // Predicated region
      $region41: #{a_call__.35} parent=39 // pred_check
        %p253 = pneg %p106
      $region42: #{a_call__.35} parent=39 // pred_check_branch
        %255 = sbr.rel (%p253) target = $region44
      $region43: #{a_call__.35} parent=39 // pred_region
        %p256 = scmp.lt.s32.totalorder %s15, 1
        %s257 = scalar_select %p256, %s15, 1
        %s258 = smul.addr %s257, 4
        %s259 = scalar_lea.vmem %s3, %s258
      $region44: #{a_call__.35} parent=39 // pred_fallthru
        _
    $region40: #{a_call__.35} parent=5 // pred_fallthru
      _
  $region6: #{a_call__.35} parent=0 // loop_footer
    %s13 = sadd.s32 1, %s9
  $region7: #{a_call__.35} parent=0 // loop_footer_branch
    %8 = sbr.rel target = $region3
  $region8: #{a_call__.35} parent=0 // loop_exit
    _

// kernel: a_call__.36
$region0: #{a_call__.36}
  #allocation0 [shape = 'u32[]', space=smem, size = 0x4, offset = 0x4, fixed_abs, tag = 'smem constant byte address 0x4 - core index']
  #allocation1 [shape = 'u32[144,128]{1,0:T(1,128)}', space=vmem, size = 0x12000, scoped, tag = 'internal scratch']
  %s0 = inlined_call_operand.vmem [shape: bf16[2,8,34], index: 0, kind: input, shape index: {}]
  %s1 = inlined_call_operand.vmem [shape: bf16[8,24], index: 1, kind: input, shape index: {}]
  %s2 = inlined_call_operand.vmem [shape: f32[8,1], index: 2, kind: input, shape index: {}]
  %s3 = inlined_call_operand.vmem [shape: bf16[2,8,32], index: 3, kind: input, shape index: {}]
  %s4 = inlined_call_operand.vmem [shape: bf16[2,8,32], index: 4, kind: output, shape index: {}]
  %s5 = sld [smem:[#allocation0]]
  $region49: #{a_call__.36} parent=0
    _
  %s7 = ssub.s32 1, %s5
  %s8 = scalar_select 0, %s7, %s5
  loop: start=0, step=1, limit=4
  $region2: #{a_call__.36} parent=0 // loop_pre_header
    _
  $region3: #{a_call__.36} parent=0 // loop_header
    %s10 = sphi 0, %s14
    %p11 = scmp.ge.s32.totalorder %s10, 4
    %s20 = sphi 0, %s22
    %s23 = sphi 0, %s20
    %s24 = sphi 0, %s23
    %s40 = sphi 0, %s24
    %s44 = sphi 0, %s44
    %s46 = sphi 0, %s44
    %s47 = sphi 0, %s46
    %s61 = sphi 0, %s47
    %s65 = sphi 0, %s65
    %s67 = sphi 0, %s65
    %s68 = sphi 0, %s67
    %s82 = sphi 0, %s68
    %s88 = sphi 0, %s90
    %s91 = sphi 0, %s88
    %s92 = sphi 0, %s91
    %s108 = sphi 0, %s92
    %s114 = sphi 0, %s116
    %s117 = sphi 0, %s114
    %s118 = sphi 0, %s117
    %s134 = sphi 0, %s118
  $region4: #{a_call__.36} parent=0 // loop_header_branch
    %13 = sbr.rel (%p11) target = $region8
  $region5: #{a_call__.36} parent=0 // loop_body
    %s15 = ssub.s32 %s10, 1
    %s16 = ssub.s32 %s10, 2
    %s17 = sadd.s32 %s10, 1
    %s18 = ssub.s32 %s10, %s17
    %p19 = scmp.eq.s32.totalorder %s18, 0
    %s21 = sadd.s32 %s20, 1
    %s22 = scalar_select %p19, %s20, %s21
    %p25 = pneg %p19
    %p26 = scmp.eq.s32.totalorder %s10, 1
    %p27 = por %p25, %p26
    %p28 = scmp.ne.s32.totalorder %s20, %s23
    %p29 = scmp.eq.s32.totalorder %s10, 0
    %p30 = por %p28, %p29
    %p31 = scmp.ne.s32.totalorder %s20, %s23
    %p32 = scmp.eq.s32.totalorder %s15, 1
    %p33 = por %p31, %p32
    %p34 = scmp.ne.s32.totalorder %s23, %s24
    %p35 = scmp.eq.s32.totalorder %s15, 0
    %p36 = por %p34, %p35
    %p37 = scmp.ne.s32.totalorder %s23, %s24
    %p38 = scmp.eq.s32.totalorder %s16, 1
    %p39 = por %p37, %p38
    %p41 = scmp.ne.s32.totalorder %s24, %s40
    %p42 = scmp.eq.s32.totalorder %s16, 0
    %p43 = por %p41, %p42
    %s45 = sadd.s32 %s44, 1
    %p48 = scmp.eq.s32.totalorder %s10, 1
    %p49 = scmp.ne.s32.totalorder %s44, %s46
    %p50 = scmp.eq.s32.totalorder %s10, 0
    %p51 = por %p49, %p50
    %p52 = scmp.ne.s32.totalorder %s44, %s46
    %p53 = scmp.eq.s32.totalorder %s15, 1
    %p54 = por %p52, %p53
    %p55 = scmp.ne.s32.totalorder %s46, %s47
    %p56 = scmp.eq.s32.totalorder %s15, 0
    %p57 = por %p55, %p56
    %p58 = scmp.ne.s32.totalorder %s46, %s47
    %p59 = scmp.eq.s32.totalorder %s16, 1
    %p60 = por %p58, %p59
    %p62 = scmp.ne.s32.totalorder %s47, %s61
    %p63 = scmp.eq.s32.totalorder %s16, 0
    %p64 = por %p62, %p63
    %s66 = sadd.s32 %s65, 1
    %p69 = scmp.eq.s32.totalorder %s10, 1
    %p70 = scmp.ne.s32.totalorder %s65, %s67
    %p71 = scmp.eq.s32.totalorder %s10, 0
    %p72 = por %p70, %p71
    %p73 = scmp.ne.s32.totalorder %s65, %s67
    %p74 = scmp.eq.s32.totalorder %s15, 1
    %p75 = por %p73, %p74
    %p76 = scmp.ne.s32.totalorder %s67, %s68
    %p77 = scmp.eq.s32.totalorder %s15, 0
    %p78 = por %p76, %p77
    %p79 = scmp.ne.s32.totalorder %s67, %s68
    %p80 = scmp.eq.s32.totalorder %s16, 1
    %p81 = por %p79, %p80
    %p83 = scmp.ne.s32.totalorder %s68, %s82
    %p84 = scmp.eq.s32.totalorder %s16, 0
    %p85 = por %p83, %p84
    %s86 = ssub.s32 %s10, %s17
    %p87 = scmp.eq.s32.totalorder %s86, 0
    %s89 = sadd.s32 %s88, 1
    %s90 = scalar_select %p87, %s88, %s89
    %p93 = pneg %p87
    %p94 = scmp.eq.s32.totalorder %s10, 1
    %p95 = por %p93, %p94
    %p96 = scmp.ne.s32.totalorder %s88, %s91
    %p97 = scmp.eq.s32.totalorder %s10, 0
    %p98 = por %p96, %p97
    %p99 = scmp.ne.s32.totalorder %s88, %s91
    %p100 = scmp.eq.s32.totalorder %s15, 1
    %p101 = por %p99, %p100
    %p102 = scmp.ne.s32.totalorder %s91, %s92
    %p103 = scmp.eq.s32.totalorder %s15, 0
    %p104 = por %p102, %p103
    %p105 = scmp.ne.s32.totalorder %s91, %s92
    %p106 = scmp.eq.s32.totalorder %s16, 1
    %p107 = por %p105, %p106
    %p109 = scmp.ne.s32.totalorder %s92, %s108
    %p110 = scmp.eq.s32.totalorder %s16, 0
    %p111 = por %p109, %p110
    %s112 = ssub.s32 %s10, %s17
    %p113 = scmp.eq.s32.totalorder %s112, 0
    %s115 = sadd.s32 %s114, 1
    %s116 = scalar_select %p113, %s114, %s115
    %p119 = pneg %p113
    %p120 = scmp.eq.s32.totalorder %s10, 1
    %p121 = por %p119, %p120
    %p122 = scmp.ne.s32.totalorder %s114, %s117
    %p123 = scmp.eq.s32.totalorder %s10, 0
    %p124 = por %p122, %p123
    %p125 = scmp.ne.s32.totalorder %s114, %s117
    %p126 = scmp.eq.s32.totalorder %s15, 1
    %p127 = por %p125, %p126
    %p128 = scmp.ne.s32.totalorder %s117, %s118
    %p129 = scmp.eq.s32.totalorder %s15, 0
    %p130 = por %p128, %p129
    %p131 = scmp.ne.s32.totalorder %s117, %s118
    %p132 = scmp.eq.s32.totalorder %s16, 1
    %p133 = por %p131, %p132
    %p135 = scmp.ne.s32.totalorder %s118, %s134
    %p136 = scmp.eq.s32.totalorder %s16, 0
    %p137 = por %p135, %p136
    %p138 = scmp.le.s32.totalorder 1, %s10
    %p139 = scmp.lt.s32.totalorder %s10, 3
    %p140 = pnand %p138, %p139
    %p141 = pneg %p140
    // Predicated region
    $region9: #{a_call__.36} parent=5 // pred_check
      _
    $region10: #{a_call__.36} parent=5 // pred_check_branch
      %143 = sbr.rel (%p140) target = $region12
    $region11: #{a_call__.36} parent=5 // pred_region
      %s144 = ssub.s32 %s10, 1
      // Predicated region
      $region13: #{a_call__.36} parent=11 // pred_check
        %p145 = pneg %p57
      $region14: #{a_call__.36} parent=11 // pred_check_branch
        %147 = sbr.rel (%p145) target = $region16
      $region15: #{a_call__.36} parent=11 // pred_region
        _
      $region16: #{a_call__.36} parent=11 // pred_fallthru
        _
      // Predicated region
      $region17: #{a_call__.36} parent=11 // pred_check
        %p148 = pneg %p78
      $region18: #{a_call__.36} parent=11 // pred_check_branch
        %150 = sbr.rel (%p148) target = $region20
      $region19: #{a_call__.36} parent=11 // pred_region
        _
      $region20: #{a_call__.36} parent=11 // pred_fallthru
        _
    $region12: #{a_call__.36} parent=5 // pred_fallthru
      _
    %p151 = scmp.lt.s32.totalorder %s10, 2
    // Predicated region
    $region21: #{a_call__.36} parent=5 // pred_check
      %p152 = pneg %p151
    $region22: #{a_call__.36} parent=5 // pred_check_branch
      %154 = sbr.rel (%p152) target = $region24
    $region23: #{a_call__.36} parent=5 // pred_region
      // Predicated region
      $region25: #{a_call__.36} parent=23 // pred_check
        %p155 = pneg %p30
      $region26: #{a_call__.36} parent=23 // pred_check_branch
        %157 = sbr.rel (%p155) target = $region28
      $region27: #{a_call__.36} parent=23 // pred_region
        %p158 = scmp.lt.s32.totalorder %s10, 1
        %s159 = scalar_select %p158, %s10, 1
        %s160 = smul.addr %s159, 4
        %s161 = scalar_lea.vmem %s0, %s160
      $region28: #{a_call__.36} parent=23 // pred_fallthru
        _
      // Predicated region
      $region29: #{a_call__.36} parent=23 // pred_check
        %p162 = pneg %p98
      $region30: #{a_call__.36} parent=23 // pred_check_branch
        %164 = sbr.rel (%p162) target = $region32
      $region31: #{a_call__.36} parent=23 // pred_region
        %p165 = scmp.lt.s32.totalorder %s10, 1
        %s166 = scalar_select %p165, %s10, 1
        %s167 = smul.addr %s166, 4
        %s168 = scalar_lea.vmem %s3, %s167
      $region32: #{a_call__.36} parent=23 // pred_fallthru
        _
    $region24: #{a_call__.36} parent=5 // pred_fallthru
      _
    %p169 = scmp.le.s32.totalorder 1, %s10
    %p170 = scmp.lt.s32.totalorder %s10, 3
    %p171 = pnand %p169, %p170
    %p172 = pneg %p171
    // Predicated region
    $region33: #{a_call__.36} parent=5 // pred_check
      _
    $region34: #{a_call__.36} parent=5 // pred_check_branch
      %174 = sbr.rel (%p171) target = $region36
    $region35: #{a_call__.36} parent=5 // pred_region
      %s175 = ssub.s32 %s10, 1
      %p176 = scmp.lt.s32.totalorder %s15, 1
      %s177 = scalar_select %p176, %s15, 1
      %s178 = smul.addr %s177, 4
      %s179 = scalar_lea.vmem %s0, %s178
      %p180 = pneg %p36
      %p181 = pneg %p33
      %p182 = pneg %p57
      %p183 = pneg %p54
      %p184 = pneg %p78
      %p185 = pneg %p75
      %p186 = scmp.lt.s32.totalorder %s15, 1
      %s187 = scalar_select %p186, %s15, 1
      %s188 = smul.addr %s187, 4
      %s189 = scalar_lea.vmem %s3, %s188
      %p190 = pneg %p104
      %p191 = pneg %p101
      %p192 = pneg %p130
      %p193 = pneg %p127
      %p194 = scmp.lt.s32.totalorder %s15, 1
      %s195 = scalar_select %p194, %s15, 1
      %s196 = smul.addr %s195, 4
      %s197 = scalar_lea.vmem %s4, %s196
      %p198 = scmp.lt.s32.totalorder %s15, 1
      %s199 = scalar_select %p198, %s15, 1
      %s200 = smul.addr %s199, 4
      %s201 = scalar_lea.vmem %s0, %s200
      %p202 = scmp.lt.s32.totalorder %s15, 1
      %s203 = scalar_select %p202, %s15, 1
      %s204 = smul.addr %s203, 4
      %s205 = scalar_lea.vmem %s3, %s204
      %p206 = scmp.lt.s32.totalorder %s15, 1
      %s207 = scalar_select %p206, %s15, 1
      %s208 = smul.addr %s207, 4
      %s209 = scalar_lea.vmem %s4, %s208
      %v211 = vld [vmem:[%s201] sm:$0xf]
      %v212 = vunpack.c.l.bf16 %v211
      %vm213 = vcmp.gt.f32.partialorder %v212, 0.0
      %v214 = vmul.f32 %v212, 0.1
      %v215 = vsel %vm213, %v212, %v214
      %v216 = vpack.c.bf16 %v215, %v215
      %v218 = vrot.slane %v216, 4
      %219 = vrot.lane.b32.xlu0 %v218, 127
      %v220 = vpop.permute.xlu0 %219
      %221 = vrot.lane.b32.xlu0 %v216, 126
      %v222 = vpop.permute.xlu0 %221
      %vm223 = vcmask 1043456
      %v226 = vsel %vm223, %v216, %v220
      %v228 = vld [vmem:[%s1] sm:$0xf]
      %v229 = vld [vmem:[%s2] sm:$0xff]
      %231 = vset.pattern.permute.xlu0 0
      %232 = vperm.xlu0 %231, %v229
      %v233 = vpop.permute.xlu0 %232
      %vm235 = vcmask 195584
      %v237 = vsel %vm235, %v228, 0
      %v240 = vsel %vm223, %v222, 0
      %242 = vmatprep.subr.bf16.mxu0 0
      %243 = vmatpush1.bf16.msra.mxu0 0
      %244 = vmatprep.subr.bf16.mxu0 0
      %245 = vmatpush1.bf16.msra.mxu0 0
      %246 = vmatprep.subr.bf16.mxu0 0
      %247 = vmatpush1.bf16.msra.mxu0 0
      %248 = vmatprep.subr.bf16.mxu0 0
      %249 = vmatpush1.bf16.msra.mxu0 0
      %250 = vmatprep.subr.bf16.mxu0 0
      %251 = vmatpush1.bf16.msra.mxu0 0
      %252 = vmatprep.subr.bf16.mxu0 0
      %253 = vmatpush1.bf16.msra.mxu0 0
      %254 = vmatprep.subr.bf16.mxu0 0
      %255 = vmatpush1.bf16.msra.mxu0 %v240
      %256 = vmatprep.subr.bf16.mxu0 0
      %257 = vmatpush1.bf16.msra.mxu0 %v226
      %258 = vmatprep.subr.bf16.mxu0 0
      %259 = vmatpush2.bf16.msra.mxu0 0
      %260 = vmatprep.subr.bf16.mxu0 0
      %261 = vmatpush2.bf16.msra.mxu0 0
      %262 = vmatprep.subr.bf16.mxu0 0
      %263 = vmatpush2.bf16.msra.mxu0 0
      %264 = vmatprep.subr.bf16.mxu0 0
      %265 = vmatpush2.bf16.msra.mxu0 0
      %266 = vmatprep.subr.bf16.mxu0 0
      %267 = vmatpush2.bf16.msra.mxu0 0
      %268 = vmatprep.subr.bf16.mxu0 0
      %269 = vmatpush2.bf16.msra.mxu0 0
      %270 = vmatprep.subr.bf16.mxu0 0
      %271 = vmatpush2.bf16.msra.mxu0 0
      %272 = vmatprep.subr.bf16.mxu0 0
      %273 = vmatpush2.bf16.msra.mxu0 0
      %274 = vmatprep.mubr.bf16.mxu0 0
      %275 = vmatmul.mubr.bf16.gmra.mxu0 %v237
      %v276 = vpop.f32.mrf.mxu0
      %v277 = vadd.f32 %v233, %v276
      %v278 = vpop.f32.mrf.mxu0
      %v279 = vpop.f32.mrf.mxu0
      %v280 = vpop.f32.mrf.mxu0
      %281 = vdwg.mxu0
      %v282 = vld [vmem:[%s205] sm:$0xf]
      %v283 = vunpack.c.l.bf16 %v282
      %v284 = vadd.f32 %v277, %v283
      %v285 = vpack.c.bf16 %v284, %v284
      %vm286 = vcmask 257024
      %287 = vst.msk [vmem:[%s209] sm:$0xf] %vm286, %v285
      %p288 = scmp.lt.s32.totalorder %s15, 1
      %s289 = scalar_select %p288, %s15, 1
      %s290 = smul.addr %s289, 4
      %s291 = scalar_lea.vmem %s4, %s290
      // Predicated region
      $region37: #{a_call__.36} parent=35 // pred_check
        %p292 = pneg %p127
      $region38: #{a_call__.36} parent=35 // pred_check_branch
        %294 = sbr.rel (%p292) target = $region40
      $region39: #{a_call__.36} parent=35 // pred_region
        _
      $region40: #{a_call__.36} parent=35 // pred_fallthru
        _
    $region36: #{a_call__.36} parent=5 // pred_fallthru
      _
    %p295 = scmp.le.s32.totalorder 2, %s10
    // Predicated region
    $region41: #{a_call__.36} parent=5 // pred_check
      %p296 = pneg %p295
    $region42: #{a_call__.36} parent=5 // pred_check_branch
      %298 = sbr.rel (%p296) target = $region44
    $region43: #{a_call__.36} parent=5 // pred_region
      %s299 = ssub.s32 %s10, 2
      // Predicated region
      $region45: #{a_call__.36} parent=43 // pred_check
        %p300 = pneg %p133
      $region46: #{a_call__.36} parent=43 // pred_check_branch
        %302 = sbr.rel (%p300) target = $region48
      $region47: #{a_call__.36} parent=43 // pred_region
        %p303 = scmp.lt.s32.totalorder %s16, 1
        %s304 = scalar_select %p303, %s16, 1
        %s305 = smul.addr %s304, 4
        %s306 = scalar_lea.vmem %s4, %s305
      $region48: #{a_call__.36} parent=43 // pred_fallthru
        _
    $region44: #{a_call__.36} parent=5 // pred_fallthru
      _
  $region6: #{a_call__.36} parent=0 // loop_footer
    %s14 = sadd.s32 1, %s10
  $region7: #{a_call__.36} parent=0 // loop_footer_branch
    %9 = sbr.rel target = $region3
  $region8: #{a_call__.36} parent=0 // loop_exit
    _

// kernel: a_call__.37
$region0: #{a_call__.37}
  #allocation0 [shape = 'u32[]', space=smem, size = 0x4, offset = 0x4, fixed_abs, tag = 'smem constant byte address 0x4 - core index']
  #allocation1 [shape = 'u32[144,128]{1,0:T(1,128)}', space=vmem, size = 0x12000, scoped, tag = 'internal scratch']
  %s0 = inlined_call_operand.vmem [shape: bf16[2,8,38], index: 0, kind: input, shape index: {}]
  %s1 = inlined_call_operand.vmem [shape: bf16[8,24], index: 1, kind: input, shape index: {}]
  %s2 = inlined_call_operand.vmem [shape: f32[8,1], index: 2, kind: input, shape index: {}]
  %s3 = inlined_call_operand.vmem [shape: bf16[2,8,32], index: 3, kind: output, shape index: {}]
  %s4 = sld [smem:[#allocation0]]
  $region45: #{a_call__.37} parent=0
    _
  %s6 = ssub.s32 1, %s4
  %s7 = scalar_select 0, %s6, %s4
  loop: start=0, step=1, limit=4
  $region2: #{a_call__.37} parent=0 // loop_pre_header
    _
  $region3: #{a_call__.37} parent=0 // loop_header
    %s9 = sphi 0, %s13
    %p10 = scmp.ge.s32.totalorder %s9, 4
    %s19 = sphi 0, %s21
    %s22 = sphi 0, %s19
    %s23 = sphi 0, %s22
    %s39 = sphi 0, %s23
    %s43 = sphi 0, %s43
    %s45 = sphi 0, %s43
    %s46 = sphi 0, %s45
    %s60 = sphi 0, %s46
    %s64 = sphi 0, %s64
    %s66 = sphi 0, %s64
    %s67 = sphi 0, %s66
    %s81 = sphi 0, %s67
    %s87 = sphi 0, %s89
    %s90 = sphi 0, %s87
    %s91 = sphi 0, %s90
    %s107 = sphi 0, %s91
  $region4: #{a_call__.37} parent=0 // loop_header_branch
    %12 = sbr.rel (%p10) target = $region8
  $region5: #{a_call__.37} parent=0 // loop_body
    %s14 = ssub.s32 %s9, 1
    %s15 = ssub.s32 %s9, 2
    %s16 = sadd.s32 %s9, 1
    %s17 = ssub.s32 %s9, %s16
    %p18 = scmp.eq.s32.totalorder %s17, 0
    %s20 = sadd.s32 %s19, 1
    %s21 = scalar_select %p18, %s19, %s20
    %p24 = pneg %p18
    %p25 = scmp.eq.s32.totalorder %s9, 1
    %p26 = por %p24, %p25
    %p27 = scmp.ne.s32.totalorder %s19, %s22
    %p28 = scmp.eq.s32.totalorder %s9, 0
    %p29 = por %p27, %p28
    %p30 = scmp.ne.s32.totalorder %s19, %s22
    %p31 = scmp.eq.s32.totalorder %s14, 1
    %p32 = por %p30, %p31
    %p33 = scmp.ne.s32.totalorder %s22, %s23
    %p34 = scmp.eq.s32.totalorder %s14, 0
    %p35 = por %p33, %p34
    %p36 = scmp.ne.s32.totalorder %s22, %s23
    %p37 = scmp.eq.s32.totalorder %s15, 1
    %p38 = por %p36, %p37
    %p40 = scmp.ne.s32.totalorder %s23, %s39
    %p41 = scmp.eq.s32.totalorder %s15, 0
    %p42 = por %p40, %p41
    %s44 = sadd.s32 %s43, 1
    %p47 = scmp.eq.s32.totalorder %s9, 1
    %p48 = scmp.ne.s32.totalorder %s43, %s45
    %p49 = scmp.eq.s32.totalorder %s9, 0
    %p50 = por %p48, %p49
    %p51 = scmp.ne.s32.totalorder %s43, %s45
    %p52 = scmp.eq.s32.totalorder %s14, 1
    %p53 = por %p51, %p52
    %p54 = scmp.ne.s32.totalorder %s45, %s46
    %p55 = scmp.eq.s32.totalorder %s14, 0
    %p56 = por %p54, %p55
    %p57 = scmp.ne.s32.totalorder %s45, %s46
    %p58 = scmp.eq.s32.totalorder %s15, 1
    %p59 = por %p57, %p58
    %p61 = scmp.ne.s32.totalorder %s46, %s60
    %p62 = scmp.eq.s32.totalorder %s15, 0
    %p63 = por %p61, %p62
    %s65 = sadd.s32 %s64, 1
    %p68 = scmp.eq.s32.totalorder %s9, 1
    %p69 = scmp.ne.s32.totalorder %s64, %s66
    %p70 = scmp.eq.s32.totalorder %s9, 0
    %p71 = por %p69, %p70
    %p72 = scmp.ne.s32.totalorder %s64, %s66
    %p73 = scmp.eq.s32.totalorder %s14, 1
    %p74 = por %p72, %p73
    %p75 = scmp.ne.s32.totalorder %s66, %s67
    %p76 = scmp.eq.s32.totalorder %s14, 0
    %p77 = por %p75, %p76
    %p78 = scmp.ne.s32.totalorder %s66, %s67
    %p79 = scmp.eq.s32.totalorder %s15, 1
    %p80 = por %p78, %p79
    %p82 = scmp.ne.s32.totalorder %s67, %s81
    %p83 = scmp.eq.s32.totalorder %s15, 0
    %p84 = por %p82, %p83
    %s85 = ssub.s32 %s9, %s16
    %p86 = scmp.eq.s32.totalorder %s85, 0
    %s88 = sadd.s32 %s87, 1
    %s89 = scalar_select %p86, %s87, %s88
    %p92 = pneg %p86
    %p93 = scmp.eq.s32.totalorder %s9, 1
    %p94 = por %p92, %p93
    %p95 = scmp.ne.s32.totalorder %s87, %s90
    %p96 = scmp.eq.s32.totalorder %s9, 0
    %p97 = por %p95, %p96
    %p98 = scmp.ne.s32.totalorder %s87, %s90
    %p99 = scmp.eq.s32.totalorder %s14, 1
    %p100 = por %p98, %p99
    %p101 = scmp.ne.s32.totalorder %s90, %s91
    %p102 = scmp.eq.s32.totalorder %s14, 0
    %p103 = por %p101, %p102
    %p104 = scmp.ne.s32.totalorder %s90, %s91
    %p105 = scmp.eq.s32.totalorder %s15, 1
    %p106 = por %p104, %p105
    %p108 = scmp.ne.s32.totalorder %s91, %s107
    %p109 = scmp.eq.s32.totalorder %s15, 0
    %p110 = por %p108, %p109
    %p111 = scmp.le.s32.totalorder 1, %s9
    %p112 = scmp.lt.s32.totalorder %s9, 3
    %p113 = pnand %p111, %p112
    %p114 = pneg %p113
    // Predicated region
    $region9: #{a_call__.37} parent=5 // pred_check
      _
    $region10: #{a_call__.37} parent=5 // pred_check_branch
      %116 = sbr.rel (%p113) target = $region12
    $region11: #{a_call__.37} parent=5 // pred_region
      %s117 = ssub.s32 %s9, 1
      // Predicated region
      $region13: #{a_call__.37} parent=11 // pred_check
        %p118 = pneg %p56
      $region14: #{a_call__.37} parent=11 // pred_check_branch
        %120 = sbr.rel (%p118) target = $region16
      $region15: #{a_call__.37} parent=11 // pred_region
        _
      $region16: #{a_call__.37} parent=11 // pred_fallthru
        _
      // Predicated region
      $region17: #{a_call__.37} parent=11 // pred_check
        %p121 = pneg %p77
      $region18: #{a_call__.37} parent=11 // pred_check_branch
        %123 = sbr.rel (%p121) target = $region20
      $region19: #{a_call__.37} parent=11 // pred_region
        _
      $region20: #{a_call__.37} parent=11 // pred_fallthru
        _
    $region12: #{a_call__.37} parent=5 // pred_fallthru
      _
    %p124 = scmp.lt.s32.totalorder %s9, 2
    // Predicated region
    $region21: #{a_call__.37} parent=5 // pred_check
      %p125 = pneg %p124
    $region22: #{a_call__.37} parent=5 // pred_check_branch
      %127 = sbr.rel (%p125) target = $region24
    $region23: #{a_call__.37} parent=5 // pred_region
      // Predicated region
      $region25: #{a_call__.37} parent=23 // pred_check
        %p128 = pneg %p29
      $region26: #{a_call__.37} parent=23 // pred_check_branch
        %130 = sbr.rel (%p128) target = $region28
      $region27: #{a_call__.37} parent=23 // pred_region
        %p131 = scmp.lt.s32.totalorder %s9, 1
        %s132 = scalar_select %p131, %s9, 1
        %s133 = smul.addr %s132, 4
        %s134 = scalar_lea.vmem %s0, %s133
      $region28: #{a_call__.37} parent=23 // pred_fallthru
        _
    $region24: #{a_call__.37} parent=5 // pred_fallthru
      _
    %p135 = scmp.le.s32.totalorder 1, %s9
    %p136 = scmp.lt.s32.totalorder %s9, 3
    %p137 = pnand %p135, %p136
    %p138 = pneg %p137
    // Predicated region
    $region29: #{a_call__.37} parent=5 // pred_check
      _
    $region30: #{a_call__.37} parent=5 // pred_check_branch
      %140 = sbr.rel (%p137) target = $region32
    $region31: #{a_call__.37} parent=5 // pred_region
      %s141 = ssub.s32 %s9, 1
      %p142 = scmp.lt.s32.totalorder %s14, 1
      %s143 = scalar_select %p142, %s14, 1
      %s144 = smul.addr %s143, 4
      %s145 = scalar_lea.vmem %s0, %s144
      %p146 = pneg %p35
      %p147 = pneg %p32
      %p148 = pneg %p56
      %p149 = pneg %p53
      %p150 = pneg %p77
      %p151 = pneg %p74
      %p152 = pneg %p103
      %p153 = pneg %p100
      %p154 = scmp.lt.s32.totalorder %s14, 1
      %s155 = scalar_select %p154, %s14, 1
      %s156 = smul.addr %s155, 4
      %s157 = scalar_lea.vmem %s3, %s156
      %p158 = scmp.lt.s32.totalorder %s14, 1
      %s159 = scalar_select %p158, %s14, 1
      %s160 = smul.addr %s159, 4
      %s161 = scalar_lea.vmem %s0, %s160
      %p162 = scmp.lt.s32.totalorder %s14, 1
      %s163 = scalar_select %p162, %s14, 1
      %s164 = smul.addr %s163, 4
      %s165 = scalar_lea.vmem %s3, %s164
      %v167 = vld [vmem:[%s161] sm:$0xf]
      %v168 = vunpack.c.l.bf16 %v167
      %vm169 = vcmp.gt.f32.partialorder %v168, 0.0
      %v170 = vmul.f32 %v168, 0.1
      %v171 = vsel %vm169, %v168, %v170
      %v172 = vpack.c.bf16 %v171, %v171
      %v174 = vrot.slane %v172, 4
      %175 = vrot.lane.b32.xlu0 %v174, 125
      %v176 = vpop.permute.xlu0 %175
      %177 = vrot.lane.b32.xlu0 %v172, 122
      %v178 = vpop.permute.xlu0 %177
      %vm179 = vcmask 1043456
      %v182 = vsel %vm179, %v172, %v176
      %v184 = vld [vmem:[%s1] sm:$0xf]
      %v185 = vld [vmem:[%s2] sm:$0xff]
      %187 = vset.pattern.permute.xlu0 0
      %188 = vperm.xlu0 %187, %v185
      %v189 = vpop.permute.xlu0 %188
      %vm191 = vcmask 195584
      %v193 = vsel %vm191, %v184, 0
      %v196 = vsel %vm179, %v178, 0
      %198 = vmatprep.subr.bf16.mxu0 0
      %199 = vmatpush1.bf16.msra.mxu0 0
      %200 = vmatprep.subr.bf16.mxu0 0
      %201 = vmatpush1.bf16.msra.mxu0 0
      %202 = vmatprep.subr.bf16.mxu0 0
      %203 = vmatpush1.bf16.msra.mxu0 0
      %204 = vmatprep.subr.bf16.mxu0 0
      %205 = vmatpush1.bf16.msra.mxu0 0
      %206 = vmatprep.subr.bf16.mxu0 0
      %207 = vmatpush1.bf16.msra.mxu0 0
      %208 = vmatprep.subr.bf16.mxu0 0
      %209 = vmatpush1.bf16.msra.mxu0 0
      %210 = vmatprep.subr.bf16.mxu0 0
      %211 = vmatpush1.bf16.msra.mxu0 %v196
      %212 = vmatprep.subr.bf16.mxu0 0
      %213 = vmatpush1.bf16.msra.mxu0 %v182
      %214 = vmatprep.subr.bf16.mxu0 0
      %215 = vmatpush2.bf16.msra.mxu0 0
      %216 = vmatprep.subr.bf16.mxu0 0
      %217 = vmatpush2.bf16.msra.mxu0 0
      %218 = vmatprep.subr.bf16.mxu0 0
      %219 = vmatpush2.bf16.msra.mxu0 0
      %220 = vmatprep.subr.bf16.mxu0 0
      %221 = vmatpush2.bf16.msra.mxu0 0
      %222 = vmatprep.subr.bf16.mxu0 0
      %223 = vmatpush2.bf16.msra.mxu0 0
      %224 = vmatprep.subr.bf16.mxu0 0
      %225 = vmatpush2.bf16.msra.mxu0 0
      %226 = vmatprep.subr.bf16.mxu0 0
      %227 = vmatpush2.bf16.msra.mxu0 0
      %228 = vmatprep.subr.bf16.mxu0 0
      %229 = vmatpush2.bf16.msra.mxu0 0
      %230 = vmatprep.mubr.bf16.mxu0 0
      %231 = vmatmul.mubr.bf16.gmra.mxu0 %v193
      %v232 = vpop.f32.mrf.mxu0
      %v233 = vadd.f32 %v189, %v232
      %v234 = vpop.f32.mrf.mxu0
      %v235 = vpop.f32.mrf.mxu0
      %v236 = vpop.f32.mrf.mxu0
      %237 = vdwg.mxu0
      %v238 = vpack.c.bf16 %v233, %v233
      %vm239 = vcmask 257024
      %240 = vst.msk [vmem:[%s165] sm:$0xf] %vm239, %v238
      %p241 = scmp.lt.s32.totalorder %s14, 1
      %s242 = scalar_select %p241, %s14, 1
      %s243 = smul.addr %s242, 4
      %s244 = scalar_lea.vmem %s3, %s243
      // Predicated region
      $region33: #{a_call__.37} parent=31 // pred_check
        %p245 = pneg %p100
      $region34: #{a_call__.37} parent=31 // pred_check_branch
        %247 = sbr.rel (%p245) target = $region36
      $region35: #{a_call__.37} parent=31 // pred_region
        _
      $region36: #{a_call__.37} parent=31 // pred_fallthru
        _
    $region32: #{a_call__.37} parent=5 // pred_fallthru
      _
    %p248 = scmp.le.s32.totalorder 2, %s9
    // Predicated region
    $region37: #{a_call__.37} parent=5 // pred_check
      %p249 = pneg %p248
    $region38: #{a_call__.37} parent=5 // pred_check_branch
      %251 = sbr.rel (%p249) target = $region40
    $region39: #{a_call__.37} parent=5 // pred_region
      %s252 = ssub.s32 %s9, 2
      // Predicated region
      $region41: #{a_call__.37} parent=39 // pred_check
        %p253 = pneg %p106
      $region42: #{a_call__.37} parent=39 // pred_check_branch
        %255 = sbr.rel (%p253) target = $region44
      $region43: #{a_call__.37} parent=39 // pred_region
        %p256 = scmp.lt.s32.totalorder %s15, 1
        %s257 = scalar_select %p256, %s15, 1
        %s258 = smul.addr %s257, 4
        %s259 = scalar_lea.vmem %s3, %s258
      $region44: #{a_call__.37} parent=39 // pred_fallthru
        _
    $region40: #{a_call__.37} parent=5 // pred_fallthru
      _
  $region6: #{a_call__.37} parent=0 // loop_footer
    %s13 = sadd.s32 1, %s9
  $region7: #{a_call__.37} parent=0 // loop_footer_branch
    %8 = sbr.rel target = $region3
  $region8: #{a_call__.37} parent=0 // loop_exit
    _

// kernel: a_call__.43
$region0: #{a_call__.43}
  #allocation0 [shape = 'u32[]', space=smem, size = 0x4, offset = 0x4, fixed_abs, tag = 'smem constant byte address 0x4 - core index']
  #allocation1 [shape = 'u32[144,128]{1,0:T(1,128)}', space=vmem, size = 0x12000, scoped, tag = 'internal scratch']
  #allocation2 [shape = 'f32[1,1]{1,0:T(1,128)S(1)}', space=vmem, size = 0x200, scoped, tag = 'scoped memory for a_call__.43']
  %s0 = inlined_call_operand.vmem [shape: bf16[2,8,38], index: 0, kind: input, shape index: {}]
  %s1 = inlined_call_operand.vmem [shape: bf16[1,56], index: 1, kind: input, shape index: {}]
  %s2 = inlined_call_operand.<no memory space> [shape: f32[1,1], index: 2, kind: input, shape index: {}]
  %s3 = inlined_call_operand.hbm [shape: f32[2,1,32], index: 3, kind: output, shape index: {}]
  %s4 = sld [smem:[#allocation0]]
  $region45: #{a_call__.43} parent=0
    _
  %s6 = ssub.s32 1, %s4
  %s7 = scalar_select 0, %s6, %s4
  %v8 = vstv %s2
  %9 = vst [vmem:[#allocation2] sm:$0x1] %v8
  $region1: #{a_call__.43} parent=0
    #allocation3 [shape = 'u8[1024]{0}', space=vmem, size = 0x400, scoped, tag = 'output window, operand 0']
    #allocation4 [shape = 's32[2]{0}', space=sflag, size = 0x8, scoped, tag = 'scoped memory for a_call__.43']
    %10 = vsyncpa [#allocation4], 0
    %s11 = scalar_lea.sflag [#allocation4], 1
    %12 = vsyncpa %s11, 0
    loop: start=0, step=1, limit=4
    $region2: #{a_call__.43} parent=1 // loop_pre_header
      _
    $region3: #{a_call__.43} parent=1 // loop_header
      %s14 = sphi 0, %s18
      %p15 = scmp.ge.s32.totalorder %s14, 4
      %s24 = sphi 0, %s26
      %s27 = sphi 0, %s24
      %s28 = sphi 0, %s27
      %s44 = sphi 0, %s28
      %s48 = sphi 0, %s48
      %s50 = sphi 0, %s48
      %s51 = sphi 0, %s50
      %s65 = sphi 0, %s51
      %s69 = sphi 0, %s69
      %s71 = sphi 0, %s69
      %s72 = sphi 0, %s71
      %s86 = sphi 0, %s72
      %s92 = sphi 0, %s94
      %s95 = sphi 0, %s92
      %s96 = sphi 0, %s95
      %s112 = sphi 0, %s96
    $region4: #{a_call__.43} parent=1 // loop_header_branch
      %17 = sbr.rel (%p15) target = $region8
    $region5: #{a_call__.43} parent=1 // loop_body
      %s19 = ssub.s32 %s14, 1
      %s20 = ssub.s32 %s14, 2
      %s21 = sadd.s32 %s14, 1
      %s22 = ssub.s32 %s14, %s21
      %p23 = scmp.eq.s32.totalorder %s22, 0
      %s25 = sadd.s32 %s24, 1
      %s26 = scalar_select %p23, %s24, %s25
      %p29 = pneg %p23
      %p30 = scmp.eq.s32.totalorder %s14, 1
      %p31 = por %p29, %p30
      %p32 = scmp.ne.s32.totalorder %s24, %s27
      %p33 = scmp.eq.s32.totalorder %s14, 0
      %p34 = por %p32, %p33
      %p35 = scmp.ne.s32.totalorder %s24, %s27
      %p36 = scmp.eq.s32.totalorder %s19, 1
      %p37 = por %p35, %p36
      %p38 = scmp.ne.s32.totalorder %s27, %s28
      %p39 = scmp.eq.s32.totalorder %s19, 0
      %p40 = por %p38, %p39
      %p41 = scmp.ne.s32.totalorder %s27, %s28
      %p42 = scmp.eq.s32.totalorder %s20, 1
      %p43 = por %p41, %p42
      %p45 = scmp.ne.s32.totalorder %s28, %s44
      %p46 = scmp.eq.s32.totalorder %s20, 0
      %p47 = por %p45, %p46
      %s49 = sadd.s32 %s48, 1
      %p52 = scmp.eq.s32.totalorder %s14, 1
      %p53 = scmp.ne.s32.totalorder %s48, %s50
      %p54 = scmp.eq.s32.totalorder %s14, 0
      %p55 = por %p53, %p54
      %p56 = scmp.ne.s32.totalorder %s48, %s50
      %p57 = scmp.eq.s32.totalorder %s19, 1
      %p58 = por %p56, %p57
      %p59 = scmp.ne.s32.totalorder %s50, %s51
      %p60 = scmp.eq.s32.totalorder %s19, 0
      %p61 = por %p59, %p60
      %p62 = scmp.ne.s32.totalorder %s50, %s51
      %p63 = scmp.eq.s32.totalorder %s20, 1
      %p64 = por %p62, %p63
      %p66 = scmp.ne.s32.totalorder %s51, %s65
      %p67 = scmp.eq.s32.totalorder %s20, 0
      %p68 = por %p66, %p67
      %s70 = sadd.s32 %s69, 1
      %p73 = scmp.eq.s32.totalorder %s14, 1
      %p74 = scmp.ne.s32.totalorder %s69, %s71
      %p75 = scmp.eq.s32.totalorder %s14, 0
      %p76 = por %p74, %p75
      %p77 = scmp.ne.s32.totalorder %s69, %s71
      %p78 = scmp.eq.s32.totalorder %s19, 1
      %p79 = por %p77, %p78
      %p80 = scmp.ne.s32.totalorder %s71, %s72
      %p81 = scmp.eq.s32.totalorder %s19, 0
      %p82 = por %p80, %p81
      %p83 = scmp.ne.s32.totalorder %s71, %s72
      %p84 = scmp.eq.s32.totalorder %s20, 1
      %p85 = por %p83, %p84
      %p87 = scmp.ne.s32.totalorder %s72, %s86
      %p88 = scmp.eq.s32.totalorder %s20, 0
      %p89 = por %p87, %p88
      %s90 = ssub.s32 %s14, %s21
      %p91 = scmp.eq.s32.totalorder %s90, 0
      %s93 = sadd.s32 %s92, 1
      %s94 = scalar_select %p91, %s92, %s93
      %p97 = pneg %p91
      %p98 = scmp.eq.s32.totalorder %s14, 1
      %p99 = por %p97, %p98
      %p100 = scmp.ne.s32.totalorder %s92, %s95
      %p101 = scmp.eq.s32.totalorder %s14, 0
      %p102 = por %p100, %p101
      %p103 = scmp.ne.s32.totalorder %s92, %s95
      %p104 = scmp.eq.s32.totalorder %s19, 1
      %p105 = por %p103, %p104
      %p106 = scmp.ne.s32.totalorder %s95, %s96
      %p107 = scmp.eq.s32.totalorder %s19, 0
      %p108 = por %p106, %p107
      %p109 = scmp.ne.s32.totalorder %s95, %s96
      %p110 = scmp.eq.s32.totalorder %s20, 1
      %p111 = por %p109, %p110
      %p113 = scmp.ne.s32.totalorder %s96, %s112
      %p114 = scmp.eq.s32.totalorder %s20, 0
      %p115 = por %p113, %p114
      %p116 = scmp.le.s32.totalorder 1, %s14
      %p117 = scmp.lt.s32.totalorder %s14, 3
      %p118 = pnand %p116, %p117
      %p119 = pneg %p118
      // Predicated region
      $region9: #{a_call__.43} parent=5 // pred_check
        _
      $region10: #{a_call__.43} parent=5 // pred_check_branch
        %121 = sbr.rel (%p118) target = $region12
      $region11: #{a_call__.43} parent=5 // pred_region
        %s122 = ssub.s32 %s14, 1
        // Predicated region
        $region13: #{a_call__.43} parent=11 // pred_check
          %p123 = pneg %p61
        $region14: #{a_call__.43} parent=11 // pred_check_branch
          %125 = sbr.rel (%p123) target = $region16
        $region15: #{a_call__.43} parent=11 // pred_region
          _
        $region16: #{a_call__.43} parent=11 // pred_fallthru
          _
        // Predicated region
        $region17: #{a_call__.43} parent=11 // pred_check
          %p126 = pneg %p82
        $region18: #{a_call__.43} parent=11 // pred_check_branch
          %128 = sbr.rel (%p126) target = $region20
        $region19: #{a_call__.43} parent=11 // pred_region
          _
        $region20: #{a_call__.43} parent=11 // pred_fallthru
          _
      $region12: #{a_call__.43} parent=5 // pred_fallthru
        _
      %p129 = scmp.lt.s32.totalorder %s14, 2
      // Predicated region
      $region21: #{a_call__.43} parent=5 // pred_check
        %p130 = pneg %p129
      $region22: #{a_call__.43} parent=5 // pred_check_branch
        %132 = sbr.rel (%p130) target = $region24
      $region23: #{a_call__.43} parent=5 // pred_region
        // Predicated region
        $region25: #{a_call__.43} parent=23 // pred_check
          %p133 = pneg %p34
        $region26: #{a_call__.43} parent=23 // pred_check_branch
          %135 = sbr.rel (%p133) target = $region28
        $region27: #{a_call__.43} parent=23 // pred_region
          %p136 = scmp.lt.s32.totalorder %s14, 1
          %s137 = scalar_select %p136, %s14, 1
          %s138 = smul.addr %s137, 4
          %s139 = scalar_lea.vmem %s0, %s138
        $region28: #{a_call__.43} parent=23 // pred_fallthru
          _
      $region24: #{a_call__.43} parent=5 // pred_fallthru
        _
      %p140 = scmp.le.s32.totalorder 1, %s14
      %p141 = scmp.lt.s32.totalorder %s14, 3
      %p142 = pnand %p140, %p141
      %p143 = pneg %p142
      // Predicated region
      $region29: #{a_call__.43} parent=5 // pred_check
        _
      $region30: #{a_call__.43} parent=5 // pred_check_branch
        %145 = sbr.rel (%p142) target = $region32
      $region31: #{a_call__.43} parent=5 // pred_region
        %s146 = ssub.s32 %s14, 1
        %p147 = scmp.lt.s32.totalorder %s19, 1
        %s148 = scalar_select %p147, %s19, 1
        %s149 = smul.addr %s148, 4
        %s150 = scalar_lea.vmem %s0, %s149
        %p151 = pneg %p40
        %p152 = pneg %p37
        %p153 = pneg %p61
        %p154 = pneg %p58
        %p155 = pneg %p82
        %p156 = pneg %p79
        %p157 = pneg %p108
        %p158 = pneg %p105
        %s159 = sand.u32 %s95, 1
        %s160 = scalar_lea.sflag [#allocation4], %s159
        %s161 = sand.u32 %s95, 1
        %s162 = scalar_lea.vmem [#allocation3], %s161
        %p163 = scmp.lt.s32.totalorder %s19, 1
        %s164 = scalar_select %p163, %s19, 1
        %s165 = smul.addr %s164, 4
        %s166 = scalar_lea.vmem %s0, %s165
        %v168 = vld [vmem:[%s166] sm:$0xf]
        %v169 = vunpack.c.l.bf16 %v168
        %vm170 = vcmp.gt.f32.partialorder %v169, 0.0
        %v171 = vmul.f32 %v169, 0.1
        %v172 = vsel %vm170, %v169, %v171
        %v173 = vpack.c.bf16 %v172, %v172
        %v175 = vrot.slane %v173, 4
        %176 = vrot.lane.b32.xlu0 %v175, 127
        %v177 = vpop.permute.xlu0 %176
        %178 = vrot.lane.b32.xlu0 %v173, 126
        %v179 = vpop.permute.xlu0 %178
        %180 = vrot.lane.b32.xlu0 %v175, 125
        %v181 = vpop.permute.xlu0 %180
        %182 = vrot.lane.b32.xlu0 %v173, 124
        %v183 = vpop.permute.xlu0 %182
        %184 = vrot.lane.b32.xlu0 %v175, 123
        %v185 = vpop.permute.xlu0 %184
        %186 = vrot.lane.b32.xlu0 %v173, 122
        %v187 = vpop.permute.xlu0 %186
        %vm188 = vcmask 1043456
        %v191 = vsel %vm188, %v173, %v177
        %v195 = vsel %vm188, %v179, %v181
        %v199 = vsel %vm188, %v183, %v185
        %v201 = vld [vmem:[%s1] sm:$0x1]
        %v202 = vld [vmem:[#allocation2] sm:$0x1]
        %204 = vset.pattern.permute.xlu0 0
        %205 = vperm.xlu0 %204, %v202
        %v206 = vpop.permute.xlu0 %205
        %v208 = vlaneseq
        %v209 = vshrl.u32 %v208, 7
        %v210 = vsub.s32 0, %v209
        %v211 = vrot.slane %v206, %v210
        %vm212 = vcmask 457728
        %v214 = vsel %vm212, %v201, 0
        %v217 = vsel %vm188, %v187, 0
        %219 = vmatprep.subr.bf16.mxu0 0
        %220 = vmatpush1.bf16.msra.mxu0 0
        %221 = vmatprep.subr.bf16.mxu0 0
        %222 = vmatpush1.bf16.msra.mxu0 0
        %223 = vmatprep.subr.bf16.mxu0 0
        %224 = vmatpush1.bf16.msra.mxu0 0
        %225 = vmatprep.subr.bf16.mxu0 0
        %226 = vmatpush1.bf16.msra.mxu0 0
        %227 = vmatprep.subr.bf16.mxu0 0
        %228 = vmatpush1.bf16.msra.mxu0 %v217
        %229 = vmatprep.subr.bf16.mxu0 0
        %230 = vmatpush1.bf16.msra.mxu0 %v199
        %231 = vmatprep.subr.bf16.mxu0 0
        %232 = vmatpush1.bf16.msra.mxu0 %v195
        %233 = vmatprep.subr.bf16.mxu0 0
        %234 = vmatpush1.bf16.msra.mxu0 %v191
        %235 = vmatprep.subr.bf16.mxu0 0
        %236 = vmatpush2.bf16.msra.mxu0 0
        %237 = vmatprep.subr.bf16.mxu0 0
        %238 = vmatpush2.bf16.msra.mxu0 0
        %239 = vmatprep.subr.bf16.mxu0 0
        %240 = vmatpush2.bf16.msra.mxu0 0
        %241 = vmatprep.subr.bf16.mxu0 0
        %242 = vmatpush2.bf16.msra.mxu0 0
        %243 = vmatprep.subr.bf16.mxu0 0
        %244 = vmatpush2.bf16.msra.mxu0 0
        %245 = vmatprep.subr.bf16.mxu0 0
        %246 = vmatpush2.bf16.msra.mxu0 0
        %247 = vmatprep.subr.bf16.mxu0 0
        %248 = vmatpush2.bf16.msra.mxu0 0
        %249 = vmatprep.subr.bf16.mxu0 0
        %250 = vmatpush2.bf16.msra.mxu0 0
        %251 = vmatprep.mubr.bf16.mxu0 0
        %252 = vmatmul.mubr.bf16.gmra.mxu0 %v214
        %v253 = vpop.f32.mrf.mxu0
        %v254 = vadd.f32 %v211, %v253
        %v255 = vpop.f32.mrf.mxu0
        %v256 = vpop.f32.mrf.mxu0
        %v257 = vpop.f32.mrf.mxu0
        %258 = vdwg.mxu0
        %v259 = vtanh.pop %v254
        %vm260 = vcmask 253952
        %261 = vst.msk [vmem:[%s162] sm:$0x1] %vm260, %v259
        %s262 = sand.u32 %s95, 1
        %s263 = scalar_lea.sflag [#allocation4], %s262
        %s264 = sand.u32 %s95, 1
        %s265 = scalar_lea.vmem [#allocation3], %s264
        // Predicated region
        $region33: #{a_call__.43} parent=31 // pred_check
          %p266 = pneg %p105
        $region34: #{a_call__.43} parent=31 // pred_check_branch
          %268 = sbr.rel (%p266) target = $region36
        $region35: #{a_call__.43} parent=31 // pred_region
          %s270 = ssub.s32 16, 16
          %271 = vsyncadd %s263, %s270
          %s272 = smul.addr %s19, 16
          %s273 = scalar_lea.hbm %s3, %s272
          %s275 = sshll.u32 %s265, 4
          %s276 = int_to_ptr.vmem [resolvable:$true] %s275
          %278 = dma.vmem_to_hbm [thread:$0]  %s276, 16, %s273, %s263
        $region36: #{a_call__.43} parent=31 // pred_fallthru
          _
      $region32: #{a_call__.43} parent=5 // pred_fallthru
        _
      %p279 = scmp.le.s32.totalorder 2, %s14
      // Predicated region
      $region37: #{a_call__.43} parent=5 // pred_check
        %p280 = pneg %p279
      $region38: #{a_call__.43} parent=5 // pred_check_branch
        %282 = sbr.rel (%p280) target = $region40
      $region39: #{a_call__.43} parent=5 // pred_region
        %s283 = ssub.s32 %s14, 2
        // Predicated region
        $region41: #{a_call__.43} parent=39 // pred_check
          %p284 = pneg %p111
        $region42: #{a_call__.43} parent=39 // pred_check_branch
          %286 = sbr.rel (%p284) target = $region44
        $region43: #{a_call__.43} parent=39 // pred_region
          %s287 = sand.u32 %s96, 1
          %s288 = scalar_lea.sflag [#allocation4], %s287
          %s289 = sand.u32 %s96, 1
          %s290 = scalar_lea.vmem [#allocation3], %s289
          %291 = dma.done %s288, 16
        $region44: #{a_call__.43} parent=39 // pred_fallthru
          _
      $region40: #{a_call__.43} parent=5 // pred_fallthru
        _
    $region6: #{a_call__.43} parent=1 // loop_footer
      %s18 = sadd.s32 1, %s14
    $region7: #{a_call__.43} parent=1 // loop_footer_branch
      %13 = sbr.rel target = $region3
    $region8: #{a_call__.43} parent=1 // loop_exit
      _
    %292 = vsyncpa [#allocation4], 1
    %s293 = scalar_lea.sflag [#allocation4], 1
    %294 = vsyncpa %s293, 1

</llo_original>
